<compile_context>
chip_gen: v5e
topology: v5e:2x2
jax: 0.10.0
libtpu: 0.0.40
codegen_flags: <defaults>
</compile_context>

<pallas_src>
import jax
import jax.numpy as jnp
from jax.experimental import pallas as pl
from jax.experimental.pallas import tpu as pltpu

NEG_SLOPE = 0.2
BN_EPS = 1e-5


# -----------------------------------------------------------------------------
# Kernel 1 (per feature block, grid=(1,)):
#   Conv3x3 as a single im2col matmul -> BatchNorm (batch stats) -> MaxPool 2x2
#   -> LeakyReLU(0.2)
# -----------------------------------------------------------------------------
def _block_kernel(p_ref, w_ref, b_ref, g_ref, bt_ref, o_ref, y_ref):
    # p_ref  : (M, K)     im2col patches, M = N*H*W, K = 9*Cin,
    #                     rows ordered (n, hh, wh, 2x2-pool-cell)
    # w_ref  : (K, C)     conv weight reshaped in the wrapper
    # b_ref, g_ref, bt_ref : (1, C)   conv bias, BN gamma, BN beta
    # o_ref  : (M//4, C)  pooled + activated output, rows = (n, hh, wh)
    # y_ref  : (M, C)     VMEM scratch holding the post-BN activation
    M = p_ref.shape[0]
    Mp = o_ref.shape[0]

    # Conv: one MXU matmul, accumulation stays inside the MXU.
    acc = jnp.dot(p_ref[...], w_ref[...],
                  preferred_element_type=jnp.float32) + b_ref[...]

    # Training-mode BatchNorm statistics over the whole batch (per channel),
    # centered two-pass variance, biased (divide by M) like PyTorch training BN.
    inv_m = 1.0 / M
    mean = jnp.sum(acc, axis=0, keepdims=True) * inv_m           # (1, C)
    cent = acc - mean
    var = jnp.sum(cent * cent, axis=0, keepdims=True) * inv_m    # (1, C)
    scale = g_ref[...] * jax.lax.rsqrt(var + BN_EPS)
    y_ref[...] = cent * scale + bt_ref[...]                      # (M, C)

    # 2x2 max-pool: the 4 taps of each output pixel are 4 consecutive rows,
    # so tap `p` for all outputs is a single stride-4 row read.
    m = jnp.maximum(
        jnp.maximum(y_ref[pl.ds(0, Mp, 4), :], y_ref[pl.ds(1, Mp, 4), :]),
        jnp.maximum(y_ref[pl.ds(2, Mp, 4), :], y_ref[pl.ds(3, Mp, 4), :]))

    # LeakyReLU(0.2)
    o_ref[...] = jnp.where(m >= 0.0, m, NEG_SLOPE * m)


def _im2col_pool_major(x_nhwc):
    """3x3 / pad-1 im2col; rows ordered (n, hh, wh, 2x2-pool-cell)."""
    N, H, W, Cin = x_nhwc.shape
    Hh, Wh = H // 2, W // 2
    K = 9 * Cin
    xp = jnp.pad(x_nhwc, ((0, 0), (1, 1), (1, 1), (0, 0)))
    cols = [xp[:, dh:dh + H, dw:dw + W, :]
            for dh in range(3) for dw in range(3)]
    p = jnp.concatenate(cols, axis=-1)                       # (N, H, W, 9*Cin)
    # h = 2*hh + ph, w = 2*wh + pw  ->  row order (n, hh, wh, ph, pw)
    p = p.reshape(N, Hh, 2, Wh, 2, K).transpose(0, 1, 3, 2, 4, 5)
    return p.reshape(N * H * W, K)


def base_block_apply(x_nhwc, blk):
    w, b, gamma, beta = blk            # w: (3,3,Cin,Cout); b/gamma/beta: (Cout,)
    N, H, W, Cin = x_nhwc.shape
    Cout = w.shape[-1]
    Hh, Wh = H // 2, W // 2
    M, K = N * H * W, 9 * Cin

    patches = _im2col_pool_major(x_nhwc)         # (M, K)
    wmat = w.reshape(K, Cout)                    # matches im2col concat order

    out2d = pl.pallas_call(
        _block_kernel,
        out_shape=jax.ShapeDtypeStruct((M // 4, Cout), jnp.float32),
        grid=(1,),
        in_specs=[
            pl.BlockSpec((M, K), lambda i: (0, 0)),
            pl.BlockSpec((K, Cout), lambda i: (0, 0)),
            pl.BlockSpec((1, Cout), lambda i: (0, 0)),
            pl.BlockSpec((1, Cout), lambda i: (0, 0)),
            pl.BlockSpec((1, Cout), lambda i: (0, 0)),
        ],
        out_specs=pl.BlockSpec((M // 4, Cout), lambda i: (0, 0)),
        scratch_shapes=[pltpu.VMEM((M, Cout), jnp.float32)],
        compiler_params=pltpu.CompilerParams(
            dimension_semantics=("arbitrary",)),
    )(patches, wmat,
      b.reshape(1, Cout), gamma.reshape(1, Cout), beta.reshape(1, Cout))

    return out2d.reshape(N, Hh, Wh, Cout)        # rows were (n, hh, wh)


# -----------------------------------------------------------------------------
# Kernel 2: classifier head  Linear(F,1024) -> LeakyReLU -> Linear(1024,1)
# -----------------------------------------------------------------------------
def _mlp_kernel(x_ref, w1_ref, b1_ref, w2_ref, b2_ref, o_ref):
    h = jnp.dot(x_ref[...], w1_ref[...],
                preferred_element_type=jnp.float32) + b1_ref[...]
    h = jnp.where(h >= 0.0, h, NEG_SLOPE * h)
    # 1024 -> 1 on the VPU: avoids a lane-padded (1024, 1) MXU tile.
    o_ref[...] = jnp.sum(h * w2_ref[...], axis=-1, keepdims=True) + b2_ref[...]


def classifier_apply(x, w1, b1, w2, b2):
    N, F = x.shape
    Hd = w1.shape[1]
    return pl.pallas_call(
        _mlp_kernel,
        out_shape=jax.ShapeDtypeStruct((N, 1), jnp.float32),
        grid=(1,),
        in_specs=[
            pl.BlockSpec((N, F), lambda i: (0, 0)),
            pl.BlockSpec((F, Hd), lambda i: (0, 0)),
            pl.BlockSpec((1, Hd), lambda i: (0, 0)),
            pl.BlockSpec((1, Hd), lambda i: (0, 0)),
            pl.BlockSpec((1, 1), lambda i: (0, 0)),
        ],
        out_specs=pl.BlockSpec((N, 1), lambda i: (0, 0)),
    )(x, w1, b1.reshape(1, Hd), w2.reshape(1, Hd), b2.reshape(1, 1))


# -----------------------------------------------------------------------------
# Full forward pass
# -----------------------------------------------------------------------------
def discriminator_forward(x_nchw, params):
    # PyTorch feeds NCHW; the kernels run channels-last.
    x = jnp.transpose(x_nchw, (0, 2, 3, 1)).astype(jnp.float32)
    for blk in params["features"]:
        x = base_block_apply(x, blk)
    # flatten in PyTorch (N, C, H, W) order for exact equivalence
    x = jnp.transpose(x, (0, 3, 1, 2)).reshape(x.shape[0], -1)
    w1, b1, w2, b2 = params["classifier"]
    return classifier_apply(x, w1, b1, w2, b2)


# -----------------------------------------------------------------------------
# Deterministic parameter initialization (synthetic, not a checkpoint load)
# -----------------------------------------------------------------------------
def init_params(key, n_colors, img_h, img_w, depth=5, out_channels=64):
    keys = jax.random.split(key, 4 * depth + 4)
    features = []
    cin = n_colors
    k = 0
    for _ in range(depth):
        w = 0.1 * jax.random.normal(keys[k], (3, 3, cin, out_channels), jnp.float32); k += 1
        b = 0.1 * jax.random.normal(keys[k], (out_channels,), jnp.float32); k += 1
        gamma = 1.0 + 0.1 * jax.random.normal(keys[k], (out_channels,), jnp.float32); k += 1
        beta = 0.1 * jax.random.normal(keys[k], (out_channels,), jnp.float32); k += 1
        features.append((w, b, gamma, beta))
        cin = out_channels
    class_in = out_channels * img_h * img_w // 2 ** (depth * 2)
    w1 = 0.05 * jax.random.normal(keys[k], (class_in, 1024), jnp.float32); k += 1
    b1 = 0.05 * jax.random.normal(keys[k], (1024,), jnp.float32); k += 1
    w2 = 0.05 * jax.random.normal(keys[k], (1024, 1), jnp.float32); k += 1
    b2 = 0.05 * jax.random.normal(keys[k], (1,), jnp.float32)
    return {"features": features, "classifier": (w1, b1, w2, b2)}


if __name__ == "__main__":
    # args.n_colors = 3, args.img_height = args.img_width = 32
    # (32 is the smallest spatial size divisible by 2^depth = 32)
    N, C, H, W = 2, 3, 32, 32
    key = jax.random.PRNGKey(0)
    pkey, xkey = jax.random.split(key)
    params = init_params(pkey, n_colors=C, img_h=H, img_w=W)
    x = jax.random.normal(xkey, (N, C, H, W), jnp.float32)

    fwd = jax.jit(discriminator_forward)
    out = jax.block_until_ready(fwd(x, params))
    assert out.shape == (N, 1), out.shape
    assert bool(jnp.all(jnp.isfinite(out)))
    print("KERNEL_OK")
</pallas_src>

<mosaic_0001>
module attributes {stable_mosaic.version = 11 : i64} {
  func.func @_block_kernel(%arg0: i32, %arg1: memref<2048x27xf32, #tpu.memory_space<vmem>>, %arg2: memref<27x64xf32, #tpu.memory_space<vmem>>, %arg3: memref<1x64xf32, #tpu.memory_space<vmem>>, %arg4: memref<1x64xf32, #tpu.memory_space<vmem>>, %arg5: memref<1x64xf32, #tpu.memory_space<vmem>>, %arg6: memref<512x64xf32, #tpu.memory_space<vmem>>, %arg7: memref<2048x64xf32, #tpu.memory_space<vmem>>) attributes {dimension_semantics = [#tpu.dimension_semantics<arbitrary>], iteration_bounds = array<i64: 1>, scalar_prefetch = 0 : i64, scratch_operands = 1 : i64, tpu.core_type = #tpu.core_type<tc>, window_params = [{pipeline_mode = #tpu.pipeline_mode<synchronous>, transform_indices = @transform_0, window_bounds = array<i64: 2048, 27>}, {pipeline_mode = #tpu.pipeline_mode<synchronous>, transform_indices = @transform_1, window_bounds = array<i64: 27, 64>}, {pipeline_mode = #tpu.pipeline_mode<synchronous>, transform_indices = @transform_2, window_bounds = array<i64: 1, 64>}, {pipeline_mode = #tpu.pipeline_mode<synchronous>, transform_indices = @transform_3, window_bounds = array<i64: 1, 64>}, {pipeline_mode = #tpu.pipeline_mode<synchronous>, transform_indices = @transform_4, window_bounds = array<i64: 1, 64>}, {pipeline_mode = #tpu.pipeline_mode<synchronous>, transform_indices = @transform_5, window_bounds = array<i64: 512, 64>}]} {
    %c0 = arith.constant 0 : index
    %c0_0 = arith.constant 0 : index
    %0 = vector.load %arg1[%c0, %c0_0] : memref<2048x27xf32, #tpu.memory_space<vmem>>, vector<2048x27xf32>
    %c0_1 = arith.constant 0 : index
    %c0_2 = arith.constant 0 : index
    %1 = vector.load %arg2[%c0_1, %c0_2] : memref<27x64xf32, #tpu.memory_space<vmem>>, vector<27x64xf32>
    %cst = arith.constant dense<0.000000e+00> : vector<2048x64xf32>
    %2 = tpu.matmul %0, %1, %cst {dimension_numbers = #tpu.dot_dimension_numbers<[1], [0], [0], [1], [0, 0, 1, 1], [], []>} : vector<2048x27xf32>, vector<27x64xf32>, vector<2048x64xf32> -> vector<2048x64xf32>
    %c0_3 = arith.constant 0 : index
    %c0_4 = arith.constant 0 : index
    %3 = vector.load %arg3[%c0_3, %c0_4] : memref<1x64xf32, #tpu.memory_space<vmem>>, vector<1x64xf32>
    %4 = vector.broadcast %3 : vector<1x64xf32> to vector<2048x64xf32>
    %5 = arith.addf %2, %4 : vector<2048x64xf32>
    %cst_5 = arith.constant dense<0.000000e+00> : vector<64xf32>
    %6 = vector.multi_reduction <add>, %5, %cst_5 [0] : vector<2048x64xf32> to vector<64xf32>
    %7 = vector.shape_cast %6 : vector<64xf32> to vector<1x64xf32>
    %cst_6 = arith.constant 4.8828125E-4 : f32
    %8 = vector.broadcast %cst_6 : f32 to vector<1x64xf32>
    %9 = arith.mulf %7, %8 : vector<1x64xf32>
    %10 = vector.broadcast %9 : vector<1x64xf32> to vector<2048x64xf32>
    %11 = arith.subf %5, %10 : vector<2048x64xf32>
    %12 = arith.mulf %11, %11 : vector<2048x64xf32>
    %cst_7 = arith.constant dense<0.000000e+00> : vector<64xf32>
    %13 = vector.multi_reduction <add>, %12, %cst_7 [0] : vector<2048x64xf32> to vector<64xf32>
    %14 = vector.shape_cast %13 : vector<64xf32> to vector<1x64xf32>
    %cst_8 = arith.constant 4.8828125E-4 : f32
    %15 = vector.broadcast %cst_8 : f32 to vector<1x64xf32>
    %16 = arith.mulf %14, %15 : vector<1x64xf32>
    %c0_9 = arith.constant 0 : index
    %c0_10 = arith.constant 0 : index
    %17 = vector.load %arg4[%c0_9, %c0_10] : memref<1x64xf32, #tpu.memory_space<vmem>>, vector<1x64xf32>
    %cst_11 = arith.constant 9.99999974E-6 : f32
    %18 = vector.broadcast %cst_11 : f32 to vector<1x64xf32>
    %19 = arith.addf %16, %18 : vector<1x64xf32>
    %20 = math.rsqrt %19 : vector<1x64xf32>
    %21 = arith.mulf %17, %20 : vector<1x64xf32>
    %22 = vector.broadcast %21 : vector<1x64xf32> to vector<2048x64xf32>
    %23 = arith.mulf %11, %22 : vector<2048x64xf32>
    %c0_12 = arith.constant 0 : index
    %c0_13 = arith.constant 0 : index
    %24 = vector.load %arg5[%c0_12, %c0_13] : memref<1x64xf32, #tpu.memory_space<vmem>>, vector<1x64xf32>
    %25 = vector.broadcast %24 : vector<1x64xf32> to vector<2048x64xf32>
    %26 = arith.addf %23, %25 : vector<2048x64xf32>
    %c0_14 = arith.constant 0 : index
    %c0_15 = arith.constant 0 : index
    %27 = vector.load %arg7[%c0_14, %c0_15] : memref<2048x64xf32, #tpu.memory_space<vmem>>, vector<2048x64xf32>
    tpu.vector_store %arg7[%c0_14, %c0_15], %26 {strides = array<i32>} : memref<2048x64xf32, #tpu.memory_space<vmem>>, vector<2048x64xf32>,
    %c0_16 = arith.constant 0 : index
    %c0_17 = arith.constant 0 : index
    %28 = tpu.strided_load %arg7[%c0_16, %c0_17] {strides = array<i32: 4, 1>} : memref<2048x64xf32, #tpu.memory_space<vmem>>, vector<512x64xf32>
    %c1 = arith.constant 1 : index
    %c0_18 = arith.constant 0 : index
    %29 = tpu.strided_load %arg7[%c1, %c0_18] {strides = array<i32: 4, 1>} : memref<2048x64xf32, #tpu.memory_space<vmem>>, vector<512x64xf32>
    %30 = arith.maximumf %28, %29 : vector<512x64xf32>
    %c2 = arith.constant 2 : index
    %c0_19 = arith.constant 0 : index
    %31 = tpu.strided_load %arg7[%c2, %c0_19] {strides = array<i32: 4, 1>} : memref<2048x64xf32, #tpu.memory_space<vmem>>, vector<512x64xf32>
    %c3 = arith.constant 3 : index
    %c0_20 = arith.constant 0 : index
    %32 = tpu.strided_load %arg7[%c3, %c0_20] {strides = array<i32: 4, 1>} : memref<2048x64xf32, #tpu.memory_space<vmem>>, vector<512x64xf32>
    %33 = arith.maximumf %31, %32 : vector<512x64xf32>
    %34 = arith.maximumf %30, %33 : vector<512x64xf32>
    %cst_21 = arith.constant 0.000000e+00 : f32
    %35 = vector.broadcast %cst_21 : f32 to vector<512x64xf32>
    %36 = arith.cmpf oge, %34, %35 : vector<512x64xf32>
    %cst_22 = arith.constant 2.000000e-01 : f32
    %37 = vector.broadcast %cst_22 : f32 to vector<512x64xf32>
    %38 = arith.mulf %37, %34 : vector<512x64xf32>
    %39 = arith.select %36, %34, %38 : vector<512x64xi1>, vector<512x64xf32>
    %c0_23 = arith.constant 0 : index
    %c0_24 = arith.constant 0 : index
    %40 = vector.load %arg6[%c0_23, %c0_24] : memref<512x64xf32, #tpu.memory_space<vmem>>, vector<512x64xf32>
    tpu.vector_store %arg6[%c0_23, %c0_24], %39 {strides = array<i32>} : memref<512x64xf32, #tpu.memory_space<vmem>>, vector<512x64xf32>,
    return
  }
  func.func @transform_0(%arg0: i32) -> (i32, i32) {
    %c0_i32 = arith.constant 0 : i32
    %c0_i32_0 = arith.constant 0 : i32
    %c0_i32_1 = arith.constant 0 : i32
    return %c0_i32, %c0_i32_0 : i32, i32
  }
  func.func @transform_1(%arg0: i32) -> (i32, i32) {
    %c0_i32 = arith.constant 0 : i32
    %c0_i32_0 = arith.constant 0 : i32
    %c0_i32_1 = arith.constant 0 : i32
    return %c0_i32, %c0_i32_0 : i32, i32
  }
  func.func @transform_2(%arg0: i32) -> (i32, i32) {
    %c0_i32 = arith.constant 0 : i32
    %c0_i32_0 = arith.constant 0 : i32
    %c0_i32_1 = arith.constant 0 : i32
    return %c0_i32, %c0_i32_0 : i32, i32
  }
  func.func @transform_3(%arg0: i32) -> (i32, i32) {
    %c0_i32 = arith.constant 0 : i32
    %c0_i32_0 = arith.constant 0 : i32
    %c0_i32_1 = arith.constant 0 : i32
    return %c0_i32, %c0_i32_0 : i32, i32
  }
  func.func @transform_4(%arg0: i32) -> (i32, i32) {
    %c0_i32 = arith.constant 0 : i32
    %c0_i32_0 = arith.constant 0 : i32
    %c0_i32_1 = arith.constant 0 : i32
    return %c0_i32, %c0_i32_0 : i32, i32
  }
  func.func @transform_5(%arg0: i32) -> (i32, i32) {
    %c0_i32 = arith.constant 0 : i32
    %c0_i32_0 = arith.constant 0 : i32
    %c0_i32_1 = arith.constant 0 : i32
    return %c0_i32, %c0_i32_0 : i32, i32
  }
}

module attributes {stable_mosaic.version = 11 : i64} {
  func.func @_block_kernel(%arg0: i32, %arg1: memref<512x576xf32, #tpu.memory_space<vmem>>, %arg2: memref<576x64xf32, #tpu.memory_space<vmem>>, %arg3: memref<1x64xf32, #tpu.memory_space<vmem>>, %arg4: memref<1x64xf32, #tpu.memory_space<vmem>>, %arg5: memref<1x64xf32, #tpu.memory_space<vmem>>, %arg6: memref<128x64xf32, #tpu.memory_space<vmem>>, %arg7: memref<512x64xf32, #tpu.memory_space<vmem>>) attributes {dimension_semantics = [#tpu.dimension_semantics<arbitrary>], iteration_bounds = array<i64: 1>, scalar_prefetch = 0 : i64, scratch_operands = 1 : i64, tpu.core_type = #tpu.core_type<tc>, window_params = [{pipeline_mode = #tpu.pipeline_mode<synchronous>, transform_indices = @transform_0, window_bounds = array<i64: 512, 576>}, {pipeline_mode = #tpu.pipeline_mode<synchronous>, transform_indices = @transform_1, window_bounds = array<i64: 576, 64>}, {pipeline_mode = #tpu.pipeline_mode<synchronous>, transform_indices = @transform_2, window_bounds = array<i64: 1, 64>}, {pipeline_mode = #tpu.pipeline_mode<synchronous>, transform_indices = @transform_3, window_bounds = array<i64: 1, 64>}, {pipeline_mode = #tpu.pipeline_mode<synchronous>, transform_indices = @transform_4, window_bounds = array<i64: 1, 64>}, {pipeline_mode = #tpu.pipeline_mode<synchronous>, transform_indices = @transform_5, window_bounds = array<i64: 128, 64>}]} {
    %c0 = arith.constant 0 : index
    %c0_0 = arith.constant 0 : index
    %0 = vector.load %arg1[%c0, %c0_0] : memref<512x576xf32, #tpu.memory_space<vmem>>, vector<512x576xf32>
    %c0_1 = arith.constant 0 : index
    %c0_2 = arith.constant 0 : index
    %1 = vector.load %arg2[%c0_1, %c0_2] : memref<576x64xf32, #tpu.memory_space<vmem>>, vector<576x64xf32>
    %cst = arith.constant dense<0.000000e+00> : vector<512x64xf32>
    %2 = tpu.matmul %0, %1, %cst {dimension_numbers = #tpu.dot_dimension_numbers<[1], [0], [0], [1], [0, 0, 1, 1], [], []>} : vector<512x576xf32>, vector<576x64xf32>, vector<512x64xf32> -> vector<512x64xf32>
    %c0_3 = arith.constant 0 : index
    %c0_4 = arith.constant 0 : index
    %3 = vector.load %arg3[%c0_3, %c0_4] : memref<1x64xf32, #tpu.memory_space<vmem>>, vector<1x64xf32>
    %4 = vector.broadcast %3 : vector<1x64xf32> to vector<512x64xf32>
    %5 = arith.addf %2, %4 : vector<512x64xf32>
    %cst_5 = arith.constant dense<0.000000e+00> : vector<64xf32>
    %6 = vector.multi_reduction <add>, %5, %cst_5 [0] : vector<512x64xf32> to vector<64xf32>
    %7 = vector.shape_cast %6 : vector<64xf32> to vector<1x64xf32>
    %cst_6 = arith.constant 0.001953125 : f32
    %8 = vector.broadcast %cst_6 : f32 to vector<1x64xf32>
    %9 = arith.mulf %7, %8 : vector<1x64xf32>
    %10 = vector.broadcast %9 : vector<1x64xf32> to vector<512x64xf32>
    %11 = arith.subf %5, %10 : vector<512x64xf32>
    %12 = arith.mulf %11, %11 : vector<512x64xf32>
    %cst_7 = arith.constant dense<0.000000e+00> : vector<64xf32>
    %13 = vector.multi_reduction <add>, %12, %cst_7 [0] : vector<512x64xf32> to vector<64xf32>
    %14 = vector.shape_cast %13 : vector<64xf32> to vector<1x64xf32>
    %cst_8 = arith.constant 0.001953125 : f32
    %15 = vector.broadcast %cst_8 : f32 to vector<1x64xf32>
    %16 = arith.mulf %14, %15 : vector<1x64xf32>
    %c0_9 = arith.constant 0 : index
    %c0_10 = arith.constant 0 : index
    %17 = vector.load %arg4[%c0_9, %c0_10] : memref<1x64xf32, #tpu.memory_space<vmem>>, vector<1x64xf32>
    %cst_11 = arith.constant 9.99999974E-6 : f32
    %18 = vector.broadcast %cst_11 : f32 to vector<1x64xf32>
    %19 = arith.addf %16, %18 : vector<1x64xf32>
    %20 = math.rsqrt %19 : vector<1x64xf32>
    %21 = arith.mulf %17, %20 : vector<1x64xf32>
    %22 = vector.broadcast %21 : vector<1x64xf32> to vector<512x64xf32>
    %23 = arith.mulf %11, %22 : vector<512x64xf32>
    %c0_12 = arith.constant 0 : index
    %c0_13 = arith.constant 0 : index
    %24 = vector.load %arg5[%c0_12, %c0_13] : memref<1x64xf32, #tpu.memory_space<vmem>>, vector<1x64xf32>
    %25 = vector.broadcast %24 : vector<1x64xf32> to vector<512x64xf32>
    %26 = arith.addf %23, %25 : vector<512x64xf32>
    %c0_14 = arith.constant 0 : index
    %c0_15 = arith.constant 0 : index
    %27 = vector.load %arg7[%c0_14, %c0_15] : memref<512x64xf32, #tpu.memory_space<vmem>>, vector<512x64xf32>
    tpu.vector_store %arg7[%c0_14, %c0_15], %26 {strides = array<i32>} : memref<512x64xf32, #tpu.memory_space<vmem>>, vector<512x64xf32>,
    %c0_16 = arith.constant 0 : index
    %c0_17 = arith.constant 0 : index
    %28 = tpu.strided_load %arg7[%c0_16, %c0_17] {strides = array<i32: 4, 1>} : memref<512x64xf32, #tpu.memory_space<vmem>>, vector<128x64xf32>
    %c1 = arith.constant 1 : index
    %c0_18 = arith.constant 0 : index
    %29 = tpu.strided_load %arg7[%c1, %c0_18] {strides = array<i32: 4, 1>} : memref<512x64xf32, #tpu.memory_space<vmem>>, vector<128x64xf32>
    %30 = arith.maximumf %28, %29 : vector<128x64xf32>
    %c2 = arith.constant 2 : index
    %c0_19 = arith.constant 0 : index
    %31 = tpu.strided_load %arg7[%c2, %c0_19] {strides = array<i32: 4, 1>} : memref<512x64xf32, #tpu.memory_space<vmem>>, vector<128x64xf32>
    %c3 = arith.constant 3 : index
    %c0_20 = arith.constant 0 : index
    %32 = tpu.strided_load %arg7[%c3, %c0_20] {strides = array<i32: 4, 1>} : memref<512x64xf32, #tpu.memory_space<vmem>>, vector<128x64xf32>
    %33 = arith.maximumf %31, %32 : vector<128x64xf32>
    %34 = arith.maximumf %30, %33 : vector<128x64xf32>
    %cst_21 = arith.constant 0.000000e+00 : f32
    %35 = vector.broadcast %cst_21 : f32 to vector<128x64xf32>
    %36 = arith.cmpf oge, %34, %35 : vector<128x64xf32>
    %cst_22 = arith.constant 2.000000e-01 : f32
    %37 = vector.broadcast %cst_22 : f32 to vector<128x64xf32>
    %38 = arith.mulf %37, %34 : vector<128x64xf32>
    %39 = arith.select %36, %34, %38 : vector<128x64xi1>, vector<128x64xf32>
    %c0_23 = arith.constant 0 : index
    %c0_24 = arith.constant 0 : index
    %40 = vector.load %arg6[%c0_23, %c0_24] : memref<128x64xf32, #tpu.memory_space<vmem>>, vector<128x64xf32>
    tpu.vector_store %arg6[%c0_23, %c0_24], %39 {strides = array<i32>} : memref<128x64xf32, #tpu.memory_space<vmem>>, vector<128x64xf32>,
    return
  }
  func.func @transform_0(%arg0: i32) -> (i32, i32) {
    %c0_i32 = arith.constant 0 : i32
    %c0_i32_0 = arith.constant 0 : i32
    %c0_i32_1 = arith.constant 0 : i32
    return %c0_i32, %c0_i32_0 : i32, i32
  }
  func.func @transform_1(%arg0: i32) -> (i32, i32) {
    %c0_i32 = arith.constant 0 : i32
    %c0_i32_0 = arith.constant 0 : i32
    %c0_i32_1 = arith.constant 0 : i32
    return %c0_i32, %c0_i32_0 : i32, i32
  }
  func.func @transform_2(%arg0: i32) -> (i32, i32) {
    %c0_i32 = arith.constant 0 : i32
    %c0_i32_0 = arith.constant 0 : i32
    %c0_i32_1 = arith.constant 0 : i32
    return %c0_i32, %c0_i32_0 : i32, i32
  }
  func.func @transform_3(%arg0: i32) -> (i32, i32) {
    %c0_i32 = arith.constant 0 : i32
    %c0_i32_0 = arith.constant 0 : i32
    %c0_i32_1 = arith.constant 0 : i32
    return %c0_i32, %c0_i32_0 : i32, i32
  }
  func.func @transform_4(%arg0: i32) -> (i32, i32) {
    %c0_i32 = arith.constant 0 : i32
    %c0_i32_0 = arith.constant 0 : i32
    %c0_i32_1 = arith.constant 0 : i32
    return %c0_i32, %c0_i32_0 : i32, i32
  }
  func.func @transform_5(%arg0: i32) -> (i32, i32) {
    %c0_i32 = arith.constant 0 : i32
    %c0_i32_0 = arith.constant 0 : i32
    %c0_i32_1 = arith.constant 0 : i32
    return %c0_i32, %c0_i32_0 : i32, i32
  }
}

module attributes {stable_mosaic.version = 11 : i64} {
  func.func @_block_kernel(%arg0: i32, %arg1: memref<128x576xf32, #tpu.memory_space<vmem>>, %arg2: memref<576x64xf32, #tpu.memory_space<vmem>>, %arg3: memref<1x64xf32, #tpu.memory_space<vmem>>, %arg4: memref<1x64xf32, #tpu.memory_space<vmem>>, %arg5: memref<1x64xf32, #tpu.memory_space<vmem>>, %arg6: memref<32x64xf32, #tpu.memory_space<vmem>>, %arg7: memref<128x64xf32, #tpu.memory_space<vmem>>) attributes {dimension_semantics = [#tpu.dimension_semantics<arbitrary>], iteration_bounds = array<i64: 1>, scalar_prefetch = 0 : i64, scratch_operands = 1 : i64, tpu.core_type = #tpu.core_type<tc>, window_params = [{pipeline_mode = #tpu.pipeline_mode<synchronous>, transform_indices = @transform_0, window_bounds = array<i64: 128, 576>}, {pipeline_mode = #tpu.pipeline_mode<synchronous>, transform_indices = @transform_1, window_bounds = array<i64: 576, 64>}, {pipeline_mode = #tpu.pipeline_mode<synchronous>, transform_indices = @transform_2, window_bounds = array<i64: 1, 64>}, {pipeline_mode = #tpu.pipeline_mode<synchronous>, transform_indices = @transform_3, window_bounds = array<i64: 1, 64>}, {pipeline_mode = #tpu.pipeline_mode<synchronous>, transform_indices = @transform_4, window_bounds = array<i64: 1, 64>}, {pipeline_mode = #tpu.pipeline_mode<synchronous>, transform_indices = @transform_5, window_bounds = array<i64: 32, 64>}]} {
    %c0 = arith.constant 0 : index
    %c0_0 = arith.constant 0 : index
    %0 = vector.load %arg1[%c0, %c0_0] : memref<128x576xf32, #tpu.memory_space<vmem>>, vector<128x576xf32>
    %c0_1 = arith.constant 0 : index
    %c0_2 = arith.constant 0 : index
    %1 = vector.load %arg2[%c0_1, %c0_2] : memref<576x64xf32, #tpu.memory_space<vmem>>, vector<576x64xf32>
    %cst = arith.constant dense<0.000000e+00> : vector<128x64xf32>
    %2 = tpu.matmul %0, %1, %cst {dimension_numbers = #tpu.dot_dimension_numbers<[1], [0], [0], [1], [0, 0, 1, 1], [], []>} : vector<128x576xf32>, vector<576x64xf32>, vector<128x64xf32> -> vector<128x64xf32>
    %c0_3 = arith.constant 0 : index
    %c0_4 = arith.constant 0 : index
    %3 = vector.load %arg3[%c0_3, %c0_4] : memref<1x64xf32, #tpu.memory_space<vmem>>, vector<1x64xf32>
    %4 = vector.broadcast %3 : vector<1x64xf32> to vector<128x64xf32>
    %5 = arith.addf %2, %4 : vector<128x64xf32>
    %cst_5 = arith.constant dense<0.000000e+00> : vector<64xf32>
    %6 = vector.multi_reduction <add>, %5, %cst_5 [0] : vector<128x64xf32> to vector<64xf32>
    %7 = vector.shape_cast %6 : vector<64xf32> to vector<1x64xf32>
    %cst_6 = arith.constant 7.812500e-03 : f32
    %8 = vector.broadcast %cst_6 : f32 to vector<1x64xf32>
    %9 = arith.mulf %7, %8 : vector<1x64xf32>
    %10 = vector.broadcast %9 : vector<1x64xf32> to vector<128x64xf32>
    %11 = arith.subf %5, %10 : vector<128x64xf32>
    %12 = arith.mulf %11, %11 : vector<128x64xf32>
    %cst_7 = arith.constant dense<0.000000e+00> : vector<64xf32>
    %13 = vector.multi_reduction <add>, %12, %cst_7 [0] : vector<128x64xf32> to vector<64xf32>
    %14 = vector.shape_cast %13 : vector<64xf32> to vector<1x64xf32>
    %cst_8 = arith.constant 7.812500e-03 : f32
    %15 = vector.broadcast %cst_8 : f32 to vector<1x64xf32>
    %16 = arith.mulf %14, %15 : vector<1x64xf32>
    %c0_9 = arith.constant 0 : index
    %c0_10 = arith.constant 0 : index
    %17 = vector.load %arg4[%c0_9, %c0_10] : memref<1x64xf32, #tpu.memory_space<vmem>>, vector<1x64xf32>
    %cst_11 = arith.constant 9.99999974E-6 : f32
    %18 = vector.broadcast %cst_11 : f32 to vector<1x64xf32>
    %19 = arith.addf %16, %18 : vector<1x64xf32>
    %20 = math.rsqrt %19 : vector<1x64xf32>
    %21 = arith.mulf %17, %20 : vector<1x64xf32>
    %22 = vector.broadcast %21 : vector<1x64xf32> to vector<128x64xf32>
    %23 = arith.mulf %11, %22 : vector<128x64xf32>
    %c0_12 = arith.constant 0 : index
    %c0_13 = arith.constant 0 : index
    %24 = vector.load %arg5[%c0_12, %c0_13] : memref<1x64xf32, #tpu.memory_space<vmem>>, vector<1x64xf32>
    %25 = vector.broadcast %24 : vector<1x64xf32> to vector<128x64xf32>
    %26 = arith.addf %23, %25 : vector<128x64xf32>
    %c0_14 = arith.constant 0 : index
    %c0_15 = arith.constant 0 : index
    %27 = vector.load %arg7[%c0_14, %c0_15] : memref<128x64xf32, #tpu.memory_space<vmem>>, vector<128x64xf32>
    tpu.vector_store %arg7[%c0_14, %c0_15], %26 {strides = array<i32>} : memref<128x64xf32, #tpu.memory_space<vmem>>, vector<128x64xf32>,
    %c0_16 = arith.constant 0 : index
    %c0_17 = arith.constant 0 : index
    %28 = tpu.strided_load %arg7[%c0_16, %c0_17] {strides = array<i32: 4, 1>} : memref<128x64xf32, #tpu.memory_space<vmem>>, vector<32x64xf32>
    %c1 = arith.constant 1 : index
    %c0_18 = arith.constant 0 : index
    %29 = tpu.strided_load %arg7[%c1, %c0_18] {strides = array<i32: 4, 1>} : memref<128x64xf32, #tpu.memory_space<vmem>>, vector<32x64xf32>
    %30 = arith.maximumf %28, %29 : vector<32x64xf32>
    %c2 = arith.constant 2 : index
    %c0_19 = arith.constant 0 : index
    %31 = tpu.strided_load %arg7[%c2, %c0_19] {strides = array<i32: 4, 1>} : memref<128x64xf32, #tpu.memory_space<vmem>>, vector<32x64xf32>
    %c3 = arith.constant 3 : index
    %c0_20 = arith.constant 0 : index
    %32 = tpu.strided_load %arg7[%c3, %c0_20] {strides = array<i32: 4, 1>} : memref<128x64xf32, #tpu.memory_space<vmem>>, vector<32x64xf32>
    %33 = arith.maximumf %31, %32 : vector<32x64xf32>
    %34 = arith.maximumf %30, %33 : vector<32x64xf32>
    %cst_21 = arith.constant 0.000000e+00 : f32
    %35 = vector.broadcast %cst_21 : f32 to vector<32x64xf32>
    %36 = arith.cmpf oge, %34, %35 : vector<32x64xf32>
    %cst_22 = arith.constant 2.000000e-01 : f32
    %37 = vector.broadcast %cst_22 : f32 to vector<32x64xf32>
    %38 = arith.mulf %37, %34 : vector<32x64xf32>
    %39 = arith.select %36, %34, %38 : vector<32x64xi1>, vector<32x64xf32>
    %c0_23 = arith.constant 0 : index
    %c0_24 = arith.constant 0 : index
    %40 = vector.load %arg6[%c0_23, %c0_24] : memref<32x64xf32, #tpu.memory_space<vmem>>, vector<32x64xf32>
    tpu.vector_store %arg6[%c0_23, %c0_24], %39 {strides = array<i32>} : memref<32x64xf32, #tpu.memory_space<vmem>>, vector<32x64xf32>,
    return
  }
  func.func @transform_0(%arg0: i32) -> (i32, i32) {
    %c0_i32 = arith.constant 0 : i32
    %c0_i32_0 = arith.constant 0 : i32
    %c0_i32_1 = arith.constant 0 : i32
    return %c0_i32, %c0_i32_0 : i32, i32
  }
  func.func @transform_1(%arg0: i32) -> (i32, i32) {
    %c0_i32 = arith.constant 0 : i32
    %c0_i32_0 = arith.constant 0 : i32
    %c0_i32_1 = arith.constant 0 : i32
    return %c0_i32, %c0_i32_0 : i32, i32
  }
  func.func @transform_2(%arg0: i32) -> (i32, i32) {
    %c0_i32 = arith.constant 0 : i32
    %c0_i32_0 = arith.constant 0 : i32
    %c0_i32_1 = arith.constant 0 : i32
    return %c0_i32, %c0_i32_0 : i32, i32
  }
  func.func @transform_3(%arg0: i32) -> (i32, i32) {
    %c0_i32 = arith.constant 0 : i32
    %c0_i32_0 = arith.constant 0 : i32
    %c0_i32_1 = arith.constant 0 : i32
    return %c0_i32, %c0_i32_0 : i32, i32
  }
  func.func @transform_4(%arg0: i32) -> (i32, i32) {
    %c0_i32 = arith.constant 0 : i32
    %c0_i32_0 = arith.constant 0 : i32
    %c0_i32_1 = arith.constant 0 : i32
    return %c0_i32, %c0_i32_0 : i32, i32
  }
  func.func @transform_5(%arg0: i32) -> (i32, i32) {
    %c0_i32 = arith.constant 0 : i32
    %c0_i32_0 = arith.constant 0 : i32
    %c0_i32_1 = arith.constant 0 : i32
    return %c0_i32, %c0_i32_0 : i32, i32
  }
}

module attributes {stable_mosaic.version = 11 : i64} {
  func.func @_block_kernel(%arg0: i32, %arg1: memref<32x576xf32, #tpu.memory_space<vmem>>, %arg2: memref<576x64xf32, #tpu.memory_space<vmem>>, %arg3: memref<1x64xf32, #tpu.memory_space<vmem>>, %arg4: memref<1x64xf32, #tpu.memory_space<vmem>>, %arg5: memref<1x64xf32, #tpu.memory_space<vmem>>, %arg6: memref<8x64xf32, #tpu.memory_space<vmem>>, %arg7: memref<32x64xf32, #tpu.memory_space<vmem>>) attributes {dimension_semantics = [#tpu.dimension_semantics<arbitrary>], iteration_bounds = array<i64: 1>, scalar_prefetch = 0 : i64, scratch_operands = 1 : i64, tpu.core_type = #tpu.core_type<tc>, window_params = [{pipeline_mode = #tpu.pipeline_mode<synchronous>, transform_indices = @transform_0, window_bounds = array<i64: 32, 576>}, {pipeline_mode = #tpu.pipeline_mode<synchronous>, transform_indices = @transform_1, window_bounds = array<i64: 576, 64>}, {pipeline_mode = #tpu.pipeline_mode<synchronous>, transform_indices = @transform_2, window_bounds = array<i64: 1, 64>}, {pipeline_mode = #tpu.pipeline_mode<synchronous>, transform_indices = @transform_3, window_bounds = array<i64: 1, 64>}, {pipeline_mode = #tpu.pipeline_mode<synchronous>, transform_indices = @transform_4, window_bounds = array<i64: 1, 64>}, {pipeline_mode = #tpu.pipeline_mode<synchronous>, transform_indices = @transform_5, window_bounds = array<i64: 8, 64>}]} {
    %c0 = arith.constant 0 : index
    %c0_0 = arith.constant 0 : index
    %0 = vector.load %arg1[%c0, %c0_0] : memref<32x576xf32, #tpu.memory_space<vmem>>, vector<32x576xf32>
    %c0_1 = arith.constant 0 : index
    %c0_2 = arith.constant 0 : index
    %1 = vector.load %arg2[%c0_1, %c0_2] : memref<576x64xf32, #tpu.memory_space<vmem>>, vector<576x64xf32>
    %cst = arith.constant dense<0.000000e+00> : vector<32x64xf32>
    %2 = tpu.matmul %0, %1, %cst {dimension_numbers = #tpu.dot_dimension_numbers<[1], [0], [0], [1], [0, 0, 1, 1], [], []>} : vector<32x576xf32>, vector<576x64xf32>, vector<32x64xf32> -> vector<32x64xf32>
    %c0_3 = arith.constant 0 : index
    %c0_4 = arith.constant 0 : index
    %3 = vector.load %arg3[%c0_3, %c0_4] : memref<1x64xf32, #tpu.memory_space<vmem>>, vector<1x64xf32>
    %4 = vector.broadcast %3 : vector<1x64xf32> to vector<32x64xf32>
    %5 = arith.addf %2, %4 : vector<32x64xf32>
    %cst_5 = arith.constant dense<0.000000e+00> : vector<64xf32>
    %6 = vector.multi_reduction <add>, %5, %cst_5 [0] : vector<32x64xf32> to vector<64xf32>
    %7 = vector.shape_cast %6 : vector<64xf32> to vector<1x64xf32>
    %cst_6 = arith.constant 3.125000e-02 : f32
    %8 = vector.broadcast %cst_6 : f32 to vector<1x64xf32>
    %9 = arith.mulf %7, %8 : vector<1x64xf32>
    %10 = vector.broadcast %9 : vector<1x64xf32> to vector<32x64xf32>
    %11 = arith.subf %5, %10 : vector<32x64xf32>
    %12 = arith.mulf %11, %11 : vector<32x64xf32>
    %cst_7 = arith.constant dense<0.000000e+00> : vector<64xf32>
    %13 = vector.multi_reduction <add>, %12, %cst_7 [0] : vector<32x64xf32> to vector<64xf32>
    %14 = vector.shape_cast %13 : vector<64xf32> to vector<1x64xf32>
    %cst_8 = arith.constant 3.125000e-02 : f32
    %15 = vector.broadcast %cst_8 : f32 to vector<1x64xf32>
    %16 = arith.mulf %14, %15 : vector<1x64xf32>
    %c0_9 = arith.constant 0 : index
    %c0_10 = arith.constant 0 : index
    %17 = vector.load %arg4[%c0_9, %c0_10] : memref<1x64xf32, #tpu.memory_space<vmem>>, vector<1x64xf32>
    %cst_11 = arith.constant 9.99999974E-6 : f32
    %18 = vector.broadcast %cst_11 : f32 to vector<1x64xf32>
    %19 = arith.addf %16, %18 : vector<1x64xf32>
    %20 = math.rsqrt %19 : vector<1x64xf32>
    %21 = arith.mulf %17, %20 : vector<1x64xf32>
    %22 = vector.broadcast %21 : vector<1x64xf32> to vector<32x64xf32>
    %23 = arith.mulf %11, %22 : vector<32x64xf32>
    %c0_12 = arith.constant 0 : index
    %c0_13 = arith.constant 0 : index
    %24 = vector.load %arg5[%c0_12, %c0_13] : memref<1x64xf32, #tpu.memory_space<vmem>>, vector<1x64xf32>
    %25 = vector.broadcast %24 : vector<1x64xf32> to vector<32x64xf32>
    %26 = arith.addf %23, %25 : vector<32x64xf32>
    %c0_14 = arith.constant 0 : index
    %c0_15 = arith.constant 0 : index
    %27 = vector.load %arg7[%c0_14, %c0_15] : memref<32x64xf32, #tpu.memory_space<vmem>>, vector<32x64xf32>
    tpu.vector_store %arg7[%c0_14, %c0_15], %26 {strides = array<i32>} : memref<32x64xf32, #tpu.memory_space<vmem>>, vector<32x64xf32>,
    %c0_16 = arith.constant 0 : index
    %c0_17 = arith.constant 0 : index
    %28 = tpu.strided_load %arg7[%c0_16, %c0_17] {strides = array<i32: 4, 1>} : memref<32x64xf32, #tpu.memory_space<vmem>>, vector<8x64xf32>
    %c1 = arith.constant 1 : index
    %c0_18 = arith.constant 0 : index
    %29 = tpu.strided_load %arg7[%c1, %c0_18] {strides = array<i32: 4, 1>} : memref<32x64xf32, #tpu.memory_space<vmem>>, vector<8x64xf32>
    %30 = arith.maximumf %28, %29 : vector<8x64xf32>
    %c2 = arith.constant 2 : index
    %c0_19 = arith.constant 0 : index
    %31 = tpu.strided_load %arg7[%c2, %c0_19] {strides = array<i32: 4, 1>} : memref<32x64xf32, #tpu.memory_space<vmem>>, vector<8x64xf32>
    %c3 = arith.constant 3 : index
    %c0_20 = arith.constant 0 : index
    %32 = tpu.strided_load %arg7[%c3, %c0_20] {strides = array<i32: 4, 1>} : memref<32x64xf32, #tpu.memory_space<vmem>>, vector<8x64xf32>
    %33 = arith.maximumf %31, %32 : vector<8x64xf32>
    %34 = arith.maximumf %30, %33 : vector<8x64xf32>
    %cst_21 = arith.constant 0.000000e+00 : f32
    %35 = vector.broadcast %cst_21 : f32 to vector<8x64xf32>
    %36 = arith.cmpf oge, %34, %35 : vector<8x64xf32>
    %cst_22 = arith.constant 2.000000e-01 : f32
    %37 = vector.broadcast %cst_22 : f32 to vector<8x64xf32>
    %38 = arith.mulf %37, %34 : vector<8x64xf32>
    %39 = arith.select %36, %34, %38 : vector<8x64xi1>, vector<8x64xf32>
    %c0_23 = arith.constant 0 : index
    %c0_24 = arith.constant 0 : index
    %40 = vector.load %arg6[%c0_23, %c0_24] : memref<8x64xf32, #tpu.memory_space<vmem>>, vector<8x64xf32>
    tpu.vector_store %arg6[%c0_23, %c0_24], %39 {strides = array<i32>} : memref<8x64xf32, #tpu.memory_space<vmem>>, vector<8x64xf32>,
    return
  }
  func.func @transform_0(%arg0: i32) -> (i32, i32) {
    %c0_i32 = arith.constant 0 : i32
    %c0_i32_0 = arith.constant 0 : i32
    %c0_i32_1 = arith.constant 0 : i32
    return %c0_i32, %c0_i32_0 : i32, i32
  }
  func.func @transform_1(%arg0: i32) -> (i32, i32) {
    %c0_i32 = arith.constant 0 : i32
    %c0_i32_0 = arith.constant 0 : i32
    %c0_i32_1 = arith.constant 0 : i32
    return %c0_i32, %c0_i32_0 : i32, i32
  }
  func.func @transform_2(%arg0: i32) -> (i32, i32) {
    %c0_i32 = arith.constant 0 : i32
    %c0_i32_0 = arith.constant 0 : i32
    %c0_i32_1 = arith.constant 0 : i32
    return %c0_i32, %c0_i32_0 : i32, i32
  }
  func.func @transform_3(%arg0: i32) -> (i32, i32) {
    %c0_i32 = arith.constant 0 : i32
    %c0_i32_0 = arith.constant 0 : i32
    %c0_i32_1 = arith.constant 0 : i32
    return %c0_i32, %c0_i32_0 : i32, i32
  }
  func.func @transform_4(%arg0: i32) -> (i32, i32) {
    %c0_i32 = arith.constant 0 : i32
    %c0_i32_0 = arith.constant 0 : i32
    %c0_i32_1 = arith.constant 0 : i32
    return %c0_i32, %c0_i32_0 : i32, i32
  }
  func.func @transform_5(%arg0: i32) -> (i32, i32) {
    %c0_i32 = arith.constant 0 : i32
    %c0_i32_0 = arith.constant 0 : i32
    %c0_i32_1 = arith.constant 0 : i32
    return %c0_i32, %c0_i32_0 : i32, i32
  }
}

module attributes {stable_mosaic.version = 11 : i64} {
  func.func @_block_kernel(%arg0: i32, %arg1: memref<8x576xf32, #tpu.memory_space<vmem>>, %arg2: memref<576x64xf32, #tpu.memory_space<vmem>>, %arg3: memref<1x64xf32, #tpu.memory_space<vmem>>, %arg4: memref<1x64xf32, #tpu.memory_space<vmem>>, %arg5: memref<1x64xf32, #tpu.memory_space<vmem>>, %arg6: memref<2x64xf32, #tpu.memory_space<vmem>>, %arg7: memref<8x64xf32, #tpu.memory_space<vmem>>) attributes {dimension_semantics = [#tpu.dimension_semantics<arbitrary>], iteration_bounds = array<i64: 1>, scalar_prefetch = 0 : i64, scratch_operands = 1 : i64, tpu.core_type = #tpu.core_type<tc>, window_params = [{pipeline_mode = #tpu.pipeline_mode<synchronous>, transform_indices = @transform_0, window_bounds = array<i64: 8, 576>}, {pipeline_mode = #tpu.pipeline_mode<synchronous>, transform_indices = @transform_1, window_bounds = array<i64: 576, 64>}, {pipeline_mode = #tpu.pipeline_mode<synchronous>, transform_indices = @transform_2, window_bounds = array<i64: 1, 64>}, {pipeline_mode = #tpu.pipeline_mode<synchronous>, transform_indices = @transform_3, window_bounds = array<i64: 1, 64>}, {pipeline_mode = #tpu.pipeline_mode<synchronous>, transform_indices = @transform_4, window_bounds = array<i64: 1, 64>}, {pipeline_mode = #tpu.pipeline_mode<synchronous>, transform_indices = @transform_5, window_bounds = array<i64: 2, 64>}]} {
    %c0 = arith.constant 0 : index
    %c0_0 = arith.constant 0 : index
    %0 = vector.load %arg1[%c0, %c0_0] : memref<8x576xf32, #tpu.memory_space<vmem>>, vector<8x576xf32>
    %c0_1 = arith.constant 0 : index
    %c0_2 = arith.constant 0 : index
    %1 = vector.load %arg2[%c0_1, %c0_2] : memref<576x64xf32, #tpu.memory_space<vmem>>, vector<576x64xf32>
    %cst = arith.constant dense<0.000000e+00> : vector<8x64xf32>
    %2 = tpu.matmul %0, %1, %cst {dimension_numbers = #tpu.dot_dimension_numbers<[1], [0], [0], [1], [0, 0, 1, 1], [], []>} : vector<8x576xf32>, vector<576x64xf32>, vector<8x64xf32> -> vector<8x64xf32>
    %c0_3 = arith.constant 0 : index
    %c0_4 = arith.constant 0 : index
    %3 = vector.load %arg3[%c0_3, %c0_4] : memref<1x64xf32, #tpu.memory_space<vmem>>, vector<1x64xf32>
    %4 = vector.broadcast %3 : vector<1x64xf32> to vector<8x64xf32>
    %5 = arith.addf %2, %4 : vector<8x64xf32>
    %cst_5 = arith.constant dense<0.000000e+00> : vector<64xf32>
    %6 = vector.multi_reduction <add>, %5, %cst_5 [0] : vector<8x64xf32> to vector<64xf32>
    %7 = vector.shape_cast %6 : vector<64xf32> to vector<1x64xf32>
    %cst_6 = arith.constant 1.250000e-01 : f32
    %8 = vector.broadcast %cst_6 : f32 to vector<1x64xf32>
    %9 = arith.mulf %7, %8 : vector<1x64xf32>
    %10 = vector.broadcast %9 : vector<1x64xf32> to vector<8x64xf32>
    %11 = arith.subf %5, %10 : vector<8x64xf32>
    %12 = arith.mulf %11, %11 : vector<8x64xf32>
    %cst_7 = arith.constant dense<0.000000e+00> : vector<64xf32>
    %13 = vector.multi_reduction <add>, %12, %cst_7 [0] : vector<8x64xf32> to vector<64xf32>
    %14 = vector.shape_cast %13 : vector<64xf32> to vector<1x64xf32>
    %cst_8 = arith.constant 1.250000e-01 : f32
    %15 = vector.broadcast %cst_8 : f32 to vector<1x64xf32>
    %16 = arith.mulf %14, %15 : vector<1x64xf32>
    %c0_9 = arith.constant 0 : index
    %c0_10 = arith.constant 0 : index
    %17 = vector.load %arg4[%c0_9, %c0_10] : memref<1x64xf32, #tpu.memory_space<vmem>>, vector<1x64xf32>
    %cst_11 = arith.constant 9.99999974E-6 : f32
    %18 = vector.broadcast %cst_11 : f32 to vector<1x64xf32>
    %19 = arith.addf %16, %18 : vector<1x64xf32>
    %20 = math.rsqrt %19 : vector<1x64xf32>
    %21 = arith.mulf %17, %20 : vector<1x64xf32>
    %22 = vector.broadcast %21 : vector<1x64xf32> to vector<8x64xf32>
    %23 = arith.mulf %11, %22 : vector<8x64xf32>
    %c0_12 = arith.constant 0 : index
    %c0_13 = arith.constant 0 : index
    %24 = vector.load %arg5[%c0_12, %c0_13] : memref<1x64xf32, #tpu.memory_space<vmem>>, vector<1x64xf32>
    %25 = vector.broadcast %24 : vector<1x64xf32> to vector<8x64xf32>
    %26 = arith.addf %23, %25 : vector<8x64xf32>
    %c0_14 = arith.constant 0 : index
    %c0_15 = arith.constant 0 : index
    %27 = vector.load %arg7[%c0_14, %c0_15] : memref<8x64xf32, #tpu.memory_space<vmem>>, vector<8x64xf32>
    tpu.vector_store %arg7[%c0_14, %c0_15], %26 {strides = array<i32>} : memref<8x64xf32, #tpu.memory_space<vmem>>, vector<8x64xf32>,
    %c0_16 = arith.constant 0 : index
    %c0_17 = arith.constant 0 : index
    %28 = tpu.strided_load %arg7[%c0_16, %c0_17] {strides = array<i32: 4, 1>} : memref<8x64xf32, #tpu.memory_space<vmem>>, vector<2x64xf32>
    %c1 = arith.constant 1 : index
    %c0_18 = arith.constant 0 : index
    %29 = tpu.strided_load %arg7[%c1, %c0_18] {strides = array<i32: 4, 1>} : memref<8x64xf32, #tpu.memory_space<vmem>>, vector<2x64xf32>
    %30 = arith.maximumf %28, %29 : vector<2x64xf32>
    %c2 = arith.constant 2 : index
    %c0_19 = arith.constant 0 : index
    %31 = tpu.strided_load %arg7[%c2, %c0_19] {strides = array<i32: 4, 1>} : memref<8x64xf32, #tpu.memory_space<vmem>>, vector<2x64xf32>
    %c3 = arith.constant 3 : index
    %c0_20 = arith.constant 0 : index
    %32 = tpu.strided_load %arg7[%c3, %c0_20] {strides = array<i32: 4, 1>} : memref<8x64xf32, #tpu.memory_space<vmem>>, vector<2x64xf32>
    %33 = arith.maximumf %31, %32 : vector<2x64xf32>
    %34 = arith.maximumf %30, %33 : vector<2x64xf32>
    %cst_21 = arith.constant 0.000000e+00 : f32
    %35 = vector.broadcast %cst_21 : f32 to vector<2x64xf32>
    %36 = arith.cmpf oge, %34, %35 : vector<2x64xf32>
    %cst_22 = arith.constant 2.000000e-01 : f32
    %37 = vector.broadcast %cst_22 : f32 to vector<2x64xf32>
    %38 = arith.mulf %37, %34 : vector<2x64xf32>
    %39 = arith.select %36, %34, %38 : vector<2x64xi1>, vector<2x64xf32>
    %c0_23 = arith.constant 0 : index
    %c0_24 = arith.constant 0 : index
    %40 = vector.load %arg6[%c0_23, %c0_24] : memref<2x64xf32, #tpu.memory_space<vmem>>, vector<2x64xf32>
    tpu.vector_store %arg6[%c0_23, %c0_24], %39 {strides = array<i32>} : memref<2x64xf32, #tpu.memory_space<vmem>>, vector<2x64xf32>,
    return
  }
  func.func @transform_0(%arg0: i32) -> (i32, i32) {
    %c0_i32 = arith.constant 0 : i32
    %c0_i32_0 = arith.constant 0 : i32
    %c0_i32_1 = arith.constant 0 : i32
    return %c0_i32, %c0_i32_0 : i32, i32
  }
  func.func @transform_1(%arg0: i32) -> (i32, i32) {
    %c0_i32 = arith.constant 0 : i32
    %c0_i32_0 = arith.constant 0 : i32
    %c0_i32_1 = arith.constant 0 : i32
    return %c0_i32, %c0_i32_0 : i32, i32
  }
  func.func @transform_2(%arg0: i32) -> (i32, i32) {
    %c0_i32 = arith.constant 0 : i32
    %c0_i32_0 = arith.constant 0 : i32
    %c0_i32_1 = arith.constant 0 : i32
    return %c0_i32, %c0_i32_0 : i32, i32
  }
  func.func @transform_3(%arg0: i32) -> (i32, i32) {
    %c0_i32 = arith.constant 0 : i32
    %c0_i32_0 = arith.constant 0 : i32
    %c0_i32_1 = arith.constant 0 : i32
    return %c0_i32, %c0_i32_0 : i32, i32
  }
  func.func @transform_4(%arg0: i32) -> (i32, i32) {
    %c0_i32 = arith.constant 0 : i32
    %c0_i32_0 = arith.constant 0 : i32
    %c0_i32_1 = arith.constant 0 : i32
    return %c0_i32, %c0_i32_0 : i32, i32
  }
  func.func @transform_5(%arg0: i32) -> (i32, i32) {
    %c0_i32 = arith.constant 0 : i32
    %c0_i32_0 = arith.constant 0 : i32
    %c0_i32_1 = arith.constant 0 : i32
    return %c0_i32, %c0_i32_0 : i32, i32
  }
}

module attributes {stable_mosaic.version = 11 : i64} {
  func.func @_mlp_kernel(%arg0: i32, %arg1: memref<2x64xf32, #tpu.memory_space<vmem>>, %arg2: memref<64x1024xf32, #tpu.memory_space<vmem>>, %arg3: memref<1x1024xf32, #tpu.memory_space<vmem>>, %arg4: memref<1x1024xf32, #tpu.memory_space<vmem>>, %arg5: memref<1x1xf32, #tpu.memory_space<vmem>>, %arg6: memref<2x1xf32, #tpu.memory_space<vmem>>) attributes {dimension_semantics = [#tpu.dimension_semantics<arbitrary>], iteration_bounds = array<i64: 1>, scalar_prefetch = 0 : i64, scratch_operands = 0 : i64, tpu.core_type = #tpu.core_type<tc>, window_params = [{pipeline_mode = #tpu.pipeline_mode<synchronous>, transform_indices = @transform_0, window_bounds = array<i64: 2, 64>}, {pipeline_mode = #tpu.pipeline_mode<synchronous>, transform_indices = @transform_1, window_bounds = array<i64: 64, 1024>}, {pipeline_mode = #tpu.pipeline_mode<synchronous>, transform_indices = @transform_2, window_bounds = array<i64: 1, 1024>}, {pipeline_mode = #tpu.pipeline_mode<synchronous>, transform_indices = @transform_3, window_bounds = array<i64: 1, 1024>}, {pipeline_mode = #tpu.pipeline_mode<synchronous>, transform_indices = @transform_4, window_bounds = array<i64: 1, 1>}, {pipeline_mode = #tpu.pipeline_mode<synchronous>, transform_indices = @transform_5, window_bounds = array<i64: 2, 1>}]} {
    %c0 = arith.constant 0 : index
    %c0_0 = arith.constant 0 : index
    %0 = vector.load %arg1[%c0, %c0_0] : memref<2x64xf32, #tpu.memory_space<vmem>>, vector<2x64xf32>
    %c0_1 = arith.constant 0 : index
    %c0_2 = arith.constant 0 : index
    %1 = vector.load %arg2[%c0_1, %c0_2] : memref<64x1024xf32, #tpu.memory_space<vmem>>, vector<64x1024xf32>
    %cst = arith.constant dense<0.000000e+00> : vector<2x1024xf32>
    %2 = tpu.matmul %0, %1, %cst {dimension_numbers = #tpu.dot_dimension_numbers<[1], [0], [0], [1], [0, 0, 1, 1], [], []>} : vector<2x64xf32>, vector<64x1024xf32>, vector<2x1024xf32> -> vector<2x1024xf32>
    %c0_3 = arith.constant 0 : index
    %c0_4 = arith.constant 0 : index
    %3 = vector.load %arg3[%c0_3, %c0_4] : memref<1x1024xf32, #tpu.memory_space<vmem>>, vector<1x1024xf32>
    %4 = vector.broadcast %3 : vector<1x1024xf32> to vector<2x1024xf32>
    %5 = arith.addf %2, %4 : vector<2x1024xf32>
    %cst_5 = arith.constant 0.000000e+00 : f32
    %6 = vector.broadcast %cst_5 : f32 to vector<2x1024xf32>
    %7 = arith.cmpf oge, %5, %6 : vector<2x1024xf32>
    %cst_6 = arith.constant 2.000000e-01 : f32
    %8 = vector.broadcast %cst_6 : f32 to vector<2x1024xf32>
    %9 = arith.mulf %8, %5 : vector<2x1024xf32>
    %10 = arith.select %7, %5, %9 : vector<2x1024xi1>, vector<2x1024xf32>
    %c0_7 = arith.constant 0 : index
    %c0_8 = arith.constant 0 : index
    %11 = vector.load %arg4[%c0_7, %c0_8] : memref<1x1024xf32, #tpu.memory_space<vmem>>, vector<1x1024xf32>
    %12 = vector.broadcast %11 : vector<1x1024xf32> to vector<2x1024xf32>
    %13 = arith.mulf %10, %12 : vector<2x1024xf32>
    %cst_9 = arith.constant dense<0.000000e+00> : vector<2xf32>
    %14 = vector.multi_reduction <add>, %13, %cst_9 [1] : vector<2x1024xf32> to vector<2xf32>
    %15 = vector.shape_cast %14 : vector<2xf32> to vector<2x1xf32>
    %c0_10 = arith.constant 0 : index
    %c0_11 = arith.constant 0 : index
    %16 = vector.load %arg5[%c0_10, %c0_11] : memref<1x1xf32, #tpu.memory_space<vmem>>, vector<1x1xf32>
    %17 = vector.broadcast %16 : vector<1x1xf32> to vector<2x1xf32>
    %18 = arith.addf %15, %17 : vector<2x1xf32>
    %c0_12 = arith.constant 0 : index
    %c0_13 = arith.constant 0 : index
    %19 = vector.load %arg6[%c0_12, %c0_13] : memref<2x1xf32, #tpu.memory_space<vmem>>, vector<2x1xf32>
    tpu.vector_store %arg6[%c0_12, %c0_13], %18 {strides = array<i32>} : memref<2x1xf32, #tpu.memory_space<vmem>>, vector<2x1xf32>,
    return
  }
  func.func @transform_0(%arg0: i32) -> (i32, i32) {
    %c0_i32 = arith.constant 0 : i32
    %c0_i32_0 = arith.constant 0 : i32
    %c0_i32_1 = arith.constant 0 : i32
    return %c0_i32, %c0_i32_0 : i32, i32
  }
  func.func @transform_1(%arg0: i32) -> (i32, i32) {
    %c0_i32 = arith.constant 0 : i32
    %c0_i32_0 = arith.constant 0 : i32
    %c0_i32_1 = arith.constant 0 : i32
    return %c0_i32, %c0_i32_0 : i32, i32
  }
  func.func @transform_2(%arg0: i32) -> (i32, i32) {
    %c0_i32 = arith.constant 0 : i32
    %c0_i32_0 = arith.constant 0 : i32
    %c0_i32_1 = arith.constant 0 : i32
    return %c0_i32, %c0_i32_0 : i32, i32
  }
  func.func @transform_3(%arg0: i32) -> (i32, i32) {
    %c0_i32 = arith.constant 0 : i32
    %c0_i32_0 = arith.constant 0 : i32
    %c0_i32_1 = arith.constant 0 : i32
    return %c0_i32, %c0_i32_0 : i32, i32
  }
  func.func @transform_4(%arg0: i32) -> (i32, i32) {
    %c0_i32 = arith.constant 0 : i32
    %c0_i32_0 = arith.constant 0 : i32
    %c0_i32_1 = arith.constant 0 : i32
    return %c0_i32, %c0_i32_0 : i32, i32
  }
  func.func @transform_5(%arg0: i32) -> (i32, i32) {
    %c0_i32 = arith.constant 0 : i32
    %c0_i32_0 = arith.constant 0 : i32
    %c0_i32_1 = arith.constant 0 : i32
    return %c0_i32, %c0_i32_0 : i32, i32
  }
}

</mosaic_0001>

<llo_original>
// kernel: discriminator_forward.6
$region0: #{discriminator_forward.6}
  #allocation0 [shape = 'u32[]', space=smem, size = 0x4, offset = 0x4, fixed_abs, tag = 'smem constant byte address 0x4 - core index']
  #allocation1 [shape = 'u32[72,128]{1,0:T(1,128)}', space=vmem, size = 0x9000, scoped, tag = 'internal scratch']
  #allocation2 [shape = 'f32[2048,64]{1,0:T(8,128)}', space=vmem, size = 0x100000, scoped, tag = 'scratch operand']
  %s0 = inlined_call_operand.vmem [shape: f32[2048,27], index: 0, kind: input, shape index: {}]
  %s1 = inlined_call_operand.vmem [shape: f32[27,64], index: 1, kind: input, shape index: {}]
  %s2 = inlined_call_operand.vmem [shape: f32[1,64], index: 2, kind: input, shape index: {}]
  %s3 = inlined_call_operand.vmem [shape: f32[1,64], index: 3, kind: input, shape index: {}]
  %s4 = inlined_call_operand.vmem [shape: f32[1,64], index: 4, kind: input, shape index: {}]
  %s5 = inlined_call_operand.vmem [shape: f32[512,64], index: 5, kind: output, shape index: {}]
  %s6 = sld [smem:[#allocation0]]
  $region30: #{discriminator_forward.6} parent=0
    _
  %s8 = ssub.s32 1, %s6
  %s9 = scalar_select 0, %s8, %s6
  // Predicated region
  $region2: #{discriminator_forward.6} parent=0 // pred_check
    _
  $region3: #{discriminator_forward.6} parent=0 // pred_check_branch
    %11 = sbr.rel (0) target = $region5
  $region4: #{discriminator_forward.6} parent=0 // pred_region
    _
  $region5: #{discriminator_forward.6} parent=0 // pred_fallthru
    _
  // Predicated region
  $region6: #{discriminator_forward.6} parent=0 // pred_check
    _
  $region7: #{discriminator_forward.6} parent=0 // pred_check_branch
    %13 = sbr.rel (0) target = $region9
  $region8: #{discriminator_forward.6} parent=0 // pred_region
    _
  $region9: #{discriminator_forward.6} parent=0 // pred_fallthru
    _
  // Predicated region
  $region10: #{discriminator_forward.6} parent=0 // pred_check
    _
  $region11: #{discriminator_forward.6} parent=0 // pred_check_branch
    %15 = sbr.rel (0) target = $region13
  $region12: #{discriminator_forward.6} parent=0 // pred_region
    _
  $region13: #{discriminator_forward.6} parent=0 // pred_fallthru
    _
  // Predicated region
  $region14: #{discriminator_forward.6} parent=0 // pred_check
    _
  $region15: #{discriminator_forward.6} parent=0 // pred_check_branch
    %17 = sbr.rel (0) target = $region17
  $region16: #{discriminator_forward.6} parent=0 // pred_region
    _
  $region17: #{discriminator_forward.6} parent=0 // pred_fallthru
    _
  // Predicated region
  $region18: #{discriminator_forward.6} parent=0 // pred_check
    _
  $region19: #{discriminator_forward.6} parent=0 // pred_check_branch
    %19 = sbr.rel (0) target = $region21
  $region20: #{discriminator_forward.6} parent=0 // pred_region
    _
  $region21: #{discriminator_forward.6} parent=0 // pred_fallthru
    _
  %v20 = vld [vmem:[%s0] sm:$0xff]
  %v21 = vld [vmem:[%s0 + $0x8] sm:$0xff]
  %v22 = vld [vmem:[%s0 + $0x10] sm:$0xff]
  %v23 = vld [vmem:[%s0 + $0x18] sm:$0xff]
  %v24 = vld [vmem:[%s0 + $0x20] sm:$0xff]
  %v25 = vld [vmem:[%s0 + $0x28] sm:$0xff]
  %v26 = vld [vmem:[%s0 + $0x30] sm:$0xff]
  %v27 = vld [vmem:[%s0 + $0x38] sm:$0xff]
  %v28 = vld [vmem:[%s0 + $0x40] sm:$0xff]
  %v29 = vld [vmem:[%s0 + $0x48] sm:$0xff]
  %v30 = vld [vmem:[%s0 + $0x50] sm:$0xff]
  %v31 = vld [vmem:[%s0 + $0x58] sm:$0xff]
  %v32 = vld [vmem:[%s0 + $0x60] sm:$0xff]
  %v33 = vld [vmem:[%s0 + $0x68] sm:$0xff]
  %v34 = vld [vmem:[%s0 + $0x70] sm:$0xff]
  %v35 = vld [vmem:[%s0 + $0x78] sm:$0xff]
  %v36 = vld [vmem:[%s0 + $0x80] sm:$0xff]
  %v37 = vld [vmem:[%s0 + $0x88] sm:$0xff]
  %v38 = vld [vmem:[%s0 + $0x90] sm:$0xff]
  %v39 = vld [vmem:[%s0 + $0x98] sm:$0xff]
  %v40 = vld [vmem:[%s0 + $0xa0] sm:$0xff]
  %v41 = vld [vmem:[%s0 + $0xa8] sm:$0xff]
  %v42 = vld [vmem:[%s0 + $0xb0] sm:$0xff]
  %v43 = vld [vmem:[%s0 + $0xb8] sm:$0xff]
  %v44 = vld [vmem:[%s0 + $0xc0] sm:$0xff]
  %v45 = vld [vmem:[%s0 + $0xc8] sm:$0xff]
  %v46 = vld [vmem:[%s0 + $0xd0] sm:$0xff]
  %v47 = vld [vmem:[%s0 + $0xd8] sm:$0xff]
  %v48 = vld [vmem:[%s0 + $0xe0] sm:$0xff]
  %v49 = vld [vmem:[%s0 + $0xe8] sm:$0xff]
  %v50 = vld [vmem:[%s0 + $0xf0] sm:$0xff]
  %v51 = vld [vmem:[%s0 + $0xf8] sm:$0xff]
  %v52 = vld [vmem:[%s0 + $0x100] sm:$0xff]
  %v53 = vld [vmem:[%s0 + $0x108] sm:$0xff]
  %v54 = vld [vmem:[%s0 + $0x110] sm:$0xff]
  %v55 = vld [vmem:[%s0 + $0x118] sm:$0xff]
  %v56 = vld [vmem:[%s0 + $0x120] sm:$0xff]
  %v57 = vld [vmem:[%s0 + $0x128] sm:$0xff]
  %v58 = vld [vmem:[%s0 + $0x130] sm:$0xff]
  %v59 = vld [vmem:[%s0 + $0x138] sm:$0xff]
  %v60 = vld [vmem:[%s0 + $0x140] sm:$0xff]
  %v61 = vld [vmem:[%s0 + $0x148] sm:$0xff]
  %v62 = vld [vmem:[%s0 + $0x150] sm:$0xff]
  %v63 = vld [vmem:[%s0 + $0x158] sm:$0xff]
  %v64 = vld [vmem:[%s0 + $0x160] sm:$0xff]
  %v65 = vld [vmem:[%s0 + $0x168] sm:$0xff]
  %v66 = vld [vmem:[%s0 + $0x170] sm:$0xff]
  %v67 = vld [vmem:[%s0 + $0x178] sm:$0xff]
  %v68 = vld [vmem:[%s0 + $0x180] sm:$0xff]
  %v69 = vld [vmem:[%s0 + $0x188] sm:$0xff]
  %v70 = vld [vmem:[%s0 + $0x190] sm:$0xff]
  %v71 = vld [vmem:[%s0 + $0x198] sm:$0xff]
  %v72 = vld [vmem:[%s0 + $0x1a0] sm:$0xff]
  %v73 = vld [vmem:[%s0 + $0x1a8] sm:$0xff]
  %v74 = vld [vmem:[%s0 + $0x1b0] sm:$0xff]
  %v75 = vld [vmem:[%s0 + $0x1b8] sm:$0xff]
  %v76 = vld [vmem:[%s0 + $0x1c0] sm:$0xff]
  %v77 = vld [vmem:[%s0 + $0x1c8] sm:$0xff]
  %v78 = vld [vmem:[%s0 + $0x1d0] sm:$0xff]
  %v79 = vld [vmem:[%s0 + $0x1d8] sm:$0xff]
  %v80 = vld [vmem:[%s0 + $0x1e0] sm:$0xff]
  %v81 = vld [vmem:[%s0 + $0x1e8] sm:$0xff]
  %v82 = vld [vmem:[%s0 + $0x1f0] sm:$0xff]
  %v83 = vld [vmem:[%s0 + $0x1f8] sm:$0xff]
  %v84 = vld [vmem:[%s0 + $0x200] sm:$0xff]
  %v85 = vld [vmem:[%s0 + $0x208] sm:$0xff]
  %v86 = vld [vmem:[%s0 + $0x210] sm:$0xff]
  %v87 = vld [vmem:[%s0 + $0x218] sm:$0xff]
  %v88 = vld [vmem:[%s0 + $0x220] sm:$0xff]
  %v89 = vld [vmem:[%s0 + $0x228] sm:$0xff]
  %v90 = vld [vmem:[%s0 + $0x230] sm:$0xff]
  %v91 = vld [vmem:[%s0 + $0x238] sm:$0xff]
  %v92 = vld [vmem:[%s0 + $0x240] sm:$0xff]
  %v93 = vld [vmem:[%s0 + $0x248] sm:$0xff]
  %v94 = vld [vmem:[%s0 + $0x250] sm:$0xff]
  %v95 = vld [vmem:[%s0 + $0x258] sm:$0xff]
  %v96 = vld [vmem:[%s0 + $0x260] sm:$0xff]
  %v97 = vld [vmem:[%s0 + $0x268] sm:$0xff]
  %v98 = vld [vmem:[%s0 + $0x270] sm:$0xff]
  %v99 = vld [vmem:[%s0 + $0x278] sm:$0xff]
  %v100 = vld [vmem:[%s0 + $0x280] sm:$0xff]
  %v101 = vld [vmem:[%s0 + $0x288] sm:$0xff]
  %v102 = vld [vmem:[%s0 + $0x290] sm:$0xff]
  %v103 = vld [vmem:[%s0 + $0x298] sm:$0xff]
  %v104 = vld [vmem:[%s0 + $0x2a0] sm:$0xff]
  %v105 = vld [vmem:[%s0 + $0x2a8] sm:$0xff]
  %v106 = vld [vmem:[%s0 + $0x2b0] sm:$0xff]
  %v107 = vld [vmem:[%s0 + $0x2b8] sm:$0xff]
  %v108 = vld [vmem:[%s0 + $0x2c0] sm:$0xff]
  %v109 = vld [vmem:[%s0 + $0x2c8] sm:$0xff]
  %v110 = vld [vmem:[%s0 + $0x2d0] sm:$0xff]
  %v111 = vld [vmem:[%s0 + $0x2d8] sm:$0xff]
  %v112 = vld [vmem:[%s0 + $0x2e0] sm:$0xff]
  %v113 = vld [vmem:[%s0 + $0x2e8] sm:$0xff]
  %v114 = vld [vmem:[%s0 + $0x2f0] sm:$0xff]
  %v115 = vld [vmem:[%s0 + $0x2f8] sm:$0xff]
  %v116 = vld [vmem:[%s0 + $0x300] sm:$0xff]
  %v117 = vld [vmem:[%s0 + $0x308] sm:$0xff]
  %v118 = vld [vmem:[%s0 + $0x310] sm:$0xff]
  %v119 = vld [vmem:[%s0 + $0x318] sm:$0xff]
  %v120 = vld [vmem:[%s0 + $0x320] sm:$0xff]
  %v121 = vld [vmem:[%s0 + $0x328] sm:$0xff]
  %v122 = vld [vmem:[%s0 + $0x330] sm:$0xff]
  %v123 = vld [vmem:[%s0 + $0x338] sm:$0xff]
  %v124 = vld [vmem:[%s0 + $0x340] sm:$0xff]
  %v125 = vld [vmem:[%s0 + $0x348] sm:$0xff]
  %v126 = vld [vmem:[%s0 + $0x350] sm:$0xff]
  %v127 = vld [vmem:[%s0 + $0x358] sm:$0xff]
  %v128 = vld [vmem:[%s0 + $0x360] sm:$0xff]
  %v129 = vld [vmem:[%s0 + $0x368] sm:$0xff]
  %v130 = vld [vmem:[%s0 + $0x370] sm:$0xff]
  %v131 = vld [vmem:[%s0 + $0x378] sm:$0xff]
  %v132 = vld [vmem:[%s0 + $0x380] sm:$0xff]
  %v133 = vld [vmem:[%s0 + $0x388] sm:$0xff]
  %v134 = vld [vmem:[%s0 + $0x390] sm:$0xff]
  %v135 = vld [vmem:[%s0 + $0x398] sm:$0xff]
  %v136 = vld [vmem:[%s0 + $0x3a0] sm:$0xff]
  %v137 = vld [vmem:[%s0 + $0x3a8] sm:$0xff]
  %v138 = vld [vmem:[%s0 + $0x3b0] sm:$0xff]
  %v139 = vld [vmem:[%s0 + $0x3b8] sm:$0xff]
  %v140 = vld [vmem:[%s0 + $0x3c0] sm:$0xff]
  %v141 = vld [vmem:[%s0 + $0x3c8] sm:$0xff]
  %v142 = vld [vmem:[%s0 + $0x3d0] sm:$0xff]
  %v143 = vld [vmem:[%s0 + $0x3d8] sm:$0xff]
  %v144 = vld [vmem:[%s0 + $0x3e0] sm:$0xff]
  %v145 = vld [vmem:[%s0 + $0x3e8] sm:$0xff]
  %v146 = vld [vmem:[%s0 + $0x3f0] sm:$0xff]
  %v147 = vld [vmem:[%s0 + $0x3f8] sm:$0xff]
  %v148 = vld [vmem:[%s0 + $0x400] sm:$0xff]
  %v149 = vld [vmem:[%s0 + $0x408] sm:$0xff]
  %v150 = vld [vmem:[%s0 + $0x410] sm:$0xff]
  %v151 = vld [vmem:[%s0 + $0x418] sm:$0xff]
  %v152 = vld [vmem:[%s0 + $0x420] sm:$0xff]
  %v153 = vld [vmem:[%s0 + $0x428] sm:$0xff]
  %v154 = vld [vmem:[%s0 + $0x430] sm:$0xff]
  %v155 = vld [vmem:[%s0 + $0x438] sm:$0xff]
  %v156 = vld [vmem:[%s0 + $0x440] sm:$0xff]
  %v157 = vld [vmem:[%s0 + $0x448] sm:$0xff]
  %v158 = vld [vmem:[%s0 + $0x450] sm:$0xff]
  %v159 = vld [vmem:[%s0 + $0x458] sm:$0xff]
  %v160 = vld [vmem:[%s0 + $0x460] sm:$0xff]
  %v161 = vld [vmem:[%s0 + $0x468] sm:$0xff]
  %v162 = vld [vmem:[%s0 + $0x470] sm:$0xff]
  %v163 = vld [vmem:[%s0 + $0x478] sm:$0xff]
  %v164 = vld [vmem:[%s0 + $0x480] sm:$0xff]
  %v165 = vld [vmem:[%s0 + $0x488] sm:$0xff]
  %v166 = vld [vmem:[%s0 + $0x490] sm:$0xff]
  %v167 = vld [vmem:[%s0 + $0x498] sm:$0xff]
  %v168 = vld [vmem:[%s0 + $0x4a0] sm:$0xff]
  %v169 = vld [vmem:[%s0 + $0x4a8] sm:$0xff]
  %v170 = vld [vmem:[%s0 + $0x4b0] sm:$0xff]
  %v171 = vld [vmem:[%s0 + $0x4b8] sm:$0xff]
  %v172 = vld [vmem:[%s0 + $0x4c0] sm:$0xff]
  %v173 = vld [vmem:[%s0 + $0x4c8] sm:$0xff]
  %v174 = vld [vmem:[%s0 + $0x4d0] sm:$0xff]
  %v175 = vld [vmem:[%s0 + $0x4d8] sm:$0xff]
  %v176 = vld [vmem:[%s0 + $0x4e0] sm:$0xff]
  %v177 = vld [vmem:[%s0 + $0x4e8] sm:$0xff]
  %v178 = vld [vmem:[%s0 + $0x4f0] sm:$0xff]
  %v179 = vld [vmem:[%s0 + $0x4f8] sm:$0xff]
  %v180 = vld [vmem:[%s0 + $0x500] sm:$0xff]
  %v181 = vld [vmem:[%s0 + $0x508] sm:$0xff]
  %v182 = vld [vmem:[%s0 + $0x510] sm:$0xff]
  %v183 = vld [vmem:[%s0 + $0x518] sm:$0xff]
  %v184 = vld [vmem:[%s0 + $0x520] sm:$0xff]
  %v185 = vld [vmem:[%s0 + $0x528] sm:$0xff]
  %v186 = vld [vmem:[%s0 + $0x530] sm:$0xff]
  %v187 = vld [vmem:[%s0 + $0x538] sm:$0xff]
  %v188 = vld [vmem:[%s0 + $0x540] sm:$0xff]
  %v189 = vld [vmem:[%s0 + $0x548] sm:$0xff]
  %v190 = vld [vmem:[%s0 + $0x550] sm:$0xff]
  %v191 = vld [vmem:[%s0 + $0x558] sm:$0xff]
  %v192 = vld [vmem:[%s0 + $0x560] sm:$0xff]
  %v193 = vld [vmem:[%s0 + $0x568] sm:$0xff]
  %v194 = vld [vmem:[%s0 + $0x570] sm:$0xff]
  %v195 = vld [vmem:[%s0 + $0x578] sm:$0xff]
  %v196 = vld [vmem:[%s0 + $0x580] sm:$0xff]
  %v197 = vld [vmem:[%s0 + $0x588] sm:$0xff]
  %v198 = vld [vmem:[%s0 + $0x590] sm:$0xff]
  %v199 = vld [vmem:[%s0 + $0x598] sm:$0xff]
  %v200 = vld [vmem:[%s0 + $0x5a0] sm:$0xff]
  %v201 = vld [vmem:[%s0 + $0x5a8] sm:$0xff]
  %v202 = vld [vmem:[%s0 + $0x5b0] sm:$0xff]
  %v203 = vld [vmem:[%s0 + $0x5b8] sm:$0xff]
  %v204 = vld [vmem:[%s0 + $0x5c0] sm:$0xff]
  %v205 = vld [vmem:[%s0 + $0x5c8] sm:$0xff]
  %v206 = vld [vmem:[%s0 + $0x5d0] sm:$0xff]
  %v207 = vld [vmem:[%s0 + $0x5d8] sm:$0xff]
  %v208 = vld [vmem:[%s0 + $0x5e0] sm:$0xff]
  %v209 = vld [vmem:[%s0 + $0x5e8] sm:$0xff]
  %v210 = vld [vmem:[%s0 + $0x5f0] sm:$0xff]
  %v211 = vld [vmem:[%s0 + $0x5f8] sm:$0xff]
  %v212 = vld [vmem:[%s0 + $0x600] sm:$0xff]
  %v213 = vld [vmem:[%s0 + $0x608] sm:$0xff]
  %v214 = vld [vmem:[%s0 + $0x610] sm:$0xff]
  %v215 = vld [vmem:[%s0 + $0x618] sm:$0xff]
  %v216 = vld [vmem:[%s0 + $0x620] sm:$0xff]
  %v217 = vld [vmem:[%s0 + $0x628] sm:$0xff]
  %v218 = vld [vmem:[%s0 + $0x630] sm:$0xff]
  %v219 = vld [vmem:[%s0 + $0x638] sm:$0xff]
  %v220 = vld [vmem:[%s0 + $0x640] sm:$0xff]
  %v221 = vld [vmem:[%s0 + $0x648] sm:$0xff]
  %v222 = vld [vmem:[%s0 + $0x650] sm:$0xff]
  %v223 = vld [vmem:[%s0 + $0x658] sm:$0xff]
  %v224 = vld [vmem:[%s0 + $0x660] sm:$0xff]
  %v225 = vld [vmem:[%s0 + $0x668] sm:$0xff]
  %v226 = vld [vmem:[%s0 + $0x670] sm:$0xff]
  %v227 = vld [vmem:[%s0 + $0x678] sm:$0xff]
  %v228 = vld [vmem:[%s0 + $0x680] sm:$0xff]
  %v229 = vld [vmem:[%s0 + $0x688] sm:$0xff]
  %v230 = vld [vmem:[%s0 + $0x690] sm:$0xff]
  %v231 = vld [vmem:[%s0 + $0x698] sm:$0xff]
  %v232 = vld [vmem:[%s0 + $0x6a0] sm:$0xff]
  %v233 = vld [vmem:[%s0 + $0x6a8] sm:$0xff]
  %v234 = vld [vmem:[%s0 + $0x6b0] sm:$0xff]
  %v235 = vld [vmem:[%s0 + $0x6b8] sm:$0xff]
  %v236 = vld [vmem:[%s0 + $0x6c0] sm:$0xff]
  %v237 = vld [vmem:[%s0 + $0x6c8] sm:$0xff]
  %v238 = vld [vmem:[%s0 + $0x6d0] sm:$0xff]
  %v239 = vld [vmem:[%s0 + $0x6d8] sm:$0xff]
  %v240 = vld [vmem:[%s0 + $0x6e0] sm:$0xff]
  %v241 = vld [vmem:[%s0 + $0x6e8] sm:$0xff]
  %v242 = vld [vmem:[%s0 + $0x6f0] sm:$0xff]
  %v243 = vld [vmem:[%s0 + $0x6f8] sm:$0xff]
  %v244 = vld [vmem:[%s0 + $0x700] sm:$0xff]
  %v245 = vld [vmem:[%s0 + $0x708] sm:$0xff]
  %v246 = vld [vmem:[%s0 + $0x710] sm:$0xff]
  %v247 = vld [vmem:[%s0 + $0x718] sm:$0xff]
  %v248 = vld [vmem:[%s0 + $0x720] sm:$0xff]
  %v249 = vld [vmem:[%s0 + $0x728] sm:$0xff]
  %v250 = vld [vmem:[%s0 + $0x730] sm:$0xff]
  %v251 = vld [vmem:[%s0 + $0x738] sm:$0xff]
  %v252 = vld [vmem:[%s0 + $0x740] sm:$0xff]
  %v253 = vld [vmem:[%s0 + $0x748] sm:$0xff]
  %v254 = vld [vmem:[%s0 + $0x750] sm:$0xff]
  %v255 = vld [vmem:[%s0 + $0x758] sm:$0xff]
  %v256 = vld [vmem:[%s0 + $0x760] sm:$0xff]
  %v257 = vld [vmem:[%s0 + $0x768] sm:$0xff]
  %v258 = vld [vmem:[%s0 + $0x770] sm:$0xff]
  %v259 = vld [vmem:[%s0 + $0x778] sm:$0xff]
  %v260 = vld [vmem:[%s0 + $0x780] sm:$0xff]
  %v261 = vld [vmem:[%s0 + $0x788] sm:$0xff]
  %v262 = vld [vmem:[%s0 + $0x790] sm:$0xff]
  %v263 = vld [vmem:[%s0 + $0x798] sm:$0xff]
  %v264 = vld [vmem:[%s0 + $0x7a0] sm:$0xff]
  %v265 = vld [vmem:[%s0 + $0x7a8] sm:$0xff]
  %v266 = vld [vmem:[%s0 + $0x7b0] sm:$0xff]
  %v267 = vld [vmem:[%s0 + $0x7b8] sm:$0xff]
  %v268 = vld [vmem:[%s0 + $0x7c0] sm:$0xff]
  %v269 = vld [vmem:[%s0 + $0x7c8] sm:$0xff]
  %v270 = vld [vmem:[%s0 + $0x7d0] sm:$0xff]
  %v271 = vld [vmem:[%s0 + $0x7d8] sm:$0xff]
  %v272 = vld [vmem:[%s0 + $0x7e0] sm:$0xff]
  %v273 = vld [vmem:[%s0 + $0x7e8] sm:$0xff]
  %v274 = vld [vmem:[%s0 + $0x7f0] sm:$0xff]
  %v275 = vld [vmem:[%s0 + $0x7f8] sm:$0xff]
  %v276 = vld [vmem:[%s1] sm:$0xff]
  %v277 = vld [vmem:[%s1 + $0x8] sm:$0xff]
  %v278 = vld [vmem:[%s1 + $0x10] sm:$0xff]
  %v279 = vld [vmem:[%s1 + $0x18] sm:$0x7]
  %v280 = vld [vmem:[%s2] sm:$0x1]
  %v282 = vperm.slane %v280, 0
  %vm284 = vcmask 220160
  %v286 = vsel %vm284, %v20, 0
  %v289 = vsel %vm284, %v21, 0
  %v292 = vsel %vm284, %v22, 0
  %v295 = vsel %vm284, %v23, 0
  %v298 = vsel %vm284, %v24, 0
  %v301 = vsel %vm284, %v25, 0
  %v304 = vsel %vm284, %v26, 0
  %v307 = vsel %vm284, %v27, 0
  %v310 = vsel %vm284, %v28, 0
  %v313 = vsel %vm284, %v29, 0
  %v316 = vsel %vm284, %v30, 0
  %v319 = vsel %vm284, %v31, 0
  %v322 = vsel %vm284, %v32, 0
  %v325 = vsel %vm284, %v33, 0
  %v328 = vsel %vm284, %v34, 0
  %v331 = vsel %vm284, %v35, 0
  %v334 = vsel %vm284, %v36, 0
  %v337 = vsel %vm284, %v37, 0
  %v340 = vsel %vm284, %v38, 0
  %v343 = vsel %vm284, %v39, 0
  %v346 = vsel %vm284, %v40, 0
  %v349 = vsel %vm284, %v41, 0
  %v352 = vsel %vm284, %v42, 0
  %v355 = vsel %vm284, %v43, 0
  %v358 = vsel %vm284, %v44, 0
  %v361 = vsel %vm284, %v45, 0
  %v364 = vsel %vm284, %v46, 0
  %v367 = vsel %vm284, %v47, 0
  %v370 = vsel %vm284, %v48, 0
  %v373 = vsel %vm284, %v49, 0
  %v376 = vsel %vm284, %v50, 0
  %v379 = vsel %vm284, %v51, 0
  %v382 = vsel %vm284, %v52, 0
  %v385 = vsel %vm284, %v53, 0
  %v388 = vsel %vm284, %v54, 0
  %v391 = vsel %vm284, %v55, 0
  %v394 = vsel %vm284, %v56, 0
  %v397 = vsel %vm284, %v57, 0
  %v400 = vsel %vm284, %v58, 0
  %v403 = vsel %vm284, %v59, 0
  %v406 = vsel %vm284, %v60, 0
  %v409 = vsel %vm284, %v61, 0
  %v412 = vsel %vm284, %v62, 0
  %v415 = vsel %vm284, %v63, 0
  %v418 = vsel %vm284, %v64, 0
  %v421 = vsel %vm284, %v65, 0
  %v424 = vsel %vm284, %v66, 0
  %v427 = vsel %vm284, %v67, 0
  %v430 = vsel %vm284, %v68, 0
  %v433 = vsel %vm284, %v69, 0
  %v436 = vsel %vm284, %v70, 0
  %v439 = vsel %vm284, %v71, 0
  %v442 = vsel %vm284, %v72, 0
  %v445 = vsel %vm284, %v73, 0
  %v448 = vsel %vm284, %v74, 0
  %v451 = vsel %vm284, %v75, 0
  %v454 = vsel %vm284, %v76, 0
  %v457 = vsel %vm284, %v77, 0
  %v460 = vsel %vm284, %v78, 0
  %v463 = vsel %vm284, %v79, 0
  %v466 = vsel %vm284, %v80, 0
  %v469 = vsel %vm284, %v81, 0
  %v472 = vsel %vm284, %v82, 0
  %v475 = vsel %vm284, %v83, 0
  %v478 = vsel %vm284, %v84, 0
  %v481 = vsel %vm284, %v85, 0
  %v484 = vsel %vm284, %v86, 0
  %v487 = vsel %vm284, %v87, 0
  %v490 = vsel %vm284, %v88, 0
  %v493 = vsel %vm284, %v89, 0
  %v496 = vsel %vm284, %v90, 0
  %v499 = vsel %vm284, %v91, 0
  %v502 = vsel %vm284, %v92, 0
  %v505 = vsel %vm284, %v93, 0
  %v508 = vsel %vm284, %v94, 0
  %v511 = vsel %vm284, %v95, 0
  %v514 = vsel %vm284, %v96, 0
  %v517 = vsel %vm284, %v97, 0
  %v520 = vsel %vm284, %v98, 0
  %v523 = vsel %vm284, %v99, 0
  %v526 = vsel %vm284, %v100, 0
  %v529 = vsel %vm284, %v101, 0
  %v532 = vsel %vm284, %v102, 0
  %v535 = vsel %vm284, %v103, 0
  %v538 = vsel %vm284, %v104, 0
  %v541 = vsel %vm284, %v105, 0
  %v544 = vsel %vm284, %v106, 0
  %v547 = vsel %vm284, %v107, 0
  %v550 = vsel %vm284, %v108, 0
  %v553 = vsel %vm284, %v109, 0
  %v556 = vsel %vm284, %v110, 0
  %v559 = vsel %vm284, %v111, 0
  %v562 = vsel %vm284, %v112, 0
  %v565 = vsel %vm284, %v113, 0
  %v568 = vsel %vm284, %v114, 0
  %v571 = vsel %vm284, %v115, 0
  %v574 = vsel %vm284, %v116, 0
  %v577 = vsel %vm284, %v117, 0
  %v580 = vsel %vm284, %v118, 0
  %v583 = vsel %vm284, %v119, 0
  %v586 = vsel %vm284, %v120, 0
  %v589 = vsel %vm284, %v121, 0
  %v592 = vsel %vm284, %v122, 0
  %v595 = vsel %vm284, %v123, 0
  %v598 = vsel %vm284, %v124, 0
  %v601 = vsel %vm284, %v125, 0
  %v604 = vsel %vm284, %v126, 0
  %v607 = vsel %vm284, %v127, 0
  %v610 = vsel %vm284, %v128, 0
  %v613 = vsel %vm284, %v129, 0
  %v616 = vsel %vm284, %v130, 0
  %v619 = vsel %vm284, %v131, 0
  %v622 = vsel %vm284, %v132, 0
  %v625 = vsel %vm284, %v133, 0
  %v628 = vsel %vm284, %v134, 0
  %v631 = vsel %vm284, %v135, 0
  %v634 = vsel %vm284, %v136, 0
  %v637 = vsel %vm284, %v137, 0
  %v640 = vsel %vm284, %v138, 0
  %v643 = vsel %vm284, %v139, 0
  %v646 = vsel %vm284, %v140, 0
  %v649 = vsel %vm284, %v141, 0
  %v652 = vsel %vm284, %v142, 0
  %v655 = vsel %vm284, %v143, 0
  %v658 = vsel %vm284, %v144, 0
  %v661 = vsel %vm284, %v145, 0
  %v664 = vsel %vm284, %v146, 0
  %v667 = vsel %vm284, %v147, 0
  %v670 = vsel %vm284, %v148, 0
  %v673 = vsel %vm284, %v149, 0
  %v676 = vsel %vm284, %v150, 0
  %v679 = vsel %vm284, %v151, 0
  %v682 = vsel %vm284, %v152, 0
  %v685 = vsel %vm284, %v153, 0
  %v688 = vsel %vm284, %v154, 0
  %v691 = vsel %vm284, %v155, 0
  %v694 = vsel %vm284, %v156, 0
  %v697 = vsel %vm284, %v157, 0
  %v700 = vsel %vm284, %v158, 0
  %v703 = vsel %vm284, %v159, 0
  %v706 = vsel %vm284, %v160, 0
  %v709 = vsel %vm284, %v161, 0
  %v712 = vsel %vm284, %v162, 0
  %v715 = vsel %vm284, %v163, 0
  %v718 = vsel %vm284, %v164, 0
  %v721 = vsel %vm284, %v165, 0
  %v724 = vsel %vm284, %v166, 0
  %v727 = vsel %vm284, %v167, 0
  %v730 = vsel %vm284, %v168, 0
  %v733 = vsel %vm284, %v169, 0
  %v736 = vsel %vm284, %v170, 0
  %v739 = vsel %vm284, %v171, 0
  %v742 = vsel %vm284, %v172, 0
  %v745 = vsel %vm284, %v173, 0
  %v748 = vsel %vm284, %v174, 0
  %v751 = vsel %vm284, %v175, 0
  %v754 = vsel %vm284, %v176, 0
  %v757 = vsel %vm284, %v177, 0
  %v760 = vsel %vm284, %v178, 0
  %v763 = vsel %vm284, %v179, 0
  %v766 = vsel %vm284, %v180, 0
  %v769 = vsel %vm284, %v181, 0
  %v772 = vsel %vm284, %v182, 0
  %v775 = vsel %vm284, %v183, 0
  %v778 = vsel %vm284, %v184, 0
  %v781 = vsel %vm284, %v185, 0
  %v784 = vsel %vm284, %v186, 0
  %v787 = vsel %vm284, %v187, 0
  %v790 = vsel %vm284, %v188, 0
  %v793 = vsel %vm284, %v189, 0
  %v796 = vsel %vm284, %v190, 0
  %v799 = vsel %vm284, %v191, 0
  %v802 = vsel %vm284, %v192, 0
  %v805 = vsel %vm284, %v193, 0
  %v808 = vsel %vm284, %v194, 0
  %v811 = vsel %vm284, %v195, 0
  %v814 = vsel %vm284, %v196, 0
  %v817 = vsel %vm284, %v197, 0
  %v820 = vsel %vm284, %v198, 0
  %v823 = vsel %vm284, %v199, 0
  %v826 = vsel %vm284, %v200, 0
  %v829 = vsel %vm284, %v201, 0
  %v832 = vsel %vm284, %v202, 0
  %v835 = vsel %vm284, %v203, 0
  %v838 = vsel %vm284, %v204, 0
  %v841 = vsel %vm284, %v205, 0
  %v844 = vsel %vm284, %v206, 0
  %v847 = vsel %vm284, %v207, 0
  %v850 = vsel %vm284, %v208, 0
  %v853 = vsel %vm284, %v209, 0
  %v856 = vsel %vm284, %v210, 0
  %v859 = vsel %vm284, %v211, 0
  %v862 = vsel %vm284, %v212, 0
  %v865 = vsel %vm284, %v213, 0
  %v868 = vsel %vm284, %v214, 0
  %v871 = vsel %vm284, %v215, 0
  %v874 = vsel %vm284, %v216, 0
  %v877 = vsel %vm284, %v217, 0
  %v880 = vsel %vm284, %v218, 0
  %v883 = vsel %vm284, %v219, 0
  %v886 = vsel %vm284, %v220, 0
  %v889 = vsel %vm284, %v221, 0
  %v892 = vsel %vm284, %v222, 0
  %v895 = vsel %vm284, %v223, 0
  %v898 = vsel %vm284, %v224, 0
  %v901 = vsel %vm284, %v225, 0
  %v904 = vsel %vm284, %v226, 0
  %v907 = vsel %vm284, %v227, 0
  %v910 = vsel %vm284, %v228, 0
  %v913 = vsel %vm284, %v229, 0
  %v916 = vsel %vm284, %v230, 0
  %v919 = vsel %vm284, %v231, 0
  %v922 = vsel %vm284, %v232, 0
  %v925 = vsel %vm284, %v233, 0
  %v928 = vsel %vm284, %v234, 0
  %v931 = vsel %vm284, %v235, 0
  %v934 = vsel %vm284, %v236, 0
  %v937 = vsel %vm284, %v237, 0
  %v940 = vsel %vm284, %v238, 0
  %v943 = vsel %vm284, %v239, 0
  %v946 = vsel %vm284, %v240, 0
  %v949 = vsel %vm284, %v241, 0
  %v952 = vsel %vm284, %v242, 0
  %v955 = vsel %vm284, %v243, 0
  %v958 = vsel %vm284, %v244, 0
  %v961 = vsel %vm284, %v245, 0
  %v964 = vsel %vm284, %v246, 0
  %v967 = vsel %vm284, %v247, 0
  %v970 = vsel %vm284, %v248, 0
  %v973 = vsel %vm284, %v249, 0
  %v976 = vsel %vm284, %v250, 0
  %v979 = vsel %vm284, %v251, 0
  %v982 = vsel %vm284, %v252, 0
  %v985 = vsel %vm284, %v253, 0
  %v988 = vsel %vm284, %v254, 0
  %v991 = vsel %vm284, %v255, 0
  %v994 = vsel %vm284, %v256, 0
  %v997 = vsel %vm284, %v257, 0
  %v1000 = vsel %vm284, %v258, 0
  %v1003 = vsel %vm284, %v259, 0
  %v1006 = vsel %vm284, %v260, 0
  %v1009 = vsel %vm284, %v261, 0
  %v1012 = vsel %vm284, %v262, 0
  %v1015 = vsel %vm284, %v263, 0
  %v1018 = vsel %vm284, %v264, 0
  %v1021 = vsel %vm284, %v265, 0
  %v1024 = vsel %vm284, %v266, 0
  %v1027 = vsel %vm284, %v267, 0
  %v1030 = vsel %vm284, %v268, 0
  %v1033 = vsel %vm284, %v269, 0
  %v1036 = vsel %vm284, %v270, 0
  %v1039 = vsel %vm284, %v271, 0
  %v1042 = vsel %vm284, %v272, 0
  %v1045 = vsel %vm284, %v273, 0
  %v1048 = vsel %vm284, %v274, 0
  %v1051 = vsel %vm284, %v275, 0
  %vm1053 = vcmask 1042432
  %v1055 = vsel %vm1053, %v279, 0
  %1057 = vmatpush.msra.mxu0 0.0
  %1058 = vmatpush.msra.mxu0 0.0
  %1059 = vmatpush.msra.mxu0 0.0
  %1060 = vmatpush.msra.mxu0 0.0
  %1061 = vmatpush.msra.mxu0 0.0
  %1062 = vmatpush.msra.mxu0 0.0
  %1063 = vmatpush.msra.mxu0 0.0
  %1064 = vmatpush.msra.mxu0 0.0
  %1065 = vmatpush.msra.mxu0 0.0
  %1066 = vmatpush.msra.mxu0 0.0
  %1067 = vmatpush.msra.mxu0 0.0
  %1068 = vmatpush.msra.mxu0 0.0
  %1069 = vmatpush.msra.mxu0 %v1055
  %1070 = vmatpush.msra.mxu0 %v278
  %1071 = vmatpush.msra.mxu0 %v277
  %1072 = vmatpush.msra.mxu0 %v276
  %1073 = vmatmul.f32.gmra.mxu0 %v286
  %v1074 = vpop.f32.mrf.mxu0
  %v1075 = vadd.f32 %v282, %v1074
  %1076 = vmatmul.f32.gmra.mxu0 %v289
  %v1077 = vpop.f32.mrf.mxu0
  %v1078 = vadd.f32 %v282, %v1077
  %1079 = vmatmul.f32.gmra.mxu0 %v292
  %v1080 = vpop.f32.mrf.mxu0
  %v1081 = vadd.f32 %v282, %v1080
  %1082 = vmatmul.f32.gmra.mxu0 %v295
  %v1083 = vpop.f32.mrf.mxu0
  %v1084 = vadd.f32 %v282, %v1083
  %1085 = vmatmul.f32.gmra.mxu0 %v298
  %v1086 = vpop.f32.mrf.mxu0
  %v1087 = vadd.f32 %v282, %v1086
  %1088 = vmatmul.f32.gmra.mxu0 %v301
  %v1089 = vpop.f32.mrf.mxu0
  %v1090 = vadd.f32 %v282, %v1089
  %1091 = vmatmul.f32.gmra.mxu0 %v304
  %v1092 = vpop.f32.mrf.mxu0
  %v1093 = vadd.f32 %v282, %v1092
  %1094 = vmatmul.f32.gmra.mxu0 %v307
  %v1095 = vpop.f32.mrf.mxu0
  %v1096 = vadd.f32 %v282, %v1095
  %1097 = vmatmul.f32.gmra.mxu0 %v310
  %v1098 = vpop.f32.mrf.mxu0
  %v1099 = vadd.f32 %v282, %v1098
  %1100 = vmatmul.f32.gmra.mxu0 %v313
  %v1101 = vpop.f32.mrf.mxu0
  %v1102 = vadd.f32 %v282, %v1101
  %1103 = vmatmul.f32.gmra.mxu0 %v316
  %v1104 = vpop.f32.mrf.mxu0
  %v1105 = vadd.f32 %v282, %v1104
  %1106 = vmatmul.f32.gmra.mxu0 %v319
  %v1107 = vpop.f32.mrf.mxu0
  %v1108 = vadd.f32 %v282, %v1107
  %1109 = vmatmul.f32.gmra.mxu0 %v322
  %v1110 = vpop.f32.mrf.mxu0
  %v1111 = vadd.f32 %v282, %v1110
  %1112 = vmatmul.f32.gmra.mxu0 %v325
  %v1113 = vpop.f32.mrf.mxu0
  %v1114 = vadd.f32 %v282, %v1113
  %1115 = vmatmul.f32.gmra.mxu0 %v328
  %v1116 = vpop.f32.mrf.mxu0
  %v1117 = vadd.f32 %v282, %v1116
  %1118 = vmatmul.f32.gmra.mxu0 %v331
  %v1119 = vpop.f32.mrf.mxu0
  %v1120 = vadd.f32 %v282, %v1119
  %1121 = vmatmul.f32.gmra.mxu0 %v334
  %v1122 = vpop.f32.mrf.mxu0
  %v1123 = vadd.f32 %v282, %v1122
  %1124 = vmatmul.f32.gmra.mxu0 %v337
  %v1125 = vpop.f32.mrf.mxu0
  %v1126 = vadd.f32 %v282, %v1125
  %1127 = vmatmul.f32.gmra.mxu0 %v340
  %v1128 = vpop.f32.mrf.mxu0
  %v1129 = vadd.f32 %v282, %v1128
  %1130 = vmatmul.f32.gmra.mxu0 %v343
  %v1131 = vpop.f32.mrf.mxu0
  %v1132 = vadd.f32 %v282, %v1131
  %1133 = vmatmul.f32.gmra.mxu0 %v346
  %v1134 = vpop.f32.mrf.mxu0
  %v1135 = vadd.f32 %v282, %v1134
  %1136 = vmatmul.f32.gmra.mxu0 %v349
  %v1137 = vpop.f32.mrf.mxu0
  %v1138 = vadd.f32 %v282, %v1137
  %1139 = vmatmul.f32.gmra.mxu0 %v352
  %v1140 = vpop.f32.mrf.mxu0
  %v1141 = vadd.f32 %v282, %v1140
  %1142 = vmatmul.f32.gmra.mxu0 %v355
  %v1143 = vpop.f32.mrf.mxu0
  %v1144 = vadd.f32 %v282, %v1143
  %1145 = vmatmul.f32.gmra.mxu0 %v358
  %v1146 = vpop.f32.mrf.mxu0
  %v1147 = vadd.f32 %v282, %v1146
  %1148 = vmatmul.f32.gmra.mxu0 %v361
  %v1149 = vpop.f32.mrf.mxu0
  %v1150 = vadd.f32 %v282, %v1149
  %1151 = vmatmul.f32.gmra.mxu0 %v364
  %v1152 = vpop.f32.mrf.mxu0
  %v1153 = vadd.f32 %v282, %v1152
  %1154 = vmatmul.f32.gmra.mxu0 %v367
  %v1155 = vpop.f32.mrf.mxu0
  %v1156 = vadd.f32 %v282, %v1155
  %1157 = vmatmul.f32.gmra.mxu0 %v370
  %v1158 = vpop.f32.mrf.mxu0
  %v1159 = vadd.f32 %v282, %v1158
  %1160 = vmatmul.f32.gmra.mxu0 %v373
  %v1161 = vpop.f32.mrf.mxu0
  %v1162 = vadd.f32 %v282, %v1161
  %1163 = vmatmul.f32.gmra.mxu0 %v376
  %v1164 = vpop.f32.mrf.mxu0
  %v1165 = vadd.f32 %v282, %v1164
  %1166 = vmatmul.f32.gmra.mxu0 %v379
  %v1167 = vpop.f32.mrf.mxu0
  %v1168 = vadd.f32 %v282, %v1167
  %1169 = vmatmul.f32.gmra.mxu0 %v382
  %v1170 = vpop.f32.mrf.mxu0
  %v1171 = vadd.f32 %v282, %v1170
  %1172 = vmatmul.f32.gmra.mxu0 %v385
  %v1173 = vpop.f32.mrf.mxu0
  %v1174 = vadd.f32 %v282, %v1173
  %1175 = vmatmul.f32.gmra.mxu0 %v388
  %v1176 = vpop.f32.mrf.mxu0
  %v1177 = vadd.f32 %v282, %v1176
  %1178 = vmatmul.f32.gmra.mxu0 %v391
  %v1179 = vpop.f32.mrf.mxu0
  %v1180 = vadd.f32 %v282, %v1179
  %1181 = vmatmul.f32.gmra.mxu0 %v394
  %v1182 = vpop.f32.mrf.mxu0
  %v1183 = vadd.f32 %v282, %v1182
  %1184 = vmatmul.f32.gmra.mxu0 %v397
  %v1185 = vpop.f32.mrf.mxu0
  %v1186 = vadd.f32 %v282, %v1185
  %1187 = vmatmul.f32.gmra.mxu0 %v400
  %v1188 = vpop.f32.mrf.mxu0
  %v1189 = vadd.f32 %v282, %v1188
  %1190 = vmatmul.f32.gmra.mxu0 %v403
  %v1191 = vpop.f32.mrf.mxu0
  %v1192 = vadd.f32 %v282, %v1191
  %1193 = vmatmul.f32.gmra.mxu0 %v406
  %v1194 = vpop.f32.mrf.mxu0
  %v1195 = vadd.f32 %v282, %v1194
  %1196 = vmatmul.f32.gmra.mxu0 %v409
  %v1197 = vpop.f32.mrf.mxu0
  %v1198 = vadd.f32 %v282, %v1197
  %1199 = vmatmul.f32.gmra.mxu0 %v412
  %v1200 = vpop.f32.mrf.mxu0
  %v1201 = vadd.f32 %v282, %v1200
  %1202 = vmatmul.f32.gmra.mxu0 %v415
  %v1203 = vpop.f32.mrf.mxu0
  %v1204 = vadd.f32 %v282, %v1203
  %1205 = vmatmul.f32.gmra.mxu0 %v418
  %v1206 = vpop.f32.mrf.mxu0
  %v1207 = vadd.f32 %v282, %v1206
  %1208 = vmatmul.f32.gmra.mxu0 %v421
  %v1209 = vpop.f32.mrf.mxu0
  %v1210 = vadd.f32 %v282, %v1209
  %1211 = vmatmul.f32.gmra.mxu0 %v424
  %v1212 = vpop.f32.mrf.mxu0
  %v1213 = vadd.f32 %v282, %v1212
  %1214 = vmatmul.f32.gmra.mxu0 %v427
  %v1215 = vpop.f32.mrf.mxu0
  %v1216 = vadd.f32 %v282, %v1215
  %1217 = vmatmul.f32.gmra.mxu0 %v430
  %v1218 = vpop.f32.mrf.mxu0
  %v1219 = vadd.f32 %v282, %v1218
  %1220 = vmatmul.f32.gmra.mxu0 %v433
  %v1221 = vpop.f32.mrf.mxu0
  %v1222 = vadd.f32 %v282, %v1221
  %1223 = vmatmul.f32.gmra.mxu0 %v436
  %v1224 = vpop.f32.mrf.mxu0
  %v1225 = vadd.f32 %v282, %v1224
  %1226 = vmatmul.f32.gmra.mxu0 %v439
  %v1227 = vpop.f32.mrf.mxu0
  %v1228 = vadd.f32 %v282, %v1227
  %1229 = vmatmul.f32.gmra.mxu0 %v442
  %v1230 = vpop.f32.mrf.mxu0
  %v1231 = vadd.f32 %v282, %v1230
  %1232 = vmatmul.f32.gmra.mxu0 %v445
  %v1233 = vpop.f32.mrf.mxu0
  %v1234 = vadd.f32 %v282, %v1233
  %1235 = vmatmul.f32.gmra.mxu0 %v448
  %v1236 = vpop.f32.mrf.mxu0
  %v1237 = vadd.f32 %v282, %v1236
  %1238 = vmatmul.f32.gmra.mxu0 %v451
  %v1239 = vpop.f32.mrf.mxu0
  %v1240 = vadd.f32 %v282, %v1239
  %1241 = vmatmul.f32.gmra.mxu0 %v454
  %v1242 = vpop.f32.mrf.mxu0
  %v1243 = vadd.f32 %v282, %v1242
  %1244 = vmatmul.f32.gmra.mxu0 %v457
  %v1245 = vpop.f32.mrf.mxu0
  %v1246 = vadd.f32 %v282, %v1245
  %1247 = vmatmul.f32.gmra.mxu0 %v460
  %v1248 = vpop.f32.mrf.mxu0
  %v1249 = vadd.f32 %v282, %v1248
  %1250 = vmatmul.f32.gmra.mxu0 %v463
  %v1251 = vpop.f32.mrf.mxu0
  %v1252 = vadd.f32 %v282, %v1251
  %1253 = vmatmul.f32.gmra.mxu0 %v466
  %v1254 = vpop.f32.mrf.mxu0
  %v1255 = vadd.f32 %v282, %v1254
  %1256 = vmatmul.f32.gmra.mxu0 %v469
  %v1257 = vpop.f32.mrf.mxu0
  %v1258 = vadd.f32 %v282, %v1257
  %1259 = vmatmul.f32.gmra.mxu0 %v472
  %v1260 = vpop.f32.mrf.mxu0
  %v1261 = vadd.f32 %v282, %v1260
  %1262 = vmatmul.f32.gmra.mxu0 %v475
  %v1263 = vpop.f32.mrf.mxu0
  %v1264 = vadd.f32 %v282, %v1263
  %1265 = vmatmul.f32.gmra.mxu0 %v478
  %v1266 = vpop.f32.mrf.mxu0
  %v1267 = vadd.f32 %v282, %v1266
  %1268 = vmatmul.f32.gmra.mxu0 %v481
  %v1269 = vpop.f32.mrf.mxu0
  %v1270 = vadd.f32 %v282, %v1269
  %1271 = vmatmul.f32.gmra.mxu0 %v484
  %v1272 = vpop.f32.mrf.mxu0
  %v1273 = vadd.f32 %v282, %v1272
  %1274 = vmatmul.f32.gmra.mxu0 %v487
  %v1275 = vpop.f32.mrf.mxu0
  %v1276 = vadd.f32 %v282, %v1275
  %1277 = vmatmul.f32.gmra.mxu0 %v490
  %v1278 = vpop.f32.mrf.mxu0
  %v1279 = vadd.f32 %v282, %v1278
  %1280 = vmatmul.f32.gmra.mxu0 %v493
  %v1281 = vpop.f32.mrf.mxu0
  %v1282 = vadd.f32 %v282, %v1281
  %1283 = vmatmul.f32.gmra.mxu0 %v496
  %v1284 = vpop.f32.mrf.mxu0
  %v1285 = vadd.f32 %v282, %v1284
  %1286 = vmatmul.f32.gmra.mxu0 %v499
  %v1287 = vpop.f32.mrf.mxu0
  %v1288 = vadd.f32 %v282, %v1287
  %1289 = vmatmul.f32.gmra.mxu0 %v502
  %v1290 = vpop.f32.mrf.mxu0
  %v1291 = vadd.f32 %v282, %v1290
  %1292 = vmatmul.f32.gmra.mxu0 %v505
  %v1293 = vpop.f32.mrf.mxu0
  %v1294 = vadd.f32 %v282, %v1293
  %1295 = vmatmul.f32.gmra.mxu0 %v508
  %v1296 = vpop.f32.mrf.mxu0
  %v1297 = vadd.f32 %v282, %v1296
  %1298 = vmatmul.f32.gmra.mxu0 %v511
  %v1299 = vpop.f32.mrf.mxu0
  %v1300 = vadd.f32 %v282, %v1299
  %1301 = vmatmul.f32.gmra.mxu0 %v514
  %v1302 = vpop.f32.mrf.mxu0
  %v1303 = vadd.f32 %v282, %v1302
  %1304 = vmatmul.f32.gmra.mxu0 %v517
  %v1305 = vpop.f32.mrf.mxu0
  %v1306 = vadd.f32 %v282, %v1305
  %1307 = vmatmul.f32.gmra.mxu0 %v520
  %v1308 = vpop.f32.mrf.mxu0
  %v1309 = vadd.f32 %v282, %v1308
  %1310 = vmatmul.f32.gmra.mxu0 %v523
  %v1311 = vpop.f32.mrf.mxu0
  %v1312 = vadd.f32 %v282, %v1311
  %1313 = vmatmul.f32.gmra.mxu0 %v526
  %v1314 = vpop.f32.mrf.mxu0
  %v1315 = vadd.f32 %v282, %v1314
  %1316 = vmatmul.f32.gmra.mxu0 %v529
  %v1317 = vpop.f32.mrf.mxu0
  %v1318 = vadd.f32 %v282, %v1317
  %1319 = vmatmul.f32.gmra.mxu0 %v532
  %v1320 = vpop.f32.mrf.mxu0
  %v1321 = vadd.f32 %v282, %v1320
  %1322 = vmatmul.f32.gmra.mxu0 %v535
  %v1323 = vpop.f32.mrf.mxu0
  %v1324 = vadd.f32 %v282, %v1323
  %1325 = vmatmul.f32.gmra.mxu0 %v538
  %v1326 = vpop.f32.mrf.mxu0
  %v1327 = vadd.f32 %v282, %v1326
  %1328 = vmatmul.f32.gmra.mxu0 %v541
  %v1329 = vpop.f32.mrf.mxu0
  %v1330 = vadd.f32 %v282, %v1329
  %1331 = vmatmul.f32.gmra.mxu0 %v544
  %v1332 = vpop.f32.mrf.mxu0
  %v1333 = vadd.f32 %v282, %v1332
  %1334 = vmatmul.f32.gmra.mxu0 %v547
  %v1335 = vpop.f32.mrf.mxu0
  %v1336 = vadd.f32 %v282, %v1335
  %1337 = vmatmul.f32.gmra.mxu0 %v550
  %v1338 = vpop.f32.mrf.mxu0
  %v1339 = vadd.f32 %v282, %v1338
  %1340 = vmatmul.f32.gmra.mxu0 %v553
  %v1341 = vpop.f32.mrf.mxu0
  %v1342 = vadd.f32 %v282, %v1341
  %1343 = vmatmul.f32.gmra.mxu0 %v556
  %v1344 = vpop.f32.mrf.mxu0
  %v1345 = vadd.f32 %v282, %v1344
  %1346 = vmatmul.f32.gmra.mxu0 %v559
  %v1347 = vpop.f32.mrf.mxu0
  %v1348 = vadd.f32 %v282, %v1347
  %1349 = vmatmul.f32.gmra.mxu0 %v562
  %v1350 = vpop.f32.mrf.mxu0
  %v1351 = vadd.f32 %v282, %v1350
  %1352 = vmatmul.f32.gmra.mxu0 %v565
  %v1353 = vpop.f32.mrf.mxu0
  %v1354 = vadd.f32 %v282, %v1353
  %1355 = vmatmul.f32.gmra.mxu0 %v568
  %v1356 = vpop.f32.mrf.mxu0
  %v1357 = vadd.f32 %v282, %v1356
  %1358 = vmatmul.f32.gmra.mxu0 %v571
  %v1359 = vpop.f32.mrf.mxu0
  %v1360 = vadd.f32 %v282, %v1359
  %1361 = vmatmul.f32.gmra.mxu0 %v574
  %v1362 = vpop.f32.mrf.mxu0
  %v1363 = vadd.f32 %v282, %v1362
  %1364 = vmatmul.f32.gmra.mxu0 %v577
  %v1365 = vpop.f32.mrf.mxu0
  %v1366 = vadd.f32 %v282, %v1365
  %1367 = vmatmul.f32.gmra.mxu0 %v580
  %v1368 = vpop.f32.mrf.mxu0
  %v1369 = vadd.f32 %v282, %v1368
  %1370 = vmatmul.f32.gmra.mxu0 %v583
  %v1371 = vpop.f32.mrf.mxu0
  %v1372 = vadd.f32 %v282, %v1371
  %1373 = vmatmul.f32.gmra.mxu0 %v586
  %v1374 = vpop.f32.mrf.mxu0
  %v1375 = vadd.f32 %v282, %v1374
  %1376 = vmatmul.f32.gmra.mxu0 %v589
  %v1377 = vpop.f32.mrf.mxu0
  %v1378 = vadd.f32 %v282, %v1377
  %1379 = vmatmul.f32.gmra.mxu0 %v592
  %v1380 = vpop.f32.mrf.mxu0
  %v1381 = vadd.f32 %v282, %v1380
  %1382 = vmatmul.f32.gmra.mxu0 %v595
  %v1383 = vpop.f32.mrf.mxu0
  %v1384 = vadd.f32 %v282, %v1383
  %1385 = vmatmul.f32.gmra.mxu0 %v598
  %v1386 = vpop.f32.mrf.mxu0
  %v1387 = vadd.f32 %v282, %v1386
  %1388 = vmatmul.f32.gmra.mxu0 %v601
  %v1389 = vpop.f32.mrf.mxu0
  %v1390 = vadd.f32 %v282, %v1389
  %1391 = vmatmul.f32.gmra.mxu0 %v604
  %v1392 = vpop.f32.mrf.mxu0
  %v1393 = vadd.f32 %v282, %v1392
  %1394 = vmatmul.f32.gmra.mxu0 %v607
  %v1395 = vpop.f32.mrf.mxu0
  %v1396 = vadd.f32 %v282, %v1395
  %1397 = vmatmul.f32.gmra.mxu0 %v610
  %v1398 = vpop.f32.mrf.mxu0
  %v1399 = vadd.f32 %v282, %v1398
  %1400 = vmatmul.f32.gmra.mxu0 %v613
  %v1401 = vpop.f32.mrf.mxu0
  %v1402 = vadd.f32 %v282, %v1401
  %1403 = vmatmul.f32.gmra.mxu0 %v616
  %v1404 = vpop.f32.mrf.mxu0
  %v1405 = vadd.f32 %v282, %v1404
  %1406 = vmatmul.f32.gmra.mxu0 %v619
  %v1407 = vpop.f32.mrf.mxu0
  %v1408 = vadd.f32 %v282, %v1407
  %1409 = vmatmul.f32.gmra.mxu0 %v622
  %v1410 = vpop.f32.mrf.mxu0
  %v1411 = vadd.f32 %v282, %v1410
  %1412 = vmatmul.f32.gmra.mxu0 %v625
  %v1413 = vpop.f32.mrf.mxu0
  %v1414 = vadd.f32 %v282, %v1413
  %1415 = vmatmul.f32.gmra.mxu0 %v628
  %v1416 = vpop.f32.mrf.mxu0
  %v1417 = vadd.f32 %v282, %v1416
  %1418 = vmatmul.f32.gmra.mxu0 %v631
  %v1419 = vpop.f32.mrf.mxu0
  %v1420 = vadd.f32 %v282, %v1419
  %1421 = vmatmul.f32.gmra.mxu0 %v634
  %v1422 = vpop.f32.mrf.mxu0
  %v1423 = vadd.f32 %v282, %v1422
  %1424 = vmatmul.f32.gmra.mxu0 %v637
  %v1425 = vpop.f32.mrf.mxu0
  %v1426 = vadd.f32 %v282, %v1425
  %1427 = vmatmul.f32.gmra.mxu0 %v640
  %v1428 = vpop.f32.mrf.mxu0
  %v1429 = vadd.f32 %v282, %v1428
  %1430 = vmatmul.f32.gmra.mxu0 %v643
  %v1431 = vpop.f32.mrf.mxu0
  %v1432 = vadd.f32 %v282, %v1431
  %1433 = vmatmul.f32.gmra.mxu0 %v646
  %v1434 = vpop.f32.mrf.mxu0
  %v1435 = vadd.f32 %v282, %v1434
  %1436 = vmatmul.f32.gmra.mxu0 %v649
  %v1437 = vpop.f32.mrf.mxu0
  %v1438 = vadd.f32 %v282, %v1437
  %1439 = vmatmul.f32.gmra.mxu0 %v652
  %v1440 = vpop.f32.mrf.mxu0
  %v1441 = vadd.f32 %v282, %v1440
  %1442 = vmatmul.f32.gmra.mxu0 %v655
  %v1443 = vpop.f32.mrf.mxu0
  %v1444 = vadd.f32 %v282, %v1443
  %1445 = vmatmul.f32.gmra.mxu0 %v658
  %v1446 = vpop.f32.mrf.mxu0
  %v1447 = vadd.f32 %v282, %v1446
  %1448 = vmatmul.f32.gmra.mxu0 %v661
  %v1449 = vpop.f32.mrf.mxu0
  %v1450 = vadd.f32 %v282, %v1449
  %1451 = vmatmul.f32.gmra.mxu0 %v664
  %v1452 = vpop.f32.mrf.mxu0
  %v1453 = vadd.f32 %v282, %v1452
  %1454 = vmatmul.f32.gmra.mxu0 %v667
  %v1455 = vpop.f32.mrf.mxu0
  %v1456 = vadd.f32 %v282, %v1455
  %1457 = vmatmul.f32.gmra.mxu0 %v670
  %v1458 = vpop.f32.mrf.mxu0
  %v1459 = vadd.f32 %v282, %v1458
  %1460 = vmatmul.f32.gmra.mxu0 %v673
  %v1461 = vpop.f32.mrf.mxu0
  %v1462 = vadd.f32 %v282, %v1461
  %1463 = vmatmul.f32.gmra.mxu0 %v676
  %v1464 = vpop.f32.mrf.mxu0
  %v1465 = vadd.f32 %v282, %v1464
  %1466 = vmatmul.f32.gmra.mxu0 %v679
  %v1467 = vpop.f32.mrf.mxu0
  %v1468 = vadd.f32 %v282, %v1467
  %1469 = vmatmul.f32.gmra.mxu0 %v682
  %v1470 = vpop.f32.mrf.mxu0
  %v1471 = vadd.f32 %v282, %v1470
  %1472 = vmatmul.f32.gmra.mxu0 %v685
  %v1473 = vpop.f32.mrf.mxu0
  %v1474 = vadd.f32 %v282, %v1473
  %1475 = vmatmul.f32.gmra.mxu0 %v688
  %v1476 = vpop.f32.mrf.mxu0
  %v1477 = vadd.f32 %v282, %v1476
  %1478 = vmatmul.f32.gmra.mxu0 %v691
  %v1479 = vpop.f32.mrf.mxu0
  %v1480 = vadd.f32 %v282, %v1479
  %1481 = vmatmul.f32.gmra.mxu0 %v694
  %v1482 = vpop.f32.mrf.mxu0
  %v1483 = vadd.f32 %v282, %v1482
  %1484 = vmatmul.f32.gmra.mxu0 %v697
  %v1485 = vpop.f32.mrf.mxu0
  %v1486 = vadd.f32 %v282, %v1485
  %1487 = vmatmul.f32.gmra.mxu0 %v700
  %v1488 = vpop.f32.mrf.mxu0
  %v1489 = vadd.f32 %v282, %v1488
  %1490 = vmatmul.f32.gmra.mxu0 %v703
  %v1491 = vpop.f32.mrf.mxu0
  %v1492 = vadd.f32 %v282, %v1491
  %1493 = vmatmul.f32.gmra.mxu0 %v706
  %v1494 = vpop.f32.mrf.mxu0
  %v1495 = vadd.f32 %v282, %v1494
  %1496 = vmatmul.f32.gmra.mxu0 %v709
  %v1497 = vpop.f32.mrf.mxu0
  %v1498 = vadd.f32 %v282, %v1497
  %1499 = vmatmul.f32.gmra.mxu0 %v712
  %v1500 = vpop.f32.mrf.mxu0
  %v1501 = vadd.f32 %v282, %v1500
  %1502 = vmatmul.f32.gmra.mxu0 %v715
  %v1503 = vpop.f32.mrf.mxu0
  %v1504 = vadd.f32 %v282, %v1503
  %1505 = vmatmul.f32.gmra.mxu0 %v718
  %v1506 = vpop.f32.mrf.mxu0
  %v1507 = vadd.f32 %v282, %v1506
  %1508 = vmatmul.f32.gmra.mxu0 %v721
  %v1509 = vpop.f32.mrf.mxu0
  %v1510 = vadd.f32 %v282, %v1509
  %1511 = vmatmul.f32.gmra.mxu0 %v724
  %v1512 = vpop.f32.mrf.mxu0
  %v1513 = vadd.f32 %v282, %v1512
  %1514 = vmatmul.f32.gmra.mxu0 %v727
  %v1515 = vpop.f32.mrf.mxu0
  %v1516 = vadd.f32 %v282, %v1515
  %1517 = vmatmul.f32.gmra.mxu0 %v730
  %v1518 = vpop.f32.mrf.mxu0
  %v1519 = vadd.f32 %v282, %v1518
  %1520 = vmatmul.f32.gmra.mxu0 %v733
  %v1521 = vpop.f32.mrf.mxu0
  %v1522 = vadd.f32 %v282, %v1521
  %1523 = vmatmul.f32.gmra.mxu0 %v736
  %v1524 = vpop.f32.mrf.mxu0
  %v1525 = vadd.f32 %v282, %v1524
  %1526 = vmatmul.f32.gmra.mxu0 %v739
  %v1527 = vpop.f32.mrf.mxu0
  %v1528 = vadd.f32 %v282, %v1527
  %1529 = vmatmul.f32.gmra.mxu0 %v742
  %v1530 = vpop.f32.mrf.mxu0
  %v1531 = vadd.f32 %v282, %v1530
  %1532 = vmatmul.f32.gmra.mxu0 %v745
  %v1533 = vpop.f32.mrf.mxu0
  %v1534 = vadd.f32 %v282, %v1533
  %1535 = vmatmul.f32.gmra.mxu0 %v748
  %v1536 = vpop.f32.mrf.mxu0
  %v1537 = vadd.f32 %v282, %v1536
  %1538 = vmatmul.f32.gmra.mxu0 %v751
  %v1539 = vpop.f32.mrf.mxu0
  %v1540 = vadd.f32 %v282, %v1539
  %1541 = vmatmul.f32.gmra.mxu0 %v754
  %v1542 = vpop.f32.mrf.mxu0
  %v1543 = vadd.f32 %v282, %v1542
  %1544 = vmatmul.f32.gmra.mxu0 %v757
  %v1545 = vpop.f32.mrf.mxu0
  %v1546 = vadd.f32 %v282, %v1545
  %1547 = vmatmul.f32.gmra.mxu0 %v760
  %v1548 = vpop.f32.mrf.mxu0
  %v1549 = vadd.f32 %v282, %v1548
  %1550 = vmatmul.f32.gmra.mxu0 %v763
  %v1551 = vpop.f32.mrf.mxu0
  %v1552 = vadd.f32 %v282, %v1551
  %1553 = vmatmul.f32.gmra.mxu0 %v766
  %v1554 = vpop.f32.mrf.mxu0
  %v1555 = vadd.f32 %v282, %v1554
  %1556 = vmatmul.f32.gmra.mxu0 %v769
  %v1557 = vpop.f32.mrf.mxu0
  %v1558 = vadd.f32 %v282, %v1557
  %1559 = vmatmul.f32.gmra.mxu0 %v772
  %v1560 = vpop.f32.mrf.mxu0
  %v1561 = vadd.f32 %v282, %v1560
  %1562 = vmatmul.f32.gmra.mxu0 %v775
  %v1563 = vpop.f32.mrf.mxu0
  %v1564 = vadd.f32 %v282, %v1563
  %1565 = vmatmul.f32.gmra.mxu0 %v778
  %v1566 = vpop.f32.mrf.mxu0
  %v1567 = vadd.f32 %v282, %v1566
  %1568 = vmatmul.f32.gmra.mxu0 %v781
  %v1569 = vpop.f32.mrf.mxu0
  %v1570 = vadd.f32 %v282, %v1569
  %1571 = vmatmul.f32.gmra.mxu0 %v784
  %v1572 = vpop.f32.mrf.mxu0
  %v1573 = vadd.f32 %v282, %v1572
  %1574 = vmatmul.f32.gmra.mxu0 %v787
  %v1575 = vpop.f32.mrf.mxu0
  %v1576 = vadd.f32 %v282, %v1575
  %1577 = vmatmul.f32.gmra.mxu0 %v790
  %v1578 = vpop.f32.mrf.mxu0
  %v1579 = vadd.f32 %v282, %v1578
  %1580 = vmatmul.f32.gmra.mxu0 %v793
  %v1581 = vpop.f32.mrf.mxu0
  %v1582 = vadd.f32 %v282, %v1581
  %1583 = vmatmul.f32.gmra.mxu0 %v796
  %v1584 = vpop.f32.mrf.mxu0
  %v1585 = vadd.f32 %v282, %v1584
  %1586 = vmatmul.f32.gmra.mxu0 %v799
  %v1587 = vpop.f32.mrf.mxu0
  %v1588 = vadd.f32 %v282, %v1587
  %1589 = vmatmul.f32.gmra.mxu0 %v802
  %v1590 = vpop.f32.mrf.mxu0
  %v1591 = vadd.f32 %v282, %v1590
  %1592 = vmatmul.f32.gmra.mxu0 %v805
  %v1593 = vpop.f32.mrf.mxu0
  %v1594 = vadd.f32 %v282, %v1593
  %1595 = vmatmul.f32.gmra.mxu0 %v808
  %v1596 = vpop.f32.mrf.mxu0
  %v1597 = vadd.f32 %v282, %v1596
  %1598 = vmatmul.f32.gmra.mxu0 %v811
  %v1599 = vpop.f32.mrf.mxu0
  %v1600 = vadd.f32 %v282, %v1599
  %1601 = vmatmul.f32.gmra.mxu0 %v814
  %v1602 = vpop.f32.mrf.mxu0
  %v1603 = vadd.f32 %v282, %v1602
  %1604 = vmatmul.f32.gmra.mxu0 %v817
  %v1605 = vpop.f32.mrf.mxu0
  %v1606 = vadd.f32 %v282, %v1605
  %1607 = vmatmul.f32.gmra.mxu0 %v820
  %v1608 = vpop.f32.mrf.mxu0
  %v1609 = vadd.f32 %v282, %v1608
  %1610 = vmatmul.f32.gmra.mxu0 %v823
  %v1611 = vpop.f32.mrf.mxu0
  %v1612 = vadd.f32 %v282, %v1611
  %1613 = vmatmul.f32.gmra.mxu0 %v826
  %v1614 = vpop.f32.mrf.mxu0
  %v1615 = vadd.f32 %v282, %v1614
  %1616 = vmatmul.f32.gmra.mxu0 %v829
  %v1617 = vpop.f32.mrf.mxu0
  %v1618 = vadd.f32 %v282, %v1617
  %1619 = vmatmul.f32.gmra.mxu0 %v832
  %v1620 = vpop.f32.mrf.mxu0
  %v1621 = vadd.f32 %v282, %v1620
  %1622 = vmatmul.f32.gmra.mxu0 %v835
  %v1623 = vpop.f32.mrf.mxu0
  %v1624 = vadd.f32 %v282, %v1623
  %1625 = vmatmul.f32.gmra.mxu0 %v838
  %v1626 = vpop.f32.mrf.mxu0
  %v1627 = vadd.f32 %v282, %v1626
  %1628 = vmatmul.f32.gmra.mxu0 %v841
  %v1629 = vpop.f32.mrf.mxu0
  %v1630 = vadd.f32 %v282, %v1629
  %1631 = vmatmul.f32.gmra.mxu0 %v844
  %v1632 = vpop.f32.mrf.mxu0
  %v1633 = vadd.f32 %v282, %v1632
  %1634 = vmatmul.f32.gmra.mxu0 %v847
  %v1635 = vpop.f32.mrf.mxu0
  %v1636 = vadd.f32 %v282, %v1635
  %1637 = vmatmul.f32.gmra.mxu0 %v850
  %v1638 = vpop.f32.mrf.mxu0
  %v1639 = vadd.f32 %v282, %v1638
  %1640 = vmatmul.f32.gmra.mxu0 %v853
  %v1641 = vpop.f32.mrf.mxu0
  %v1642 = vadd.f32 %v282, %v1641
  %1643 = vmatmul.f32.gmra.mxu0 %v856
  %v1644 = vpop.f32.mrf.mxu0
  %v1645 = vadd.f32 %v282, %v1644
  %1646 = vmatmul.f32.gmra.mxu0 %v859
  %v1647 = vpop.f32.mrf.mxu0
  %v1648 = vadd.f32 %v282, %v1647
  %1649 = vmatmul.f32.gmra.mxu0 %v862
  %v1650 = vpop.f32.mrf.mxu0
  %v1651 = vadd.f32 %v282, %v1650
  %1652 = vmatmul.f32.gmra.mxu0 %v865
  %v1653 = vpop.f32.mrf.mxu0
  %v1654 = vadd.f32 %v282, %v1653
  %1655 = vmatmul.f32.gmra.mxu0 %v868
  %v1656 = vpop.f32.mrf.mxu0
  %v1657 = vadd.f32 %v282, %v1656
  %1658 = vmatmul.f32.gmra.mxu0 %v871
  %v1659 = vpop.f32.mrf.mxu0
  %v1660 = vadd.f32 %v282, %v1659
  %1661 = vmatmul.f32.gmra.mxu0 %v874
  %v1662 = vpop.f32.mrf.mxu0
  %v1663 = vadd.f32 %v282, %v1662
  %1664 = vmatmul.f32.gmra.mxu0 %v877
  %v1665 = vpop.f32.mrf.mxu0
  %v1666 = vadd.f32 %v282, %v1665
  %1667 = vmatmul.f32.gmra.mxu0 %v880
  %v1668 = vpop.f32.mrf.mxu0
  %v1669 = vadd.f32 %v282, %v1668
  %1670 = vmatmul.f32.gmra.mxu0 %v883
  %v1671 = vpop.f32.mrf.mxu0
  %v1672 = vadd.f32 %v282, %v1671
  %1673 = vmatmul.f32.gmra.mxu0 %v886
  %v1674 = vpop.f32.mrf.mxu0
  %v1675 = vadd.f32 %v282, %v1674
  %1676 = vmatmul.f32.gmra.mxu0 %v889
  %v1677 = vpop.f32.mrf.mxu0
  %v1678 = vadd.f32 %v282, %v1677
  %1679 = vmatmul.f32.gmra.mxu0 %v892
  %v1680 = vpop.f32.mrf.mxu0
  %v1681 = vadd.f32 %v282, %v1680
  %1682 = vmatmul.f32.gmra.mxu0 %v895
  %v1683 = vpop.f32.mrf.mxu0
  %v1684 = vadd.f32 %v282, %v1683
  %1685 = vmatmul.f32.gmra.mxu0 %v898
  %v1686 = vpop.f32.mrf.mxu0
  %v1687 = vadd.f32 %v282, %v1686
  %1688 = vmatmul.f32.gmra.mxu0 %v901
  %v1689 = vpop.f32.mrf.mxu0
  %v1690 = vadd.f32 %v282, %v1689
  %1691 = vmatmul.f32.gmra.mxu0 %v904
  %v1692 = vpop.f32.mrf.mxu0
  %v1693 = vadd.f32 %v282, %v1692
  %1694 = vmatmul.f32.gmra.mxu0 %v907
  %v1695 = vpop.f32.mrf.mxu0
  %v1696 = vadd.f32 %v282, %v1695
  %1697 = vmatmul.f32.gmra.mxu0 %v910
  %v1698 = vpop.f32.mrf.mxu0
  %v1699 = vadd.f32 %v282, %v1698
  %1700 = vmatmul.f32.gmra.mxu0 %v913
  %v1701 = vpop.f32.mrf.mxu0
  %v1702 = vadd.f32 %v282, %v1701
  %1703 = vmatmul.f32.gmra.mxu0 %v916
  %v1704 = vpop.f32.mrf.mxu0
  %v1705 = vadd.f32 %v282, %v1704
  %1706 = vmatmul.f32.gmra.mxu0 %v919
  %v1707 = vpop.f32.mrf.mxu0
  %v1708 = vadd.f32 %v282, %v1707
  %1709 = vmatmul.f32.gmra.mxu0 %v922
  %v1710 = vpop.f32.mrf.mxu0
  %v1711 = vadd.f32 %v282, %v1710
  %1712 = vmatmul.f32.gmra.mxu0 %v925
  %v1713 = vpop.f32.mrf.mxu0
  %v1714 = vadd.f32 %v282, %v1713
  %1715 = vmatmul.f32.gmra.mxu0 %v928
  %v1716 = vpop.f32.mrf.mxu0
  %v1717 = vadd.f32 %v282, %v1716
  %1718 = vmatmul.f32.gmra.mxu0 %v931
  %v1719 = vpop.f32.mrf.mxu0
  %v1720 = vadd.f32 %v282, %v1719
  %1721 = vmatmul.f32.gmra.mxu0 %v934
  %v1722 = vpop.f32.mrf.mxu0
  %v1723 = vadd.f32 %v282, %v1722
  %1724 = vmatmul.f32.gmra.mxu0 %v937
  %v1725 = vpop.f32.mrf.mxu0
  %v1726 = vadd.f32 %v282, %v1725
  %1727 = vmatmul.f32.gmra.mxu0 %v940
  %v1728 = vpop.f32.mrf.mxu0
  %v1729 = vadd.f32 %v282, %v1728
  %1730 = vmatmul.f32.gmra.mxu0 %v943
  %v1731 = vpop.f32.mrf.mxu0
  %v1732 = vadd.f32 %v282, %v1731
  %1733 = vmatmul.f32.gmra.mxu0 %v946
  %v1734 = vpop.f32.mrf.mxu0
  %v1735 = vadd.f32 %v282, %v1734
  %1736 = vmatmul.f32.gmra.mxu0 %v949
  %v1737 = vpop.f32.mrf.mxu0
  %v1738 = vadd.f32 %v282, %v1737
  %1739 = vmatmul.f32.gmra.mxu0 %v952
  %v1740 = vpop.f32.mrf.mxu0
  %v1741 = vadd.f32 %v282, %v1740
  %1742 = vmatmul.f32.gmra.mxu0 %v955
  %v1743 = vpop.f32.mrf.mxu0
  %v1744 = vadd.f32 %v282, %v1743
  %1745 = vmatmul.f32.gmra.mxu0 %v958
  %v1746 = vpop.f32.mrf.mxu0
  %v1747 = vadd.f32 %v282, %v1746
  %1748 = vmatmul.f32.gmra.mxu0 %v961
  %v1749 = vpop.f32.mrf.mxu0
  %v1750 = vadd.f32 %v282, %v1749
  %1751 = vmatmul.f32.gmra.mxu0 %v964
  %v1752 = vpop.f32.mrf.mxu0
  %v1753 = vadd.f32 %v282, %v1752
  %1754 = vmatmul.f32.gmra.mxu0 %v967
  %v1755 = vpop.f32.mrf.mxu0
  %v1756 = vadd.f32 %v282, %v1755
  %1757 = vmatmul.f32.gmra.mxu0 %v970
  %v1758 = vpop.f32.mrf.mxu0
  %v1759 = vadd.f32 %v282, %v1758
  %1760 = vmatmul.f32.gmra.mxu0 %v973
  %v1761 = vpop.f32.mrf.mxu0
  %v1762 = vadd.f32 %v282, %v1761
  %1763 = vmatmul.f32.gmra.mxu0 %v976
  %v1764 = vpop.f32.mrf.mxu0
  %v1765 = vadd.f32 %v282, %v1764
  %1766 = vmatmul.f32.gmra.mxu0 %v979
  %v1767 = vpop.f32.mrf.mxu0
  %v1768 = vadd.f32 %v282, %v1767
  %1769 = vmatmul.f32.gmra.mxu0 %v982
  %v1770 = vpop.f32.mrf.mxu0
  %v1771 = vadd.f32 %v282, %v1770
  %1772 = vmatmul.f32.gmra.mxu0 %v985
  %v1773 = vpop.f32.mrf.mxu0
  %v1774 = vadd.f32 %v282, %v1773
  %1775 = vmatmul.f32.gmra.mxu0 %v988
  %v1776 = vpop.f32.mrf.mxu0
  %v1777 = vadd.f32 %v282, %v1776
  %1778 = vmatmul.f32.gmra.mxu0 %v991
  %v1779 = vpop.f32.mrf.mxu0
  %v1780 = vadd.f32 %v282, %v1779
  %1781 = vmatmul.f32.gmra.mxu0 %v994
  %v1782 = vpop.f32.mrf.mxu0
  %v1783 = vadd.f32 %v282, %v1782
  %1784 = vmatmul.f32.gmra.mxu0 %v997
  %v1785 = vpop.f32.mrf.mxu0
  %v1786 = vadd.f32 %v282, %v1785
  %1787 = vmatmul.f32.gmra.mxu0 %v1000
  %v1788 = vpop.f32.mrf.mxu0
  %v1789 = vadd.f32 %v282, %v1788
  %1790 = vmatmul.f32.gmra.mxu0 %v1003
  %v1791 = vpop.f32.mrf.mxu0
  %v1792 = vadd.f32 %v282, %v1791
  %1793 = vmatmul.f32.gmra.mxu0 %v1006
  %v1794 = vpop.f32.mrf.mxu0
  %v1795 = vadd.f32 %v282, %v1794
  %1796 = vmatmul.f32.gmra.mxu0 %v1009
  %v1797 = vpop.f32.mrf.mxu0
  %v1798 = vadd.f32 %v282, %v1797
  %1799 = vmatmul.f32.gmra.mxu0 %v1012
  %v1800 = vpop.f32.mrf.mxu0
  %v1801 = vadd.f32 %v282, %v1800
  %1802 = vmatmul.f32.gmra.mxu0 %v1015
  %v1803 = vpop.f32.mrf.mxu0
  %v1804 = vadd.f32 %v282, %v1803
  %1805 = vmatmul.f32.gmra.mxu0 %v1018
  %v1806 = vpop.f32.mrf.mxu0
  %v1807 = vadd.f32 %v282, %v1806
  %1808 = vmatmul.f32.gmra.mxu0 %v1021
  %v1809 = vpop.f32.mrf.mxu0
  %v1810 = vadd.f32 %v282, %v1809
  %1811 = vmatmul.f32.gmra.mxu0 %v1024
  %v1812 = vpop.f32.mrf.mxu0
  %v1813 = vadd.f32 %v282, %v1812
  %1814 = vmatmul.f32.gmra.mxu0 %v1027
  %v1815 = vpop.f32.mrf.mxu0
  %v1816 = vadd.f32 %v282, %v1815
  %1817 = vmatmul.f32.gmra.mxu0 %v1030
  %v1818 = vpop.f32.mrf.mxu0
  %v1819 = vadd.f32 %v282, %v1818
  %1820 = vmatmul.f32.gmra.mxu0 %v1033
  %v1821 = vpop.f32.mrf.mxu0
  %v1822 = vadd.f32 %v282, %v1821
  %1823 = vmatmul.f32.gmra.mxu0 %v1036
  %v1824 = vpop.f32.mrf.mxu0
  %v1825 = vadd.f32 %v282, %v1824
  %1826 = vmatmul.f32.gmra.mxu0 %v1039
  %v1827 = vpop.f32.mrf.mxu0
  %v1828 = vadd.f32 %v282, %v1827
  %1829 = vmatmul.f32.gmra.mxu0 %v1042
  %v1830 = vpop.f32.mrf.mxu0
  %v1831 = vadd.f32 %v282, %v1830
  %1832 = vmatmul.f32.gmra.mxu0 %v1045
  %v1833 = vpop.f32.mrf.mxu0
  %v1834 = vadd.f32 %v282, %v1833
  %1835 = vmatmul.f32.gmra.mxu0 %v1048
  %v1836 = vpop.f32.mrf.mxu0
  %v1837 = vadd.f32 %v282, %v1836
  %1838 = vmatmul.f32.gmra.mxu0 %v1051
  %v1839 = vpop.f32.mrf.mxu0
  %v1840 = vadd.f32 %v282, %v1839
  %1841 = vdwg.mxu0
  %vm1842 = vcmask 523264
  %v1843 = vsel %vm1842, %v1075, 0.0
  %v1844 = vsel %vm1842, %v1078, 0.0
  %v1845 = vadd.f32 %v1843, %v1844
  %v1846 = vsel %vm1842, %v1081, 0.0
  %v1847 = vadd.f32 %v1845, %v1846
  %v1848 = vsel %vm1842, %v1084, 0.0
  %v1849 = vadd.f32 %v1847, %v1848
  %v1850 = vsel %vm1842, %v1087, 0.0
  %v1851 = vadd.f32 %v1849, %v1850
  %v1852 = vsel %vm1842, %v1090, 0.0
  %v1853 = vadd.f32 %v1851, %v1852
  %v1854 = vsel %vm1842, %v1093, 0.0
  %v1855 = vadd.f32 %v1853, %v1854
  %v1856 = vsel %vm1842, %v1096, 0.0
  %v1857 = vadd.f32 %v1855, %v1856
  %v1858 = vsel %vm1842, %v1099, 0.0
  %v1859 = vadd.f32 %v1857, %v1858
  %v1860 = vsel %vm1842, %v1102, 0.0
  %v1861 = vadd.f32 %v1859, %v1860
  %v1862 = vsel %vm1842, %v1105, 0.0
  %v1863 = vadd.f32 %v1861, %v1862
  %v1864 = vsel %vm1842, %v1108, 0.0
  %v1865 = vadd.f32 %v1863, %v1864
  %v1866 = vsel %vm1842, %v1111, 0.0
  %v1867 = vadd.f32 %v1865, %v1866
  %v1868 = vsel %vm1842, %v1114, 0.0
  %v1869 = vadd.f32 %v1867, %v1868
  %v1870 = vsel %vm1842, %v1117, 0.0
  %v1871 = vadd.f32 %v1869, %v1870
  %v1872 = vsel %vm1842, %v1120, 0.0
  %v1873 = vadd.f32 %v1871, %v1872
  %v1874 = vsel %vm1842, %v1123, 0.0
  %v1875 = vadd.f32 %v1873, %v1874
  %v1876 = vsel %vm1842, %v1126, 0.0
  %v1877 = vadd.f32 %v1875, %v1876
  %v1878 = vsel %vm1842, %v1129, 0.0
  %v1879 = vadd.f32 %v1877, %v1878
  %v1880 = vsel %vm1842, %v1132, 0.0
  %v1881 = vadd.f32 %v1879, %v1880
  %v1882 = vsel %vm1842, %v1135, 0.0
  %v1883 = vadd.f32 %v1881, %v1882
  %v1884 = vsel %vm1842, %v1138, 0.0
  %v1885 = vadd.f32 %v1883, %v1884
  %v1886 = vsel %vm1842, %v1141, 0.0
  %v1887 = vadd.f32 %v1885, %v1886
  %v1888 = vsel %vm1842, %v1144, 0.0
  %v1889 = vadd.f32 %v1887, %v1888
  %v1890 = vsel %vm1842, %v1147, 0.0
  %v1891 = vadd.f32 %v1889, %v1890
  %v1892 = vsel %vm1842, %v1150, 0.0
  %v1893 = vadd.f32 %v1891, %v1892
  %v1894 = vsel %vm1842, %v1153, 0.0
  %v1895 = vadd.f32 %v1893, %v1894
  %v1896 = vsel %vm1842, %v1156, 0.0
  %v1897 = vadd.f32 %v1895, %v1896
  %v1898 = vsel %vm1842, %v1159, 0.0
  %v1899 = vadd.f32 %v1897, %v1898
  %v1900 = vsel %vm1842, %v1162, 0.0
  %v1901 = vadd.f32 %v1899, %v1900
  %v1902 = vsel %vm1842, %v1165, 0.0
  %v1903 = vadd.f32 %v1901, %v1902
  %v1904 = vsel %vm1842, %v1168, 0.0
  %v1905 = vadd.f32 %v1903, %v1904
  %v1906 = vsel %vm1842, %v1171, 0.0
  %v1907 = vadd.f32 %v1905, %v1906
  %v1908 = vsel %vm1842, %v1174, 0.0
  %v1909 = vadd.f32 %v1907, %v1908
  %v1910 = vsel %vm1842, %v1177, 0.0
  %v1911 = vadd.f32 %v1909, %v1910
  %v1912 = vsel %vm1842, %v1180, 0.0
  %v1913 = vadd.f32 %v1911, %v1912
  %v1914 = vsel %vm1842, %v1183, 0.0
  %v1915 = vadd.f32 %v1913, %v1914
  %v1916 = vsel %vm1842, %v1186, 0.0
  %v1917 = vadd.f32 %v1915, %v1916
  %v1918 = vsel %vm1842, %v1189, 0.0
  %v1919 = vadd.f32 %v1917, %v1918
  %v1920 = vsel %vm1842, %v1192, 0.0
  %v1921 = vadd.f32 %v1919, %v1920
  %v1922 = vsel %vm1842, %v1195, 0.0
  %v1923 = vadd.f32 %v1921, %v1922
  %v1924 = vsel %vm1842, %v1198, 0.0
  %v1925 = vadd.f32 %v1923, %v1924
  %v1926 = vsel %vm1842, %v1201, 0.0
  %v1927 = vadd.f32 %v1925, %v1926
  %v1928 = vsel %vm1842, %v1204, 0.0
  %v1929 = vadd.f32 %v1927, %v1928
  %v1930 = vsel %vm1842, %v1207, 0.0
  %v1931 = vadd.f32 %v1929, %v1930
  %v1932 = vsel %vm1842, %v1210, 0.0
  %v1933 = vadd.f32 %v1931, %v1932
  %v1934 = vsel %vm1842, %v1213, 0.0
  %v1935 = vadd.f32 %v1933, %v1934
  %v1936 = vsel %vm1842, %v1216, 0.0
  %v1937 = vadd.f32 %v1935, %v1936
  %v1938 = vsel %vm1842, %v1219, 0.0
  %v1939 = vadd.f32 %v1937, %v1938
  %v1940 = vsel %vm1842, %v1222, 0.0
  %v1941 = vadd.f32 %v1939, %v1940
  %v1942 = vsel %vm1842, %v1225, 0.0
  %v1943 = vadd.f32 %v1941, %v1942
  %v1944 = vsel %vm1842, %v1228, 0.0
  %v1945 = vadd.f32 %v1943, %v1944
  %v1946 = vsel %vm1842, %v1231, 0.0
  %v1947 = vadd.f32 %v1945, %v1946
  %v1948 = vsel %vm1842, %v1234, 0.0
  %v1949 = vadd.f32 %v1947, %v1948
  %v1950 = vsel %vm1842, %v1237, 0.0
  %v1951 = vadd.f32 %v1949, %v1950
  %v1952 = vsel %vm1842, %v1240, 0.0
  %v1953 = vadd.f32 %v1951, %v1952
  %v1954 = vsel %vm1842, %v1243, 0.0
  %v1955 = vadd.f32 %v1953, %v1954
  %v1956 = vsel %vm1842, %v1246, 0.0
  %v1957 = vadd.f32 %v1955, %v1956
  %v1958 = vsel %vm1842, %v1249, 0.0
  %v1959 = vadd.f32 %v1957, %v1958
  %v1960 = vsel %vm1842, %v1252, 0.0
  %v1961 = vadd.f32 %v1959, %v1960
  %v1962 = vsel %vm1842, %v1255, 0.0
  %v1963 = vadd.f32 %v1961, %v1962
  %v1964 = vsel %vm1842, %v1258, 0.0
  %v1965 = vadd.f32 %v1963, %v1964
  %v1966 = vsel %vm1842, %v1261, 0.0
  %v1967 = vadd.f32 %v1965, %v1966
  %v1968 = vsel %vm1842, %v1264, 0.0
  %v1969 = vadd.f32 %v1967, %v1968
  %v1970 = vsel %vm1842, %v1267, 0.0
  %v1971 = vadd.f32 %v1969, %v1970
  %v1972 = vsel %vm1842, %v1270, 0.0
  %v1973 = vadd.f32 %v1971, %v1972
  %v1974 = vsel %vm1842, %v1273, 0.0
  %v1975 = vadd.f32 %v1973, %v1974
  %v1976 = vsel %vm1842, %v1276, 0.0
  %v1977 = vadd.f32 %v1975, %v1976
  %v1978 = vsel %vm1842, %v1279, 0.0
  %v1979 = vadd.f32 %v1977, %v1978
  %v1980 = vsel %vm1842, %v1282, 0.0
  %v1981 = vadd.f32 %v1979, %v1980
  %v1982 = vsel %vm1842, %v1285, 0.0
  %v1983 = vadd.f32 %v1981, %v1982
  %v1984 = vsel %vm1842, %v1288, 0.0
  %v1985 = vadd.f32 %v1983, %v1984
  %v1986 = vsel %vm1842, %v1291, 0.0
  %v1987 = vadd.f32 %v1985, %v1986
  %v1988 = vsel %vm1842, %v1294, 0.0
  %v1989 = vadd.f32 %v1987, %v1988
  %v1990 = vsel %vm1842, %v1297, 0.0
  %v1991 = vadd.f32 %v1989, %v1990
  %v1992 = vsel %vm1842, %v1300, 0.0
  %v1993 = vadd.f32 %v1991, %v1992
  %v1994 = vsel %vm1842, %v1303, 0.0
  %v1995 = vadd.f32 %v1993, %v1994
  %v1996 = vsel %vm1842, %v1306, 0.0
  %v1997 = vadd.f32 %v1995, %v1996
  %v1998 = vsel %vm1842, %v1309, 0.0
  %v1999 = vadd.f32 %v1997, %v1998
  %v2000 = vsel %vm1842, %v1312, 0.0
  %v2001 = vadd.f32 %v1999, %v2000
  %v2002 = vsel %vm1842, %v1315, 0.0
  %v2003 = vadd.f32 %v2001, %v2002
  %v2004 = vsel %vm1842, %v1318, 0.0
  %v2005 = vadd.f32 %v2003, %v2004
  %v2006 = vsel %vm1842, %v1321, 0.0
  %v2007 = vadd.f32 %v2005, %v2006
  %v2008 = vsel %vm1842, %v1324, 0.0
  %v2009 = vadd.f32 %v2007, %v2008
  %v2010 = vsel %vm1842, %v1327, 0.0
  %v2011 = vadd.f32 %v2009, %v2010
  %v2012 = vsel %vm1842, %v1330, 0.0
  %v2013 = vadd.f32 %v2011, %v2012
  %v2014 = vsel %vm1842, %v1333, 0.0
  %v2015 = vadd.f32 %v2013, %v2014
  %v2016 = vsel %vm1842, %v1336, 0.0
  %v2017 = vadd.f32 %v2015, %v2016
  %v2018 = vsel %vm1842, %v1339, 0.0
  %v2019 = vadd.f32 %v2017, %v2018
  %v2020 = vsel %vm1842, %v1342, 0.0
  %v2021 = vadd.f32 %v2019, %v2020
  %v2022 = vsel %vm1842, %v1345, 0.0
  %v2023 = vadd.f32 %v2021, %v2022
  %v2024 = vsel %vm1842, %v1348, 0.0
  %v2025 = vadd.f32 %v2023, %v2024
  %v2026 = vsel %vm1842, %v1351, 0.0
  %v2027 = vadd.f32 %v2025, %v2026
  %v2028 = vsel %vm1842, %v1354, 0.0
  %v2029 = vadd.f32 %v2027, %v2028
  %v2030 = vsel %vm1842, %v1357, 0.0
  %v2031 = vadd.f32 %v2029, %v2030
  %v2032 = vsel %vm1842, %v1360, 0.0
  %v2033 = vadd.f32 %v2031, %v2032
  %v2034 = vsel %vm1842, %v1363, 0.0
  %v2035 = vadd.f32 %v2033, %v2034
  %v2036 = vsel %vm1842, %v1366, 0.0
  %v2037 = vadd.f32 %v2035, %v2036
  %v2038 = vsel %vm1842, %v1369, 0.0
  %v2039 = vadd.f32 %v2037, %v2038
  %v2040 = vsel %vm1842, %v1372, 0.0
  %v2041 = vadd.f32 %v2039, %v2040
  %v2042 = vsel %vm1842, %v1375, 0.0
  %v2043 = vadd.f32 %v2041, %v2042
  %v2044 = vsel %vm1842, %v1378, 0.0
  %v2045 = vadd.f32 %v2043, %v2044
  %v2046 = vsel %vm1842, %v1381, 0.0
  %v2047 = vadd.f32 %v2045, %v2046
  %v2048 = vsel %vm1842, %v1384, 0.0
  %v2049 = vadd.f32 %v2047, %v2048
  %v2050 = vsel %vm1842, %v1387, 0.0
  %v2051 = vadd.f32 %v2049, %v2050
  %v2052 = vsel %vm1842, %v1390, 0.0
  %v2053 = vadd.f32 %v2051, %v2052
  %v2054 = vsel %vm1842, %v1393, 0.0
  %v2055 = vadd.f32 %v2053, %v2054
  %v2056 = vsel %vm1842, %v1396, 0.0
  %v2057 = vadd.f32 %v2055, %v2056
  %v2058 = vsel %vm1842, %v1399, 0.0
  %v2059 = vadd.f32 %v2057, %v2058
  %v2060 = vsel %vm1842, %v1402, 0.0
  %v2061 = vadd.f32 %v2059, %v2060
  %v2062 = vsel %vm1842, %v1405, 0.0
  %v2063 = vadd.f32 %v2061, %v2062
  %v2064 = vsel %vm1842, %v1408, 0.0
  %v2065 = vadd.f32 %v2063, %v2064
  %v2066 = vsel %vm1842, %v1411, 0.0
  %v2067 = vadd.f32 %v2065, %v2066
  %v2068 = vsel %vm1842, %v1414, 0.0
  %v2069 = vadd.f32 %v2067, %v2068
  %v2070 = vsel %vm1842, %v1417, 0.0
  %v2071 = vadd.f32 %v2069, %v2070
  %v2072 = vsel %vm1842, %v1420, 0.0
  %v2073 = vadd.f32 %v2071, %v2072
  %v2074 = vsel %vm1842, %v1423, 0.0
  %v2075 = vadd.f32 %v2073, %v2074
  %v2076 = vsel %vm1842, %v1426, 0.0
  %v2077 = vadd.f32 %v2075, %v2076
  %v2078 = vsel %vm1842, %v1429, 0.0
  %v2079 = vadd.f32 %v2077, %v2078
  %v2080 = vsel %vm1842, %v1432, 0.0
  %v2081 = vadd.f32 %v2079, %v2080
  %v2082 = vsel %vm1842, %v1435, 0.0
  %v2083 = vadd.f32 %v2081, %v2082
  %v2084 = vsel %vm1842, %v1438, 0.0
  %v2085 = vadd.f32 %v2083, %v2084
  %v2086 = vsel %vm1842, %v1441, 0.0
  %v2087 = vadd.f32 %v2085, %v2086
  %v2088 = vsel %vm1842, %v1444, 0.0
  %v2089 = vadd.f32 %v2087, %v2088
  %v2090 = vsel %vm1842, %v1447, 0.0
  %v2091 = vadd.f32 %v2089, %v2090
  %v2092 = vsel %vm1842, %v1450, 0.0
  %v2093 = vadd.f32 %v2091, %v2092
  %v2094 = vsel %vm1842, %v1453, 0.0
  %v2095 = vadd.f32 %v2093, %v2094
  %v2096 = vsel %vm1842, %v1456, 0.0
  %v2097 = vadd.f32 %v2095, %v2096
  %v2098 = vsel %vm1842, %v1459, 0.0
  %v2099 = vadd.f32 %v2097, %v2098
  %v2100 = vsel %vm1842, %v1462, 0.0
  %v2101 = vadd.f32 %v2099, %v2100
  %v2102 = vsel %vm1842, %v1465, 0.0
  %v2103 = vadd.f32 %v2101, %v2102
  %v2104 = vsel %vm1842, %v1468, 0.0
  %v2105 = vadd.f32 %v2103, %v2104
  %v2106 = vsel %vm1842, %v1471, 0.0
  %v2107 = vadd.f32 %v2105, %v2106
  %v2108 = vsel %vm1842, %v1474, 0.0
  %v2109 = vadd.f32 %v2107, %v2108
  %v2110 = vsel %vm1842, %v1477, 0.0
  %v2111 = vadd.f32 %v2109, %v2110
  %v2112 = vsel %vm1842, %v1480, 0.0
  %v2113 = vadd.f32 %v2111, %v2112
  %v2114 = vsel %vm1842, %v1483, 0.0
  %v2115 = vadd.f32 %v2113, %v2114
  %v2116 = vsel %vm1842, %v1486, 0.0
  %v2117 = vadd.f32 %v2115, %v2116
  %v2118 = vsel %vm1842, %v1489, 0.0
  %v2119 = vadd.f32 %v2117, %v2118
  %v2120 = vsel %vm1842, %v1492, 0.0
  %v2121 = vadd.f32 %v2119, %v2120
  %v2122 = vsel %vm1842, %v1495, 0.0
  %v2123 = vadd.f32 %v2121, %v2122
  %v2124 = vsel %vm1842, %v1498, 0.0
  %v2125 = vadd.f32 %v2123, %v2124
  %v2126 = vsel %vm1842, %v1501, 0.0
  %v2127 = vadd.f32 %v2125, %v2126
  %v2128 = vsel %vm1842, %v1504, 0.0
  %v2129 = vadd.f32 %v2127, %v2128
  %v2130 = vsel %vm1842, %v1507, 0.0
  %v2131 = vadd.f32 %v2129, %v2130
  %v2132 = vsel %vm1842, %v1510, 0.0
  %v2133 = vadd.f32 %v2131, %v2132
  %v2134 = vsel %vm1842, %v1513, 0.0
  %v2135 = vadd.f32 %v2133, %v2134
  %v2136 = vsel %vm1842, %v1516, 0.0
  %v2137 = vadd.f32 %v2135, %v2136
  %v2138 = vsel %vm1842, %v1519, 0.0
  %v2139 = vadd.f32 %v2137, %v2138
  %v2140 = vsel %vm1842, %v1522, 0.0
  %v2141 = vadd.f32 %v2139, %v2140
  %v2142 = vsel %vm1842, %v1525, 0.0
  %v2143 = vadd.f32 %v2141, %v2142
  %v2144 = vsel %vm1842, %v1528, 0.0
  %v2145 = vadd.f32 %v2143, %v2144
  %v2146 = vsel %vm1842, %v1531, 0.0
  %v2147 = vadd.f32 %v2145, %v2146
  %v2148 = vsel %vm1842, %v1534, 0.0
  %v2149 = vadd.f32 %v2147, %v2148
  %v2150 = vsel %vm1842, %v1537, 0.0
  %v2151 = vadd.f32 %v2149, %v2150
  %v2152 = vsel %vm1842, %v1540, 0.0
  %v2153 = vadd.f32 %v2151, %v2152
  %v2154 = vsel %vm1842, %v1543, 0.0
  %v2155 = vadd.f32 %v2153, %v2154
  %v2156 = vsel %vm1842, %v1546, 0.0
  %v2157 = vadd.f32 %v2155, %v2156
  %v2158 = vsel %vm1842, %v1549, 0.0
  %v2159 = vadd.f32 %v2157, %v2158
  %v2160 = vsel %vm1842, %v1552, 0.0
  %v2161 = vadd.f32 %v2159, %v2160
  %v2162 = vsel %vm1842, %v1555, 0.0
  %v2163 = vadd.f32 %v2161, %v2162
  %v2164 = vsel %vm1842, %v1558, 0.0
  %v2165 = vadd.f32 %v2163, %v2164
  %v2166 = vsel %vm1842, %v1561, 0.0
  %v2167 = vadd.f32 %v2165, %v2166
  %v2168 = vsel %vm1842, %v1564, 0.0
  %v2169 = vadd.f32 %v2167, %v2168
  %v2170 = vsel %vm1842, %v1567, 0.0
  %v2171 = vadd.f32 %v2169, %v2170
  %v2172 = vsel %vm1842, %v1570, 0.0
  %v2173 = vadd.f32 %v2171, %v2172
  %v2174 = vsel %vm1842, %v1573, 0.0
  %v2175 = vadd.f32 %v2173, %v2174
  %v2176 = vsel %vm1842, %v1576, 0.0
  %v2177 = vadd.f32 %v2175, %v2176
  %v2178 = vsel %vm1842, %v1579, 0.0
  %v2179 = vadd.f32 %v2177, %v2178
  %v2180 = vsel %vm1842, %v1582, 0.0
  %v2181 = vadd.f32 %v2179, %v2180
  %v2182 = vsel %vm1842, %v1585, 0.0
  %v2183 = vadd.f32 %v2181, %v2182
  %v2184 = vsel %vm1842, %v1588, 0.0
  %v2185 = vadd.f32 %v2183, %v2184
  %v2186 = vsel %vm1842, %v1591, 0.0
  %v2187 = vadd.f32 %v2185, %v2186
  %v2188 = vsel %vm1842, %v1594, 0.0
  %v2189 = vadd.f32 %v2187, %v2188
  %v2190 = vsel %vm1842, %v1597, 0.0
  %v2191 = vadd.f32 %v2189, %v2190
  %v2192 = vsel %vm1842, %v1600, 0.0
  %v2193 = vadd.f32 %v2191, %v2192
  %v2194 = vsel %vm1842, %v1603, 0.0
  %v2195 = vadd.f32 %v2193, %v2194
  %v2196 = vsel %vm1842, %v1606, 0.0
  %v2197 = vadd.f32 %v2195, %v2196
  %v2198 = vsel %vm1842, %v1609, 0.0
  %v2199 = vadd.f32 %v2197, %v2198
  %v2200 = vsel %vm1842, %v1612, 0.0
  %v2201 = vadd.f32 %v2199, %v2200
  %v2202 = vsel %vm1842, %v1615, 0.0
  %v2203 = vadd.f32 %v2201, %v2202
  %v2204 = vsel %vm1842, %v1618, 0.0
  %v2205 = vadd.f32 %v2203, %v2204
  %v2206 = vsel %vm1842, %v1621, 0.0
  %v2207 = vadd.f32 %v2205, %v2206
  %v2208 = vsel %vm1842, %v1624, 0.0
  %v2209 = vadd.f32 %v2207, %v2208
  %v2210 = vsel %vm1842, %v1627, 0.0
  %v2211 = vadd.f32 %v2209, %v2210
  %v2212 = vsel %vm1842, %v1630, 0.0
  %v2213 = vadd.f32 %v2211, %v2212
  %v2214 = vsel %vm1842, %v1633, 0.0
  %v2215 = vadd.f32 %v2213, %v2214
  %v2216 = vsel %vm1842, %v1636, 0.0
  %v2217 = vadd.f32 %v2215, %v2216
  %v2218 = vsel %vm1842, %v1639, 0.0
  %v2219 = vadd.f32 %v2217, %v2218
  %v2220 = vsel %vm1842, %v1642, 0.0
  %v2221 = vadd.f32 %v2219, %v2220
  %v2222 = vsel %vm1842, %v1645, 0.0
  %v2223 = vadd.f32 %v2221, %v2222
  %v2224 = vsel %vm1842, %v1648, 0.0
  %v2225 = vadd.f32 %v2223, %v2224
  %v2226 = vsel %vm1842, %v1651, 0.0
  %v2227 = vadd.f32 %v2225, %v2226
  %v2228 = vsel %vm1842, %v1654, 0.0
  %v2229 = vadd.f32 %v2227, %v2228
  %v2230 = vsel %vm1842, %v1657, 0.0
  %v2231 = vadd.f32 %v2229, %v2230
  %v2232 = vsel %vm1842, %v1660, 0.0
  %v2233 = vadd.f32 %v2231, %v2232
  %v2234 = vsel %vm1842, %v1663, 0.0
  %v2235 = vadd.f32 %v2233, %v2234
  %v2236 = vsel %vm1842, %v1666, 0.0
  %v2237 = vadd.f32 %v2235, %v2236
  %v2238 = vsel %vm1842, %v1669, 0.0
  %v2239 = vadd.f32 %v2237, %v2238
  %v2240 = vsel %vm1842, %v1672, 0.0
  %v2241 = vadd.f32 %v2239, %v2240
  %v2242 = vsel %vm1842, %v1675, 0.0
  %v2243 = vadd.f32 %v2241, %v2242
  %v2244 = vsel %vm1842, %v1678, 0.0
  %v2245 = vadd.f32 %v2243, %v2244
  %v2246 = vsel %vm1842, %v1681, 0.0
  %v2247 = vadd.f32 %v2245, %v2246
  %v2248 = vsel %vm1842, %v1684, 0.0
  %v2249 = vadd.f32 %v2247, %v2248
  %v2250 = vsel %vm1842, %v1687, 0.0
  %v2251 = vadd.f32 %v2249, %v2250
  %v2252 = vsel %vm1842, %v1690, 0.0
  %v2253 = vadd.f32 %v2251, %v2252
  %v2254 = vsel %vm1842, %v1693, 0.0
  %v2255 = vadd.f32 %v2253, %v2254
  %v2256 = vsel %vm1842, %v1696, 0.0
  %v2257 = vadd.f32 %v2255, %v2256
  %v2258 = vsel %vm1842, %v1699, 0.0
  %v2259 = vadd.f32 %v2257, %v2258
  %v2260 = vsel %vm1842, %v1702, 0.0
  %v2261 = vadd.f32 %v2259, %v2260
  %v2262 = vsel %vm1842, %v1705, 0.0
  %v2263 = vadd.f32 %v2261, %v2262
  %v2264 = vsel %vm1842, %v1708, 0.0
  %v2265 = vadd.f32 %v2263, %v2264
  %v2266 = vsel %vm1842, %v1711, 0.0
  %v2267 = vadd.f32 %v2265, %v2266
  %v2268 = vsel %vm1842, %v1714, 0.0
  %v2269 = vadd.f32 %v2267, %v2268
  %v2270 = vsel %vm1842, %v1717, 0.0
  %v2271 = vadd.f32 %v2269, %v2270
  %v2272 = vsel %vm1842, %v1720, 0.0
  %v2273 = vadd.f32 %v2271, %v2272
  %v2274 = vsel %vm1842, %v1723, 0.0
  %v2275 = vadd.f32 %v2273, %v2274
  %v2276 = vsel %vm1842, %v1726, 0.0
  %v2277 = vadd.f32 %v2275, %v2276
  %v2278 = vsel %vm1842, %v1729, 0.0
  %v2279 = vadd.f32 %v2277, %v2278
  %v2280 = vsel %vm1842, %v1732, 0.0
  %v2281 = vadd.f32 %v2279, %v2280
  %v2282 = vsel %vm1842, %v1735, 0.0
  %v2283 = vadd.f32 %v2281, %v2282
  %v2284 = vsel %vm1842, %v1738, 0.0
  %v2285 = vadd.f32 %v2283, %v2284
  %v2286 = vsel %vm1842, %v1741, 0.0
  %v2287 = vadd.f32 %v2285, %v2286
  %v2288 = vsel %vm1842, %v1744, 0.0
  %v2289 = vadd.f32 %v2287, %v2288
  %v2290 = vsel %vm1842, %v1747, 0.0
  %v2291 = vadd.f32 %v2289, %v2290
  %v2292 = vsel %vm1842, %v1750, 0.0
  %v2293 = vadd.f32 %v2291, %v2292
  %v2294 = vsel %vm1842, %v1753, 0.0
  %v2295 = vadd.f32 %v2293, %v2294
  %v2296 = vsel %vm1842, %v1756, 0.0
  %v2297 = vadd.f32 %v2295, %v2296
  %v2298 = vsel %vm1842, %v1759, 0.0
  %v2299 = vadd.f32 %v2297, %v2298
  %v2300 = vsel %vm1842, %v1762, 0.0
  %v2301 = vadd.f32 %v2299, %v2300
  %v2302 = vsel %vm1842, %v1765, 0.0
  %v2303 = vadd.f32 %v2301, %v2302
  %v2304 = vsel %vm1842, %v1768, 0.0
  %v2305 = vadd.f32 %v2303, %v2304
  %v2306 = vsel %vm1842, %v1771, 0.0
  %v2307 = vadd.f32 %v2305, %v2306
  %v2308 = vsel %vm1842, %v1774, 0.0
  %v2309 = vadd.f32 %v2307, %v2308
  %v2310 = vsel %vm1842, %v1777, 0.0
  %v2311 = vadd.f32 %v2309, %v2310
  %v2312 = vsel %vm1842, %v1780, 0.0
  %v2313 = vadd.f32 %v2311, %v2312
  %v2314 = vsel %vm1842, %v1783, 0.0
  %v2315 = vadd.f32 %v2313, %v2314
  %v2316 = vsel %vm1842, %v1786, 0.0
  %v2317 = vadd.f32 %v2315, %v2316
  %v2318 = vsel %vm1842, %v1789, 0.0
  %v2319 = vadd.f32 %v2317, %v2318
  %v2320 = vsel %vm1842, %v1792, 0.0
  %v2321 = vadd.f32 %v2319, %v2320
  %v2322 = vsel %vm1842, %v1795, 0.0
  %v2323 = vadd.f32 %v2321, %v2322
  %v2324 = vsel %vm1842, %v1798, 0.0
  %v2325 = vadd.f32 %v2323, %v2324
  %v2326 = vsel %vm1842, %v1801, 0.0
  %v2327 = vadd.f32 %v2325, %v2326
  %v2328 = vsel %vm1842, %v1804, 0.0
  %v2329 = vadd.f32 %v2327, %v2328
  %v2330 = vsel %vm1842, %v1807, 0.0
  %v2331 = vadd.f32 %v2329, %v2330
  %v2332 = vsel %vm1842, %v1810, 0.0
  %v2333 = vadd.f32 %v2331, %v2332
  %v2334 = vsel %vm1842, %v1813, 0.0
  %v2335 = vadd.f32 %v2333, %v2334
  %v2336 = vsel %vm1842, %v1816, 0.0
  %v2337 = vadd.f32 %v2335, %v2336
  %v2338 = vsel %vm1842, %v1819, 0.0
  %v2339 = vadd.f32 %v2337, %v2338
  %v2340 = vsel %vm1842, %v1822, 0.0
  %v2341 = vadd.f32 %v2339, %v2340
  %v2342 = vsel %vm1842, %v1825, 0.0
  %v2343 = vadd.f32 %v2341, %v2342
  %v2344 = vsel %vm1842, %v1828, 0.0
  %v2345 = vadd.f32 %v2343, %v2344
  %v2346 = vsel %vm1842, %v1831, 0.0
  %v2347 = vadd.f32 %v2345, %v2346
  %v2348 = vsel %vm1842, %v1834, 0.0
  %v2349 = vadd.f32 %v2347, %v2348
  %v2350 = vsel %vm1842, %v1837, 0.0
  %v2351 = vadd.f32 %v2349, %v2350
  %v2352 = vsel %vm1842, %v1840, 0.0
  %v2353 = vadd.f32 %v2351, %v2352
  %v2354 = vrot.slane %v2353, 4
  %v2355 = vadd.f32 %v2353, %v2354
  %v2356 = vrot.slane %v2355, 2
  %v2357 = vadd.f32 %v2355, %v2356
  %v2358 = vrot.slane %v2357, 1
  %v2359 = vadd.f32 %v2357, %v2358
  %v2360 = vmul.f32 %v2359, 0.00048828125
  %v2361 = vsub.f32 %v1075, %v2360
  %v2362 = vsub.f32 %v1078, %v2360
  %v2363 = vsub.f32 %v1081, %v2360
  %v2364 = vsub.f32 %v1084, %v2360
  %v2365 = vsub.f32 %v1087, %v2360
  %v2366 = vsub.f32 %v1090, %v2360
  %v2367 = vsub.f32 %v1093, %v2360
  %v2368 = vsub.f32 %v1096, %v2360
  %v2369 = vsub.f32 %v1099, %v2360
  %v2370 = vsub.f32 %v1102, %v2360
  %v2371 = vsub.f32 %v1105, %v2360
  %v2372 = vsub.f32 %v1108, %v2360
  %v2373 = vsub.f32 %v1111, %v2360
  %v2374 = vsub.f32 %v1114, %v2360
  %v2375 = vsub.f32 %v1117, %v2360
  %v2376 = vsub.f32 %v1120, %v2360
  %v2377 = vsub.f32 %v1123, %v2360
  %v2378 = vsub.f32 %v1126, %v2360
  %v2379 = vsub.f32 %v1129, %v2360
  %v2380 = vsub.f32 %v1132, %v2360
  %v2381 = vsub.f32 %v1135, %v2360
  %v2382 = vsub.f32 %v1138, %v2360
  %v2383 = vsub.f32 %v1141, %v2360
  %v2384 = vsub.f32 %v1144, %v2360
  %v2385 = vsub.f32 %v1147, %v2360
  %v2386 = vsub.f32 %v1150, %v2360
  %v2387 = vsub.f32 %v1153, %v2360
  %v2388 = vsub.f32 %v1156, %v2360
  %v2389 = vsub.f32 %v1159, %v2360
  %v2390 = vsub.f32 %v1162, %v2360
  %v2391 = vsub.f32 %v1165, %v2360
  %v2392 = vsub.f32 %v1168, %v2360
  %v2393 = vsub.f32 %v1171, %v2360
  %v2394 = vsub.f32 %v1174, %v2360
  %v2395 = vsub.f32 %v1177, %v2360
  %v2396 = vsub.f32 %v1180, %v2360
  %v2397 = vsub.f32 %v1183, %v2360
  %v2398 = vsub.f32 %v1186, %v2360
  %v2399 = vsub.f32 %v1189, %v2360
  %v2400 = vsub.f32 %v1192, %v2360
  %v2401 = vsub.f32 %v1195, %v2360
  %v2402 = vsub.f32 %v1198, %v2360
  %v2403 = vsub.f32 %v1201, %v2360
  %v2404 = vsub.f32 %v1204, %v2360
  %v2405 = vsub.f32 %v1207, %v2360
  %v2406 = vsub.f32 %v1210, %v2360
  %v2407 = vsub.f32 %v1213, %v2360
  %v2408 = vsub.f32 %v1216, %v2360
  %v2409 = vsub.f32 %v1219, %v2360
  %v2410 = vsub.f32 %v1222, %v2360
  %v2411 = vsub.f32 %v1225, %v2360
  %v2412 = vsub.f32 %v1228, %v2360
  %v2413 = vsub.f32 %v1231, %v2360
  %v2414 = vsub.f32 %v1234, %v2360
  %v2415 = vsub.f32 %v1237, %v2360
  %v2416 = vsub.f32 %v1240, %v2360
  %v2417 = vsub.f32 %v1243, %v2360
  %v2418 = vsub.f32 %v1246, %v2360
  %v2419 = vsub.f32 %v1249, %v2360
  %v2420 = vsub.f32 %v1252, %v2360
  %v2421 = vsub.f32 %v1255, %v2360
  %v2422 = vsub.f32 %v1258, %v2360
  %v2423 = vsub.f32 %v1261, %v2360
  %v2424 = vsub.f32 %v1264, %v2360
  %v2425 = vsub.f32 %v1267, %v2360
  %v2426 = vsub.f32 %v1270, %v2360
  %v2427 = vsub.f32 %v1273, %v2360
  %v2428 = vsub.f32 %v1276, %v2360
  %v2429 = vsub.f32 %v1279, %v2360
  %v2430 = vsub.f32 %v1282, %v2360
  %v2431 = vsub.f32 %v1285, %v2360
  %v2432 = vsub.f32 %v1288, %v2360
  %v2433 = vsub.f32 %v1291, %v2360
  %v2434 = vsub.f32 %v1294, %v2360
  %v2435 = vsub.f32 %v1297, %v2360
  %v2436 = vsub.f32 %v1300, %v2360
  %v2437 = vsub.f32 %v1303, %v2360
  %v2438 = vsub.f32 %v1306, %v2360
  %v2439 = vsub.f32 %v1309, %v2360
  %v2440 = vsub.f32 %v1312, %v2360
  %v2441 = vsub.f32 %v1315, %v2360
  %v2442 = vsub.f32 %v1318, %v2360
  %v2443 = vsub.f32 %v1321, %v2360
  %v2444 = vsub.f32 %v1324, %v2360
  %v2445 = vsub.f32 %v1327, %v2360
  %v2446 = vsub.f32 %v1330, %v2360
  %v2447 = vsub.f32 %v1333, %v2360
  %v2448 = vsub.f32 %v1336, %v2360
  %v2449 = vsub.f32 %v1339, %v2360
  %v2450 = vsub.f32 %v1342, %v2360
  %v2451 = vsub.f32 %v1345, %v2360
  %v2452 = vsub.f32 %v1348, %v2360
  %v2453 = vsub.f32 %v1351, %v2360
  %v2454 = vsub.f32 %v1354, %v2360
  %v2455 = vsub.f32 %v1357, %v2360
  %v2456 = vsub.f32 %v1360, %v2360
  %v2457 = vsub.f32 %v1363, %v2360
  %v2458 = vsub.f32 %v1366, %v2360
  %v2459 = vsub.f32 %v1369, %v2360
  %v2460 = vsub.f32 %v1372, %v2360
  %v2461 = vsub.f32 %v1375, %v2360
  %v2462 = vsub.f32 %v1378, %v2360
  %v2463 = vsub.f32 %v1381, %v2360
  %v2464 = vsub.f32 %v1384, %v2360
  %v2465 = vsub.f32 %v1387, %v2360
  %v2466 = vsub.f32 %v1390, %v2360
  %v2467 = vsub.f32 %v1393, %v2360
  %v2468 = vsub.f32 %v1396, %v2360
  %v2469 = vsub.f32 %v1399, %v2360
  %v2470 = vsub.f32 %v1402, %v2360
  %v2471 = vsub.f32 %v1405, %v2360
  %v2472 = vsub.f32 %v1408, %v2360
  %v2473 = vsub.f32 %v1411, %v2360
  %v2474 = vsub.f32 %v1414, %v2360
  %v2475 = vsub.f32 %v1417, %v2360
  %v2476 = vsub.f32 %v1420, %v2360
  %v2477 = vsub.f32 %v1423, %v2360
  %v2478 = vsub.f32 %v1426, %v2360
  %v2479 = vsub.f32 %v1429, %v2360
  %v2480 = vsub.f32 %v1432, %v2360
  %v2481 = vsub.f32 %v1435, %v2360
  %v2482 = vsub.f32 %v1438, %v2360
  %v2483 = vsub.f32 %v1441, %v2360
  %v2484 = vsub.f32 %v1444, %v2360
  %v2485 = vsub.f32 %v1447, %v2360
  %v2486 = vsub.f32 %v1450, %v2360
  %v2487 = vsub.f32 %v1453, %v2360
  %v2488 = vsub.f32 %v1456, %v2360
  %v2489 = vsub.f32 %v1459, %v2360
  %v2490 = vsub.f32 %v1462, %v2360
  %v2491 = vsub.f32 %v1465, %v2360
  %v2492 = vsub.f32 %v1468, %v2360
  %v2493 = vsub.f32 %v1471, %v2360
  %v2494 = vsub.f32 %v1474, %v2360
  %v2495 = vsub.f32 %v1477, %v2360
  %v2496 = vsub.f32 %v1480, %v2360
  %v2497 = vsub.f32 %v1483, %v2360
  %v2498 = vsub.f32 %v1486, %v2360
  %v2499 = vsub.f32 %v1489, %v2360
  %v2500 = vsub.f32 %v1492, %v2360
  %v2501 = vsub.f32 %v1495, %v2360
  %v2502 = vsub.f32 %v1498, %v2360
  %v2503 = vsub.f32 %v1501, %v2360
  %v2504 = vsub.f32 %v1504, %v2360
  %v2505 = vsub.f32 %v1507, %v2360
  %v2506 = vsub.f32 %v1510, %v2360
  %v2507 = vsub.f32 %v1513, %v2360
  %v2508 = vsub.f32 %v1516, %v2360
  %v2509 = vsub.f32 %v1519, %v2360
  %v2510 = vsub.f32 %v1522, %v2360
  %v2511 = vsub.f32 %v1525, %v2360
  %v2512 = vsub.f32 %v1528, %v2360
  %v2513 = vsub.f32 %v1531, %v2360
  %v2514 = vsub.f32 %v1534, %v2360
  %v2515 = vsub.f32 %v1537, %v2360
  %v2516 = vsub.f32 %v1540, %v2360
  %v2517 = vsub.f32 %v1543, %v2360
  %v2518 = vsub.f32 %v1546, %v2360
  %v2519 = vsub.f32 %v1549, %v2360
  %v2520 = vsub.f32 %v1552, %v2360
  %v2521 = vsub.f32 %v1555, %v2360
  %v2522 = vsub.f32 %v1558, %v2360
  %v2523 = vsub.f32 %v1561, %v2360
  %v2524 = vsub.f32 %v1564, %v2360
  %v2525 = vsub.f32 %v1567, %v2360
  %v2526 = vsub.f32 %v1570, %v2360
  %v2527 = vsub.f32 %v1573, %v2360
  %v2528 = vsub.f32 %v1576, %v2360
  %v2529 = vsub.f32 %v1579, %v2360
  %v2530 = vsub.f32 %v1582, %v2360
  %v2531 = vsub.f32 %v1585, %v2360
  %v2532 = vsub.f32 %v1588, %v2360
  %v2533 = vsub.f32 %v1591, %v2360
  %v2534 = vsub.f32 %v1594, %v2360
  %v2535 = vsub.f32 %v1597, %v2360
  %v2536 = vsub.f32 %v1600, %v2360
  %v2537 = vsub.f32 %v1603, %v2360
  %v2538 = vsub.f32 %v1606, %v2360
  %v2539 = vsub.f32 %v1609, %v2360
  %v2540 = vsub.f32 %v1612, %v2360
  %v2541 = vsub.f32 %v1615, %v2360
  %v2542 = vsub.f32 %v1618, %v2360
  %v2543 = vsub.f32 %v1621, %v2360
  %v2544 = vsub.f32 %v1624, %v2360
  %v2545 = vsub.f32 %v1627, %v2360
  %v2546 = vsub.f32 %v1630, %v2360
  %v2547 = vsub.f32 %v1633, %v2360
  %v2548 = vsub.f32 %v1636, %v2360
  %v2549 = vsub.f32 %v1639, %v2360
  %v2550 = vsub.f32 %v1642, %v2360
  %v2551 = vsub.f32 %v1645, %v2360
  %v2552 = vsub.f32 %v1648, %v2360
  %v2553 = vsub.f32 %v1651, %v2360
  %v2554 = vsub.f32 %v1654, %v2360
  %v2555 = vsub.f32 %v1657, %v2360
  %v2556 = vsub.f32 %v1660, %v2360
  %v2557 = vsub.f32 %v1663, %v2360
  %v2558 = vsub.f32 %v1666, %v2360
  %v2559 = vsub.f32 %v1669, %v2360
  %v2560 = vsub.f32 %v1672, %v2360
  %v2561 = vsub.f32 %v1675, %v2360
  %v2562 = vsub.f32 %v1678, %v2360
  %v2563 = vsub.f32 %v1681, %v2360
  %v2564 = vsub.f32 %v1684, %v2360
  %v2565 = vsub.f32 %v1687, %v2360
  %v2566 = vsub.f32 %v1690, %v2360
  %v2567 = vsub.f32 %v1693, %v2360
  %v2568 = vsub.f32 %v1696, %v2360
  %v2569 = vsub.f32 %v1699, %v2360
  %v2570 = vsub.f32 %v1702, %v2360
  %v2571 = vsub.f32 %v1705, %v2360
  %v2572 = vsub.f32 %v1708, %v2360
  %v2573 = vsub.f32 %v1711, %v2360
  %v2574 = vsub.f32 %v1714, %v2360
  %v2575 = vsub.f32 %v1717, %v2360
  %v2576 = vsub.f32 %v1720, %v2360
  %v2577 = vsub.f32 %v1723, %v2360
  %v2578 = vsub.f32 %v1726, %v2360
  %v2579 = vsub.f32 %v1729, %v2360
  %v2580 = vsub.f32 %v1732, %v2360
  %v2581 = vsub.f32 %v1735, %v2360
  %v2582 = vsub.f32 %v1738, %v2360
  %v2583 = vsub.f32 %v1741, %v2360
  %v2584 = vsub.f32 %v1744, %v2360
  %v2585 = vsub.f32 %v1747, %v2360
  %v2586 = vsub.f32 %v1750, %v2360
  %v2587 = vsub.f32 %v1753, %v2360
  %v2588 = vsub.f32 %v1756, %v2360
  %v2589 = vsub.f32 %v1759, %v2360
  %v2590 = vsub.f32 %v1762, %v2360
  %v2591 = vsub.f32 %v1765, %v2360
  %v2592 = vsub.f32 %v1768, %v2360
  %v2593 = vsub.f32 %v1771, %v2360
  %v2594 = vsub.f32 %v1774, %v2360
  %v2595 = vsub.f32 %v1777, %v2360
  %v2596 = vsub.f32 %v1780, %v2360
  %v2597 = vsub.f32 %v1783, %v2360
  %v2598 = vsub.f32 %v1786, %v2360
  %v2599 = vsub.f32 %v1789, %v2360
  %v2600 = vsub.f32 %v1792, %v2360
  %v2601 = vsub.f32 %v1795, %v2360
  %v2602 = vsub.f32 %v1798, %v2360
  %v2603 = vsub.f32 %v1801, %v2360
  %v2604 = vsub.f32 %v1804, %v2360
  %v2605 = vsub.f32 %v1807, %v2360
  %v2606 = vsub.f32 %v1810, %v2360
  %v2607 = vsub.f32 %v1813, %v2360
  %v2608 = vsub.f32 %v1816, %v2360
  %v2609 = vsub.f32 %v1819, %v2360
  %v2610 = vsub.f32 %v1822, %v2360
  %v2611 = vsub.f32 %v1825, %v2360
  %v2612 = vsub.f32 %v1828, %v2360
  %v2613 = vsub.f32 %v1831, %v2360
  %v2614 = vsub.f32 %v1834, %v2360
  %v2615 = vsub.f32 %v1837, %v2360
  %v2616 = vsub.f32 %v1840, %v2360
  %v2617 = vmul.f32 %v2361, %v2361
  %v2618 = vmul.f32 %v2362, %v2362
  %v2619 = vmul.f32 %v2363, %v2363
  %v2620 = vmul.f32 %v2364, %v2364
  %v2621 = vmul.f32 %v2365, %v2365
  %v2622 = vmul.f32 %v2366, %v2366
  %v2623 = vmul.f32 %v2367, %v2367
  %v2624 = vmul.f32 %v2368, %v2368
  %v2625 = vmul.f32 %v2369, %v2369
  %v2626 = vmul.f32 %v2370, %v2370
  %v2627 = vmul.f32 %v2371, %v2371
  %v2628 = vmul.f32 %v2372, %v2372
  %v2629 = vmul.f32 %v2373, %v2373
  %v2630 = vmul.f32 %v2374, %v2374
  %v2631 = vmul.f32 %v2375, %v2375
  %v2632 = vmul.f32 %v2376, %v2376
  %v2633 = vmul.f32 %v2377, %v2377
  %v2634 = vmul.f32 %v2378, %v2378
  %v2635 = vmul.f32 %v2379, %v2379
  %v2636 = vmul.f32 %v2380, %v2380
  %v2637 = vmul.f32 %v2381, %v2381
  %v2638 = vmul.f32 %v2382, %v2382
  %v2639 = vmul.f32 %v2383, %v2383
  %v2640 = vmul.f32 %v2384, %v2384
  %v2641 = vmul.f32 %v2385, %v2385
  %v2642 = vmul.f32 %v2386, %v2386
  %v2643 = vmul.f32 %v2387, %v2387
  %v2644 = vmul.f32 %v2388, %v2388
  %v2645 = vmul.f32 %v2389, %v2389
  %v2646 = vmul.f32 %v2390, %v2390
  %v2647 = vmul.f32 %v2391, %v2391
  %v2648 = vmul.f32 %v2392, %v2392
  %v2649 = vmul.f32 %v2393, %v2393
  %v2650 = vmul.f32 %v2394, %v2394
  %v2651 = vmul.f32 %v2395, %v2395
  %v2652 = vmul.f32 %v2396, %v2396
  %v2653 = vmul.f32 %v2397, %v2397
  %v2654 = vmul.f32 %v2398, %v2398
  %v2655 = vmul.f32 %v2399, %v2399
  %v2656 = vmul.f32 %v2400, %v2400
  %v2657 = vmul.f32 %v2401, %v2401
  %v2658 = vmul.f32 %v2402, %v2402
  %v2659 = vmul.f32 %v2403, %v2403
  %v2660 = vmul.f32 %v2404, %v2404
  %v2661 = vmul.f32 %v2405, %v2405
  %v2662 = vmul.f32 %v2406, %v2406
  %v2663 = vmul.f32 %v2407, %v2407
  %v2664 = vmul.f32 %v2408, %v2408
  %v2665 = vmul.f32 %v2409, %v2409
  %v2666 = vmul.f32 %v2410, %v2410
  %v2667 = vmul.f32 %v2411, %v2411
  %v2668 = vmul.f32 %v2412, %v2412
  %v2669 = vmul.f32 %v2413, %v2413
  %v2670 = vmul.f32 %v2414, %v2414
  %v2671 = vmul.f32 %v2415, %v2415
  %v2672 = vmul.f32 %v2416, %v2416
  %v2673 = vmul.f32 %v2417, %v2417
  %v2674 = vmul.f32 %v2418, %v2418
  %v2675 = vmul.f32 %v2419, %v2419
  %v2676 = vmul.f32 %v2420, %v2420
  %v2677 = vmul.f32 %v2421, %v2421
  %v2678 = vmul.f32 %v2422, %v2422
  %v2679 = vmul.f32 %v2423, %v2423
  %v2680 = vmul.f32 %v2424, %v2424
  %v2681 = vmul.f32 %v2425, %v2425
  %v2682 = vmul.f32 %v2426, %v2426
  %v2683 = vmul.f32 %v2427, %v2427
  %v2684 = vmul.f32 %v2428, %v2428
  %v2685 = vmul.f32 %v2429, %v2429
  %v2686 = vmul.f32 %v2430, %v2430
  %v2687 = vmul.f32 %v2431, %v2431
  %v2688 = vmul.f32 %v2432, %v2432
  %v2689 = vmul.f32 %v2433, %v2433
  %v2690 = vmul.f32 %v2434, %v2434
  %v2691 = vmul.f32 %v2435, %v2435
  %v2692 = vmul.f32 %v2436, %v2436
  %v2693 = vmul.f32 %v2437, %v2437
  %v2694 = vmul.f32 %v2438, %v2438
  %v2695 = vmul.f32 %v2439, %v2439
  %v2696 = vmul.f32 %v2440, %v2440
  %v2697 = vmul.f32 %v2441, %v2441
  %v2698 = vmul.f32 %v2442, %v2442
  %v2699 = vmul.f32 %v2443, %v2443
  %v2700 = vmul.f32 %v2444, %v2444
  %v2701 = vmul.f32 %v2445, %v2445
  %v2702 = vmul.f32 %v2446, %v2446
  %v2703 = vmul.f32 %v2447, %v2447
  %v2704 = vmul.f32 %v2448, %v2448
  %v2705 = vmul.f32 %v2449, %v2449
  %v2706 = vmul.f32 %v2450, %v2450
  %v2707 = vmul.f32 %v2451, %v2451
  %v2708 = vmul.f32 %v2452, %v2452
  %v2709 = vmul.f32 %v2453, %v2453
  %v2710 = vmul.f32 %v2454, %v2454
  %v2711 = vmul.f32 %v2455, %v2455
  %v2712 = vmul.f32 %v2456, %v2456
  %v2713 = vmul.f32 %v2457, %v2457
  %v2714 = vmul.f32 %v2458, %v2458
  %v2715 = vmul.f32 %v2459, %v2459
  %v2716 = vmul.f32 %v2460, %v2460
  %v2717 = vmul.f32 %v2461, %v2461
  %v2718 = vmul.f32 %v2462, %v2462
  %v2719 = vmul.f32 %v2463, %v2463
  %v2720 = vmul.f32 %v2464, %v2464
  %v2721 = vmul.f32 %v2465, %v2465
  %v2722 = vmul.f32 %v2466, %v2466
  %v2723 = vmul.f32 %v2467, %v2467
  %v2724 = vmul.f32 %v2468, %v2468
  %v2725 = vmul.f32 %v2469, %v2469
  %v2726 = vmul.f32 %v2470, %v2470
  %v2727 = vmul.f32 %v2471, %v2471
  %v2728 = vmul.f32 %v2472, %v2472
  %v2729 = vmul.f32 %v2473, %v2473
  %v2730 = vmul.f32 %v2474, %v2474
  %v2731 = vmul.f32 %v2475, %v2475
  %v2732 = vmul.f32 %v2476, %v2476
  %v2733 = vmul.f32 %v2477, %v2477
  %v2734 = vmul.f32 %v2478, %v2478
  %v2735 = vmul.f32 %v2479, %v2479
  %v2736 = vmul.f32 %v2480, %v2480
  %v2737 = vmul.f32 %v2481, %v2481
  %v2738 = vmul.f32 %v2482, %v2482
  %v2739 = vmul.f32 %v2483, %v2483
  %v2740 = vmul.f32 %v2484, %v2484
  %v2741 = vmul.f32 %v2485, %v2485
  %v2742 = vmul.f32 %v2486, %v2486
  %v2743 = vmul.f32 %v2487, %v2487
  %v2744 = vmul.f32 %v2488, %v2488
  %v2745 = vmul.f32 %v2489, %v2489
  %v2746 = vmul.f32 %v2490, %v2490
  %v2747 = vmul.f32 %v2491, %v2491
  %v2748 = vmul.f32 %v2492, %v2492
  %v2749 = vmul.f32 %v2493, %v2493
  %v2750 = vmul.f32 %v2494, %v2494
  %v2751 = vmul.f32 %v2495, %v2495
  %v2752 = vmul.f32 %v2496, %v2496
  %v2753 = vmul.f32 %v2497, %v2497
  %v2754 = vmul.f32 %v2498, %v2498
  %v2755 = vmul.f32 %v2499, %v2499
  %v2756 = vmul.f32 %v2500, %v2500
  %v2757 = vmul.f32 %v2501, %v2501
  %v2758 = vmul.f32 %v2502, %v2502
  %v2759 = vmul.f32 %v2503, %v2503
  %v2760 = vmul.f32 %v2504, %v2504
  %v2761 = vmul.f32 %v2505, %v2505
  %v2762 = vmul.f32 %v2506, %v2506
  %v2763 = vmul.f32 %v2507, %v2507
  %v2764 = vmul.f32 %v2508, %v2508
  %v2765 = vmul.f32 %v2509, %v2509
  %v2766 = vmul.f32 %v2510, %v2510
  %v2767 = vmul.f32 %v2511, %v2511
  %v2768 = vmul.f32 %v2512, %v2512
  %v2769 = vmul.f32 %v2513, %v2513
  %v2770 = vmul.f32 %v2514, %v2514
  %v2771 = vmul.f32 %v2515, %v2515
  %v2772 = vmul.f32 %v2516, %v2516
  %v2773 = vmul.f32 %v2517, %v2517
  %v2774 = vmul.f32 %v2518, %v2518
  %v2775 = vmul.f32 %v2519, %v2519
  %v2776 = vmul.f32 %v2520, %v2520
  %v2777 = vmul.f32 %v2521, %v2521
  %v2778 = vmul.f32 %v2522, %v2522
  %v2779 = vmul.f32 %v2523, %v2523
  %v2780 = vmul.f32 %v2524, %v2524
  %v2781 = vmul.f32 %v2525, %v2525
  %v2782 = vmul.f32 %v2526, %v2526
  %v2783 = vmul.f32 %v2527, %v2527
  %v2784 = vmul.f32 %v2528, %v2528
  %v2785 = vmul.f32 %v2529, %v2529
  %v2786 = vmul.f32 %v2530, %v2530
  %v2787 = vmul.f32 %v2531, %v2531
  %v2788 = vmul.f32 %v2532, %v2532
  %v2789 = vmul.f32 %v2533, %v2533
  %v2790 = vmul.f32 %v2534, %v2534
  %v2791 = vmul.f32 %v2535, %v2535
  %v2792 = vmul.f32 %v2536, %v2536
  %v2793 = vmul.f32 %v2537, %v2537
  %v2794 = vmul.f32 %v2538, %v2538
  %v2795 = vmul.f32 %v2539, %v2539
  %v2796 = vmul.f32 %v2540, %v2540
  %v2797 = vmul.f32 %v2541, %v2541
  %v2798 = vmul.f32 %v2542, %v2542
  %v2799 = vmul.f32 %v2543, %v2543
  %v2800 = vmul.f32 %v2544, %v2544
  %v2801 = vmul.f32 %v2545, %v2545
  %v2802 = vmul.f32 %v2546, %v2546
  %v2803 = vmul.f32 %v2547, %v2547
  %v2804 = vmul.f32 %v2548, %v2548
  %v2805 = vmul.f32 %v2549, %v2549
  %v2806 = vmul.f32 %v2550, %v2550
  %v2807 = vmul.f32 %v2551, %v2551
  %v2808 = vmul.f32 %v2552, %v2552
  %v2809 = vmul.f32 %v2553, %v2553
  %v2810 = vmul.f32 %v2554, %v2554
  %v2811 = vmul.f32 %v2555, %v2555
  %v2812 = vmul.f32 %v2556, %v2556
  %v2813 = vmul.f32 %v2557, %v2557
  %v2814 = vmul.f32 %v2558, %v2558
  %v2815 = vmul.f32 %v2559, %v2559
  %v2816 = vmul.f32 %v2560, %v2560
  %v2817 = vmul.f32 %v2561, %v2561
  %v2818 = vmul.f32 %v2562, %v2562
  %v2819 = vmul.f32 %v2563, %v2563
  %v2820 = vmul.f32 %v2564, %v2564
  %v2821 = vmul.f32 %v2565, %v2565
  %v2822 = vmul.f32 %v2566, %v2566
  %v2823 = vmul.f32 %v2567, %v2567
  %v2824 = vmul.f32 %v2568, %v2568
  %v2825 = vmul.f32 %v2569, %v2569
  %v2826 = vmul.f32 %v2570, %v2570
  %v2827 = vmul.f32 %v2571, %v2571
  %v2828 = vmul.f32 %v2572, %v2572
  %v2829 = vmul.f32 %v2573, %v2573
  %v2830 = vmul.f32 %v2574, %v2574
  %v2831 = vmul.f32 %v2575, %v2575
  %v2832 = vmul.f32 %v2576, %v2576
  %v2833 = vmul.f32 %v2577, %v2577
  %v2834 = vmul.f32 %v2578, %v2578
  %v2835 = vmul.f32 %v2579, %v2579
  %v2836 = vmul.f32 %v2580, %v2580
  %v2837 = vmul.f32 %v2581, %v2581
  %v2838 = vmul.f32 %v2582, %v2582
  %v2839 = vmul.f32 %v2583, %v2583
  %v2840 = vmul.f32 %v2584, %v2584
  %v2841 = vmul.f32 %v2585, %v2585
  %v2842 = vmul.f32 %v2586, %v2586
  %v2843 = vmul.f32 %v2587, %v2587
  %v2844 = vmul.f32 %v2588, %v2588
  %v2845 = vmul.f32 %v2589, %v2589
  %v2846 = vmul.f32 %v2590, %v2590
  %v2847 = vmul.f32 %v2591, %v2591
  %v2848 = vmul.f32 %v2592, %v2592
  %v2849 = vmul.f32 %v2593, %v2593
  %v2850 = vmul.f32 %v2594, %v2594
  %v2851 = vmul.f32 %v2595, %v2595
  %v2852 = vmul.f32 %v2596, %v2596
  %v2853 = vmul.f32 %v2597, %v2597
  %v2854 = vmul.f32 %v2598, %v2598
  %v2855 = vmul.f32 %v2599, %v2599
  %v2856 = vmul.f32 %v2600, %v2600
  %v2857 = vmul.f32 %v2601, %v2601
  %v2858 = vmul.f32 %v2602, %v2602
  %v2859 = vmul.f32 %v2603, %v2603
  %v2860 = vmul.f32 %v2604, %v2604
  %v2861 = vmul.f32 %v2605, %v2605
  %v2862 = vmul.f32 %v2606, %v2606
  %v2863 = vmul.f32 %v2607, %v2607
  %v2864 = vmul.f32 %v2608, %v2608
  %v2865 = vmul.f32 %v2609, %v2609
  %v2866 = vmul.f32 %v2610, %v2610
  %v2867 = vmul.f32 %v2611, %v2611
  %v2868 = vmul.f32 %v2612, %v2612
  %v2869 = vmul.f32 %v2613, %v2613
  %v2870 = vmul.f32 %v2614, %v2614
  %v2871 = vmul.f32 %v2615, %v2615
  %v2872 = vmul.f32 %v2616, %v2616
  %v2873 = vsel %vm1842, %v2617, 0.0
  %v2874 = vsel %vm1842, %v2618, 0.0
  %v2875 = vadd.f32 %v2873, %v2874
  %v2876 = vsel %vm1842, %v2619, 0.0
  %v2877 = vadd.f32 %v2875, %v2876
  %v2878 = vsel %vm1842, %v2620, 0.0
  %v2879 = vadd.f32 %v2877, %v2878
  %v2880 = vsel %vm1842, %v2621, 0.0
  %v2881 = vadd.f32 %v2879, %v2880
  %v2882 = vsel %vm1842, %v2622, 0.0
  %v2883 = vadd.f32 %v2881, %v2882
  %v2884 = vsel %vm1842, %v2623, 0.0
  %v2885 = vadd.f32 %v2883, %v2884
  %v2886 = vsel %vm1842, %v2624, 0.0
  %v2887 = vadd.f32 %v2885, %v2886
  %v2888 = vsel %vm1842, %v2625, 0.0
  %v2889 = vadd.f32 %v2887, %v2888
  %v2890 = vsel %vm1842, %v2626, 0.0
  %v2891 = vadd.f32 %v2889, %v2890
  %v2892 = vsel %vm1842, %v2627, 0.0
  %v2893 = vadd.f32 %v2891, %v2892
  %v2894 = vsel %vm1842, %v2628, 0.0
  %v2895 = vadd.f32 %v2893, %v2894
  %v2896 = vsel %vm1842, %v2629, 0.0
  %v2897 = vadd.f32 %v2895, %v2896
  %v2898 = vsel %vm1842, %v2630, 0.0
  %v2899 = vadd.f32 %v2897, %v2898
  %v2900 = vsel %vm1842, %v2631, 0.0
  %v2901 = vadd.f32 %v2899, %v2900
  %v2902 = vsel %vm1842, %v2632, 0.0
  %v2903 = vadd.f32 %v2901, %v2902
  %v2904 = vsel %vm1842, %v2633, 0.0
  %v2905 = vadd.f32 %v2903, %v2904
  %v2906 = vsel %vm1842, %v2634, 0.0
  %v2907 = vadd.f32 %v2905, %v2906
  %v2908 = vsel %vm1842, %v2635, 0.0
  %v2909 = vadd.f32 %v2907, %v2908
  %v2910 = vsel %vm1842, %v2636, 0.0
  %v2911 = vadd.f32 %v2909, %v2910
  %v2912 = vsel %vm1842, %v2637, 0.0
  %v2913 = vadd.f32 %v2911, %v2912
  %v2914 = vsel %vm1842, %v2638, 0.0
  %v2915 = vadd.f32 %v2913, %v2914
  %v2916 = vsel %vm1842, %v2639, 0.0
  %v2917 = vadd.f32 %v2915, %v2916
  %v2918 = vsel %vm1842, %v2640, 0.0
  %v2919 = vadd.f32 %v2917, %v2918
  %v2920 = vsel %vm1842, %v2641, 0.0
  %v2921 = vadd.f32 %v2919, %v2920
  %v2922 = vsel %vm1842, %v2642, 0.0
  %v2923 = vadd.f32 %v2921, %v2922
  %v2924 = vsel %vm1842, %v2643, 0.0
  %v2925 = vadd.f32 %v2923, %v2924
  %v2926 = vsel %vm1842, %v2644, 0.0
  %v2927 = vadd.f32 %v2925, %v2926
  %v2928 = vsel %vm1842, %v2645, 0.0
  %v2929 = vadd.f32 %v2927, %v2928
  %v2930 = vsel %vm1842, %v2646, 0.0
  %v2931 = vadd.f32 %v2929, %v2930
  %v2932 = vsel %vm1842, %v2647, 0.0
  %v2933 = vadd.f32 %v2931, %v2932
  %v2934 = vsel %vm1842, %v2648, 0.0
  %v2935 = vadd.f32 %v2933, %v2934
  %v2936 = vsel %vm1842, %v2649, 0.0
  %v2937 = vadd.f32 %v2935, %v2936
  %v2938 = vsel %vm1842, %v2650, 0.0
  %v2939 = vadd.f32 %v2937, %v2938
  %v2940 = vsel %vm1842, %v2651, 0.0
  %v2941 = vadd.f32 %v2939, %v2940
  %v2942 = vsel %vm1842, %v2652, 0.0
  %v2943 = vadd.f32 %v2941, %v2942
  %v2944 = vsel %vm1842, %v2653, 0.0
  %v2945 = vadd.f32 %v2943, %v2944
  %v2946 = vsel %vm1842, %v2654, 0.0
  %v2947 = vadd.f32 %v2945, %v2946
  %v2948 = vsel %vm1842, %v2655, 0.0
  %v2949 = vadd.f32 %v2947, %v2948
  %v2950 = vsel %vm1842, %v2656, 0.0
  %v2951 = vadd.f32 %v2949, %v2950
  %v2952 = vsel %vm1842, %v2657, 0.0
  %v2953 = vadd.f32 %v2951, %v2952
  %v2954 = vsel %vm1842, %v2658, 0.0
  %v2955 = vadd.f32 %v2953, %v2954
  %v2956 = vsel %vm1842, %v2659, 0.0
  %v2957 = vadd.f32 %v2955, %v2956
  %v2958 = vsel %vm1842, %v2660, 0.0
  %v2959 = vadd.f32 %v2957, %v2958
  %v2960 = vsel %vm1842, %v2661, 0.0
  %v2961 = vadd.f32 %v2959, %v2960
  %v2962 = vsel %vm1842, %v2662, 0.0
  %v2963 = vadd.f32 %v2961, %v2962
  %v2964 = vsel %vm1842, %v2663, 0.0
  %v2965 = vadd.f32 %v2963, %v2964
  %v2966 = vsel %vm1842, %v2664, 0.0
  %v2967 = vadd.f32 %v2965, %v2966
  %v2968 = vsel %vm1842, %v2665, 0.0
  %v2969 = vadd.f32 %v2967, %v2968
  %v2970 = vsel %vm1842, %v2666, 0.0
  %v2971 = vadd.f32 %v2969, %v2970
  %v2972 = vsel %vm1842, %v2667, 0.0
  %v2973 = vadd.f32 %v2971, %v2972
  %v2974 = vsel %vm1842, %v2668, 0.0
  %v2975 = vadd.f32 %v2973, %v2974
  %v2976 = vsel %vm1842, %v2669, 0.0
  %v2977 = vadd.f32 %v2975, %v2976
  %v2978 = vsel %vm1842, %v2670, 0.0
  %v2979 = vadd.f32 %v2977, %v2978
  %v2980 = vsel %vm1842, %v2671, 0.0
  %v2981 = vadd.f32 %v2979, %v2980
  %v2982 = vsel %vm1842, %v2672, 0.0
  %v2983 = vadd.f32 %v2981, %v2982
  %v2984 = vsel %vm1842, %v2673, 0.0
  %v2985 = vadd.f32 %v2983, %v2984
  %v2986 = vsel %vm1842, %v2674, 0.0
  %v2987 = vadd.f32 %v2985, %v2986
  %v2988 = vsel %vm1842, %v2675, 0.0
  %v2989 = vadd.f32 %v2987, %v2988
  %v2990 = vsel %vm1842, %v2676, 0.0
  %v2991 = vadd.f32 %v2989, %v2990
  %v2992 = vsel %vm1842, %v2677, 0.0
  %v2993 = vadd.f32 %v2991, %v2992
  %v2994 = vsel %vm1842, %v2678, 0.0
  %v2995 = vadd.f32 %v2993, %v2994
  %v2996 = vsel %vm1842, %v2679, 0.0
  %v2997 = vadd.f32 %v2995, %v2996
  %v2998 = vsel %vm1842, %v2680, 0.0
  %v2999 = vadd.f32 %v2997, %v2998
  %v3000 = vsel %vm1842, %v2681, 0.0
  %v3001 = vadd.f32 %v2999, %v3000
  %v3002 = vsel %vm1842, %v2682, 0.0
  %v3003 = vadd.f32 %v3001, %v3002
  %v3004 = vsel %vm1842, %v2683, 0.0
  %v3005 = vadd.f32 %v3003, %v3004
  %v3006 = vsel %vm1842, %v2684, 0.0
  %v3007 = vadd.f32 %v3005, %v3006
  %v3008 = vsel %vm1842, %v2685, 0.0
  %v3009 = vadd.f32 %v3007, %v3008
  %v3010 = vsel %vm1842, %v2686, 0.0
  %v3011 = vadd.f32 %v3009, %v3010
  %v3012 = vsel %vm1842, %v2687, 0.0
  %v3013 = vadd.f32 %v3011, %v3012
  %v3014 = vsel %vm1842, %v2688, 0.0
  %v3015 = vadd.f32 %v3013, %v3014
  %v3016 = vsel %vm1842, %v2689, 0.0
  %v3017 = vadd.f32 %v3015, %v3016
  %v3018 = vsel %vm1842, %v2690, 0.0
  %v3019 = vadd.f32 %v3017, %v3018
  %v3020 = vsel %vm1842, %v2691, 0.0
  %v3021 = vadd.f32 %v3019, %v3020
  %v3022 = vsel %vm1842, %v2692, 0.0
  %v3023 = vadd.f32 %v3021, %v3022
  %v3024 = vsel %vm1842, %v2693, 0.0
  %v3025 = vadd.f32 %v3023, %v3024
  %v3026 = vsel %vm1842, %v2694, 0.0
  %v3027 = vadd.f32 %v3025, %v3026
  %v3028 = vsel %vm1842, %v2695, 0.0
  %v3029 = vadd.f32 %v3027, %v3028
  %v3030 = vsel %vm1842, %v2696, 0.0
  %v3031 = vadd.f32 %v3029, %v3030
  %v3032 = vsel %vm1842, %v2697, 0.0
  %v3033 = vadd.f32 %v3031, %v3032
  %v3034 = vsel %vm1842, %v2698, 0.0
  %v3035 = vadd.f32 %v3033, %v3034
  %v3036 = vsel %vm1842, %v2699, 0.0
  %v3037 = vadd.f32 %v3035, %v3036
  %v3038 = vsel %vm1842, %v2700, 0.0
  %v3039 = vadd.f32 %v3037, %v3038
  %v3040 = vsel %vm1842, %v2701, 0.0
  %v3041 = vadd.f32 %v3039, %v3040
  %v3042 = vsel %vm1842, %v2702, 0.0
  %v3043 = vadd.f32 %v3041, %v3042
  %v3044 = vsel %vm1842, %v2703, 0.0
  %v3045 = vadd.f32 %v3043, %v3044
  %v3046 = vsel %vm1842, %v2704, 0.0
  %v3047 = vadd.f32 %v3045, %v3046
  %v3048 = vsel %vm1842, %v2705, 0.0
  %v3049 = vadd.f32 %v3047, %v3048
  %v3050 = vsel %vm1842, %v2706, 0.0
  %v3051 = vadd.f32 %v3049, %v3050
  %v3052 = vsel %vm1842, %v2707, 0.0
  %v3053 = vadd.f32 %v3051, %v3052
  %v3054 = vsel %vm1842, %v2708, 0.0
  %v3055 = vadd.f32 %v3053, %v3054
  %v3056 = vsel %vm1842, %v2709, 0.0
  %v3057 = vadd.f32 %v3055, %v3056
  %v3058 = vsel %vm1842, %v2710, 0.0
  %v3059 = vadd.f32 %v3057, %v3058
  %v3060 = vsel %vm1842, %v2711, 0.0
  %v3061 = vadd.f32 %v3059, %v3060
  %v3062 = vsel %vm1842, %v2712, 0.0
  %v3063 = vadd.f32 %v3061, %v3062
  %v3064 = vsel %vm1842, %v2713, 0.0
  %v3065 = vadd.f32 %v3063, %v3064
  %v3066 = vsel %vm1842, %v2714, 0.0
  %v3067 = vadd.f32 %v3065, %v3066
  %v3068 = vsel %vm1842, %v2715, 0.0
  %v3069 = vadd.f32 %v3067, %v3068
  %v3070 = vsel %vm1842, %v2716, 0.0
  %v3071 = vadd.f32 %v3069, %v3070
  %v3072 = vsel %vm1842, %v2717, 0.0
  %v3073 = vadd.f32 %v3071, %v3072
  %v3074 = vsel %vm1842, %v2718, 0.0
  %v3075 = vadd.f32 %v3073, %v3074
  %v3076 = vsel %vm1842, %v2719, 0.0
  %v3077 = vadd.f32 %v3075, %v3076
  %v3078 = vsel %vm1842, %v2720, 0.0
  %v3079 = vadd.f32 %v3077, %v3078
  %v3080 = vsel %vm1842, %v2721, 0.0
  %v3081 = vadd.f32 %v3079, %v3080
  %v3082 = vsel %vm1842, %v2722, 0.0
  %v3083 = vadd.f32 %v3081, %v3082
  %v3084 = vsel %vm1842, %v2723, 0.0
  %v3085 = vadd.f32 %v3083, %v3084
  %v3086 = vsel %vm1842, %v2724, 0.0
  %v3087 = vadd.f32 %v3085, %v3086
  %v3088 = vsel %vm1842, %v2725, 0.0
  %v3089 = vadd.f32 %v3087, %v3088
  %v3090 = vsel %vm1842, %v2726, 0.0
  %v3091 = vadd.f32 %v3089, %v3090
  %v3092 = vsel %vm1842, %v2727, 0.0
  %v3093 = vadd.f32 %v3091, %v3092
  %v3094 = vsel %vm1842, %v2728, 0.0
  %v3095 = vadd.f32 %v3093, %v3094
  %v3096 = vsel %vm1842, %v2729, 0.0
  %v3097 = vadd.f32 %v3095, %v3096
  %v3098 = vsel %vm1842, %v2730, 0.0
  %v3099 = vadd.f32 %v3097, %v3098
  %v3100 = vsel %vm1842, %v2731, 0.0
  %v3101 = vadd.f32 %v3099, %v3100
  %v3102 = vsel %vm1842, %v2732, 0.0
  %v3103 = vadd.f32 %v3101, %v3102
  %v3104 = vsel %vm1842, %v2733, 0.0
  %v3105 = vadd.f32 %v3103, %v3104
  %v3106 = vsel %vm1842, %v2734, 0.0
  %v3107 = vadd.f32 %v3105, %v3106
  %v3108 = vsel %vm1842, %v2735, 0.0
  %v3109 = vadd.f32 %v3107, %v3108
  %v3110 = vsel %vm1842, %v2736, 0.0
  %v3111 = vadd.f32 %v3109, %v3110
  %v3112 = vsel %vm1842, %v2737, 0.0
  %v3113 = vadd.f32 %v3111, %v3112
  %v3114 = vsel %vm1842, %v2738, 0.0
  %v3115 = vadd.f32 %v3113, %v3114
  %v3116 = vsel %vm1842, %v2739, 0.0
  %v3117 = vadd.f32 %v3115, %v3116
  %v3118 = vsel %vm1842, %v2740, 0.0
  %v3119 = vadd.f32 %v3117, %v3118
  %v3120 = vsel %vm1842, %v2741, 0.0
  %v3121 = vadd.f32 %v3119, %v3120
  %v3122 = vsel %vm1842, %v2742, 0.0
  %v3123 = vadd.f32 %v3121, %v3122
  %v3124 = vsel %vm1842, %v2743, 0.0
  %v3125 = vadd.f32 %v3123, %v3124
  %v3126 = vsel %vm1842, %v2744, 0.0
  %v3127 = vadd.f32 %v3125, %v3126
  %v3128 = vsel %vm1842, %v2745, 0.0
  %v3129 = vadd.f32 %v3127, %v3128
  %v3130 = vsel %vm1842, %v2746, 0.0
  %v3131 = vadd.f32 %v3129, %v3130
  %v3132 = vsel %vm1842, %v2747, 0.0
  %v3133 = vadd.f32 %v3131, %v3132
  %v3134 = vsel %vm1842, %v2748, 0.0
  %v3135 = vadd.f32 %v3133, %v3134
  %v3136 = vsel %vm1842, %v2749, 0.0
  %v3137 = vadd.f32 %v3135, %v3136
  %v3138 = vsel %vm1842, %v2750, 0.0
  %v3139 = vadd.f32 %v3137, %v3138
  %v3140 = vsel %vm1842, %v2751, 0.0
  %v3141 = vadd.f32 %v3139, %v3140
  %v3142 = vsel %vm1842, %v2752, 0.0
  %v3143 = vadd.f32 %v3141, %v3142
  %v3144 = vsel %vm1842, %v2753, 0.0
  %v3145 = vadd.f32 %v3143, %v3144
  %v3146 = vsel %vm1842, %v2754, 0.0
  %v3147 = vadd.f32 %v3145, %v3146
  %v3148 = vsel %vm1842, %v2755, 0.0
  %v3149 = vadd.f32 %v3147, %v3148
  %v3150 = vsel %vm1842, %v2756, 0.0
  %v3151 = vadd.f32 %v3149, %v3150
  %v3152 = vsel %vm1842, %v2757, 0.0
  %v3153 = vadd.f32 %v3151, %v3152
  %v3154 = vsel %vm1842, %v2758, 0.0
  %v3155 = vadd.f32 %v3153, %v3154
  %v3156 = vsel %vm1842, %v2759, 0.0
  %v3157 = vadd.f32 %v3155, %v3156
  %v3158 = vsel %vm1842, %v2760, 0.0
  %v3159 = vadd.f32 %v3157, %v3158
  %v3160 = vsel %vm1842, %v2761, 0.0
  %v3161 = vadd.f32 %v3159, %v3160
  %v3162 = vsel %vm1842, %v2762, 0.0
  %v3163 = vadd.f32 %v3161, %v3162
  %v3164 = vsel %vm1842, %v2763, 0.0
  %v3165 = vadd.f32 %v3163, %v3164
  %v3166 = vsel %vm1842, %v2764, 0.0
  %v3167 = vadd.f32 %v3165, %v3166
  %v3168 = vsel %vm1842, %v2765, 0.0
  %v3169 = vadd.f32 %v3167, %v3168
  %v3170 = vsel %vm1842, %v2766, 0.0
  %v3171 = vadd.f32 %v3169, %v3170
  %v3172 = vsel %vm1842, %v2767, 0.0
  %v3173 = vadd.f32 %v3171, %v3172
  %v3174 = vsel %vm1842, %v2768, 0.0
  %v3175 = vadd.f32 %v3173, %v3174
  %v3176 = vsel %vm1842, %v2769, 0.0
  %v3177 = vadd.f32 %v3175, %v3176
  %v3178 = vsel %vm1842, %v2770, 0.0
  %v3179 = vadd.f32 %v3177, %v3178
  %v3180 = vsel %vm1842, %v2771, 0.0
  %v3181 = vadd.f32 %v3179, %v3180
  %v3182 = vsel %vm1842, %v2772, 0.0
  %v3183 = vadd.f32 %v3181, %v3182
  %v3184 = vsel %vm1842, %v2773, 0.0
  %v3185 = vadd.f32 %v3183, %v3184
  %v3186 = vsel %vm1842, %v2774, 0.0
  %v3187 = vadd.f32 %v3185, %v3186
  %v3188 = vsel %vm1842, %v2775, 0.0
  %v3189 = vadd.f32 %v3187, %v3188
  %v3190 = vsel %vm1842, %v2776, 0.0
  %v3191 = vadd.f32 %v3189, %v3190
  %v3192 = vsel %vm1842, %v2777, 0.0
  %v3193 = vadd.f32 %v3191, %v3192
  %v3194 = vsel %vm1842, %v2778, 0.0
  %v3195 = vadd.f32 %v3193, %v3194
  %v3196 = vsel %vm1842, %v2779, 0.0
  %v3197 = vadd.f32 %v3195, %v3196
  %v3198 = vsel %vm1842, %v2780, 0.0
  %v3199 = vadd.f32 %v3197, %v3198
  %v3200 = vsel %vm1842, %v2781, 0.0
  %v3201 = vadd.f32 %v3199, %v3200
  %v3202 = vsel %vm1842, %v2782, 0.0
  %v3203 = vadd.f32 %v3201, %v3202
  %v3204 = vsel %vm1842, %v2783, 0.0
  %v3205 = vadd.f32 %v3203, %v3204
  %v3206 = vsel %vm1842, %v2784, 0.0
  %v3207 = vadd.f32 %v3205, %v3206
  %v3208 = vsel %vm1842, %v2785, 0.0
  %v3209 = vadd.f32 %v3207, %v3208
  %v3210 = vsel %vm1842, %v2786, 0.0
  %v3211 = vadd.f32 %v3209, %v3210
  %v3212 = vsel %vm1842, %v2787, 0.0
  %v3213 = vadd.f32 %v3211, %v3212
  %v3214 = vsel %vm1842, %v2788, 0.0
  %v3215 = vadd.f32 %v3213, %v3214
  %v3216 = vsel %vm1842, %v2789, 0.0
  %v3217 = vadd.f32 %v3215, %v3216
  %v3218 = vsel %vm1842, %v2790, 0.0
  %v3219 = vadd.f32 %v3217, %v3218
  %v3220 = vsel %vm1842, %v2791, 0.0
  %v3221 = vadd.f32 %v3219, %v3220
  %v3222 = vsel %vm1842, %v2792, 0.0
  %v3223 = vadd.f32 %v3221, %v3222
  %v3224 = vsel %vm1842, %v2793, 0.0
  %v3225 = vadd.f32 %v3223, %v3224
  %v3226 = vsel %vm1842, %v2794, 0.0
  %v3227 = vadd.f32 %v3225, %v3226
  %v3228 = vsel %vm1842, %v2795, 0.0
  %v3229 = vadd.f32 %v3227, %v3228
  %v3230 = vsel %vm1842, %v2796, 0.0
  %v3231 = vadd.f32 %v3229, %v3230
  %v3232 = vsel %vm1842, %v2797, 0.0
  %v3233 = vadd.f32 %v3231, %v3232
  %v3234 = vsel %vm1842, %v2798, 0.0
  %v3235 = vadd.f32 %v3233, %v3234
  %v3236 = vsel %vm1842, %v2799, 0.0
  %v3237 = vadd.f32 %v3235, %v3236
  %v3238 = vsel %vm1842, %v2800, 0.0
  %v3239 = vadd.f32 %v3237, %v3238
  %v3240 = vsel %vm1842, %v2801, 0.0
  %v3241 = vadd.f32 %v3239, %v3240
  %v3242 = vsel %vm1842, %v2802, 0.0
  %v3243 = vadd.f32 %v3241, %v3242
  %v3244 = vsel %vm1842, %v2803, 0.0
  %v3245 = vadd.f32 %v3243, %v3244
  %v3246 = vsel %vm1842, %v2804, 0.0
  %v3247 = vadd.f32 %v3245, %v3246
  %v3248 = vsel %vm1842, %v2805, 0.0
  %v3249 = vadd.f32 %v3247, %v3248
  %v3250 = vsel %vm1842, %v2806, 0.0
  %v3251 = vadd.f32 %v3249, %v3250
  %v3252 = vsel %vm1842, %v2807, 0.0
  %v3253 = vadd.f32 %v3251, %v3252
  %v3254 = vsel %vm1842, %v2808, 0.0
  %v3255 = vadd.f32 %v3253, %v3254
  %v3256 = vsel %vm1842, %v2809, 0.0
  %v3257 = vadd.f32 %v3255, %v3256
  %v3258 = vsel %vm1842, %v2810, 0.0
  %v3259 = vadd.f32 %v3257, %v3258
  %v3260 = vsel %vm1842, %v2811, 0.0
  %v3261 = vadd.f32 %v3259, %v3260
  %v3262 = vsel %vm1842, %v2812, 0.0
  %v3263 = vadd.f32 %v3261, %v3262
  %v3264 = vsel %vm1842, %v2813, 0.0
  %v3265 = vadd.f32 %v3263, %v3264
  %v3266 = vsel %vm1842, %v2814, 0.0
  %v3267 = vadd.f32 %v3265, %v3266
  %v3268 = vsel %vm1842, %v2815, 0.0
  %v3269 = vadd.f32 %v3267, %v3268
  %v3270 = vsel %vm1842, %v2816, 0.0
  %v3271 = vadd.f32 %v3269, %v3270
  %v3272 = vsel %vm1842, %v2817, 0.0
  %v3273 = vadd.f32 %v3271, %v3272
  %v3274 = vsel %vm1842, %v2818, 0.0
  %v3275 = vadd.f32 %v3273, %v3274
  %v3276 = vsel %vm1842, %v2819, 0.0
  %v3277 = vadd.f32 %v3275, %v3276
  %v3278 = vsel %vm1842, %v2820, 0.0
  %v3279 = vadd.f32 %v3277, %v3278
  %v3280 = vsel %vm1842, %v2821, 0.0
  %v3281 = vadd.f32 %v3279, %v3280
  %v3282 = vsel %vm1842, %v2822, 0.0
  %v3283 = vadd.f32 %v3281, %v3282
  %v3284 = vsel %vm1842, %v2823, 0.0
  %v3285 = vadd.f32 %v3283, %v3284
  %v3286 = vsel %vm1842, %v2824, 0.0
  %v3287 = vadd.f32 %v3285, %v3286
  %v3288 = vsel %vm1842, %v2825, 0.0
  %v3289 = vadd.f32 %v3287, %v3288
  %v3290 = vsel %vm1842, %v2826, 0.0
  %v3291 = vadd.f32 %v3289, %v3290
  %v3292 = vsel %vm1842, %v2827, 0.0
  %v3293 = vadd.f32 %v3291, %v3292
  %v3294 = vsel %vm1842, %v2828, 0.0
  %v3295 = vadd.f32 %v3293, %v3294
  %v3296 = vsel %vm1842, %v2829, 0.0
  %v3297 = vadd.f32 %v3295, %v3296
  %v3298 = vsel %vm1842, %v2830, 0.0
  %v3299 = vadd.f32 %v3297, %v3298
  %v3300 = vsel %vm1842, %v2831, 0.0
  %v3301 = vadd.f32 %v3299, %v3300
  %v3302 = vsel %vm1842, %v2832, 0.0
  %v3303 = vadd.f32 %v3301, %v3302
  %v3304 = vsel %vm1842, %v2833, 0.0
  %v3305 = vadd.f32 %v3303, %v3304
  %v3306 = vsel %vm1842, %v2834, 0.0
  %v3307 = vadd.f32 %v3305, %v3306
  %v3308 = vsel %vm1842, %v2835, 0.0
  %v3309 = vadd.f32 %v3307, %v3308
  %v3310 = vsel %vm1842, %v2836, 0.0
  %v3311 = vadd.f32 %v3309, %v3310
  %v3312 = vsel %vm1842, %v2837, 0.0
  %v3313 = vadd.f32 %v3311, %v3312
  %v3314 = vsel %vm1842, %v2838, 0.0
  %v3315 = vadd.f32 %v3313, %v3314
  %v3316 = vsel %vm1842, %v2839, 0.0
  %v3317 = vadd.f32 %v3315, %v3316
  %v3318 = vsel %vm1842, %v2840, 0.0
  %v3319 = vadd.f32 %v3317, %v3318
  %v3320 = vsel %vm1842, %v2841, 0.0
  %v3321 = vadd.f32 %v3319, %v3320
  %v3322 = vsel %vm1842, %v2842, 0.0
  %v3323 = vadd.f32 %v3321, %v3322
  %v3324 = vsel %vm1842, %v2843, 0.0
  %v3325 = vadd.f32 %v3323, %v3324
  %v3326 = vsel %vm1842, %v2844, 0.0
  %v3327 = vadd.f32 %v3325, %v3326
  %v3328 = vsel %vm1842, %v2845, 0.0
  %v3329 = vadd.f32 %v3327, %v3328
  %v3330 = vsel %vm1842, %v2846, 0.0
  %v3331 = vadd.f32 %v3329, %v3330
  %v3332 = vsel %vm1842, %v2847, 0.0
  %v3333 = vadd.f32 %v3331, %v3332
  %v3334 = vsel %vm1842, %v2848, 0.0
  %v3335 = vadd.f32 %v3333, %v3334
  %v3336 = vsel %vm1842, %v2849, 0.0
  %v3337 = vadd.f32 %v3335, %v3336
  %v3338 = vsel %vm1842, %v2850, 0.0
  %v3339 = vadd.f32 %v3337, %v3338
  %v3340 = vsel %vm1842, %v2851, 0.0
  %v3341 = vadd.f32 %v3339, %v3340
  %v3342 = vsel %vm1842, %v2852, 0.0
  %v3343 = vadd.f32 %v3341, %v3342
  %v3344 = vsel %vm1842, %v2853, 0.0
  %v3345 = vadd.f32 %v3343, %v3344
  %v3346 = vsel %vm1842, %v2854, 0.0
  %v3347 = vadd.f32 %v3345, %v3346
  %v3348 = vsel %vm1842, %v2855, 0.0
  %v3349 = vadd.f32 %v3347, %v3348
  %v3350 = vsel %vm1842, %v2856, 0.0
  %v3351 = vadd.f32 %v3349, %v3350
  %v3352 = vsel %vm1842, %v2857, 0.0
  %v3353 = vadd.f32 %v3351, %v3352
  %v3354 = vsel %vm1842, %v2858, 0.0
  %v3355 = vadd.f32 %v3353, %v3354
  %v3356 = vsel %vm1842, %v2859, 0.0
  %v3357 = vadd.f32 %v3355, %v3356
  %v3358 = vsel %vm1842, %v2860, 0.0
  %v3359 = vadd.f32 %v3357, %v3358
  %v3360 = vsel %vm1842, %v2861, 0.0
  %v3361 = vadd.f32 %v3359, %v3360
  %v3362 = vsel %vm1842, %v2862, 0.0
  %v3363 = vadd.f32 %v3361, %v3362
  %v3364 = vsel %vm1842, %v2863, 0.0
  %v3365 = vadd.f32 %v3363, %v3364
  %v3366 = vsel %vm1842, %v2864, 0.0
  %v3367 = vadd.f32 %v3365, %v3366
  %v3368 = vsel %vm1842, %v2865, 0.0
  %v3369 = vadd.f32 %v3367, %v3368
  %v3370 = vsel %vm1842, %v2866, 0.0
  %v3371 = vadd.f32 %v3369, %v3370
  %v3372 = vsel %vm1842, %v2867, 0.0
  %v3373 = vadd.f32 %v3371, %v3372
  %v3374 = vsel %vm1842, %v2868, 0.0
  %v3375 = vadd.f32 %v3373, %v3374
  %v3376 = vsel %vm1842, %v2869, 0.0
  %v3377 = vadd.f32 %v3375, %v3376
  %v3378 = vsel %vm1842, %v2870, 0.0
  %v3379 = vadd.f32 %v3377, %v3378
  %v3380 = vsel %vm1842, %v2871, 0.0
  %v3381 = vadd.f32 %v3379, %v3380
  %v3382 = vsel %vm1842, %v2872, 0.0
  %v3383 = vadd.f32 %v3381, %v3382
  %v3384 = vrot.slane %v3383, 4
  %v3385 = vadd.f32 %v3383, %v3384
  %v3386 = vrot.slane %v3385, 2
  %v3387 = vadd.f32 %v3385, %v3386
  %v3388 = vrot.slane %v3387, 1
  %v3389 = vadd.f32 %v3387, %v3388
  %v3390 = vmul.f32 %v3389, 0.00048828125
  %v3391 = vld [vmem:[%s3] sm:$0x1]
  %v3392 = vadd.f32 %v3390, 1e-05
  %v3393 = vrsqrt.pop %v3392
  %v3394 = vmul.f32 %v3393, %v3392
  %v3395 = vmul.f32 %v3394, %v3393
  %v3396 = vmul.f32 0.5, %v3395
  %v3397 = vsub.f32 1.5, %v3396
  %v3398 = vmul.f32 %v3393, %v3397
  %vm3399 = vweird.f32 %v3392
  %vm3400 = vweird.f32 %v3393
  %vm3401 = vmor %vm3399, %vm3400
  %v3402 = vsel %vm3401, %v3393, %v3398
  %v3403 = vmul.f32 %v3391, %v3402
  %v3405 = vperm.slane %v3403, 0
  %v3407 = vmul.f32 %v2361, %v3405
  %v3408 = vmul.f32 %v2362, %v3405
  %v3409 = vmul.f32 %v2363, %v3405
  %v3410 = vmul.f32 %v2364, %v3405
  %v3411 = vmul.f32 %v2365, %v3405
  %v3412 = vmul.f32 %v2366, %v3405
  %v3413 = vmul.f32 %v2367, %v3405
  %v3414 = vmul.f32 %v2368, %v3405
  %v3415 = vmul.f32 %v2369, %v3405
  %v3416 = vmul.f32 %v2370, %v3405
  %v3417 = vmul.f32 %v2371, %v3405
  %v3418 = vmul.f32 %v2372, %v3405
  %v3419 = vmul.f32 %v2373, %v3405
  %v3420 = vmul.f32 %v2374, %v3405
  %v3421 = vmul.f32 %v2375, %v3405
  %v3422 = vmul.f32 %v2376, %v3405
  %v3423 = vmul.f32 %v2377, %v3405
  %v3424 = vmul.f32 %v2378, %v3405
  %v3425 = vmul.f32 %v2379, %v3405
  %v3426 = vmul.f32 %v2380, %v3405
  %v3427 = vmul.f32 %v2381, %v3405
  %v3428 = vmul.f32 %v2382, %v3405
  %v3429 = vmul.f32 %v2383, %v3405
  %v3430 = vmul.f32 %v2384, %v3405
  %v3431 = vmul.f32 %v2385, %v3405
  %v3432 = vmul.f32 %v2386, %v3405
  %v3433 = vmul.f32 %v2387, %v3405
  %v3434 = vmul.f32 %v2388, %v3405
  %v3435 = vmul.f32 %v2389, %v3405
  %v3436 = vmul.f32 %v2390, %v3405
  %v3437 = vmul.f32 %v2391, %v3405
  %v3438 = vmul.f32 %v2392, %v3405
  %v3439 = vmul.f32 %v2393, %v3405
  %v3440 = vmul.f32 %v2394, %v3405
  %v3441 = vmul.f32 %v2395, %v3405
  %v3442 = vmul.f32 %v2396, %v3405
  %v3443 = vmul.f32 %v2397, %v3405
  %v3444 = vmul.f32 %v2398, %v3405
  %v3445 = vmul.f32 %v2399, %v3405
  %v3446 = vmul.f32 %v2400, %v3405
  %v3447 = vmul.f32 %v2401, %v3405
  %v3448 = vmul.f32 %v2402, %v3405
  %v3449 = vmul.f32 %v2403, %v3405
  %v3450 = vmul.f32 %v2404, %v3405
  %v3451 = vmul.f32 %v2405, %v3405
  %v3452 = vmul.f32 %v2406, %v3405
  %v3453 = vmul.f32 %v2407, %v3405
  %v3454 = vmul.f32 %v2408, %v3405
  %v3455 = vmul.f32 %v2409, %v3405
  %v3456 = vmul.f32 %v2410, %v3405
  %v3457 = vmul.f32 %v2411, %v3405
  %v3458 = vmul.f32 %v2412, %v3405
  %v3459 = vmul.f32 %v2413, %v3405
  %v3460 = vmul.f32 %v2414, %v3405
  %v3461 = vmul.f32 %v2415, %v3405
  %v3462 = vmul.f32 %v2416, %v3405
  %v3463 = vmul.f32 %v2417, %v3405
  %v3464 = vmul.f32 %v2418, %v3405
  %v3465 = vmul.f32 %v2419, %v3405
  %v3466 = vmul.f32 %v2420, %v3405
  %v3467 = vmul.f32 %v2421, %v3405
  %v3468 = vmul.f32 %v2422, %v3405
  %v3469 = vmul.f32 %v2423, %v3405
  %v3470 = vmul.f32 %v2424, %v3405
  %v3471 = vmul.f32 %v2425, %v3405
  %v3472 = vmul.f32 %v2426, %v3405
  %v3473 = vmul.f32 %v2427, %v3405
  %v3474 = vmul.f32 %v2428, %v3405
  %v3475 = vmul.f32 %v2429, %v3405
  %v3476 = vmul.f32 %v2430, %v3405
  %v3477 = vmul.f32 %v2431, %v3405
  %v3478 = vmul.f32 %v2432, %v3405
  %v3479 = vmul.f32 %v2433, %v3405
  %v3480 = vmul.f32 %v2434, %v3405
  %v3481 = vmul.f32 %v2435, %v3405
  %v3482 = vmul.f32 %v2436, %v3405
  %v3483 = vmul.f32 %v2437, %v3405
  %v3484 = vmul.f32 %v2438, %v3405
  %v3485 = vmul.f32 %v2439, %v3405
  %v3486 = vmul.f32 %v2440, %v3405
  %v3487 = vmul.f32 %v2441, %v3405
  %v3488 = vmul.f32 %v2442, %v3405
  %v3489 = vmul.f32 %v2443, %v3405
  %v3490 = vmul.f32 %v2444, %v3405
  %v3491 = vmul.f32 %v2445, %v3405
  %v3492 = vmul.f32 %v2446, %v3405
  %v3493 = vmul.f32 %v2447, %v3405
  %v3494 = vmul.f32 %v2448, %v3405
  %v3495 = vmul.f32 %v2449, %v3405
  %v3496 = vmul.f32 %v2450, %v3405
  %v3497 = vmul.f32 %v2451, %v3405
  %v3498 = vmul.f32 %v2452, %v3405
  %v3499 = vmul.f32 %v2453, %v3405
  %v3500 = vmul.f32 %v2454, %v3405
  %v3501 = vmul.f32 %v2455, %v3405
  %v3502 = vmul.f32 %v2456, %v3405
  %v3503 = vmul.f32 %v2457, %v3405
  %v3504 = vmul.f32 %v2458, %v3405
  %v3505 = vmul.f32 %v2459, %v3405
  %v3506 = vmul.f32 %v2460, %v3405
  %v3507 = vmul.f32 %v2461, %v3405
  %v3508 = vmul.f32 %v2462, %v3405
  %v3509 = vmul.f32 %v2463, %v3405
  %v3510 = vmul.f32 %v2464, %v3405
  %v3511 = vmul.f32 %v2465, %v3405
  %v3512 = vmul.f32 %v2466, %v3405
  %v3513 = vmul.f32 %v2467, %v3405
  %v3514 = vmul.f32 %v2468, %v3405
  %v3515 = vmul.f32 %v2469, %v3405
  %v3516 = vmul.f32 %v2470, %v3405
  %v3517 = vmul.f32 %v2471, %v3405
  %v3518 = vmul.f32 %v2472, %v3405
  %v3519 = vmul.f32 %v2473, %v3405
  %v3520 = vmul.f32 %v2474, %v3405
  %v3521 = vmul.f32 %v2475, %v3405
  %v3522 = vmul.f32 %v2476, %v3405
  %v3523 = vmul.f32 %v2477, %v3405
  %v3524 = vmul.f32 %v2478, %v3405
  %v3525 = vmul.f32 %v2479, %v3405
  %v3526 = vmul.f32 %v2480, %v3405
  %v3527 = vmul.f32 %v2481, %v3405
  %v3528 = vmul.f32 %v2482, %v3405
  %v3529 = vmul.f32 %v2483, %v3405
  %v3530 = vmul.f32 %v2484, %v3405
  %v3531 = vmul.f32 %v2485, %v3405
  %v3532 = vmul.f32 %v2486, %v3405
  %v3533 = vmul.f32 %v2487, %v3405
  %v3534 = vmul.f32 %v2488, %v3405
  %v3535 = vmul.f32 %v2489, %v3405
  %v3536 = vmul.f32 %v2490, %v3405
  %v3537 = vmul.f32 %v2491, %v3405
  %v3538 = vmul.f32 %v2492, %v3405
  %v3539 = vmul.f32 %v2493, %v3405
  %v3540 = vmul.f32 %v2494, %v3405
  %v3541 = vmul.f32 %v2495, %v3405
  %v3542 = vmul.f32 %v2496, %v3405
  %v3543 = vmul.f32 %v2497, %v3405
  %v3544 = vmul.f32 %v2498, %v3405
  %v3545 = vmul.f32 %v2499, %v3405
  %v3546 = vmul.f32 %v2500, %v3405
  %v3547 = vmul.f32 %v2501, %v3405
  %v3548 = vmul.f32 %v2502, %v3405
  %v3549 = vmul.f32 %v2503, %v3405
  %v3550 = vmul.f32 %v2504, %v3405
  %v3551 = vmul.f32 %v2505, %v3405
  %v3552 = vmul.f32 %v2506, %v3405
  %v3553 = vmul.f32 %v2507, %v3405
  %v3554 = vmul.f32 %v2508, %v3405
  %v3555 = vmul.f32 %v2509, %v3405
  %v3556 = vmul.f32 %v2510, %v3405
  %v3557 = vmul.f32 %v2511, %v3405
  %v3558 = vmul.f32 %v2512, %v3405
  %v3559 = vmul.f32 %v2513, %v3405
  %v3560 = vmul.f32 %v2514, %v3405
  %v3561 = vmul.f32 %v2515, %v3405
  %v3562 = vmul.f32 %v2516, %v3405
  %v3563 = vmul.f32 %v2517, %v3405
  %v3564 = vmul.f32 %v2518, %v3405
  %v3565 = vmul.f32 %v2519, %v3405
  %v3566 = vmul.f32 %v2520, %v3405
  %v3567 = vmul.f32 %v2521, %v3405
  %v3568 = vmul.f32 %v2522, %v3405
  %v3569 = vmul.f32 %v2523, %v3405
  %v3570 = vmul.f32 %v2524, %v3405
  %v3571 = vmul.f32 %v2525, %v3405
  %v3572 = vmul.f32 %v2526, %v3405
  %v3573 = vmul.f32 %v2527, %v3405
  %v3574 = vmul.f32 %v2528, %v3405
  %v3575 = vmul.f32 %v2529, %v3405
  %v3576 = vmul.f32 %v2530, %v3405
  %v3577 = vmul.f32 %v2531, %v3405
  %v3578 = vmul.f32 %v2532, %v3405
  %v3579 = vmul.f32 %v2533, %v3405
  %v3580 = vmul.f32 %v2534, %v3405
  %v3581 = vmul.f32 %v2535, %v3405
  %v3582 = vmul.f32 %v2536, %v3405
  %v3583 = vmul.f32 %v2537, %v3405
  %v3584 = vmul.f32 %v2538, %v3405
  %v3585 = vmul.f32 %v2539, %v3405
  %v3586 = vmul.f32 %v2540, %v3405
  %v3587 = vmul.f32 %v2541, %v3405
  %v3588 = vmul.f32 %v2542, %v3405
  %v3589 = vmul.f32 %v2543, %v3405
  %v3590 = vmul.f32 %v2544, %v3405
  %v3591 = vmul.f32 %v2545, %v3405
  %v3592 = vmul.f32 %v2546, %v3405
  %v3593 = vmul.f32 %v2547, %v3405
  %v3594 = vmul.f32 %v2548, %v3405
  %v3595 = vmul.f32 %v2549, %v3405
  %v3596 = vmul.f32 %v2550, %v3405
  %v3597 = vmul.f32 %v2551, %v3405
  %v3598 = vmul.f32 %v2552, %v3405
  %v3599 = vmul.f32 %v2553, %v3405
  %v3600 = vmul.f32 %v2554, %v3405
  %v3601 = vmul.f32 %v2555, %v3405
  %v3602 = vmul.f32 %v2556, %v3405
  %v3603 = vmul.f32 %v2557, %v3405
  %v3604 = vmul.f32 %v2558, %v3405
  %v3605 = vmul.f32 %v2559, %v3405
  %v3606 = vmul.f32 %v2560, %v3405
  %v3607 = vmul.f32 %v2561, %v3405
  %v3608 = vmul.f32 %v2562, %v3405
  %v3609 = vmul.f32 %v2563, %v3405
  %v3610 = vmul.f32 %v2564, %v3405
  %v3611 = vmul.f32 %v2565, %v3405
  %v3612 = vmul.f32 %v2566, %v3405
  %v3613 = vmul.f32 %v2567, %v3405
  %v3614 = vmul.f32 %v2568, %v3405
  %v3615 = vmul.f32 %v2569, %v3405
  %v3616 = vmul.f32 %v2570, %v3405
  %v3617 = vmul.f32 %v2571, %v3405
  %v3618 = vmul.f32 %v2572, %v3405
  %v3619 = vmul.f32 %v2573, %v3405
  %v3620 = vmul.f32 %v2574, %v3405
  %v3621 = vmul.f32 %v2575, %v3405
  %v3622 = vmul.f32 %v2576, %v3405
  %v3623 = vmul.f32 %v2577, %v3405
  %v3624 = vmul.f32 %v2578, %v3405
  %v3625 = vmul.f32 %v2579, %v3405
  %v3626 = vmul.f32 %v2580, %v3405
  %v3627 = vmul.f32 %v2581, %v3405
  %v3628 = vmul.f32 %v2582, %v3405
  %v3629 = vmul.f32 %v2583, %v3405
  %v3630 = vmul.f32 %v2584, %v3405
  %v3631 = vmul.f32 %v2585, %v3405
  %v3632 = vmul.f32 %v2586, %v3405
  %v3633 = vmul.f32 %v2587, %v3405
  %v3634 = vmul.f32 %v2588, %v3405
  %v3635 = vmul.f32 %v2589, %v3405
  %v3636 = vmul.f32 %v2590, %v3405
  %v3637 = vmul.f32 %v2591, %v3405
  %v3638 = vmul.f32 %v2592, %v3405
  %v3639 = vmul.f32 %v2593, %v3405
  %v3640 = vmul.f32 %v2594, %v3405
  %v3641 = vmul.f32 %v2595, %v3405
  %v3642 = vmul.f32 %v2596, %v3405
  %v3643 = vmul.f32 %v2597, %v3405
  %v3644 = vmul.f32 %v2598, %v3405
  %v3645 = vmul.f32 %v2599, %v3405
  %v3646 = vmul.f32 %v2600, %v3405
  %v3647 = vmul.f32 %v2601, %v3405
  %v3648 = vmul.f32 %v2602, %v3405
  %v3649 = vmul.f32 %v2603, %v3405
  %v3650 = vmul.f32 %v2604, %v3405
  %v3651 = vmul.f32 %v2605, %v3405
  %v3652 = vmul.f32 %v2606, %v3405
  %v3653 = vmul.f32 %v2607, %v3405
  %v3654 = vmul.f32 %v2608, %v3405
  %v3655 = vmul.f32 %v2609, %v3405
  %v3656 = vmul.f32 %v2610, %v3405
  %v3657 = vmul.f32 %v2611, %v3405
  %v3658 = vmul.f32 %v2612, %v3405
  %v3659 = vmul.f32 %v2613, %v3405
  %v3660 = vmul.f32 %v2614, %v3405
  %v3661 = vmul.f32 %v2615, %v3405
  %v3662 = vmul.f32 %v2616, %v3405
  %v3663 = vld [vmem:[%s4] sm:$0x1]
  %v3665 = vperm.slane %v3663, 0
  %v3667 = vadd.f32 %v3407, %v3665
  %v3668 = vadd.f32 %v3408, %v3665
  %v3669 = vadd.f32 %v3409, %v3665
  %v3670 = vadd.f32 %v3410, %v3665
  %v3671 = vadd.f32 %v3411, %v3665
  %v3672 = vadd.f32 %v3412, %v3665
  %v3673 = vadd.f32 %v3413, %v3665
  %v3674 = vadd.f32 %v3414, %v3665
  %v3675 = vadd.f32 %v3415, %v3665
  %v3676 = vadd.f32 %v3416, %v3665
  %v3677 = vadd.f32 %v3417, %v3665
  %v3678 = vadd.f32 %v3418, %v3665
  %v3679 = vadd.f32 %v3419, %v3665
  %v3680 = vadd.f32 %v3420, %v3665
  %v3681 = vadd.f32 %v3421, %v3665
  %v3682 = vadd.f32 %v3422, %v3665
  %v3683 = vadd.f32 %v3423, %v3665
  %v3684 = vadd.f32 %v3424, %v3665
  %v3685 = vadd.f32 %v3425, %v3665
  %v3686 = vadd.f32 %v3426, %v3665
  %v3687 = vadd.f32 %v3427, %v3665
  %v3688 = vadd.f32 %v3428, %v3665
  %v3689 = vadd.f32 %v3429, %v3665
  %v3690 = vadd.f32 %v3430, %v3665
  %v3691 = vadd.f32 %v3431, %v3665
  %v3692 = vadd.f32 %v3432, %v3665
  %v3693 = vadd.f32 %v3433, %v3665
  %v3694 = vadd.f32 %v3434, %v3665
  %v3695 = vadd.f32 %v3435, %v3665
  %v3696 = vadd.f32 %v3436, %v3665
  %v3697 = vadd.f32 %v3437, %v3665
  %v3698 = vadd.f32 %v3438, %v3665
  %v3699 = vadd.f32 %v3439, %v3665
  %v3700 = vadd.f32 %v3440, %v3665
  %v3701 = vadd.f32 %v3441, %v3665
  %v3702 = vadd.f32 %v3442, %v3665
  %v3703 = vadd.f32 %v3443, %v3665
  %v3704 = vadd.f32 %v3444, %v3665
  %v3705 = vadd.f32 %v3445, %v3665
  %v3706 = vadd.f32 %v3446, %v3665
  %v3707 = vadd.f32 %v3447, %v3665
  %v3708 = vadd.f32 %v3448, %v3665
  %v3709 = vadd.f32 %v3449, %v3665
  %v3710 = vadd.f32 %v3450, %v3665
  %v3711 = vadd.f32 %v3451, %v3665
  %v3712 = vadd.f32 %v3452, %v3665
  %v3713 = vadd.f32 %v3453, %v3665
  %v3714 = vadd.f32 %v3454, %v3665
  %v3715 = vadd.f32 %v3455, %v3665
  %v3716 = vadd.f32 %v3456, %v3665
  %v3717 = vadd.f32 %v3457, %v3665
  %v3718 = vadd.f32 %v3458, %v3665
  %v3719 = vadd.f32 %v3459, %v3665
  %v3720 = vadd.f32 %v3460, %v3665
  %v3721 = vadd.f32 %v3461, %v3665
  %v3722 = vadd.f32 %v3462, %v3665
  %v3723 = vadd.f32 %v3463, %v3665
  %v3724 = vadd.f32 %v3464, %v3665
  %v3725 = vadd.f32 %v3465, %v3665
  %v3726 = vadd.f32 %v3466, %v3665
  %v3727 = vadd.f32 %v3467, %v3665
  %v3728 = vadd.f32 %v3468, %v3665
  %v3729 = vadd.f32 %v3469, %v3665
  %v3730 = vadd.f32 %v3470, %v3665
  %v3731 = vadd.f32 %v3471, %v3665
  %v3732 = vadd.f32 %v3472, %v3665
  %v3733 = vadd.f32 %v3473, %v3665
  %v3734 = vadd.f32 %v3474, %v3665
  %v3735 = vadd.f32 %v3475, %v3665
  %v3736 = vadd.f32 %v3476, %v3665
  %v3737 = vadd.f32 %v3477, %v3665
  %v3738 = vadd.f32 %v3478, %v3665
  %v3739 = vadd.f32 %v3479, %v3665
  %v3740 = vadd.f32 %v3480, %v3665
  %v3741 = vadd.f32 %v3481, %v3665
  %v3742 = vadd.f32 %v3482, %v3665
  %v3743 = vadd.f32 %v3483, %v3665
  %v3744 = vadd.f32 %v3484, %v3665
  %v3745 = vadd.f32 %v3485, %v3665
  %v3746 = vadd.f32 %v3486, %v3665
  %v3747 = vadd.f32 %v3487, %v3665
  %v3748 = vadd.f32 %v3488, %v3665
  %v3749 = vadd.f32 %v3489, %v3665
  %v3750 = vadd.f32 %v3490, %v3665
  %v3751 = vadd.f32 %v3491, %v3665
  %v3752 = vadd.f32 %v3492, %v3665
  %v3753 = vadd.f32 %v3493, %v3665
  %v3754 = vadd.f32 %v3494, %v3665
  %v3755 = vadd.f32 %v3495, %v3665
  %v3756 = vadd.f32 %v3496, %v3665
  %v3757 = vadd.f32 %v3497, %v3665
  %v3758 = vadd.f32 %v3498, %v3665
  %v3759 = vadd.f32 %v3499, %v3665
  %v3760 = vadd.f32 %v3500, %v3665
  %v3761 = vadd.f32 %v3501, %v3665
  %v3762 = vadd.f32 %v3502, %v3665
  %v3763 = vadd.f32 %v3503, %v3665
  %v3764 = vadd.f32 %v3504, %v3665
  %v3765 = vadd.f32 %v3505, %v3665
  %v3766 = vadd.f32 %v3506, %v3665
  %v3767 = vadd.f32 %v3507, %v3665
  %v3768 = vadd.f32 %v3508, %v3665
  %v3769 = vadd.f32 %v3509, %v3665
  %v3770 = vadd.f32 %v3510, %v3665
  %v3771 = vadd.f32 %v3511, %v3665
  %v3772 = vadd.f32 %v3512, %v3665
  %v3773 = vadd.f32 %v3513, %v3665
  %v3774 = vadd.f32 %v3514, %v3665
  %v3775 = vadd.f32 %v3515, %v3665
  %v3776 = vadd.f32 %v3516, %v3665
  %v3777 = vadd.f32 %v3517, %v3665
  %v3778 = vadd.f32 %v3518, %v3665
  %v3779 = vadd.f32 %v3519, %v3665
  %v3780 = vadd.f32 %v3520, %v3665
  %v3781 = vadd.f32 %v3521, %v3665
  %v3782 = vadd.f32 %v3522, %v3665
  %v3783 = vadd.f32 %v3523, %v3665
  %v3784 = vadd.f32 %v3524, %v3665
  %v3785 = vadd.f32 %v3525, %v3665
  %v3786 = vadd.f32 %v3526, %v3665
  %v3787 = vadd.f32 %v3527, %v3665
  %v3788 = vadd.f32 %v3528, %v3665
  %v3789 = vadd.f32 %v3529, %v3665
  %v3790 = vadd.f32 %v3530, %v3665
  %v3791 = vadd.f32 %v3531, %v3665
  %v3792 = vadd.f32 %v3532, %v3665
  %v3793 = vadd.f32 %v3533, %v3665
  %v3794 = vadd.f32 %v3534, %v3665
  %v3795 = vadd.f32 %v3535, %v3665
  %v3796 = vadd.f32 %v3536, %v3665
  %v3797 = vadd.f32 %v3537, %v3665
  %v3798 = vadd.f32 %v3538, %v3665
  %v3799 = vadd.f32 %v3539, %v3665
  %v3800 = vadd.f32 %v3540, %v3665
  %v3801 = vadd.f32 %v3541, %v3665
  %v3802 = vadd.f32 %v3542, %v3665
  %v3803 = vadd.f32 %v3543, %v3665
  %v3804 = vadd.f32 %v3544, %v3665
  %v3805 = vadd.f32 %v3545, %v3665
  %v3806 = vadd.f32 %v3546, %v3665
  %v3807 = vadd.f32 %v3547, %v3665
  %v3808 = vadd.f32 %v3548, %v3665
  %v3809 = vadd.f32 %v3549, %v3665
  %v3810 = vadd.f32 %v3550, %v3665
  %v3811 = vadd.f32 %v3551, %v3665
  %v3812 = vadd.f32 %v3552, %v3665
  %v3813 = vadd.f32 %v3553, %v3665
  %v3814 = vadd.f32 %v3554, %v3665
  %v3815 = vadd.f32 %v3555, %v3665
  %v3816 = vadd.f32 %v3556, %v3665
  %v3817 = vadd.f32 %v3557, %v3665
  %v3818 = vadd.f32 %v3558, %v3665
  %v3819 = vadd.f32 %v3559, %v3665
  %v3820 = vadd.f32 %v3560, %v3665
  %v3821 = vadd.f32 %v3561, %v3665
  %v3822 = vadd.f32 %v3562, %v3665
  %v3823 = vadd.f32 %v3563, %v3665
  %v3824 = vadd.f32 %v3564, %v3665
  %v3825 = vadd.f32 %v3565, %v3665
  %v3826 = vadd.f32 %v3566, %v3665
  %v3827 = vadd.f32 %v3567, %v3665
  %v3828 = vadd.f32 %v3568, %v3665
  %v3829 = vadd.f32 %v3569, %v3665
  %v3830 = vadd.f32 %v3570, %v3665
  %v3831 = vadd.f32 %v3571, %v3665
  %v3832 = vadd.f32 %v3572, %v3665
  %v3833 = vadd.f32 %v3573, %v3665
  %v3834 = vadd.f32 %v3574, %v3665
  %v3835 = vadd.f32 %v3575, %v3665
  %v3836 = vadd.f32 %v3576, %v3665
  %v3837 = vadd.f32 %v3577, %v3665
  %v3838 = vadd.f32 %v3578, %v3665
  %v3839 = vadd.f32 %v3579, %v3665
  %v3840 = vadd.f32 %v3580, %v3665
  %v3841 = vadd.f32 %v3581, %v3665
  %v3842 = vadd.f32 %v3582, %v3665
  %v3843 = vadd.f32 %v3583, %v3665
  %v3844 = vadd.f32 %v3584, %v3665
  %v3845 = vadd.f32 %v3585, %v3665
  %v3846 = vadd.f32 %v3586, %v3665
  %v3847 = vadd.f32 %v3587, %v3665
  %v3848 = vadd.f32 %v3588, %v3665
  %v3849 = vadd.f32 %v3589, %v3665
  %v3850 = vadd.f32 %v3590, %v3665
  %v3851 = vadd.f32 %v3591, %v3665
  %v3852 = vadd.f32 %v3592, %v3665
  %v3853 = vadd.f32 %v3593, %v3665
  %v3854 = vadd.f32 %v3594, %v3665
  %v3855 = vadd.f32 %v3595, %v3665
  %v3856 = vadd.f32 %v3596, %v3665
  %v3857 = vadd.f32 %v3597, %v3665
  %v3858 = vadd.f32 %v3598, %v3665
  %v3859 = vadd.f32 %v3599, %v3665
  %v3860 = vadd.f32 %v3600, %v3665
  %v3861 = vadd.f32 %v3601, %v3665
  %v3862 = vadd.f32 %v3602, %v3665
  %v3863 = vadd.f32 %v3603, %v3665
  %v3864 = vadd.f32 %v3604, %v3665
  %v3865 = vadd.f32 %v3605, %v3665
  %v3866 = vadd.f32 %v3606, %v3665
  %v3867 = vadd.f32 %v3607, %v3665
  %v3868 = vadd.f32 %v3608, %v3665
  %v3869 = vadd.f32 %v3609, %v3665
  %v3870 = vadd.f32 %v3610, %v3665
  %v3871 = vadd.f32 %v3611, %v3665
  %v3872 = vadd.f32 %v3612, %v3665
  %v3873 = vadd.f32 %v3613, %v3665
  %v3874 = vadd.f32 %v3614, %v3665
  %v3875 = vadd.f32 %v3615, %v3665
  %v3876 = vadd.f32 %v3616, %v3665
  %v3877 = vadd.f32 %v3617, %v3665
  %v3878 = vadd.f32 %v3618, %v3665
  %v3879 = vadd.f32 %v3619, %v3665
  %v3880 = vadd.f32 %v3620, %v3665
  %v3881 = vadd.f32 %v3621, %v3665
  %v3882 = vadd.f32 %v3622, %v3665
  %v3883 = vadd.f32 %v3623, %v3665
  %v3884 = vadd.f32 %v3624, %v3665
  %v3885 = vadd.f32 %v3625, %v3665
  %v3886 = vadd.f32 %v3626, %v3665
  %v3887 = vadd.f32 %v3627, %v3665
  %v3888 = vadd.f32 %v3628, %v3665
  %v3889 = vadd.f32 %v3629, %v3665
  %v3890 = vadd.f32 %v3630, %v3665
  %v3891 = vadd.f32 %v3631, %v3665
  %v3892 = vadd.f32 %v3632, %v3665
  %v3893 = vadd.f32 %v3633, %v3665
  %v3894 = vadd.f32 %v3634, %v3665
  %v3895 = vadd.f32 %v3635, %v3665
  %v3896 = vadd.f32 %v3636, %v3665
  %v3897 = vadd.f32 %v3637, %v3665
  %v3898 = vadd.f32 %v3638, %v3665
  %v3899 = vadd.f32 %v3639, %v3665
  %v3900 = vadd.f32 %v3640, %v3665
  %v3901 = vadd.f32 %v3641, %v3665
  %v3902 = vadd.f32 %v3642, %v3665
  %v3903 = vadd.f32 %v3643, %v3665
  %v3904 = vadd.f32 %v3644, %v3665
  %v3905 = vadd.f32 %v3645, %v3665
  %v3906 = vadd.f32 %v3646, %v3665
  %v3907 = vadd.f32 %v3647, %v3665
  %v3908 = vadd.f32 %v3648, %v3665
  %v3909 = vadd.f32 %v3649, %v3665
  %v3910 = vadd.f32 %v3650, %v3665
  %v3911 = vadd.f32 %v3651, %v3665
  %v3912 = vadd.f32 %v3652, %v3665
  %v3913 = vadd.f32 %v3653, %v3665
  %v3914 = vadd.f32 %v3654, %v3665
  %v3915 = vadd.f32 %v3655, %v3665
  %v3916 = vadd.f32 %v3656, %v3665
  %v3917 = vadd.f32 %v3657, %v3665
  %v3918 = vadd.f32 %v3658, %v3665
  %v3919 = vadd.f32 %v3659, %v3665
  %v3920 = vadd.f32 %v3660, %v3665
  %v3921 = vadd.f32 %v3661, %v3665
  %v3922 = vadd.f32 %v3662, %v3665
  %3923 = vst.msk [vmem:[#allocation2] sm:$0xff] %vm1842, %v3667
  %3924 = vst.msk [vmem:[#allocation2 + $0x8] sm:$0xff] %vm1842, %v3668
  %3925 = vst.msk [vmem:[#allocation2 + $0x10] sm:$0xff] %vm1842, %v3669
  %3926 = vst.msk [vmem:[#allocation2 + $0x18] sm:$0xff] %vm1842, %v3670
  %3927 = vst.msk [vmem:[#allocation2 + $0x20] sm:$0xff] %vm1842, %v3671
  %3928 = vst.msk [vmem:[#allocation2 + $0x28] sm:$0xff] %vm1842, %v3672
  %3929 = vst.msk [vmem:[#allocation2 + $0x30] sm:$0xff] %vm1842, %v3673
  %3930 = vst.msk [vmem:[#allocation2 + $0x38] sm:$0xff] %vm1842, %v3674
  %3931 = vst.msk [vmem:[#allocation2 + $0x40] sm:$0xff] %vm1842, %v3675
  %3932 = vst.msk [vmem:[#allocation2 + $0x48] sm:$0xff] %vm1842, %v3676
  %3933 = vst.msk [vmem:[#allocation2 + $0x50] sm:$0xff] %vm1842, %v3677
  %3934 = vst.msk [vmem:[#allocation2 + $0x58] sm:$0xff] %vm1842, %v3678
  %3935 = vst.msk [vmem:[#allocation2 + $0x60] sm:$0xff] %vm1842, %v3679
  %3936 = vst.msk [vmem:[#allocation2 + $0x68] sm:$0xff] %vm1842, %v3680
  %3937 = vst.msk [vmem:[#allocation2 + $0x70] sm:$0xff] %vm1842, %v3681
  %3938 = vst.msk [vmem:[#allocation2 + $0x78] sm:$0xff] %vm1842, %v3682
  %3939 = vst.msk [vmem:[#allocation2 + $0x80] sm:$0xff] %vm1842, %v3683
  %3940 = vst.msk [vmem:[#allocation2 + $0x88] sm:$0xff] %vm1842, %v3684
  %3941 = vst.msk [vmem:[#allocation2 + $0x90] sm:$0xff] %vm1842, %v3685
  %3942 = vst.msk [vmem:[#allocation2 + $0x98] sm:$0xff] %vm1842, %v3686
  %3943 = vst.msk [vmem:[#allocation2 + $0xa0] sm:$0xff] %vm1842, %v3687
  %3944 = vst.msk [vmem:[#allocation2 + $0xa8] sm:$0xff] %vm1842, %v3688
  %3945 = vst.msk [vmem:[#allocation2 + $0xb0] sm:$0xff] %vm1842, %v3689
  %3946 = vst.msk [vmem:[#allocation2 + $0xb8] sm:$0xff] %vm1842, %v3690
  %3947 = vst.msk [vmem:[#allocation2 + $0xc0] sm:$0xff] %vm1842, %v3691
  %3948 = vst.msk [vmem:[#allocation2 + $0xc8] sm:$0xff] %vm1842, %v3692
  %3949 = vst.msk [vmem:[#allocation2 + $0xd0] sm:$0xff] %vm1842, %v3693
  %3950 = vst.msk [vmem:[#allocation2 + $0xd8] sm:$0xff] %vm1842, %v3694
  %3951 = vst.msk [vmem:[#allocation2 + $0xe0] sm:$0xff] %vm1842, %v3695
  %3952 = vst.msk [vmem:[#allocation2 + $0xe8] sm:$0xff] %vm1842, %v3696
  %3953 = vst.msk [vmem:[#allocation2 + $0xf0] sm:$0xff] %vm1842, %v3697
  %3954 = vst.msk [vmem:[#allocation2 + $0xf8] sm:$0xff] %vm1842, %v3698
  %3955 = vst.msk [vmem:[#allocation2 + $0x100] sm:$0xff] %vm1842, %v3699
  %3956 = vst.msk [vmem:[#allocation2 + $0x108] sm:$0xff] %vm1842, %v3700
  %3957 = vst.msk [vmem:[#allocation2 + $0x110] sm:$0xff] %vm1842, %v3701
  %3958 = vst.msk [vmem:[#allocation2 + $0x118] sm:$0xff] %vm1842, %v3702
  %3959 = vst.msk [vmem:[#allocation2 + $0x120] sm:$0xff] %vm1842, %v3703
  %3960 = vst.msk [vmem:[#allocation2 + $0x128] sm:$0xff] %vm1842, %v3704
  %3961 = vst.msk [vmem:[#allocation2 + $0x130] sm:$0xff] %vm1842, %v3705
  %3962 = vst.msk [vmem:[#allocation2 + $0x138] sm:$0xff] %vm1842, %v3706
  %3963 = vst.msk [vmem:[#allocation2 + $0x140] sm:$0xff] %vm1842, %v3707
  %3964 = vst.msk [vmem:[#allocation2 + $0x148] sm:$0xff] %vm1842, %v3708
  %3965 = vst.msk [vmem:[#allocation2 + $0x150] sm:$0xff] %vm1842, %v3709
  %3966 = vst.msk [vmem:[#allocation2 + $0x158] sm:$0xff] %vm1842, %v3710
  %3967 = vst.msk [vmem:[#allocation2 + $0x160] sm:$0xff] %vm1842, %v3711
  %3968 = vst.msk [vmem:[#allocation2 + $0x168] sm:$0xff] %vm1842, %v3712
  %3969 = vst.msk [vmem:[#allocation2 + $0x170] sm:$0xff] %vm1842, %v3713
  %3970 = vst.msk [vmem:[#allocation2 + $0x178] sm:$0xff] %vm1842, %v3714
  %3971 = vst.msk [vmem:[#allocation2 + $0x180] sm:$0xff] %vm1842, %v3715
  %3972 = vst.msk [vmem:[#allocation2 + $0x188] sm:$0xff] %vm1842, %v3716
  %3973 = vst.msk [vmem:[#allocation2 + $0x190] sm:$0xff] %vm1842, %v3717
  %3974 = vst.msk [vmem:[#allocation2 + $0x198] sm:$0xff] %vm1842, %v3718
  %3975 = vst.msk [vmem:[#allocation2 + $0x1a0] sm:$0xff] %vm1842, %v3719
  %3976 = vst.msk [vmem:[#allocation2 + $0x1a8] sm:$0xff] %vm1842, %v3720
  %3977 = vst.msk [vmem:[#allocation2 + $0x1b0] sm:$0xff] %vm1842, %v3721
  %3978 = vst.msk [vmem:[#allocation2 + $0x1b8] sm:$0xff] %vm1842, %v3722
  %3979 = vst.msk [vmem:[#allocation2 + $0x1c0] sm:$0xff] %vm1842, %v3723
  %3980 = vst.msk [vmem:[#allocation2 + $0x1c8] sm:$0xff] %vm1842, %v3724
  %3981 = vst.msk [vmem:[#allocation2 + $0x1d0] sm:$0xff] %vm1842, %v3725
  %3982 = vst.msk [vmem:[#allocation2 + $0x1d8] sm:$0xff] %vm1842, %v3726
  %3983 = vst.msk [vmem:[#allocation2 + $0x1e0] sm:$0xff] %vm1842, %v3727
  %3984 = vst.msk [vmem:[#allocation2 + $0x1e8] sm:$0xff] %vm1842, %v3728
  %3985 = vst.msk [vmem:[#allocation2 + $0x1f0] sm:$0xff] %vm1842, %v3729
  %3986 = vst.msk [vmem:[#allocation2 + $0x1f8] sm:$0xff] %vm1842, %v3730
  %3987 = vst.msk [vmem:[#allocation2 + $0x200] sm:$0xff] %vm1842, %v3731
  %3988 = vst.msk [vmem:[#allocation2 + $0x208] sm:$0xff] %vm1842, %v3732
  %3989 = vst.msk [vmem:[#allocation2 + $0x210] sm:$0xff] %vm1842, %v3733
  %3990 = vst.msk [vmem:[#allocation2 + $0x218] sm:$0xff] %vm1842, %v3734
  %3991 = vst.msk [vmem:[#allocation2 + $0x220] sm:$0xff] %vm1842, %v3735
  %3992 = vst.msk [vmem:[#allocation2 + $0x228] sm:$0xff] %vm1842, %v3736
  %3993 = vst.msk [vmem:[#allocation2 + $0x230] sm:$0xff] %vm1842, %v3737
  %3994 = vst.msk [vmem:[#allocation2 + $0x238] sm:$0xff] %vm1842, %v3738
  %3995 = vst.msk [vmem:[#allocation2 + $0x240] sm:$0xff] %vm1842, %v3739
  %3996 = vst.msk [vmem:[#allocation2 + $0x248] sm:$0xff] %vm1842, %v3740
  %3997 = vst.msk [vmem:[#allocation2 + $0x250] sm:$0xff] %vm1842, %v3741
  %3998 = vst.msk [vmem:[#allocation2 + $0x258] sm:$0xff] %vm1842, %v3742
  %3999 = vst.msk [vmem:[#allocation2 + $0x260] sm:$0xff] %vm1842, %v3743
  %4000 = vst.msk [vmem:[#allocation2 + $0x268] sm:$0xff] %vm1842, %v3744
  %4001 = vst.msk [vmem:[#allocation2 + $0x270] sm:$0xff] %vm1842, %v3745
  %4002 = vst.msk [vmem:[#allocation2 + $0x278] sm:$0xff] %vm1842, %v3746
  %4003 = vst.msk [vmem:[#allocation2 + $0x280] sm:$0xff] %vm1842, %v3747
  %4004 = vst.msk [vmem:[#allocation2 + $0x288] sm:$0xff] %vm1842, %v3748
  %4005 = vst.msk [vmem:[#allocation2 + $0x290] sm:$0xff] %vm1842, %v3749
  %4006 = vst.msk [vmem:[#allocation2 + $0x298] sm:$0xff] %vm1842, %v3750
  %4007 = vst.msk [vmem:[#allocation2 + $0x2a0] sm:$0xff] %vm1842, %v3751
  %4008 = vst.msk [vmem:[#allocation2 + $0x2a8] sm:$0xff] %vm1842, %v3752
  %4009 = vst.msk [vmem:[#allocation2 + $0x2b0] sm:$0xff] %vm1842, %v3753
  %4010 = vst.msk [vmem:[#allocation2 + $0x2b8] sm:$0xff] %vm1842, %v3754
  %4011 = vst.msk [vmem:[#allocation2 + $0x2c0] sm:$0xff] %vm1842, %v3755
  %4012 = vst.msk [vmem:[#allocation2 + $0x2c8] sm:$0xff] %vm1842, %v3756
  %4013 = vst.msk [vmem:[#allocation2 + $0x2d0] sm:$0xff] %vm1842, %v3757
  %4014 = vst.msk [vmem:[#allocation2 + $0x2d8] sm:$0xff] %vm1842, %v3758
  %4015 = vst.msk [vmem:[#allocation2 + $0x2e0] sm:$0xff] %vm1842, %v3759
  %4016 = vst.msk [vmem:[#allocation2 + $0x2e8] sm:$0xff] %vm1842, %v3760
  %4017 = vst.msk [vmem:[#allocation2 + $0x2f0] sm:$0xff] %vm1842, %v3761
  %4018 = vst.msk [vmem:[#allocation2 + $0x2f8] sm:$0xff] %vm1842, %v3762
  %4019 = vst.msk [vmem:[#allocation2 + $0x300] sm:$0xff] %vm1842, %v3763
  %4020 = vst.msk [vmem:[#allocation2 + $0x308] sm:$0xff] %vm1842, %v3764
  %4021 = vst.msk [vmem:[#allocation2 + $0x310] sm:$0xff] %vm1842, %v3765
  %4022 = vst.msk [vmem:[#allocation2 + $0x318] sm:$0xff] %vm1842, %v3766
  %4023 = vst.msk [vmem:[#allocation2 + $0x320] sm:$0xff] %vm1842, %v3767
  %4024 = vst.msk [vmem:[#allocation2 + $0x328] sm:$0xff] %vm1842, %v3768
  %4025 = vst.msk [vmem:[#allocation2 + $0x330] sm:$0xff] %vm1842, %v3769
  %4026 = vst.msk [vmem:[#allocation2 + $0x338] sm:$0xff] %vm1842, %v3770
  %4027 = vst.msk [vmem:[#allocation2 + $0x340] sm:$0xff] %vm1842, %v3771
  %4028 = vst.msk [vmem:[#allocation2 + $0x348] sm:$0xff] %vm1842, %v3772
  %4029 = vst.msk [vmem:[#allocation2 + $0x350] sm:$0xff] %vm1842, %v3773
  %4030 = vst.msk [vmem:[#allocation2 + $0x358] sm:$0xff] %vm1842, %v3774
  %4031 = vst.msk [vmem:[#allocation2 + $0x360] sm:$0xff] %vm1842, %v3775
  %4032 = vst.msk [vmem:[#allocation2 + $0x368] sm:$0xff] %vm1842, %v3776
  %4033 = vst.msk [vmem:[#allocation2 + $0x370] sm:$0xff] %vm1842, %v3777
  %4034 = vst.msk [vmem:[#allocation2 + $0x378] sm:$0xff] %vm1842, %v3778
  %4035 = vst.msk [vmem:[#allocation2 + $0x380] sm:$0xff] %vm1842, %v3779
  %4036 = vst.msk [vmem:[#allocation2 + $0x388] sm:$0xff] %vm1842, %v3780
  %4037 = vst.msk [vmem:[#allocation2 + $0x390] sm:$0xff] %vm1842, %v3781
  %4038 = vst.msk [vmem:[#allocation2 + $0x398] sm:$0xff] %vm1842, %v3782
  %4039 = vst.msk [vmem:[#allocation2 + $0x3a0] sm:$0xff] %vm1842, %v3783
  %4040 = vst.msk [vmem:[#allocation2 + $0x3a8] sm:$0xff] %vm1842, %v3784
  %4041 = vst.msk [vmem:[#allocation2 + $0x3b0] sm:$0xff] %vm1842, %v3785
  %4042 = vst.msk [vmem:[#allocation2 + $0x3b8] sm:$0xff] %vm1842, %v3786
  %4043 = vst.msk [vmem:[#allocation2 + $0x3c0] sm:$0xff] %vm1842, %v3787
  %4044 = vst.msk [vmem:[#allocation2 + $0x3c8] sm:$0xff] %vm1842, %v3788
  %4045 = vst.msk [vmem:[#allocation2 + $0x3d0] sm:$0xff] %vm1842, %v3789
  %4046 = vst.msk [vmem:[#allocation2 + $0x3d8] sm:$0xff] %vm1842, %v3790
  %4047 = vst.msk [vmem:[#allocation2 + $0x3e0] sm:$0xff] %vm1842, %v3791
  %4048 = vst.msk [vmem:[#allocation2 + $0x3e8] sm:$0xff] %vm1842, %v3792
  %4049 = vst.msk [vmem:[#allocation2 + $0x3f0] sm:$0xff] %vm1842, %v3793
  %4050 = vst.msk [vmem:[#allocation2 + $0x3f8] sm:$0xff] %vm1842, %v3794
  %4051 = vst.msk [vmem:[#allocation2 + $0x400] sm:$0xff] %vm1842, %v3795
  %4052 = vst.msk [vmem:[#allocation2 + $0x408] sm:$0xff] %vm1842, %v3796
  %4053 = vst.msk [vmem:[#allocation2 + $0x410] sm:$0xff] %vm1842, %v3797
  %4054 = vst.msk [vmem:[#allocation2 + $0x418] sm:$0xff] %vm1842, %v3798
  %4055 = vst.msk [vmem:[#allocation2 + $0x420] sm:$0xff] %vm1842, %v3799
  %4056 = vst.msk [vmem:[#allocation2 + $0x428] sm:$0xff] %vm1842, %v3800
  %4057 = vst.msk [vmem:[#allocation2 + $0x430] sm:$0xff] %vm1842, %v3801
  %4058 = vst.msk [vmem:[#allocation2 + $0x438] sm:$0xff] %vm1842, %v3802
  %4059 = vst.msk [vmem:[#allocation2 + $0x440] sm:$0xff] %vm1842, %v3803
  %4060 = vst.msk [vmem:[#allocation2 + $0x448] sm:$0xff] %vm1842, %v3804
  %4061 = vst.msk [vmem:[#allocation2 + $0x450] sm:$0xff] %vm1842, %v3805
  %4062 = vst.msk [vmem:[#allocation2 + $0x458] sm:$0xff] %vm1842, %v3806
  %4063 = vst.msk [vmem:[#allocation2 + $0x460] sm:$0xff] %vm1842, %v3807
  %4064 = vst.msk [vmem:[#allocation2 + $0x468] sm:$0xff] %vm1842, %v3808
  %4065 = vst.msk [vmem:[#allocation2 + $0x470] sm:$0xff] %vm1842, %v3809
  %4066 = vst.msk [vmem:[#allocation2 + $0x478] sm:$0xff] %vm1842, %v3810
  %4067 = vst.msk [vmem:[#allocation2 + $0x480] sm:$0xff] %vm1842, %v3811
  %4068 = vst.msk [vmem:[#allocation2 + $0x488] sm:$0xff] %vm1842, %v3812
  %4069 = vst.msk [vmem:[#allocation2 + $0x490] sm:$0xff] %vm1842, %v3813
  %4070 = vst.msk [vmem:[#allocation2 + $0x498] sm:$0xff] %vm1842, %v3814
  %4071 = vst.msk [vmem:[#allocation2 + $0x4a0] sm:$0xff] %vm1842, %v3815
  %4072 = vst.msk [vmem:[#allocation2 + $0x4a8] sm:$0xff] %vm1842, %v3816
  %4073 = vst.msk [vmem:[#allocation2 + $0x4b0] sm:$0xff] %vm1842, %v3817
  %4074 = vst.msk [vmem:[#allocation2 + $0x4b8] sm:$0xff] %vm1842, %v3818
  %4075 = vst.msk [vmem:[#allocation2 + $0x4c0] sm:$0xff] %vm1842, %v3819
  %4076 = vst.msk [vmem:[#allocation2 + $0x4c8] sm:$0xff] %vm1842, %v3820
  %4077 = vst.msk [vmem:[#allocation2 + $0x4d0] sm:$0xff] %vm1842, %v3821
  %4078 = vst.msk [vmem:[#allocation2 + $0x4d8] sm:$0xff] %vm1842, %v3822
  %4079 = vst.msk [vmem:[#allocation2 + $0x4e0] sm:$0xff] %vm1842, %v3823
  %4080 = vst.msk [vmem:[#allocation2 + $0x4e8] sm:$0xff] %vm1842, %v3824
  %4081 = vst.msk [vmem:[#allocation2 + $0x4f0] sm:$0xff] %vm1842, %v3825
  %4082 = vst.msk [vmem:[#allocation2 + $0x4f8] sm:$0xff] %vm1842, %v3826
  %4083 = vst.msk [vmem:[#allocation2 + $0x500] sm:$0xff] %vm1842, %v3827
  %4084 = vst.msk [vmem:[#allocation2 + $0x508] sm:$0xff] %vm1842, %v3828
  %4085 = vst.msk [vmem:[#allocation2 + $0x510] sm:$0xff] %vm1842, %v3829
  %4086 = vst.msk [vmem:[#allocation2 + $0x518] sm:$0xff] %vm1842, %v3830
  %4087 = vst.msk [vmem:[#allocation2 + $0x520] sm:$0xff] %vm1842, %v3831
  %4088 = vst.msk [vmem:[#allocation2 + $0x528] sm:$0xff] %vm1842, %v3832
  %4089 = vst.msk [vmem:[#allocation2 + $0x530] sm:$0xff] %vm1842, %v3833
  %4090 = vst.msk [vmem:[#allocation2 + $0x538] sm:$0xff] %vm1842, %v3834
  %4091 = vst.msk [vmem:[#allocation2 + $0x540] sm:$0xff] %vm1842, %v3835
  %4092 = vst.msk [vmem:[#allocation2 + $0x548] sm:$0xff] %vm1842, %v3836
  %4093 = vst.msk [vmem:[#allocation2 + $0x550] sm:$0xff] %vm1842, %v3837
  %4094 = vst.msk [vmem:[#allocation2 + $0x558] sm:$0xff] %vm1842, %v3838
  %4095 = vst.msk [vmem:[#allocation2 + $0x560] sm:$0xff] %vm1842, %v3839
  %4096 = vst.msk [vmem:[#allocation2 + $0x568] sm:$0xff] %vm1842, %v3840
  %4097 = vst.msk [vmem:[#allocation2 + $0x570] sm:$0xff] %vm1842, %v3841
  %4098 = vst.msk [vmem:[#allocation2 + $0x578] sm:$0xff] %vm1842, %v3842
  %4099 = vst.msk [vmem:[#allocation2 + $0x580] sm:$0xff] %vm1842, %v3843
  %4100 = vst.msk [vmem:[#allocation2 + $0x588] sm:$0xff] %vm1842, %v3844
  %4101 = vst.msk [vmem:[#allocation2 + $0x590] sm:$0xff] %vm1842, %v3845
  %4102 = vst.msk [vmem:[#allocation2 + $0x598] sm:$0xff] %vm1842, %v3846
  %4103 = vst.msk [vmem:[#allocation2 + $0x5a0] sm:$0xff] %vm1842, %v3847
  %4104 = vst.msk [vmem:[#allocation2 + $0x5a8] sm:$0xff] %vm1842, %v3848
  %4105 = vst.msk [vmem:[#allocation2 + $0x5b0] sm:$0xff] %vm1842, %v3849
  %4106 = vst.msk [vmem:[#allocation2 + $0x5b8] sm:$0xff] %vm1842, %v3850
  %4107 = vst.msk [vmem:[#allocation2 + $0x5c0] sm:$0xff] %vm1842, %v3851
  %4108 = vst.msk [vmem:[#allocation2 + $0x5c8] sm:$0xff] %vm1842, %v3852
  %4109 = vst.msk [vmem:[#allocation2 + $0x5d0] sm:$0xff] %vm1842, %v3853
  %4110 = vst.msk [vmem:[#allocation2 + $0x5d8] sm:$0xff] %vm1842, %v3854
  %4111 = vst.msk [vmem:[#allocation2 + $0x5e0] sm:$0xff] %vm1842, %v3855
  %4112 = vst.msk [vmem:[#allocation2 + $0x5e8] sm:$0xff] %vm1842, %v3856
  %4113 = vst.msk [vmem:[#allocation2 + $0x5f0] sm:$0xff] %vm1842, %v3857
  %4114 = vst.msk [vmem:[#allocation2 + $0x5f8] sm:$0xff] %vm1842, %v3858
  %4115 = vst.msk [vmem:[#allocation2 + $0x600] sm:$0xff] %vm1842, %v3859
  %4116 = vst.msk [vmem:[#allocation2 + $0x608] sm:$0xff] %vm1842, %v3860
  %4117 = vst.msk [vmem:[#allocation2 + $0x610] sm:$0xff] %vm1842, %v3861
  %4118 = vst.msk [vmem:[#allocation2 + $0x618] sm:$0xff] %vm1842, %v3862
  %4119 = vst.msk [vmem:[#allocation2 + $0x620] sm:$0xff] %vm1842, %v3863
  %4120 = vst.msk [vmem:[#allocation2 + $0x628] sm:$0xff] %vm1842, %v3864
  %4121 = vst.msk [vmem:[#allocation2 + $0x630] sm:$0xff] %vm1842, %v3865
  %4122 = vst.msk [vmem:[#allocation2 + $0x638] sm:$0xff] %vm1842, %v3866
  %4123 = vst.msk [vmem:[#allocation2 + $0x640] sm:$0xff] %vm1842, %v3867
  %4124 = vst.msk [vmem:[#allocation2 + $0x648] sm:$0xff] %vm1842, %v3868
  %4125 = vst.msk [vmem:[#allocation2 + $0x650] sm:$0xff] %vm1842, %v3869
  %4126 = vst.msk [vmem:[#allocation2 + $0x658] sm:$0xff] %vm1842, %v3870
  %4127 = vst.msk [vmem:[#allocation2 + $0x660] sm:$0xff] %vm1842, %v3871
  %4128 = vst.msk [vmem:[#allocation2 + $0x668] sm:$0xff] %vm1842, %v3872
  %4129 = vst.msk [vmem:[#allocation2 + $0x670] sm:$0xff] %vm1842, %v3873
  %4130 = vst.msk [vmem:[#allocation2 + $0x678] sm:$0xff] %vm1842, %v3874
  %4131 = vst.msk [vmem:[#allocation2 + $0x680] sm:$0xff] %vm1842, %v3875
  %4132 = vst.msk [vmem:[#allocation2 + $0x688] sm:$0xff] %vm1842, %v3876
  %4133 = vst.msk [vmem:[#allocation2 + $0x690] sm:$0xff] %vm1842, %v3877
  %4134 = vst.msk [vmem:[#allocation2 + $0x698] sm:$0xff] %vm1842, %v3878
  %4135 = vst.msk [vmem:[#allocation2 + $0x6a0] sm:$0xff] %vm1842, %v3879
  %4136 = vst.msk [vmem:[#allocation2 + $0x6a8] sm:$0xff] %vm1842, %v3880
  %4137 = vst.msk [vmem:[#allocation2 + $0x6b0] sm:$0xff] %vm1842, %v3881
  %4138 = vst.msk [vmem:[#allocation2 + $0x6b8] sm:$0xff] %vm1842, %v3882
  %4139 = vst.msk [vmem:[#allocation2 + $0x6c0] sm:$0xff] %vm1842, %v3883
  %4140 = vst.msk [vmem:[#allocation2 + $0x6c8] sm:$0xff] %vm1842, %v3884
  %4141 = vst.msk [vmem:[#allocation2 + $0x6d0] sm:$0xff] %vm1842, %v3885
  %4142 = vst.msk [vmem:[#allocation2 + $0x6d8] sm:$0xff] %vm1842, %v3886
  %4143 = vst.msk [vmem:[#allocation2 + $0x6e0] sm:$0xff] %vm1842, %v3887
  %4144 = vst.msk [vmem:[#allocation2 + $0x6e8] sm:$0xff] %vm1842, %v3888
  %4145 = vst.msk [vmem:[#allocation2 + $0x6f0] sm:$0xff] %vm1842, %v3889
  %4146 = vst.msk [vmem:[#allocation2 + $0x6f8] sm:$0xff] %vm1842, %v3890
  %4147 = vst.msk [vmem:[#allocation2 + $0x700] sm:$0xff] %vm1842, %v3891
  %4148 = vst.msk [vmem:[#allocation2 + $0x708] sm:$0xff] %vm1842, %v3892
  %4149 = vst.msk [vmem:[#allocation2 + $0x710] sm:$0xff] %vm1842, %v3893
  %4150 = vst.msk [vmem:[#allocation2 + $0x718] sm:$0xff] %vm1842, %v3894
  %4151 = vst.msk [vmem:[#allocation2 + $0x720] sm:$0xff] %vm1842, %v3895
  %4152 = vst.msk [vmem:[#allocation2 + $0x728] sm:$0xff] %vm1842, %v3896
  %4153 = vst.msk [vmem:[#allocation2 + $0x730] sm:$0xff] %vm1842, %v3897
  %4154 = vst.msk [vmem:[#allocation2 + $0x738] sm:$0xff] %vm1842, %v3898
  %4155 = vst.msk [vmem:[#allocation2 + $0x740] sm:$0xff] %vm1842, %v3899
  %4156 = vst.msk [vmem:[#allocation2 + $0x748] sm:$0xff] %vm1842, %v3900
  %4157 = vst.msk [vmem:[#allocation2 + $0x750] sm:$0xff] %vm1842, %v3901
  %4158 = vst.msk [vmem:[#allocation2 + $0x758] sm:$0xff] %vm1842, %v3902
  %4159 = vst.msk [vmem:[#allocation2 + $0x760] sm:$0xff] %vm1842, %v3903
  %4160 = vst.msk [vmem:[#allocation2 + $0x768] sm:$0xff] %vm1842, %v3904
  %4161 = vst.msk [vmem:[#allocation2 + $0x770] sm:$0xff] %vm1842, %v3905
  %4162 = vst.msk [vmem:[#allocation2 + $0x778] sm:$0xff] %vm1842, %v3906
  %4163 = vst.msk [vmem:[#allocation2 + $0x780] sm:$0xff] %vm1842, %v3907
  %4164 = vst.msk [vmem:[#allocation2 + $0x788] sm:$0xff] %vm1842, %v3908
  %4165 = vst.msk [vmem:[#allocation2 + $0x790] sm:$0xff] %vm1842, %v3909
  %4166 = vst.msk [vmem:[#allocation2 + $0x798] sm:$0xff] %vm1842, %v3910
  %4167 = vst.msk [vmem:[#allocation2 + $0x7a0] sm:$0xff] %vm1842, %v3911
  %4168 = vst.msk [vmem:[#allocation2 + $0x7a8] sm:$0xff] %vm1842, %v3912
  %4169 = vst.msk [vmem:[#allocation2 + $0x7b0] sm:$0xff] %vm1842, %v3913
  %4170 = vst.msk [vmem:[#allocation2 + $0x7b8] sm:$0xff] %vm1842, %v3914
  %4171 = vst.msk [vmem:[#allocation2 + $0x7c0] sm:$0xff] %vm1842, %v3915
  %4172 = vst.msk [vmem:[#allocation2 + $0x7c8] sm:$0xff] %vm1842, %v3916
  %4173 = vst.msk [vmem:[#allocation2 + $0x7d0] sm:$0xff] %vm1842, %v3917
  %4174 = vst.msk [vmem:[#allocation2 + $0x7d8] sm:$0xff] %vm1842, %v3918
  %4175 = vst.msk [vmem:[#allocation2 + $0x7e0] sm:$0xff] %vm1842, %v3919
  %4176 = vst.msk [vmem:[#allocation2 + $0x7e8] sm:$0xff] %vm1842, %v3920
  %4177 = vst.msk [vmem:[#allocation2 + $0x7f0] sm:$0xff] %vm1842, %v3921
  %4178 = vst.msk [vmem:[#allocation2 + $0x7f8] sm:$0xff] %vm1842, %v3922
  %v4179 = vld [vmem:[#allocation2] ss:$4 sm:$0xff]
  %s4180 = scalar_lea.vmem [#allocation2], 32
  %v4181 = vld [vmem:[%s4180] ss:$4 sm:$0xff]
  %s4182 = scalar_lea.vmem [#allocation2], 64
  %v4183 = vld [vmem:[%s4182] ss:$4 sm:$0xff]
  %s4184 = scalar_lea.vmem [#allocation2], 96
  %v4185 = vld [vmem:[%s4184] ss:$4 sm:$0xff]
  %s4186 = scalar_lea.vmem [#allocation2], 128
  %v4187 = vld [vmem:[%s4186] ss:$4 sm:$0xff]
  %s4188 = scalar_lea.vmem [#allocation2], 160
  %v4189 = vld [vmem:[%s4188] ss:$4 sm:$0xff]
  %s4190 = scalar_lea.vmem [#allocation2], 192
  %v4191 = vld [vmem:[%s4190] ss:$4 sm:$0xff]
  %s4192 = scalar_lea.vmem [#allocation2], 224
  %v4193 = vld [vmem:[%s4192] ss:$4 sm:$0xff]
  %s4194 = scalar_lea.vmem [#allocation2], 256
  %v4195 = vld [vmem:[%s4194] ss:$4 sm:$0xff]
  %s4196 = scalar_lea.vmem [#allocation2], 288
  %v4197 = vld [vmem:[%s4196] ss:$4 sm:$0xff]
  %s4198 = scalar_lea.vmem [#allocation2], 320
  %v4199 = vld [vmem:[%s4198] ss:$4 sm:$0xff]
  %s4200 = scalar_lea.vmem [#allocation2], 352
  %v4201 = vld [vmem:[%s4200] ss:$4 sm:$0xff]
  %s4202 = scalar_lea.vmem [#allocation2], 384
  %v4203 = vld [vmem:[%s4202] ss:$4 sm:$0xff]
  %s4204 = scalar_lea.vmem [#allocation2], 416
  %v4205 = vld [vmem:[%s4204] ss:$4 sm:$0xff]
  %s4206 = scalar_lea.vmem [#allocation2], 448
  %v4207 = vld [vmem:[%s4206] ss:$4 sm:$0xff]
  %s4208 = scalar_lea.vmem [#allocation2], 480
  %v4209 = vld [vmem:[%s4208] ss:$4 sm:$0xff]
  %s4210 = scalar_lea.vmem [#allocation2], 512
  %v4211 = vld [vmem:[%s4210] ss:$4 sm:$0xff]
  %s4212 = scalar_lea.vmem [#allocation2], 544
  %v4213 = vld [vmem:[%s4212] ss:$4 sm:$0xff]
  %s4214 = scalar_lea.vmem [#allocation2], 576
  %v4215 = vld [vmem:[%s4214] ss:$4 sm:$0xff]
  %s4216 = scalar_lea.vmem [#allocation2], 608
  %v4217 = vld [vmem:[%s4216] ss:$4 sm:$0xff]
  %s4218 = scalar_lea.vmem [#allocation2], 640
  %v4219 = vld [vmem:[%s4218] ss:$4 sm:$0xff]
  %s4220 = scalar_lea.vmem [#allocation2], 672
  %v4221 = vld [vmem:[%s4220] ss:$4 sm:$0xff]
  %s4222 = scalar_lea.vmem [#allocation2], 704
  %v4223 = vld [vmem:[%s4222] ss:$4 sm:$0xff]
  %s4224 = scalar_lea.vmem [#allocation2], 736
  %v4225 = vld [vmem:[%s4224] ss:$4 sm:$0xff]
  %s4226 = scalar_lea.vmem [#allocation2], 768
  %v4227 = vld [vmem:[%s4226] ss:$4 sm:$0xff]
  %s4228 = scalar_lea.vmem [#allocation2], 800
  %v4229 = vld [vmem:[%s4228] ss:$4 sm:$0xff]
  %s4230 = scalar_lea.vmem [#allocation2], 832
  %v4231 = vld [vmem:[%s4230] ss:$4 sm:$0xff]
  %s4232 = scalar_lea.vmem [#allocation2], 864
  %v4233 = vld [vmem:[%s4232] ss:$4 sm:$0xff]
  %s4234 = scalar_lea.vmem [#allocation2], 896
  %v4235 = vld [vmem:[%s4234] ss:$4 sm:$0xff]
  %s4236 = scalar_lea.vmem [#allocation2], 928
  %v4237 = vld [vmem:[%s4236] ss:$4 sm:$0xff]
  %s4238 = scalar_lea.vmem [#allocation2], 960
  %v4239 = vld [vmem:[%s4238] ss:$4 sm:$0xff]
  %s4240 = scalar_lea.vmem [#allocation2], 992
  %v4241 = vld [vmem:[%s4240] ss:$4 sm:$0xff]
  %s4242 = scalar_lea.vmem [#allocation2], 1024
  %v4243 = vld [vmem:[%s4242] ss:$4 sm:$0xff]
  %s4244 = scalar_lea.vmem [#allocation2], 1056
  %v4245 = vld [vmem:[%s4244] ss:$4 sm:$0xff]
  %s4246 = scalar_lea.vmem [#allocation2], 1088
  %v4247 = vld [vmem:[%s4246] ss:$4 sm:$0xff]
  %s4248 = scalar_lea.vmem [#allocation2], 1120
  %v4249 = vld [vmem:[%s4248] ss:$4 sm:$0xff]
  %s4250 = scalar_lea.vmem [#allocation2], 1152
  %v4251 = vld [vmem:[%s4250] ss:$4 sm:$0xff]
  %s4252 = scalar_lea.vmem [#allocation2], 1184
  %v4253 = vld [vmem:[%s4252] ss:$4 sm:$0xff]
  %s4254 = scalar_lea.vmem [#allocation2], 1216
  %v4255 = vld [vmem:[%s4254] ss:$4 sm:$0xff]
  %s4256 = scalar_lea.vmem [#allocation2], 1248
  %v4257 = vld [vmem:[%s4256] ss:$4 sm:$0xff]
  %s4258 = scalar_lea.vmem [#allocation2], 1280
  %v4259 = vld [vmem:[%s4258] ss:$4 sm:$0xff]
  %s4260 = scalar_lea.vmem [#allocation2], 1312
  %v4261 = vld [vmem:[%s4260] ss:$4 sm:$0xff]
  %s4262 = scalar_lea.vmem [#allocation2], 1344
  %v4263 = vld [vmem:[%s4262] ss:$4 sm:$0xff]
  %s4264 = scalar_lea.vmem [#allocation2], 1376
  %v4265 = vld [vmem:[%s4264] ss:$4 sm:$0xff]
  %s4266 = scalar_lea.vmem [#allocation2], 1408
  %v4267 = vld [vmem:[%s4266] ss:$4 sm:$0xff]
  %s4268 = scalar_lea.vmem [#allocation2], 1440
  %v4269 = vld [vmem:[%s4268] ss:$4 sm:$0xff]
  %s4270 = scalar_lea.vmem [#allocation2], 1472
  %v4271 = vld [vmem:[%s4270] ss:$4 sm:$0xff]
  %s4272 = scalar_lea.vmem [#allocation2], 1504
  %v4273 = vld [vmem:[%s4272] ss:$4 sm:$0xff]
  %s4274 = scalar_lea.vmem [#allocation2], 1536
  %v4275 = vld [vmem:[%s4274] ss:$4 sm:$0xff]
  %s4276 = scalar_lea.vmem [#allocation2], 1568
  %v4277 = vld [vmem:[%s4276] ss:$4 sm:$0xff]
  %s4278 = scalar_lea.vmem [#allocation2], 1600
  %v4279 = vld [vmem:[%s4278] ss:$4 sm:$0xff]
  %s4280 = scalar_lea.vmem [#allocation2], 1632
  %v4281 = vld [vmem:[%s4280] ss:$4 sm:$0xff]
  %s4282 = scalar_lea.vmem [#allocation2], 1664
  %v4283 = vld [vmem:[%s4282] ss:$4 sm:$0xff]
  %s4284 = scalar_lea.vmem [#allocation2], 1696
  %v4285 = vld [vmem:[%s4284] ss:$4 sm:$0xff]
  %s4286 = scalar_lea.vmem [#allocation2], 1728
  %v4287 = vld [vmem:[%s4286] ss:$4 sm:$0xff]
  %s4288 = scalar_lea.vmem [#allocation2], 1760
  %v4289 = vld [vmem:[%s4288] ss:$4 sm:$0xff]
  %s4290 = scalar_lea.vmem [#allocation2], 1792
  %v4291 = vld [vmem:[%s4290] ss:$4 sm:$0xff]
  %s4292 = scalar_lea.vmem [#allocation2], 1824
  %v4293 = vld [vmem:[%s4292] ss:$4 sm:$0xff]
  %s4294 = scalar_lea.vmem [#allocation2], 1856
  %v4295 = vld [vmem:[%s4294] ss:$4 sm:$0xff]
  %s4296 = scalar_lea.vmem [#allocation2], 1888
  %v4297 = vld [vmem:[%s4296] ss:$4 sm:$0xff]
  %s4298 = scalar_lea.vmem [#allocation2], 1920
  %v4299 = vld [vmem:[%s4298] ss:$4 sm:$0xff]
  %s4300 = scalar_lea.vmem [#allocation2], 1952
  %v4301 = vld [vmem:[%s4300] ss:$4 sm:$0xff]
  %s4302 = scalar_lea.vmem [#allocation2], 1984
  %v4303 = vld [vmem:[%s4302] ss:$4 sm:$0xff]
  %s4304 = scalar_lea.vmem [#allocation2], 2016
  %v4305 = vld [vmem:[%s4304] ss:$4 sm:$0xff]
  %s4306 = scalar_lea.vmem [#allocation2], 1
  %v4307 = vld [vmem:[%s4306] ss:$4 sm:$0xff]
  %s4308 = scalar_lea.vmem [#allocation2], 33
  %v4309 = vld [vmem:[%s4308] ss:$4 sm:$0xff]
  %s4310 = scalar_lea.vmem [#allocation2], 65
  %v4311 = vld [vmem:[%s4310] ss:$4 sm:$0xff]
  %s4312 = scalar_lea.vmem [#allocation2], 97
  %v4313 = vld [vmem:[%s4312] ss:$4 sm:$0xff]
  %s4314 = scalar_lea.vmem [#allocation2], 129
  %v4315 = vld [vmem:[%s4314] ss:$4 sm:$0xff]
  %s4316 = scalar_lea.vmem [#allocation2], 161
  %v4317 = vld [vmem:[%s4316] ss:$4 sm:$0xff]
  %s4318 = scalar_lea.vmem [#allocation2], 193
  %v4319 = vld [vmem:[%s4318] ss:$4 sm:$0xff]
  %s4320 = scalar_lea.vmem [#allocation2], 225
  %v4321 = vld [vmem:[%s4320] ss:$4 sm:$0xff]
  %s4322 = scalar_lea.vmem [#allocation2], 257
  %v4323 = vld [vmem:[%s4322] ss:$4 sm:$0xff]
  %s4324 = scalar_lea.vmem [#allocation2], 289
  %v4325 = vld [vmem:[%s4324] ss:$4 sm:$0xff]
  %s4326 = scalar_lea.vmem [#allocation2], 321
  %v4327 = vld [vmem:[%s4326] ss:$4 sm:$0xff]
  %s4328 = scalar_lea.vmem [#allocation2], 353
  %v4329 = vld [vmem:[%s4328] ss:$4 sm:$0xff]
  %s4330 = scalar_lea.vmem [#allocation2], 385
  %v4331 = vld [vmem:[%s4330] ss:$4 sm:$0xff]
  %s4332 = scalar_lea.vmem [#allocation2], 417
  %v4333 = vld [vmem:[%s4332] ss:$4 sm:$0xff]
  %s4334 = scalar_lea.vmem [#allocation2], 449
  %v4335 = vld [vmem:[%s4334] ss:$4 sm:$0xff]
  %s4336 = scalar_lea.vmem [#allocation2], 481
  %v4337 = vld [vmem:[%s4336] ss:$4 sm:$0xff]
  %s4338 = scalar_lea.vmem [#allocation2], 513
  %v4339 = vld [vmem:[%s4338] ss:$4 sm:$0xff]
  %s4340 = scalar_lea.vmem [#allocation2], 545
  %v4341 = vld [vmem:[%s4340] ss:$4 sm:$0xff]
  %s4342 = scalar_lea.vmem [#allocation2], 577
  %v4343 = vld [vmem:[%s4342] ss:$4 sm:$0xff]
  %s4344 = scalar_lea.vmem [#allocation2], 609
  %v4345 = vld [vmem:[%s4344] ss:$4 sm:$0xff]
  %s4346 = scalar_lea.vmem [#allocation2], 641
  %v4347 = vld [vmem:[%s4346] ss:$4 sm:$0xff]
  %s4348 = scalar_lea.vmem [#allocation2], 673
  %v4349 = vld [vmem:[%s4348] ss:$4 sm:$0xff]
  %s4350 = scalar_lea.vmem [#allocation2], 705
  %v4351 = vld [vmem:[%s4350] ss:$4 sm:$0xff]
  %s4352 = scalar_lea.vmem [#allocation2], 737
  %v4353 = vld [vmem:[%s4352] ss:$4 sm:$0xff]
  %s4354 = scalar_lea.vmem [#allocation2], 769
  %v4355 = vld [vmem:[%s4354] ss:$4 sm:$0xff]
  %s4356 = scalar_lea.vmem [#allocation2], 801
  %v4357 = vld [vmem:[%s4356] ss:$4 sm:$0xff]
  %s4358 = scalar_lea.vmem [#allocation2], 833
  %v4359 = vld [vmem:[%s4358] ss:$4 sm:$0xff]
  %s4360 = scalar_lea.vmem [#allocation2], 865
  %v4361 = vld [vmem:[%s4360] ss:$4 sm:$0xff]
  %s4362 = scalar_lea.vmem [#allocation2], 897
  %v4363 = vld [vmem:[%s4362] ss:$4 sm:$0xff]
  %s4364 = scalar_lea.vmem [#allocation2], 929
  %v4365 = vld [vmem:[%s4364] ss:$4 sm:$0xff]
  %s4366 = scalar_lea.vmem [#allocation2], 961
  %v4367 = vld [vmem:[%s4366] ss:$4 sm:$0xff]
  %s4368 = scalar_lea.vmem [#allocation2], 993
  %v4369 = vld [vmem:[%s4368] ss:$4 sm:$0xff]
  %s4370 = scalar_lea.vmem [#allocation2], 1025
  %v4371 = vld [vmem:[%s4370] ss:$4 sm:$0xff]
  %s4372 = scalar_lea.vmem [#allocation2], 1057
  %v4373 = vld [vmem:[%s4372] ss:$4 sm:$0xff]
  %s4374 = scalar_lea.vmem [#allocation2], 1089
  %v4375 = vld [vmem:[%s4374] ss:$4 sm:$0xff]
  %s4376 = scalar_lea.vmem [#allocation2], 1121
  %v4377 = vld [vmem:[%s4376] ss:$4 sm:$0xff]
  %s4378 = scalar_lea.vmem [#allocation2], 1153
  %v4379 = vld [vmem:[%s4378] ss:$4 sm:$0xff]
  %s4380 = scalar_lea.vmem [#allocation2], 1185
  %v4381 = vld [vmem:[%s4380] ss:$4 sm:$0xff]
  %s4382 = scalar_lea.vmem [#allocation2], 1217
  %v4383 = vld [vmem:[%s4382] ss:$4 sm:$0xff]
  %s4384 = scalar_lea.vmem [#allocation2], 1249
  %v4385 = vld [vmem:[%s4384] ss:$4 sm:$0xff]
  %s4386 = scalar_lea.vmem [#allocation2], 1281
  %v4387 = vld [vmem:[%s4386] ss:$4 sm:$0xff]
  %s4388 = scalar_lea.vmem [#allocation2], 1313
  %v4389 = vld [vmem:[%s4388] ss:$4 sm:$0xff]
  %s4390 = scalar_lea.vmem [#allocation2], 1345
  %v4391 = vld [vmem:[%s4390] ss:$4 sm:$0xff]
  %s4392 = scalar_lea.vmem [#allocation2], 1377
  %v4393 = vld [vmem:[%s4392] ss:$4 sm:$0xff]
  %s4394 = scalar_lea.vmem [#allocation2], 1409
  %v4395 = vld [vmem:[%s4394] ss:$4 sm:$0xff]
  %s4396 = scalar_lea.vmem [#allocation2], 1441
  %v4397 = vld [vmem:[%s4396] ss:$4 sm:$0xff]
  %s4398 = scalar_lea.vmem [#allocation2], 1473
  %v4399 = vld [vmem:[%s4398] ss:$4 sm:$0xff]
  %s4400 = scalar_lea.vmem [#allocation2], 1505
  %v4401 = vld [vmem:[%s4400] ss:$4 sm:$0xff]
  %s4402 = scalar_lea.vmem [#allocation2], 1537
  %v4403 = vld [vmem:[%s4402] ss:$4 sm:$0xff]
  %s4404 = scalar_lea.vmem [#allocation2], 1569
  %v4405 = vld [vmem:[%s4404] ss:$4 sm:$0xff]
  %s4406 = scalar_lea.vmem [#allocation2], 1601
  %v4407 = vld [vmem:[%s4406] ss:$4 sm:$0xff]
  %s4408 = scalar_lea.vmem [#allocation2], 1633
  %v4409 = vld [vmem:[%s4408] ss:$4 sm:$0xff]
  %s4410 = scalar_lea.vmem [#allocation2], 1665
  %v4411 = vld [vmem:[%s4410] ss:$4 sm:$0xff]
  %s4412 = scalar_lea.vmem [#allocation2], 1697
  %v4413 = vld [vmem:[%s4412] ss:$4 sm:$0xff]
  %s4414 = scalar_lea.vmem [#allocation2], 1729
  %v4415 = vld [vmem:[%s4414] ss:$4 sm:$0xff]
  %s4416 = scalar_lea.vmem [#allocation2], 1761
  %v4417 = vld [vmem:[%s4416] ss:$4 sm:$0xff]
  %s4418 = scalar_lea.vmem [#allocation2], 1793
  %v4419 = vld [vmem:[%s4418] ss:$4 sm:$0xff]
  %s4420 = scalar_lea.vmem [#allocation2], 1825
  %v4421 = vld [vmem:[%s4420] ss:$4 sm:$0xff]
  %s4422 = scalar_lea.vmem [#allocation2], 1857
  %v4423 = vld [vmem:[%s4422] ss:$4 sm:$0xff]
  %s4424 = scalar_lea.vmem [#allocation2], 1889
  %v4425 = vld [vmem:[%s4424] ss:$4 sm:$0xff]
  %s4426 = scalar_lea.vmem [#allocation2], 1921
  %v4427 = vld [vmem:[%s4426] ss:$4 sm:$0xff]
  %s4428 = scalar_lea.vmem [#allocation2], 1953
  %v4429 = vld [vmem:[%s4428] ss:$4 sm:$0xff]
  %s4430 = scalar_lea.vmem [#allocation2], 1985
  %v4431 = vld [vmem:[%s4430] ss:$4 sm:$0xff]
  %s4432 = scalar_lea.vmem [#allocation2], 2017
  %v4433 = vld [vmem:[%s4432] ss:$4 sm:$0xff]
  %v4434 = vmax.f32 %v4179, %v4307
  %v4435 = vmax.f32 %v4181, %v4309
  %v4436 = vmax.f32 %v4183, %v4311
  %v4437 = vmax.f32 %v4185, %v4313
  %v4438 = vmax.f32 %v4187, %v4315
  %v4439 = vmax.f32 %v4189, %v4317
  %v4440 = vmax.f32 %v4191, %v4319
  %v4441 = vmax.f32 %v4193, %v4321
  %v4442 = vmax.f32 %v4195, %v4323
  %v4443 = vmax.f32 %v4197, %v4325
  %v4444 = vmax.f32 %v4199, %v4327
  %v4445 = vmax.f32 %v4201, %v4329
  %v4446 = vmax.f32 %v4203, %v4331
  %v4447 = vmax.f32 %v4205, %v4333
  %v4448 = vmax.f32 %v4207, %v4335
  %v4449 = vmax.f32 %v4209, %v4337
  %v4450 = vmax.f32 %v4211, %v4339
  %v4451 = vmax.f32 %v4213, %v4341
  %v4452 = vmax.f32 %v4215, %v4343
  %v4453 = vmax.f32 %v4217, %v4345
  %v4454 = vmax.f32 %v4219, %v4347
  %v4455 = vmax.f32 %v4221, %v4349
  %v4456 = vmax.f32 %v4223, %v4351
  %v4457 = vmax.f32 %v4225, %v4353
  %v4458 = vmax.f32 %v4227, %v4355
  %v4459 = vmax.f32 %v4229, %v4357
  %v4460 = vmax.f32 %v4231, %v4359
  %v4461 = vmax.f32 %v4233, %v4361
  %v4462 = vmax.f32 %v4235, %v4363
  %v4463 = vmax.f32 %v4237, %v4365
  %v4464 = vmax.f32 %v4239, %v4367
  %v4465 = vmax.f32 %v4241, %v4369
  %v4466 = vmax.f32 %v4243, %v4371
  %v4467 = vmax.f32 %v4245, %v4373
  %v4468 = vmax.f32 %v4247, %v4375
  %v4469 = vmax.f32 %v4249, %v4377
  %v4470 = vmax.f32 %v4251, %v4379
  %v4471 = vmax.f32 %v4253, %v4381
  %v4472 = vmax.f32 %v4255, %v4383
  %v4473 = vmax.f32 %v4257, %v4385
  %v4474 = vmax.f32 %v4259, %v4387
  %v4475 = vmax.f32 %v4261, %v4389
  %v4476 = vmax.f32 %v4263, %v4391
  %v4477 = vmax.f32 %v4265, %v4393
  %v4478 = vmax.f32 %v4267, %v4395
  %v4479 = vmax.f32 %v4269, %v4397
  %v4480 = vmax.f32 %v4271, %v4399
  %v4481 = vmax.f32 %v4273, %v4401
  %v4482 = vmax.f32 %v4275, %v4403
  %v4483 = vmax.f32 %v4277, %v4405
  %v4484 = vmax.f32 %v4279, %v4407
  %v4485 = vmax.f32 %v4281, %v4409
  %v4486 = vmax.f32 %v4283, %v4411
  %v4487 = vmax.f32 %v4285, %v4413
  %v4488 = vmax.f32 %v4287, %v4415
  %v4489 = vmax.f32 %v4289, %v4417
  %v4490 = vmax.f32 %v4291, %v4419
  %v4491 = vmax.f32 %v4293, %v4421
  %v4492 = vmax.f32 %v4295, %v4423
  %v4493 = vmax.f32 %v4297, %v4425
  %v4494 = vmax.f32 %v4299, %v4427
  %v4495 = vmax.f32 %v4301, %v4429
  %v4496 = vmax.f32 %v4303, %v4431
  %v4497 = vmax.f32 %v4305, %v4433
  %s4498 = scalar_lea.vmem [#allocation2], 2
  %v4499 = vld [vmem:[%s4498] ss:$4 sm:$0xff]
  %s4500 = scalar_lea.vmem [#allocation2], 34
  %v4501 = vld [vmem:[%s4500] ss:$4 sm:$0xff]
  %s4502 = scalar_lea.vmem [#allocation2], 66
  %v4503 = vld [vmem:[%s4502] ss:$4 sm:$0xff]
  %s4504 = scalar_lea.vmem [#allocation2], 98
  %v4505 = vld [vmem:[%s4504] ss:$4 sm:$0xff]
  %s4506 = scalar_lea.vmem [#allocation2], 130
  %v4507 = vld [vmem:[%s4506] ss:$4 sm:$0xff]
  %s4508 = scalar_lea.vmem [#allocation2], 162
  %v4509 = vld [vmem:[%s4508] ss:$4 sm:$0xff]
  %s4510 = scalar_lea.vmem [#allocation2], 194
  %v4511 = vld [vmem:[%s4510] ss:$4 sm:$0xff]
  %s4512 = scalar_lea.vmem [#allocation2], 226
  %v4513 = vld [vmem:[%s4512] ss:$4 sm:$0xff]
  %s4514 = scalar_lea.vmem [#allocation2], 258
  %v4515 = vld [vmem:[%s4514] ss:$4 sm:$0xff]
  %s4516 = scalar_lea.vmem [#allocation2], 290
  %v4517 = vld [vmem:[%s4516] ss:$4 sm:$0xff]
  %s4518 = scalar_lea.vmem [#allocation2], 322
  %v4519 = vld [vmem:[%s4518] ss:$4 sm:$0xff]
  %s4520 = scalar_lea.vmem [#allocation2], 354
  %v4521 = vld [vmem:[%s4520] ss:$4 sm:$0xff]
  %s4522 = scalar_lea.vmem [#allocation2], 386
  %v4523 = vld [vmem:[%s4522] ss:$4 sm:$0xff]
  %s4524 = scalar_lea.vmem [#allocation2], 418
  %v4525 = vld [vmem:[%s4524] ss:$4 sm:$0xff]
  %s4526 = scalar_lea.vmem [#allocation2], 450
  %v4527 = vld [vmem:[%s4526] ss:$4 sm:$0xff]
  %s4528 = scalar_lea.vmem [#allocation2], 482
  %v4529 = vld [vmem:[%s4528] ss:$4 sm:$0xff]
  %s4530 = scalar_lea.vmem [#allocation2], 514
  %v4531 = vld [vmem:[%s4530] ss:$4 sm:$0xff]
  %s4532 = scalar_lea.vmem [#allocation2], 546
  %v4533 = vld [vmem:[%s4532] ss:$4 sm:$0xff]
  %s4534 = scalar_lea.vmem [#allocation2], 578
  %v4535 = vld [vmem:[%s4534] ss:$4 sm:$0xff]
  %s4536 = scalar_lea.vmem [#allocation2], 610
  %v4537 = vld [vmem:[%s4536] ss:$4 sm:$0xff]
  %s4538 = scalar_lea.vmem [#allocation2], 642
  %v4539 = vld [vmem:[%s4538] ss:$4 sm:$0xff]
  %s4540 = scalar_lea.vmem [#allocation2], 674
  %v4541 = vld [vmem:[%s4540] ss:$4 sm:$0xff]
  %s4542 = scalar_lea.vmem [#allocation2], 706
  %v4543 = vld [vmem:[%s4542] ss:$4 sm:$0xff]
  %s4544 = scalar_lea.vmem [#allocation2], 738
  %v4545 = vld [vmem:[%s4544] ss:$4 sm:$0xff]
  %s4546 = scalar_lea.vmem [#allocation2], 770
  %v4547 = vld [vmem:[%s4546] ss:$4 sm:$0xff]
  %s4548 = scalar_lea.vmem [#allocation2], 802
  %v4549 = vld [vmem:[%s4548] ss:$4 sm:$0xff]
  %s4550 = scalar_lea.vmem [#allocation2], 834
  %v4551 = vld [vmem:[%s4550] ss:$4 sm:$0xff]
  %s4552 = scalar_lea.vmem [#allocation2], 866
  %v4553 = vld [vmem:[%s4552] ss:$4 sm:$0xff]
  %s4554 = scalar_lea.vmem [#allocation2], 898
  %v4555 = vld [vmem:[%s4554] ss:$4 sm:$0xff]
  %s4556 = scalar_lea.vmem [#allocation2], 930
  %v4557 = vld [vmem:[%s4556] ss:$4 sm:$0xff]
  %s4558 = scalar_lea.vmem [#allocation2], 962
  %v4559 = vld [vmem:[%s4558] ss:$4 sm:$0xff]
  %s4560 = scalar_lea.vmem [#allocation2], 994
  %v4561 = vld [vmem:[%s4560] ss:$4 sm:$0xff]
  %s4562 = scalar_lea.vmem [#allocation2], 1026
  %v4563 = vld [vmem:[%s4562] ss:$4 sm:$0xff]
  %s4564 = scalar_lea.vmem [#allocation2], 1058
  %v4565 = vld [vmem:[%s4564] ss:$4 sm:$0xff]
  %s4566 = scalar_lea.vmem [#allocation2], 1090
  %v4567 = vld [vmem:[%s4566] ss:$4 sm:$0xff]
  %s4568 = scalar_lea.vmem [#allocation2], 1122
  %v4569 = vld [vmem:[%s4568] ss:$4 sm:$0xff]
  %s4570 = scalar_lea.vmem [#allocation2], 1154
  %v4571 = vld [vmem:[%s4570] ss:$4 sm:$0xff]
  %s4572 = scalar_lea.vmem [#allocation2], 1186
  %v4573 = vld [vmem:[%s4572] ss:$4 sm:$0xff]
  %s4574 = scalar_lea.vmem [#allocation2], 1218
  %v4575 = vld [vmem:[%s4574] ss:$4 sm:$0xff]
  %s4576 = scalar_lea.vmem [#allocation2], 1250
  %v4577 = vld [vmem:[%s4576] ss:$4 sm:$0xff]
  %s4578 = scalar_lea.vmem [#allocation2], 1282
  %v4579 = vld [vmem:[%s4578] ss:$4 sm:$0xff]
  %s4580 = scalar_lea.vmem [#allocation2], 1314
  %v4581 = vld [vmem:[%s4580] ss:$4 sm:$0xff]
  %s4582 = scalar_lea.vmem [#allocation2], 1346
  %v4583 = vld [vmem:[%s4582] ss:$4 sm:$0xff]
  %s4584 = scalar_lea.vmem [#allocation2], 1378
  %v4585 = vld [vmem:[%s4584] ss:$4 sm:$0xff]
  %s4586 = scalar_lea.vmem [#allocation2], 1410
  %v4587 = vld [vmem:[%s4586] ss:$4 sm:$0xff]
  %s4588 = scalar_lea.vmem [#allocation2], 1442
  %v4589 = vld [vmem:[%s4588] ss:$4 sm:$0xff]
  %s4590 = scalar_lea.vmem [#allocation2], 1474
  %v4591 = vld [vmem:[%s4590] ss:$4 sm:$0xff]
  %s4592 = scalar_lea.vmem [#allocation2], 1506
  %v4593 = vld [vmem:[%s4592] ss:$4 sm:$0xff]
  %s4594 = scalar_lea.vmem [#allocation2], 1538
  %v4595 = vld [vmem:[%s4594] ss:$4 sm:$0xff]
  %s4596 = scalar_lea.vmem [#allocation2], 1570
  %v4597 = vld [vmem:[%s4596] ss:$4 sm:$0xff]
  %s4598 = scalar_lea.vmem [#allocation2], 1602
  %v4599 = vld [vmem:[%s4598] ss:$4 sm:$0xff]
  %s4600 = scalar_lea.vmem [#allocation2], 1634
  %v4601 = vld [vmem:[%s4600] ss:$4 sm:$0xff]
  %s4602 = scalar_lea.vmem [#allocation2], 1666
  %v4603 = vld [vmem:[%s4602] ss:$4 sm:$0xff]
  %s4604 = scalar_lea.vmem [#allocation2], 1698
  %v4605 = vld [vmem:[%s4604] ss:$4 sm:$0xff]
  %s4606 = scalar_lea.vmem [#allocation2], 1730
  %v4607 = vld [vmem:[%s4606] ss:$4 sm:$0xff]
  %s4608 = scalar_lea.vmem [#allocation2], 1762
  %v4609 = vld [vmem:[%s4608] ss:$4 sm:$0xff]
  %s4610 = scalar_lea.vmem [#allocation2], 1794
  %v4611 = vld [vmem:[%s4610] ss:$4 sm:$0xff]
  %s4612 = scalar_lea.vmem [#allocation2], 1826
  %v4613 = vld [vmem:[%s4612] ss:$4 sm:$0xff]
  %s4614 = scalar_lea.vmem [#allocation2], 1858
  %v4615 = vld [vmem:[%s4614] ss:$4 sm:$0xff]
  %s4616 = scalar_lea.vmem [#allocation2], 1890
  %v4617 = vld [vmem:[%s4616] ss:$4 sm:$0xff]
  %s4618 = scalar_lea.vmem [#allocation2], 1922
  %v4619 = vld [vmem:[%s4618] ss:$4 sm:$0xff]
  %s4620 = scalar_lea.vmem [#allocation2], 1954
  %v4621 = vld [vmem:[%s4620] ss:$4 sm:$0xff]
  %s4622 = scalar_lea.vmem [#allocation2], 1986
  %v4623 = vld [vmem:[%s4622] ss:$4 sm:$0xff]
  %s4624 = scalar_lea.vmem [#allocation2], 2018
  %v4625 = vld [vmem:[%s4624] ss:$4 sm:$0xff]
  %s4626 = scalar_lea.vmem [#allocation2], 3
  %v4627 = vld [vmem:[%s4626] ss:$4 sm:$0xff]
  %s4628 = scalar_lea.vmem [#allocation2], 35
  %v4629 = vld [vmem:[%s4628] ss:$4 sm:$0xff]
  %s4630 = scalar_lea.vmem [#allocation2], 67
  %v4631 = vld [vmem:[%s4630] ss:$4 sm:$0xff]
  %s4632 = scalar_lea.vmem [#allocation2], 99
  %v4633 = vld [vmem:[%s4632] ss:$4 sm:$0xff]
  %s4634 = scalar_lea.vmem [#allocation2], 131
  %v4635 = vld [vmem:[%s4634] ss:$4 sm:$0xff]
  %s4636 = scalar_lea.vmem [#allocation2], 163
  %v4637 = vld [vmem:[%s4636] ss:$4 sm:$0xff]
  %s4638 = scalar_lea.vmem [#allocation2], 195
  %v4639 = vld [vmem:[%s4638] ss:$4 sm:$0xff]
  %s4640 = scalar_lea.vmem [#allocation2], 227
  %v4641 = vld [vmem:[%s4640] ss:$4 sm:$0xff]
  %s4642 = scalar_lea.vmem [#allocation2], 259
  %v4643 = vld [vmem:[%s4642] ss:$4 sm:$0xff]
  %s4644 = scalar_lea.vmem [#allocation2], 291
  %v4645 = vld [vmem:[%s4644] ss:$4 sm:$0xff]
  %s4646 = scalar_lea.vmem [#allocation2], 323
  %v4647 = vld [vmem:[%s4646] ss:$4 sm:$0xff]
  %s4648 = scalar_lea.vmem [#allocation2], 355
  %v4649 = vld [vmem:[%s4648] ss:$4 sm:$0xff]
  %s4650 = scalar_lea.vmem [#allocation2], 387
  %v4651 = vld [vmem:[%s4650] ss:$4 sm:$0xff]
  %s4652 = scalar_lea.vmem [#allocation2], 419
  %v4653 = vld [vmem:[%s4652] ss:$4 sm:$0xff]
  %s4654 = scalar_lea.vmem [#allocation2], 451
  %v4655 = vld [vmem:[%s4654] ss:$4 sm:$0xff]
  %s4656 = scalar_lea.vmem [#allocation2], 483
  %v4657 = vld [vmem:[%s4656] ss:$4 sm:$0xff]
  %s4658 = scalar_lea.vmem [#allocation2], 515
  %v4659 = vld [vmem:[%s4658] ss:$4 sm:$0xff]
  %s4660 = scalar_lea.vmem [#allocation2], 547
  %v4661 = vld [vmem:[%s4660] ss:$4 sm:$0xff]
  %s4662 = scalar_lea.vmem [#allocation2], 579
  %v4663 = vld [vmem:[%s4662] ss:$4 sm:$0xff]
  %s4664 = scalar_lea.vmem [#allocation2], 611
  %v4665 = vld [vmem:[%s4664] ss:$4 sm:$0xff]
  %s4666 = scalar_lea.vmem [#allocation2], 643
  %v4667 = vld [vmem:[%s4666] ss:$4 sm:$0xff]
  %s4668 = scalar_lea.vmem [#allocation2], 675
  %v4669 = vld [vmem:[%s4668] ss:$4 sm:$0xff]
  %s4670 = scalar_lea.vmem [#allocation2], 707
  %v4671 = vld [vmem:[%s4670] ss:$4 sm:$0xff]
  %s4672 = scalar_lea.vmem [#allocation2], 739
  %v4673 = vld [vmem:[%s4672] ss:$4 sm:$0xff]
  %s4674 = scalar_lea.vmem [#allocation2], 771
  %v4675 = vld [vmem:[%s4674] ss:$4 sm:$0xff]
  %s4676 = scalar_lea.vmem [#allocation2], 803
  %v4677 = vld [vmem:[%s4676] ss:$4 sm:$0xff]
  %s4678 = scalar_lea.vmem [#allocation2], 835
  %v4679 = vld [vmem:[%s4678] ss:$4 sm:$0xff]
  %s4680 = scalar_lea.vmem [#allocation2], 867
  %v4681 = vld [vmem:[%s4680] ss:$4 sm:$0xff]
  %s4682 = scalar_lea.vmem [#allocation2], 899
  %v4683 = vld [vmem:[%s4682] ss:$4 sm:$0xff]
  %s4684 = scalar_lea.vmem [#allocation2], 931
  %v4685 = vld [vmem:[%s4684] ss:$4 sm:$0xff]
  %s4686 = scalar_lea.vmem [#allocation2], 963
  %v4687 = vld [vmem:[%s4686] ss:$4 sm:$0xff]
  %s4688 = scalar_lea.vmem [#allocation2], 995
  %v4689 = vld [vmem:[%s4688] ss:$4 sm:$0xff]
  %s4690 = scalar_lea.vmem [#allocation2], 1027
  %v4691 = vld [vmem:[%s4690] ss:$4 sm:$0xff]
  %s4692 = scalar_lea.vmem [#allocation2], 1059
  %v4693 = vld [vmem:[%s4692] ss:$4 sm:$0xff]
  %s4694 = scalar_lea.vmem [#allocation2], 1091
  %v4695 = vld [vmem:[%s4694] ss:$4 sm:$0xff]
  %s4696 = scalar_lea.vmem [#allocation2], 1123
  %v4697 = vld [vmem:[%s4696] ss:$4 sm:$0xff]
  %s4698 = scalar_lea.vmem [#allocation2], 1155
  %v4699 = vld [vmem:[%s4698] ss:$4 sm:$0xff]
  %s4700 = scalar_lea.vmem [#allocation2], 1187
  %v4701 = vld [vmem:[%s4700] ss:$4 sm:$0xff]
  %s4702 = scalar_lea.vmem [#allocation2], 1219
  %v4703 = vld [vmem:[%s4702] ss:$4 sm:$0xff]
  %s4704 = scalar_lea.vmem [#allocation2], 1251
  %v4705 = vld [vmem:[%s4704] ss:$4 sm:$0xff]
  %s4706 = scalar_lea.vmem [#allocation2], 1283
  %v4707 = vld [vmem:[%s4706] ss:$4 sm:$0xff]
  %s4708 = scalar_lea.vmem [#allocation2], 1315
  %v4709 = vld [vmem:[%s4708] ss:$4 sm:$0xff]
  %s4710 = scalar_lea.vmem [#allocation2], 1347
  %v4711 = vld [vmem:[%s4710] ss:$4 sm:$0xff]
  %s4712 = scalar_lea.vmem [#allocation2], 1379
  %v4713 = vld [vmem:[%s4712] ss:$4 sm:$0xff]
  %s4714 = scalar_lea.vmem [#allocation2], 1411
  %v4715 = vld [vmem:[%s4714] ss:$4 sm:$0xff]
  %s4716 = scalar_lea.vmem [#allocation2], 1443
  %v4717 = vld [vmem:[%s4716] ss:$4 sm:$0xff]
  %s4718 = scalar_lea.vmem [#allocation2], 1475
  %v4719 = vld [vmem:[%s4718] ss:$4 sm:$0xff]
  %s4720 = scalar_lea.vmem [#allocation2], 1507
  %v4721 = vld [vmem:[%s4720] ss:$4 sm:$0xff]
  %s4722 = scalar_lea.vmem [#allocation2], 1539
  %v4723 = vld [vmem:[%s4722] ss:$4 sm:$0xff]
  %s4724 = scalar_lea.vmem [#allocation2], 1571
  %v4725 = vld [vmem:[%s4724] ss:$4 sm:$0xff]
  %s4726 = scalar_lea.vmem [#allocation2], 1603
  %v4727 = vld [vmem:[%s4726] ss:$4 sm:$0xff]
  %s4728 = scalar_lea.vmem [#allocation2], 1635
  %v4729 = vld [vmem:[%s4728] ss:$4 sm:$0xff]
  %s4730 = scalar_lea.vmem [#allocation2], 1667
  %v4731 = vld [vmem:[%s4730] ss:$4 sm:$0xff]
  %s4732 = scalar_lea.vmem [#allocation2], 1699
  %v4733 = vld [vmem:[%s4732] ss:$4 sm:$0xff]
  %s4734 = scalar_lea.vmem [#allocation2], 1731
  %v4735 = vld [vmem:[%s4734] ss:$4 sm:$0xff]
  %s4736 = scalar_lea.vmem [#allocation2], 1763
  %v4737 = vld [vmem:[%s4736] ss:$4 sm:$0xff]
  %s4738 = scalar_lea.vmem [#allocation2], 1795
  %v4739 = vld [vmem:[%s4738] ss:$4 sm:$0xff]
  %s4740 = scalar_lea.vmem [#allocation2], 1827
  %v4741 = vld [vmem:[%s4740] ss:$4 sm:$0xff]
  %s4742 = scalar_lea.vmem [#allocation2], 1859
  %v4743 = vld [vmem:[%s4742] ss:$4 sm:$0xff]
  %s4744 = scalar_lea.vmem [#allocation2], 1891
  %v4745 = vld [vmem:[%s4744] ss:$4 sm:$0xff]
  %s4746 = scalar_lea.vmem [#allocation2], 1923
  %v4747 = vld [vmem:[%s4746] ss:$4 sm:$0xff]
  %s4748 = scalar_lea.vmem [#allocation2], 1955
  %v4749 = vld [vmem:[%s4748] ss:$4 sm:$0xff]
  %s4750 = scalar_lea.vmem [#allocation2], 1987
  %v4751 = vld [vmem:[%s4750] ss:$4 sm:$0xff]
  %s4752 = scalar_lea.vmem [#allocation2], 2019
  %v4753 = vld [vmem:[%s4752] ss:$4 sm:$0xff]
  %v4754 = vmax.f32 %v4499, %v4627
  %v4755 = vmax.f32 %v4501, %v4629
  %v4756 = vmax.f32 %v4503, %v4631
  %v4757 = vmax.f32 %v4505, %v4633
  %v4758 = vmax.f32 %v4507, %v4635
  %v4759 = vmax.f32 %v4509, %v4637
  %v4760 = vmax.f32 %v4511, %v4639
  %v4761 = vmax.f32 %v4513, %v4641
  %v4762 = vmax.f32 %v4515, %v4643
  %v4763 = vmax.f32 %v4517, %v4645
  %v4764 = vmax.f32 %v4519, %v4647
  %v4765 = vmax.f32 %v4521, %v4649
  %v4766 = vmax.f32 %v4523, %v4651
  %v4767 = vmax.f32 %v4525, %v4653
  %v4768 = vmax.f32 %v4527, %v4655
  %v4769 = vmax.f32 %v4529, %v4657
  %v4770 = vmax.f32 %v4531, %v4659
  %v4771 = vmax.f32 %v4533, %v4661
  %v4772 = vmax.f32 %v4535, %v4663
  %v4773 = vmax.f32 %v4537, %v4665
  %v4774 = vmax.f32 %v4539, %v4667
  %v4775 = vmax.f32 %v4541, %v4669
  %v4776 = vmax.f32 %v4543, %v4671
  %v4777 = vmax.f32 %v4545, %v4673
  %v4778 = vmax.f32 %v4547, %v4675
  %v4779 = vmax.f32 %v4549, %v4677
  %v4780 = vmax.f32 %v4551, %v4679
  %v4781 = vmax.f32 %v4553, %v4681
  %v4782 = vmax.f32 %v4555, %v4683
  %v4783 = vmax.f32 %v4557, %v4685
  %v4784 = vmax.f32 %v4559, %v4687
  %v4785 = vmax.f32 %v4561, %v4689
  %v4786 = vmax.f32 %v4563, %v4691
  %v4787 = vmax.f32 %v4565, %v4693
  %v4788 = vmax.f32 %v4567, %v4695
  %v4789 = vmax.f32 %v4569, %v4697
  %v4790 = vmax.f32 %v4571, %v4699
  %v4791 = vmax.f32 %v4573, %v4701
  %v4792 = vmax.f32 %v4575, %v4703
  %v4793 = vmax.f32 %v4577, %v4705
  %v4794 = vmax.f32 %v4579, %v4707
  %v4795 = vmax.f32 %v4581, %v4709
  %v4796 = vmax.f32 %v4583, %v4711
  %v4797 = vmax.f32 %v4585, %v4713
  %v4798 = vmax.f32 %v4587, %v4715
  %v4799 = vmax.f32 %v4589, %v4717
  %v4800 = vmax.f32 %v4591, %v4719
  %v4801 = vmax.f32 %v4593, %v4721
  %v4802 = vmax.f32 %v4595, %v4723
  %v4803 = vmax.f32 %v4597, %v4725
  %v4804 = vmax.f32 %v4599, %v4727
  %v4805 = vmax.f32 %v4601, %v4729
  %v4806 = vmax.f32 %v4603, %v4731
  %v4807 = vmax.f32 %v4605, %v4733
  %v4808 = vmax.f32 %v4607, %v4735
  %v4809 = vmax.f32 %v4609, %v4737
  %v4810 = vmax.f32 %v4611, %v4739
  %v4811 = vmax.f32 %v4613, %v4741
  %v4812 = vmax.f32 %v4615, %v4743
  %v4813 = vmax.f32 %v4617, %v4745
  %v4814 = vmax.f32 %v4619, %v4747
  %v4815 = vmax.f32 %v4621, %v4749
  %v4816 = vmax.f32 %v4623, %v4751
  %v4817 = vmax.f32 %v4625, %v4753
  %v4818 = vmax.f32 %v4434, %v4754
  %v4819 = vmax.f32 %v4435, %v4755
  %v4820 = vmax.f32 %v4436, %v4756
  %v4821 = vmax.f32 %v4437, %v4757
  %v4822 = vmax.f32 %v4438, %v4758
  %v4823 = vmax.f32 %v4439, %v4759
  %v4824 = vmax.f32 %v4440, %v4760
  %v4825 = vmax.f32 %v4441, %v4761
  %v4826 = vmax.f32 %v4442, %v4762
  %v4827 = vmax.f32 %v4443, %v4763
  %v4828 = vmax.f32 %v4444, %v4764
  %v4829 = vmax.f32 %v4445, %v4765
  %v4830 = vmax.f32 %v4446, %v4766
  %v4831 = vmax.f32 %v4447, %v4767
  %v4832 = vmax.f32 %v4448, %v4768
  %v4833 = vmax.f32 %v4449, %v4769
  %v4834 = vmax.f32 %v4450, %v4770
  %v4835 = vmax.f32 %v4451, %v4771
  %v4836 = vmax.f32 %v4452, %v4772
  %v4837 = vmax.f32 %v4453, %v4773
  %v4838 = vmax.f32 %v4454, %v4774
  %v4839 = vmax.f32 %v4455, %v4775
  %v4840 = vmax.f32 %v4456, %v4776
  %v4841 = vmax.f32 %v4457, %v4777
  %v4842 = vmax.f32 %v4458, %v4778
  %v4843 = vmax.f32 %v4459, %v4779
  %v4844 = vmax.f32 %v4460, %v4780
  %v4845 = vmax.f32 %v4461, %v4781
  %v4846 = vmax.f32 %v4462, %v4782
  %v4847 = vmax.f32 %v4463, %v4783
  %v4848 = vmax.f32 %v4464, %v4784
  %v4849 = vmax.f32 %v4465, %v4785
  %v4850 = vmax.f32 %v4466, %v4786
  %v4851 = vmax.f32 %v4467, %v4787
  %v4852 = vmax.f32 %v4468, %v4788
  %v4853 = vmax.f32 %v4469, %v4789
  %v4854 = vmax.f32 %v4470, %v4790
  %v4855 = vmax.f32 %v4471, %v4791
  %v4856 = vmax.f32 %v4472, %v4792
  %v4857 = vmax.f32 %v4473, %v4793
  %v4858 = vmax.f32 %v4474, %v4794
  %v4859 = vmax.f32 %v4475, %v4795
  %v4860 = vmax.f32 %v4476, %v4796
  %v4861 = vmax.f32 %v4477, %v4797
  %v4862 = vmax.f32 %v4478, %v4798
  %v4863 = vmax.f32 %v4479, %v4799
  %v4864 = vmax.f32 %v4480, %v4800
  %v4865 = vmax.f32 %v4481, %v4801
  %v4866 = vmax.f32 %v4482, %v4802
  %v4867 = vmax.f32 %v4483, %v4803
  %v4868 = vmax.f32 %v4484, %v4804
  %v4869 = vmax.f32 %v4485, %v4805
  %v4870 = vmax.f32 %v4486, %v4806
  %v4871 = vmax.f32 %v4487, %v4807
  %v4872 = vmax.f32 %v4488, %v4808
  %v4873 = vmax.f32 %v4489, %v4809
  %v4874 = vmax.f32 %v4490, %v4810
  %v4875 = vmax.f32 %v4491, %v4811
  %v4876 = vmax.f32 %v4492, %v4812
  %v4877 = vmax.f32 %v4493, %v4813
  %v4878 = vmax.f32 %v4494, %v4814
  %v4879 = vmax.f32 %v4495, %v4815
  %v4880 = vmax.f32 %v4496, %v4816
  %v4881 = vmax.f32 %v4497, %v4817
  %vm4882 = vcmp.ge.f32.partialorder %v4818, 0.0
  %vm4883 = vcmp.ge.f32.partialorder %v4819, 0.0
  %vm4884 = vcmp.ge.f32.partialorder %v4820, 0.0
  %vm4885 = vcmp.ge.f32.partialorder %v4821, 0.0
  %vm4886 = vcmp.ge.f32.partialorder %v4822, 0.0
  %vm4887 = vcmp.ge.f32.partialorder %v4823, 0.0
  %vm4888 = vcmp.ge.f32.partialorder %v4824, 0.0
  %vm4889 = vcmp.ge.f32.partialorder %v4825, 0.0
  %vm4890 = vcmp.ge.f32.partialorder %v4826, 0.0
  %vm4891 = vcmp.ge.f32.partialorder %v4827, 0.0
  %vm4892 = vcmp.ge.f32.partialorder %v4828, 0.0
  %vm4893 = vcmp.ge.f32.partialorder %v4829, 0.0
  %vm4894 = vcmp.ge.f32.partialorder %v4830, 0.0
  %vm4895 = vcmp.ge.f32.partialorder %v4831, 0.0
  %vm4896 = vcmp.ge.f32.partialorder %v4832, 0.0
  %vm4897 = vcmp.ge.f32.partialorder %v4833, 0.0
  %vm4898 = vcmp.ge.f32.partialorder %v4834, 0.0
  %vm4899 = vcmp.ge.f32.partialorder %v4835, 0.0
  %vm4900 = vcmp.ge.f32.partialorder %v4836, 0.0
  %vm4901 = vcmp.ge.f32.partialorder %v4837, 0.0
  %vm4902 = vcmp.ge.f32.partialorder %v4838, 0.0
  %vm4903 = vcmp.ge.f32.partialorder %v4839, 0.0
  %vm4904 = vcmp.ge.f32.partialorder %v4840, 0.0
  %vm4905 = vcmp.ge.f32.partialorder %v4841, 0.0
  %vm4906 = vcmp.ge.f32.partialorder %v4842, 0.0
  %vm4907 = vcmp.ge.f32.partialorder %v4843, 0.0
  %vm4908 = vcmp.ge.f32.partialorder %v4844, 0.0
  %vm4909 = vcmp.ge.f32.partialorder %v4845, 0.0
  %vm4910 = vcmp.ge.f32.partialorder %v4846, 0.0
  %vm4911 = vcmp.ge.f32.partialorder %v4847, 0.0
  %vm4912 = vcmp.ge.f32.partialorder %v4848, 0.0
  %vm4913 = vcmp.ge.f32.partialorder %v4849, 0.0
  %vm4914 = vcmp.ge.f32.partialorder %v4850, 0.0
  %vm4915 = vcmp.ge.f32.partialorder %v4851, 0.0
  %vm4916 = vcmp.ge.f32.partialorder %v4852, 0.0
  %vm4917 = vcmp.ge.f32.partialorder %v4853, 0.0
  %vm4918 = vcmp.ge.f32.partialorder %v4854, 0.0
  %vm4919 = vcmp.ge.f32.partialorder %v4855, 0.0
  %vm4920 = vcmp.ge.f32.partialorder %v4856, 0.0
  %vm4921 = vcmp.ge.f32.partialorder %v4857, 0.0
  %vm4922 = vcmp.ge.f32.partialorder %v4858, 0.0
  %vm4923 = vcmp.ge.f32.partialorder %v4859, 0.0
  %vm4924 = vcmp.ge.f32.partialorder %v4860, 0.0
  %vm4925 = vcmp.ge.f32.partialorder %v4861, 0.0
  %vm4926 = vcmp.ge.f32.partialorder %v4862, 0.0
  %vm4927 = vcmp.ge.f32.partialorder %v4863, 0.0
  %vm4928 = vcmp.ge.f32.partialorder %v4864, 0.0
  %vm4929 = vcmp.ge.f32.partialorder %v4865, 0.0
  %vm4930 = vcmp.ge.f32.partialorder %v4866, 0.0
  %vm4931 = vcmp.ge.f32.partialorder %v4867, 0.0
  %vm4932 = vcmp.ge.f32.partialorder %v4868, 0.0
  %vm4933 = vcmp.ge.f32.partialorder %v4869, 0.0
  %vm4934 = vcmp.ge.f32.partialorder %v4870, 0.0
  %vm4935 = vcmp.ge.f32.partialorder %v4871, 0.0
  %vm4936 = vcmp.ge.f32.partialorder %v4872, 0.0
  %vm4937 = vcmp.ge.f32.partialorder %v4873, 0.0
  %vm4938 = vcmp.ge.f32.partialorder %v4874, 0.0
  %vm4939 = vcmp.ge.f32.partialorder %v4875, 0.0
  %vm4940 = vcmp.ge.f32.partialorder %v4876, 0.0
  %vm4941 = vcmp.ge.f32.partialorder %v4877, 0.0
  %vm4942 = vcmp.ge.f32.partialorder %v4878, 0.0
  %vm4943 = vcmp.ge.f32.partialorder %v4879, 0.0
  %vm4944 = vcmp.ge.f32.partialorder %v4880, 0.0
  %vm4945 = vcmp.ge.f32.partialorder %v4881, 0.0
  %v4946 = vmul.f32 %v4818, 0.2
  %v4947 = vmul.f32 %v4819, 0.2
  %v4948 = vmul.f32 %v4820, 0.2
  %v4949 = vmul.f32 %v4821, 0.2
  %v4950 = vmul.f32 %v4822, 0.2
  %v4951 = vmul.f32 %v4823, 0.2
  %v4952 = vmul.f32 %v4824, 0.2
  %v4953 = vmul.f32 %v4825, 0.2
  %v4954 = vmul.f32 %v4826, 0.2
  %v4955 = vmul.f32 %v4827, 0.2
  %v4956 = vmul.f32 %v4828, 0.2
  %v4957 = vmul.f32 %v4829, 0.2
  %v4958 = vmul.f32 %v4830, 0.2
  %v4959 = vmul.f32 %v4831, 0.2
  %v4960 = vmul.f32 %v4832, 0.2
  %v4961 = vmul.f32 %v4833, 0.2
  %v4962 = vmul.f32 %v4834, 0.2
  %v4963 = vmul.f32 %v4835, 0.2
  %v4964 = vmul.f32 %v4836, 0.2
  %v4965 = vmul.f32 %v4837, 0.2
  %v4966 = vmul.f32 %v4838, 0.2
  %v4967 = vmul.f32 %v4839, 0.2
  %v4968 = vmul.f32 %v4840, 0.2
  %v4969 = vmul.f32 %v4841, 0.2
  %v4970 = vmul.f32 %v4842, 0.2
  %v4971 = vmul.f32 %v4843, 0.2
  %v4972 = vmul.f32 %v4844, 0.2
  %v4973 = vmul.f32 %v4845, 0.2
  %v4974 = vmul.f32 %v4846, 0.2
  %v4975 = vmul.f32 %v4847, 0.2
  %v4976 = vmul.f32 %v4848, 0.2
  %v4977 = vmul.f32 %v4849, 0.2
  %v4978 = vmul.f32 %v4850, 0.2
  %v4979 = vmul.f32 %v4851, 0.2
  %v4980 = vmul.f32 %v4852, 0.2
  %v4981 = vmul.f32 %v4853, 0.2
  %v4982 = vmul.f32 %v4854, 0.2
  %v4983 = vmul.f32 %v4855, 0.2
  %v4984 = vmul.f32 %v4856, 0.2
  %v4985 = vmul.f32 %v4857, 0.2
  %v4986 = vmul.f32 %v4858, 0.2
  %v4987 = vmul.f32 %v4859, 0.2
  %v4988 = vmul.f32 %v4860, 0.2
  %v4989 = vmul.f32 %v4861, 0.2
  %v4990 = vmul.f32 %v4862, 0.2
  %v4991 = vmul.f32 %v4863, 0.2
  %v4992 = vmul.f32 %v4864, 0.2
  %v4993 = vmul.f32 %v4865, 0.2
  %v4994 = vmul.f32 %v4866, 0.2
  %v4995 = vmul.f32 %v4867, 0.2
  %v4996 = vmul.f32 %v4868, 0.2
  %v4997 = vmul.f32 %v4869, 0.2
  %v4998 = vmul.f32 %v4870, 0.2
  %v4999 = vmul.f32 %v4871, 0.2
  %v5000 = vmul.f32 %v4872, 0.2
  %v5001 = vmul.f32 %v4873, 0.2
  %v5002 = vmul.f32 %v4874, 0.2
  %v5003 = vmul.f32 %v4875, 0.2
  %v5004 = vmul.f32 %v4876, 0.2
  %v5005 = vmul.f32 %v4877, 0.2
  %v5006 = vmul.f32 %v4878, 0.2
  %v5007 = vmul.f32 %v4879, 0.2
  %v5008 = vmul.f32 %v4880, 0.2
  %v5009 = vmul.f32 %v4881, 0.2
  %v5010 = vsel %vm4882, %v4818, %v4946
  %v5011 = vsel %vm4883, %v4819, %v4947
  %v5012 = vsel %vm4884, %v4820, %v4948
  %v5013 = vsel %vm4885, %v4821, %v4949
  %v5014 = vsel %vm4886, %v4822, %v4950
  %v5015 = vsel %vm4887, %v4823, %v4951
  %v5016 = vsel %vm4888, %v4824, %v4952
  %v5017 = vsel %vm4889, %v4825, %v4953
  %v5018 = vsel %vm4890, %v4826, %v4954
  %v5019 = vsel %vm4891, %v4827, %v4955
  %v5020 = vsel %vm4892, %v4828, %v4956
  %v5021 = vsel %vm4893, %v4829, %v4957
  %v5022 = vsel %vm4894, %v4830, %v4958
  %v5023 = vsel %vm4895, %v4831, %v4959
  %v5024 = vsel %vm4896, %v4832, %v4960
  %v5025 = vsel %vm4897, %v4833, %v4961
  %v5026 = vsel %vm4898, %v4834, %v4962
  %v5027 = vsel %vm4899, %v4835, %v4963
  %v5028 = vsel %vm4900, %v4836, %v4964
  %v5029 = vsel %vm4901, %v4837, %v4965
  %v5030 = vsel %vm4902, %v4838, %v4966
  %v5031 = vsel %vm4903, %v4839, %v4967
  %v5032 = vsel %vm4904, %v4840, %v4968
  %v5033 = vsel %vm4905, %v4841, %v4969
  %v5034 = vsel %vm4906, %v4842, %v4970
  %v5035 = vsel %vm4907, %v4843, %v4971
  %v5036 = vsel %vm4908, %v4844, %v4972
  %v5037 = vsel %vm4909, %v4845, %v4973
  %v5038 = vsel %vm4910, %v4846, %v4974
  %v5039 = vsel %vm4911, %v4847, %v4975
  %v5040 = vsel %vm4912, %v4848, %v4976
  %v5041 = vsel %vm4913, %v4849, %v4977
  %v5042 = vsel %vm4914, %v4850, %v4978
  %v5043 = vsel %vm4915, %v4851, %v4979
  %v5044 = vsel %vm4916, %v4852, %v4980
  %v5045 = vsel %vm4917, %v4853, %v4981
  %v5046 = vsel %vm4918, %v4854, %v4982
  %v5047 = vsel %vm4919, %v4855, %v4983
  %v5048 = vsel %vm4920, %v4856, %v4984
  %v5049 = vsel %vm4921, %v4857, %v4985
  %v5050 = vsel %vm4922, %v4858, %v4986
  %v5051 = vsel %vm4923, %v4859, %v4987
  %v5052 = vsel %vm4924, %v4860, %v4988
  %v5053 = vsel %vm4925, %v4861, %v4989
  %v5054 = vsel %vm4926, %v4862, %v4990
  %v5055 = vsel %vm4927, %v4863, %v4991
  %v5056 = vsel %vm4928, %v4864, %v4992
  %v5057 = vsel %vm4929, %v4865, %v4993
  %v5058 = vsel %vm4930, %v4866, %v4994
  %v5059 = vsel %vm4931, %v4867, %v4995
  %v5060 = vsel %vm4932, %v4868, %v4996
  %v5061 = vsel %vm4933, %v4869, %v4997
  %v5062 = vsel %vm4934, %v4870, %v4998
  %v5063 = vsel %vm4935, %v4871, %v4999
  %v5064 = vsel %vm4936, %v4872, %v5000
  %v5065 = vsel %vm4937, %v4873, %v5001
  %v5066 = vsel %vm4938, %v4874, %v5002
  %v5067 = vsel %vm4939, %v4875, %v5003
  %v5068 = vsel %vm4940, %v4876, %v5004
  %v5069 = vsel %vm4941, %v4877, %v5005
  %v5070 = vsel %vm4942, %v4878, %v5006
  %v5071 = vsel %vm4943, %v4879, %v5007
  %v5072 = vsel %vm4944, %v4880, %v5008
  %v5073 = vsel %vm4945, %v4881, %v5009
  %5074 = vst.msk [vmem:[%s5] sm:$0xff] %vm1842, %v5010
  %5075 = vst.msk [vmem:[%s5 + $0x8] sm:$0xff] %vm1842, %v5011
  %5076 = vst.msk [vmem:[%s5 + $0x10] sm:$0xff] %vm1842, %v5012
  %5077 = vst.msk [vmem:[%s5 + $0x18] sm:$0xff] %vm1842, %v5013
  %5078 = vst.msk [vmem:[%s5 + $0x20] sm:$0xff] %vm1842, %v5014
  %5079 = vst.msk [vmem:[%s5 + $0x28] sm:$0xff] %vm1842, %v5015
  %5080 = vst.msk [vmem:[%s5 + $0x30] sm:$0xff] %vm1842, %v5016
  %5081 = vst.msk [vmem:[%s5 + $0x38] sm:$0xff] %vm1842, %v5017
  %5082 = vst.msk [vmem:[%s5 + $0x40] sm:$0xff] %vm1842, %v5018
  %5083 = vst.msk [vmem:[%s5 + $0x48] sm:$0xff] %vm1842, %v5019
  %5084 = vst.msk [vmem:[%s5 + $0x50] sm:$0xff] %vm1842, %v5020
  %5085 = vst.msk [vmem:[%s5 + $0x58] sm:$0xff] %vm1842, %v5021
  %5086 = vst.msk [vmem:[%s5 + $0x60] sm:$0xff] %vm1842, %v5022
  %5087 = vst.msk [vmem:[%s5 + $0x68] sm:$0xff] %vm1842, %v5023
  %5088 = vst.msk [vmem:[%s5 + $0x70] sm:$0xff] %vm1842, %v5024
  %5089 = vst.msk [vmem:[%s5 + $0x78] sm:$0xff] %vm1842, %v5025
  %5090 = vst.msk [vmem:[%s5 + $0x80] sm:$0xff] %vm1842, %v5026
  %5091 = vst.msk [vmem:[%s5 + $0x88] sm:$0xff] %vm1842, %v5027
  %5092 = vst.msk [vmem:[%s5 + $0x90] sm:$0xff] %vm1842, %v5028
  %5093 = vst.msk [vmem:[%s5 + $0x98] sm:$0xff] %vm1842, %v5029
  %5094 = vst.msk [vmem:[%s5 + $0xa0] sm:$0xff] %vm1842, %v5030
  %5095 = vst.msk [vmem:[%s5 + $0xa8] sm:$0xff] %vm1842, %v5031
  %5096 = vst.msk [vmem:[%s5 + $0xb0] sm:$0xff] %vm1842, %v5032
  %5097 = vst.msk [vmem:[%s5 + $0xb8] sm:$0xff] %vm1842, %v5033
  %5098 = vst.msk [vmem:[%s5 + $0xc0] sm:$0xff] %vm1842, %v5034
  %5099 = vst.msk [vmem:[%s5 + $0xc8] sm:$0xff] %vm1842, %v5035
  %5100 = vst.msk [vmem:[%s5 + $0xd0] sm:$0xff] %vm1842, %v5036
  %5101 = vst.msk [vmem:[%s5 + $0xd8] sm:$0xff] %vm1842, %v5037
  %5102 = vst.msk [vmem:[%s5 + $0xe0] sm:$0xff] %vm1842, %v5038
  %5103 = vst.msk [vmem:[%s5 + $0xe8] sm:$0xff] %vm1842, %v5039
  %5104 = vst.msk [vmem:[%s5 + $0xf0] sm:$0xff] %vm1842, %v5040
  %5105 = vst.msk [vmem:[%s5 + $0xf8] sm:$0xff] %vm1842, %v5041
  %5106 = vst.msk [vmem:[%s5 + $0x100] sm:$0xff] %vm1842, %v5042
  %5107 = vst.msk [vmem:[%s5 + $0x108] sm:$0xff] %vm1842, %v5043
  %5108 = vst.msk [vmem:[%s5 + $0x110] sm:$0xff] %vm1842, %v5044
  %5109 = vst.msk [vmem:[%s5 + $0x118] sm:$0xff] %vm1842, %v5045
  %5110 = vst.msk [vmem:[%s5 + $0x120] sm:$0xff] %vm1842, %v5046
  %5111 = vst.msk [vmem:[%s5 + $0x128] sm:$0xff] %vm1842, %v5047
  %5112 = vst.msk [vmem:[%s5 + $0x130] sm:$0xff] %vm1842, %v5048
  %5113 = vst.msk [vmem:[%s5 + $0x138] sm:$0xff] %vm1842, %v5049
  %5114 = vst.msk [vmem:[%s5 + $0x140] sm:$0xff] %vm1842, %v5050
  %5115 = vst.msk [vmem:[%s5 + $0x148] sm:$0xff] %vm1842, %v5051
  %5116 = vst.msk [vmem:[%s5 + $0x150] sm:$0xff] %vm1842, %v5052
  %5117 = vst.msk [vmem:[%s5 + $0x158] sm:$0xff] %vm1842, %v5053
  %5118 = vst.msk [vmem:[%s5 + $0x160] sm:$0xff] %vm1842, %v5054
  %5119 = vst.msk [vmem:[%s5 + $0x168] sm:$0xff] %vm1842, %v5055
  %5120 = vst.msk [vmem:[%s5 + $0x170] sm:$0xff] %vm1842, %v5056
  %5121 = vst.msk [vmem:[%s5 + $0x178] sm:$0xff] %vm1842, %v5057
  %5122 = vst.msk [vmem:[%s5 + $0x180] sm:$0xff] %vm1842, %v5058
  %5123 = vst.msk [vmem:[%s5 + $0x188] sm:$0xff] %vm1842, %v5059
  %5124 = vst.msk [vmem:[%s5 + $0x190] sm:$0xff] %vm1842, %v5060
  %5125 = vst.msk [vmem:[%s5 + $0x198] sm:$0xff] %vm1842, %v5061
  %5126 = vst.msk [vmem:[%s5 + $0x1a0] sm:$0xff] %vm1842, %v5062
  %5127 = vst.msk [vmem:[%s5 + $0x1a8] sm:$0xff] %vm1842, %v5063
  %5128 = vst.msk [vmem:[%s5 + $0x1b0] sm:$0xff] %vm1842, %v5064
  %5129 = vst.msk [vmem:[%s5 + $0x1b8] sm:$0xff] %vm1842, %v5065
  %5130 = vst.msk [vmem:[%s5 + $0x1c0] sm:$0xff] %vm1842, %v5066
  %5131 = vst.msk [vmem:[%s5 + $0x1c8] sm:$0xff] %vm1842, %v5067
  %5132 = vst.msk [vmem:[%s5 + $0x1d0] sm:$0xff] %vm1842, %v5068
  %5133 = vst.msk [vmem:[%s5 + $0x1d8] sm:$0xff] %vm1842, %v5069
  %5134 = vst.msk [vmem:[%s5 + $0x1e0] sm:$0xff] %vm1842, %v5070
  %5135 = vst.msk [vmem:[%s5 + $0x1e8] sm:$0xff] %vm1842, %v5071
  %5136 = vst.msk [vmem:[%s5 + $0x1f0] sm:$0xff] %vm1842, %v5072
  %5137 = vst.msk [vmem:[%s5 + $0x1f8] sm:$0xff] %vm1842, %v5073
  // Predicated region
  $region22: #{discriminator_forward.6} parent=0 // pred_check
    _
  $region23: #{discriminator_forward.6} parent=0 // pred_check_branch
    %5139 = sbr.rel (0) target = $region25
  $region24: #{discriminator_forward.6} parent=0 // pred_region
    _
  $region25: #{discriminator_forward.6} parent=0 // pred_fallthru
    _
  // Predicated region
  $region26: #{discriminator_forward.6} parent=0 // pred_check
    _
  $region27: #{discriminator_forward.6} parent=0 // pred_check_branch
    %5141 = sbr.rel (0) target = $region29
  $region28: #{discriminator_forward.6} parent=0 // pred_region
    _
  $region29: #{discriminator_forward.6} parent=0 // pred_fallthru
    _

// kernel: discriminator_forward.7
$region0: #{discriminator_forward.7}
  #allocation0 [shape = 'u32[]', space=smem, size = 0x4, offset = 0x4, fixed_abs, tag = 'smem constant byte address 0x4 - core index']
  #allocation1 [shape = 'u32[72,128]{1,0:T(1,128)}', space=vmem, size = 0x9000, scoped, tag = 'internal scratch']
  #allocation2 [shape = 'f32[512,64]{1,0:T(8,128)}', space=vmem, size = 0x40000, scoped, tag = 'scratch operand']
  %s0 = inlined_call_operand.vmem [shape: f32[512,576], index: 0, kind: input, shape index: {}]
  %s1 = inlined_call_operand.vmem [shape: f32[576,64], index: 1, kind: input, shape index: {}]
  %s2 = inlined_call_operand.vmem [shape: f32[1,64], index: 2, kind: input, shape index: {}]
  %s3 = inlined_call_operand.vmem [shape: f32[1,64], index: 3, kind: input, shape index: {}]
  %s4 = inlined_call_operand.vmem [shape: f32[1,64], index: 4, kind: input, shape index: {}]
  %s5 = inlined_call_operand.vmem [shape: f32[128,64], index: 5, kind: output, shape index: {}]
  %s6 = sld [smem:[#allocation0]]
  $region30: #{discriminator_forward.7} parent=0
    _
  %s8 = ssub.s32 1, %s6
  %s9 = scalar_select 0, %s8, %s6
  // Predicated region
  $region2: #{discriminator_forward.7} parent=0 // pred_check
    _
  $region3: #{discriminator_forward.7} parent=0 // pred_check_branch
    %11 = sbr.rel (0) target = $region5
  $region4: #{discriminator_forward.7} parent=0 // pred_region
    _
  $region5: #{discriminator_forward.7} parent=0 // pred_fallthru
    _
  // Predicated region
  $region6: #{discriminator_forward.7} parent=0 // pred_check
    _
  $region7: #{discriminator_forward.7} parent=0 // pred_check_branch
    %13 = sbr.rel (0) target = $region9
  $region8: #{discriminator_forward.7} parent=0 // pred_region
    _
  $region9: #{discriminator_forward.7} parent=0 // pred_fallthru
    _
  // Predicated region
  $region10: #{discriminator_forward.7} parent=0 // pred_check
    _
  $region11: #{discriminator_forward.7} parent=0 // pred_check_branch
    %15 = sbr.rel (0) target = $region13
  $region12: #{discriminator_forward.7} parent=0 // pred_region
    _
  $region13: #{discriminator_forward.7} parent=0 // pred_fallthru
    _
  // Predicated region
  $region14: #{discriminator_forward.7} parent=0 // pred_check
    _
  $region15: #{discriminator_forward.7} parent=0 // pred_check_branch
    %17 = sbr.rel (0) target = $region17
  $region16: #{discriminator_forward.7} parent=0 // pred_region
    _
  $region17: #{discriminator_forward.7} parent=0 // pred_fallthru
    _
  // Predicated region
  $region18: #{discriminator_forward.7} parent=0 // pred_check
    _
  $region19: #{discriminator_forward.7} parent=0 // pred_check_branch
    %19 = sbr.rel (0) target = $region21
  $region20: #{discriminator_forward.7} parent=0 // pred_region
    _
  $region21: #{discriminator_forward.7} parent=0 // pred_fallthru
    _
  %v20 = vld [vmem:[%s0] sm:$0xff]
  %v21 = vld [vmem:[%s0 + $0x8] sm:$0xff]
  %v22 = vld [vmem:[%s0 + $0x10] sm:$0xff]
  %v23 = vld [vmem:[%s0 + $0x18] sm:$0xff]
  %v24 = vld [vmem:[%s0 + $0x20] sm:$0xff]
  %v25 = vld [vmem:[%s0 + $0x28] sm:$0xff]
  %v26 = vld [vmem:[%s0 + $0x30] sm:$0xff]
  %v27 = vld [vmem:[%s0 + $0x38] sm:$0xff]
  %v28 = vld [vmem:[%s0 + $0x40] sm:$0xff]
  %v29 = vld [vmem:[%s0 + $0x48] sm:$0xff]
  %v30 = vld [vmem:[%s0 + $0x50] sm:$0xff]
  %v31 = vld [vmem:[%s0 + $0x58] sm:$0xff]
  %v32 = vld [vmem:[%s0 + $0x60] sm:$0xff]
  %v33 = vld [vmem:[%s0 + $0x68] sm:$0xff]
  %v34 = vld [vmem:[%s0 + $0x70] sm:$0xff]
  %v35 = vld [vmem:[%s0 + $0x78] sm:$0xff]
  %v36 = vld [vmem:[%s0 + $0x80] sm:$0xff]
  %v37 = vld [vmem:[%s0 + $0x88] sm:$0xff]
  %v38 = vld [vmem:[%s0 + $0x90] sm:$0xff]
  %v39 = vld [vmem:[%s0 + $0x98] sm:$0xff]
  %v40 = vld [vmem:[%s0 + $0xa0] sm:$0xff]
  %v41 = vld [vmem:[%s0 + $0xa8] sm:$0xff]
  %v42 = vld [vmem:[%s0 + $0xb0] sm:$0xff]
  %v43 = vld [vmem:[%s0 + $0xb8] sm:$0xff]
  %v44 = vld [vmem:[%s0 + $0xc0] sm:$0xff]
  %v45 = vld [vmem:[%s0 + $0xc8] sm:$0xff]
  %v46 = vld [vmem:[%s0 + $0xd0] sm:$0xff]
  %v47 = vld [vmem:[%s0 + $0xd8] sm:$0xff]
  %v48 = vld [vmem:[%s0 + $0xe0] sm:$0xff]
  %v49 = vld [vmem:[%s0 + $0xe8] sm:$0xff]
  %v50 = vld [vmem:[%s0 + $0xf0] sm:$0xff]
  %v51 = vld [vmem:[%s0 + $0xf8] sm:$0xff]
  %v52 = vld [vmem:[%s0 + $0x100] sm:$0xff]
  %v53 = vld [vmem:[%s0 + $0x108] sm:$0xff]
  %v54 = vld [vmem:[%s0 + $0x110] sm:$0xff]
  %v55 = vld [vmem:[%s0 + $0x118] sm:$0xff]
  %v56 = vld [vmem:[%s0 + $0x120] sm:$0xff]
  %v57 = vld [vmem:[%s0 + $0x128] sm:$0xff]
  %v58 = vld [vmem:[%s0 + $0x130] sm:$0xff]
  %v59 = vld [vmem:[%s0 + $0x138] sm:$0xff]
  %v60 = vld [vmem:[%s0 + $0x140] sm:$0xff]
  %v61 = vld [vmem:[%s0 + $0x148] sm:$0xff]
  %v62 = vld [vmem:[%s0 + $0x150] sm:$0xff]
  %v63 = vld [vmem:[%s0 + $0x158] sm:$0xff]
  %v64 = vld [vmem:[%s0 + $0x160] sm:$0xff]
  %v65 = vld [vmem:[%s0 + $0x168] sm:$0xff]
  %v66 = vld [vmem:[%s0 + $0x170] sm:$0xff]
  %v67 = vld [vmem:[%s0 + $0x178] sm:$0xff]
  %v68 = vld [vmem:[%s0 + $0x180] sm:$0xff]
  %v69 = vld [vmem:[%s0 + $0x188] sm:$0xff]
  %v70 = vld [vmem:[%s0 + $0x190] sm:$0xff]
  %v71 = vld [vmem:[%s0 + $0x198] sm:$0xff]
  %v72 = vld [vmem:[%s0 + $0x1a0] sm:$0xff]
  %v73 = vld [vmem:[%s0 + $0x1a8] sm:$0xff]
  %v74 = vld [vmem:[%s0 + $0x1b0] sm:$0xff]
  %v75 = vld [vmem:[%s0 + $0x1b8] sm:$0xff]
  %v76 = vld [vmem:[%s0 + $0x1c0] sm:$0xff]
  %v77 = vld [vmem:[%s0 + $0x1c8] sm:$0xff]
  %v78 = vld [vmem:[%s0 + $0x1d0] sm:$0xff]
  %v79 = vld [vmem:[%s0 + $0x1d8] sm:$0xff]
  %v80 = vld [vmem:[%s0 + $0x1e0] sm:$0xff]
  %v81 = vld [vmem:[%s0 + $0x1e8] sm:$0xff]
  %v82 = vld [vmem:[%s0 + $0x1f0] sm:$0xff]
  %v83 = vld [vmem:[%s0 + $0x1f8] sm:$0xff]
  %v84 = vld [vmem:[%s0 + $0x200] sm:$0xff]
  %v85 = vld [vmem:[%s0 + $0x208] sm:$0xff]
  %v86 = vld [vmem:[%s0 + $0x210] sm:$0xff]
  %v87 = vld [vmem:[%s0 + $0x218] sm:$0xff]
  %v88 = vld [vmem:[%s0 + $0x220] sm:$0xff]
  %v89 = vld [vmem:[%s0 + $0x228] sm:$0xff]
  %v90 = vld [vmem:[%s0 + $0x230] sm:$0xff]
  %v91 = vld [vmem:[%s0 + $0x238] sm:$0xff]
  %v92 = vld [vmem:[%s0 + $0x240] sm:$0xff]
  %v93 = vld [vmem:[%s0 + $0x248] sm:$0xff]
  %v94 = vld [vmem:[%s0 + $0x250] sm:$0xff]
  %v95 = vld [vmem:[%s0 + $0x258] sm:$0xff]
  %v96 = vld [vmem:[%s0 + $0x260] sm:$0xff]
  %v97 = vld [vmem:[%s0 + $0x268] sm:$0xff]
  %v98 = vld [vmem:[%s0 + $0x270] sm:$0xff]
  %v99 = vld [vmem:[%s0 + $0x278] sm:$0xff]
  %v100 = vld [vmem:[%s0 + $0x280] sm:$0xff]
  %v101 = vld [vmem:[%s0 + $0x288] sm:$0xff]
  %v102 = vld [vmem:[%s0 + $0x290] sm:$0xff]
  %v103 = vld [vmem:[%s0 + $0x298] sm:$0xff]
  %v104 = vld [vmem:[%s0 + $0x2a0] sm:$0xff]
  %v105 = vld [vmem:[%s0 + $0x2a8] sm:$0xff]
  %v106 = vld [vmem:[%s0 + $0x2b0] sm:$0xff]
  %v107 = vld [vmem:[%s0 + $0x2b8] sm:$0xff]
  %v108 = vld [vmem:[%s0 + $0x2c0] sm:$0xff]
  %v109 = vld [vmem:[%s0 + $0x2c8] sm:$0xff]
  %v110 = vld [vmem:[%s0 + $0x2d0] sm:$0xff]
  %v111 = vld [vmem:[%s0 + $0x2d8] sm:$0xff]
  %v112 = vld [vmem:[%s0 + $0x2e0] sm:$0xff]
  %v113 = vld [vmem:[%s0 + $0x2e8] sm:$0xff]
  %v114 = vld [vmem:[%s0 + $0x2f0] sm:$0xff]
  %v115 = vld [vmem:[%s0 + $0x2f8] sm:$0xff]
  %v116 = vld [vmem:[%s0 + $0x300] sm:$0xff]
  %v117 = vld [vmem:[%s0 + $0x308] sm:$0xff]
  %v118 = vld [vmem:[%s0 + $0x310] sm:$0xff]
  %v119 = vld [vmem:[%s0 + $0x318] sm:$0xff]
  %v120 = vld [vmem:[%s0 + $0x320] sm:$0xff]
  %v121 = vld [vmem:[%s0 + $0x328] sm:$0xff]
  %v122 = vld [vmem:[%s0 + $0x330] sm:$0xff]
  %v123 = vld [vmem:[%s0 + $0x338] sm:$0xff]
  %v124 = vld [vmem:[%s0 + $0x340] sm:$0xff]
  %v125 = vld [vmem:[%s0 + $0x348] sm:$0xff]
  %v126 = vld [vmem:[%s0 + $0x350] sm:$0xff]
  %v127 = vld [vmem:[%s0 + $0x358] sm:$0xff]
  %v128 = vld [vmem:[%s0 + $0x360] sm:$0xff]
  %v129 = vld [vmem:[%s0 + $0x368] sm:$0xff]
  %v130 = vld [vmem:[%s0 + $0x370] sm:$0xff]
  %v131 = vld [vmem:[%s0 + $0x378] sm:$0xff]
  %v132 = vld [vmem:[%s0 + $0x380] sm:$0xff]
  %v133 = vld [vmem:[%s0 + $0x388] sm:$0xff]
  %v134 = vld [vmem:[%s0 + $0x390] sm:$0xff]
  %v135 = vld [vmem:[%s0 + $0x398] sm:$0xff]
  %v136 = vld [vmem:[%s0 + $0x3a0] sm:$0xff]
  %v137 = vld [vmem:[%s0 + $0x3a8] sm:$0xff]
  %v138 = vld [vmem:[%s0 + $0x3b0] sm:$0xff]
  %v139 = vld [vmem:[%s0 + $0x3b8] sm:$0xff]
  %v140 = vld [vmem:[%s0 + $0x3c0] sm:$0xff]
  %v141 = vld [vmem:[%s0 + $0x3c8] sm:$0xff]
  %v142 = vld [vmem:[%s0 + $0x3d0] sm:$0xff]
  %v143 = vld [vmem:[%s0 + $0x3d8] sm:$0xff]
  %v144 = vld [vmem:[%s0 + $0x3e0] sm:$0xff]
  %v145 = vld [vmem:[%s0 + $0x3e8] sm:$0xff]
  %v146 = vld [vmem:[%s0 + $0x3f0] sm:$0xff]
  %v147 = vld [vmem:[%s0 + $0x3f8] sm:$0xff]
  %v148 = vld [vmem:[%s0 + $0x400] sm:$0xff]
  %v149 = vld [vmem:[%s0 + $0x408] sm:$0xff]
  %v150 = vld [vmem:[%s0 + $0x410] sm:$0xff]
  %v151 = vld [vmem:[%s0 + $0x418] sm:$0xff]
  %v152 = vld [vmem:[%s0 + $0x420] sm:$0xff]
  %v153 = vld [vmem:[%s0 + $0x428] sm:$0xff]
  %v154 = vld [vmem:[%s0 + $0x430] sm:$0xff]
  %v155 = vld [vmem:[%s0 + $0x438] sm:$0xff]
  %v156 = vld [vmem:[%s0 + $0x440] sm:$0xff]
  %v157 = vld [vmem:[%s0 + $0x448] sm:$0xff]
  %v158 = vld [vmem:[%s0 + $0x450] sm:$0xff]
  %v159 = vld [vmem:[%s0 + $0x458] sm:$0xff]
  %v160 = vld [vmem:[%s0 + $0x460] sm:$0xff]
  %v161 = vld [vmem:[%s0 + $0x468] sm:$0xff]
  %v162 = vld [vmem:[%s0 + $0x470] sm:$0xff]
  %v163 = vld [vmem:[%s0 + $0x478] sm:$0xff]
  %v164 = vld [vmem:[%s0 + $0x480] sm:$0xff]
  %v165 = vld [vmem:[%s0 + $0x488] sm:$0xff]
  %v166 = vld [vmem:[%s0 + $0x490] sm:$0xff]
  %v167 = vld [vmem:[%s0 + $0x498] sm:$0xff]
  %v168 = vld [vmem:[%s0 + $0x4a0] sm:$0xff]
  %v169 = vld [vmem:[%s0 + $0x4a8] sm:$0xff]
  %v170 = vld [vmem:[%s0 + $0x4b0] sm:$0xff]
  %v171 = vld [vmem:[%s0 + $0x4b8] sm:$0xff]
  %v172 = vld [vmem:[%s0 + $0x4c0] sm:$0xff]
  %v173 = vld [vmem:[%s0 + $0x4c8] sm:$0xff]
  %v174 = vld [vmem:[%s0 + $0x4d0] sm:$0xff]
  %v175 = vld [vmem:[%s0 + $0x4d8] sm:$0xff]
  %v176 = vld [vmem:[%s0 + $0x4e0] sm:$0xff]
  %v177 = vld [vmem:[%s0 + $0x4e8] sm:$0xff]
  %v178 = vld [vmem:[%s0 + $0x4f0] sm:$0xff]
  %v179 = vld [vmem:[%s0 + $0x4f8] sm:$0xff]
  %v180 = vld [vmem:[%s0 + $0x500] sm:$0xff]
  %v181 = vld [vmem:[%s0 + $0x508] sm:$0xff]
  %v182 = vld [vmem:[%s0 + $0x510] sm:$0xff]
  %v183 = vld [vmem:[%s0 + $0x518] sm:$0xff]
  %v184 = vld [vmem:[%s0 + $0x520] sm:$0xff]
  %v185 = vld [vmem:[%s0 + $0x528] sm:$0xff]
  %v186 = vld [vmem:[%s0 + $0x530] sm:$0xff]
  %v187 = vld [vmem:[%s0 + $0x538] sm:$0xff]
  %v188 = vld [vmem:[%s0 + $0x540] sm:$0xff]
  %v189 = vld [vmem:[%s0 + $0x548] sm:$0xff]
  %v190 = vld [vmem:[%s0 + $0x550] sm:$0xff]
  %v191 = vld [vmem:[%s0 + $0x558] sm:$0xff]
  %v192 = vld [vmem:[%s0 + $0x560] sm:$0xff]
  %v193 = vld [vmem:[%s0 + $0x568] sm:$0xff]
  %v194 = vld [vmem:[%s0 + $0x570] sm:$0xff]
  %v195 = vld [vmem:[%s0 + $0x578] sm:$0xff]
  %v196 = vld [vmem:[%s0 + $0x580] sm:$0xff]
  %v197 = vld [vmem:[%s0 + $0x588] sm:$0xff]
  %v198 = vld [vmem:[%s0 + $0x590] sm:$0xff]
  %v199 = vld [vmem:[%s0 + $0x598] sm:$0xff]
  %v200 = vld [vmem:[%s0 + $0x5a0] sm:$0xff]
  %v201 = vld [vmem:[%s0 + $0x5a8] sm:$0xff]
  %v202 = vld [vmem:[%s0 + $0x5b0] sm:$0xff]
  %v203 = vld [vmem:[%s0 + $0x5b8] sm:$0xff]
  %v204 = vld [vmem:[%s0 + $0x5c0] sm:$0xff]
  %v205 = vld [vmem:[%s0 + $0x5c8] sm:$0xff]
  %v206 = vld [vmem:[%s0 + $0x5d0] sm:$0xff]
  %v207 = vld [vmem:[%s0 + $0x5d8] sm:$0xff]
  %v208 = vld [vmem:[%s0 + $0x5e0] sm:$0xff]
  %v209 = vld [vmem:[%s0 + $0x5e8] sm:$0xff]
  %v210 = vld [vmem:[%s0 + $0x5f0] sm:$0xff]
  %v211 = vld [vmem:[%s0 + $0x5f8] sm:$0xff]
  %v212 = vld [vmem:[%s0 + $0x600] sm:$0xff]
  %v213 = vld [vmem:[%s0 + $0x608] sm:$0xff]
  %v214 = vld [vmem:[%s0 + $0x610] sm:$0xff]
  %v215 = vld [vmem:[%s0 + $0x618] sm:$0xff]
  %v216 = vld [vmem:[%s0 + $0x620] sm:$0xff]
  %v217 = vld [vmem:[%s0 + $0x628] sm:$0xff]
  %v218 = vld [vmem:[%s0 + $0x630] sm:$0xff]
  %v219 = vld [vmem:[%s0 + $0x638] sm:$0xff]
  %v220 = vld [vmem:[%s0 + $0x640] sm:$0xff]
  %v221 = vld [vmem:[%s0 + $0x648] sm:$0xff]
  %v222 = vld [vmem:[%s0 + $0x650] sm:$0xff]
  %v223 = vld [vmem:[%s0 + $0x658] sm:$0xff]
  %v224 = vld [vmem:[%s0 + $0x660] sm:$0xff]
  %v225 = vld [vmem:[%s0 + $0x668] sm:$0xff]
  %v226 = vld [vmem:[%s0 + $0x670] sm:$0xff]
  %v227 = vld [vmem:[%s0 + $0x678] sm:$0xff]
  %v228 = vld [vmem:[%s0 + $0x680] sm:$0xff]
  %v229 = vld [vmem:[%s0 + $0x688] sm:$0xff]
  %v230 = vld [vmem:[%s0 + $0x690] sm:$0xff]
  %v231 = vld [vmem:[%s0 + $0x698] sm:$0xff]
  %v232 = vld [vmem:[%s0 + $0x6a0] sm:$0xff]
  %v233 = vld [vmem:[%s0 + $0x6a8] sm:$0xff]
  %v234 = vld [vmem:[%s0 + $0x6b0] sm:$0xff]
  %v235 = vld [vmem:[%s0 + $0x6b8] sm:$0xff]
  %v236 = vld [vmem:[%s0 + $0x6c0] sm:$0xff]
  %v237 = vld [vmem:[%s0 + $0x6c8] sm:$0xff]
  %v238 = vld [vmem:[%s0 + $0x6d0] sm:$0xff]
  %v239 = vld [vmem:[%s0 + $0x6d8] sm:$0xff]
  %v240 = vld [vmem:[%s0 + $0x6e0] sm:$0xff]
  %v241 = vld [vmem:[%s0 + $0x6e8] sm:$0xff]
  %v242 = vld [vmem:[%s0 + $0x6f0] sm:$0xff]
  %v243 = vld [vmem:[%s0 + $0x6f8] sm:$0xff]
  %v244 = vld [vmem:[%s0 + $0x700] sm:$0xff]
  %v245 = vld [vmem:[%s0 + $0x708] sm:$0xff]
  %v246 = vld [vmem:[%s0 + $0x710] sm:$0xff]
  %v247 = vld [vmem:[%s0 + $0x718] sm:$0xff]
  %v248 = vld [vmem:[%s0 + $0x720] sm:$0xff]
  %v249 = vld [vmem:[%s0 + $0x728] sm:$0xff]
  %v250 = vld [vmem:[%s0 + $0x730] sm:$0xff]
  %v251 = vld [vmem:[%s0 + $0x738] sm:$0xff]
  %v252 = vld [vmem:[%s0 + $0x740] sm:$0xff]
  %v253 = vld [vmem:[%s0 + $0x748] sm:$0xff]
  %v254 = vld [vmem:[%s0 + $0x750] sm:$0xff]
  %v255 = vld [vmem:[%s0 + $0x758] sm:$0xff]
  %v256 = vld [vmem:[%s0 + $0x760] sm:$0xff]
  %v257 = vld [vmem:[%s0 + $0x768] sm:$0xff]
  %v258 = vld [vmem:[%s0 + $0x770] sm:$0xff]
  %v259 = vld [vmem:[%s0 + $0x778] sm:$0xff]
  %v260 = vld [vmem:[%s0 + $0x780] sm:$0xff]
  %v261 = vld [vmem:[%s0 + $0x788] sm:$0xff]
  %v262 = vld [vmem:[%s0 + $0x790] sm:$0xff]
  %v263 = vld [vmem:[%s0 + $0x798] sm:$0xff]
  %v264 = vld [vmem:[%s0 + $0x7a0] sm:$0xff]
  %v265 = vld [vmem:[%s0 + $0x7a8] sm:$0xff]
  %v266 = vld [vmem:[%s0 + $0x7b0] sm:$0xff]
  %v267 = vld [vmem:[%s0 + $0x7b8] sm:$0xff]
  %v268 = vld [vmem:[%s0 + $0x7c0] sm:$0xff]
  %v269 = vld [vmem:[%s0 + $0x7c8] sm:$0xff]
  %v270 = vld [vmem:[%s0 + $0x7d0] sm:$0xff]
  %v271 = vld [vmem:[%s0 + $0x7d8] sm:$0xff]
  %v272 = vld [vmem:[%s0 + $0x7e0] sm:$0xff]
  %v273 = vld [vmem:[%s0 + $0x7e8] sm:$0xff]
  %v274 = vld [vmem:[%s0 + $0x7f0] sm:$0xff]
  %v275 = vld [vmem:[%s0 + $0x7f8] sm:$0xff]
  %v276 = vld [vmem:[%s0 + $0x800] sm:$0xff]
  %v277 = vld [vmem:[%s0 + $0x808] sm:$0xff]
  %v278 = vld [vmem:[%s0 + $0x810] sm:$0xff]
  %v279 = vld [vmem:[%s0 + $0x818] sm:$0xff]
  %v280 = vld [vmem:[%s0 + $0x820] sm:$0xff]
  %v281 = vld [vmem:[%s0 + $0x828] sm:$0xff]
  %v282 = vld [vmem:[%s0 + $0x830] sm:$0xff]
  %v283 = vld [vmem:[%s0 + $0x838] sm:$0xff]
  %v284 = vld [vmem:[%s0 + $0x840] sm:$0xff]
  %v285 = vld [vmem:[%s0 + $0x848] sm:$0xff]
  %v286 = vld [vmem:[%s0 + $0x850] sm:$0xff]
  %v287 = vld [vmem:[%s0 + $0x858] sm:$0xff]
  %v288 = vld [vmem:[%s0 + $0x860] sm:$0xff]
  %v289 = vld [vmem:[%s0 + $0x868] sm:$0xff]
  %v290 = vld [vmem:[%s0 + $0x870] sm:$0xff]
  %v291 = vld [vmem:[%s0 + $0x878] sm:$0xff]
  %v292 = vld [vmem:[%s0 + $0x880] sm:$0xff]
  %v293 = vld [vmem:[%s0 + $0x888] sm:$0xff]
  %v294 = vld [vmem:[%s0 + $0x890] sm:$0xff]
  %v295 = vld [vmem:[%s0 + $0x898] sm:$0xff]
  %v296 = vld [vmem:[%s0 + $0x8a0] sm:$0xff]
  %v297 = vld [vmem:[%s0 + $0x8a8] sm:$0xff]
  %v298 = vld [vmem:[%s0 + $0x8b0] sm:$0xff]
  %v299 = vld [vmem:[%s0 + $0x8b8] sm:$0xff]
  %v300 = vld [vmem:[%s0 + $0x8c0] sm:$0xff]
  %v301 = vld [vmem:[%s0 + $0x8c8] sm:$0xff]
  %v302 = vld [vmem:[%s0 + $0x8d0] sm:$0xff]
  %v303 = vld [vmem:[%s0 + $0x8d8] sm:$0xff]
  %v304 = vld [vmem:[%s0 + $0x8e0] sm:$0xff]
  %v305 = vld [vmem:[%s0 + $0x8e8] sm:$0xff]
  %v306 = vld [vmem:[%s0 + $0x8f0] sm:$0xff]
  %v307 = vld [vmem:[%s0 + $0x8f8] sm:$0xff]
  %v308 = vld [vmem:[%s0 + $0x900] sm:$0xff]
  %v309 = vld [vmem:[%s0 + $0x908] sm:$0xff]
  %v310 = vld [vmem:[%s0 + $0x910] sm:$0xff]
  %v311 = vld [vmem:[%s0 + $0x918] sm:$0xff]
  %v312 = vld [vmem:[%s0 + $0x920] sm:$0xff]
  %v313 = vld [vmem:[%s0 + $0x928] sm:$0xff]
  %v314 = vld [vmem:[%s0 + $0x930] sm:$0xff]
  %v315 = vld [vmem:[%s0 + $0x938] sm:$0xff]
  %v316 = vld [vmem:[%s0 + $0x940] sm:$0xff]
  %v317 = vld [vmem:[%s0 + $0x948] sm:$0xff]
  %v318 = vld [vmem:[%s0 + $0x950] sm:$0xff]
  %v319 = vld [vmem:[%s0 + $0x958] sm:$0xff]
  %v320 = vld [vmem:[%s0 + $0x960] sm:$0xff]
  %v321 = vld [vmem:[%s0 + $0x968] sm:$0xff]
  %v322 = vld [vmem:[%s0 + $0x970] sm:$0xff]
  %v323 = vld [vmem:[%s0 + $0x978] sm:$0xff]
  %v324 = vld [vmem:[%s0 + $0x980] sm:$0xff]
  %v325 = vld [vmem:[%s0 + $0x988] sm:$0xff]
  %v326 = vld [vmem:[%s0 + $0x990] sm:$0xff]
  %v327 = vld [vmem:[%s0 + $0x998] sm:$0xff]
  %v328 = vld [vmem:[%s0 + $0x9a0] sm:$0xff]
  %v329 = vld [vmem:[%s0 + $0x9a8] sm:$0xff]
  %v330 = vld [vmem:[%s0 + $0x9b0] sm:$0xff]
  %v331 = vld [vmem:[%s0 + $0x9b8] sm:$0xff]
  %v332 = vld [vmem:[%s0 + $0x9c0] sm:$0xff]
  %v333 = vld [vmem:[%s0 + $0x9c8] sm:$0xff]
  %v334 = vld [vmem:[%s0 + $0x9d0] sm:$0xff]
  %v335 = vld [vmem:[%s0 + $0x9d8] sm:$0xff]
  %v336 = vld [vmem:[%s0 + $0x9e0] sm:$0xff]
  %v337 = vld [vmem:[%s0 + $0x9e8] sm:$0xff]
  %v338 = vld [vmem:[%s0 + $0x9f0] sm:$0xff]
  %v339 = vld [vmem:[%s0 + $0x9f8] sm:$0xff]
  %v340 = vld [vmem:[%s1] sm:$0xff]
  %v341 = vld [vmem:[%s1 + $0x8] sm:$0xff]
  %v342 = vld [vmem:[%s1 + $0x10] sm:$0xff]
  %v343 = vld [vmem:[%s1 + $0x18] sm:$0xff]
  %v344 = vld [vmem:[%s1 + $0x20] sm:$0xff]
  %v345 = vld [vmem:[%s1 + $0x28] sm:$0xff]
  %v346 = vld [vmem:[%s1 + $0x30] sm:$0xff]
  %v347 = vld [vmem:[%s1 + $0x38] sm:$0xff]
  %v348 = vld [vmem:[%s1 + $0x40] sm:$0xff]
  %v349 = vld [vmem:[%s1 + $0x48] sm:$0xff]
  %v350 = vld [vmem:[%s1 + $0x50] sm:$0xff]
  %v351 = vld [vmem:[%s1 + $0x58] sm:$0xff]
  %v352 = vld [vmem:[%s1 + $0x60] sm:$0xff]
  %v353 = vld [vmem:[%s1 + $0x68] sm:$0xff]
  %v354 = vld [vmem:[%s1 + $0x70] sm:$0xff]
  %v355 = vld [vmem:[%s1 + $0x78] sm:$0xff]
  %v356 = vld [vmem:[%s1 + $0x80] sm:$0xff]
  %v357 = vld [vmem:[%s1 + $0x88] sm:$0xff]
  %v358 = vld [vmem:[%s1 + $0x90] sm:$0xff]
  %v359 = vld [vmem:[%s1 + $0x98] sm:$0xff]
  %v360 = vld [vmem:[%s1 + $0xa0] sm:$0xff]
  %v361 = vld [vmem:[%s1 + $0xa8] sm:$0xff]
  %v362 = vld [vmem:[%s1 + $0xb0] sm:$0xff]
  %v363 = vld [vmem:[%s1 + $0xb8] sm:$0xff]
  %v364 = vld [vmem:[%s1 + $0xc0] sm:$0xff]
  %v365 = vld [vmem:[%s1 + $0xc8] sm:$0xff]
  %v366 = vld [vmem:[%s1 + $0xd0] sm:$0xff]
  %v367 = vld [vmem:[%s1 + $0xd8] sm:$0xff]
  %v368 = vld [vmem:[%s1 + $0xe0] sm:$0xff]
  %v369 = vld [vmem:[%s1 + $0xe8] sm:$0xff]
  %v370 = vld [vmem:[%s1 + $0xf0] sm:$0xff]
  %v371 = vld [vmem:[%s1 + $0xf8] sm:$0xff]
  %v372 = vld [vmem:[%s1 + $0x100] sm:$0xff]
  %v373 = vld [vmem:[%s1 + $0x108] sm:$0xff]
  %v374 = vld [vmem:[%s1 + $0x110] sm:$0xff]
  %v375 = vld [vmem:[%s1 + $0x118] sm:$0xff]
  %v376 = vld [vmem:[%s1 + $0x120] sm:$0xff]
  %v377 = vld [vmem:[%s1 + $0x128] sm:$0xff]
  %v378 = vld [vmem:[%s1 + $0x130] sm:$0xff]
  %v379 = vld [vmem:[%s1 + $0x138] sm:$0xff]
  %v380 = vld [vmem:[%s1 + $0x140] sm:$0xff]
  %v381 = vld [vmem:[%s1 + $0x148] sm:$0xff]
  %v382 = vld [vmem:[%s1 + $0x150] sm:$0xff]
  %v383 = vld [vmem:[%s1 + $0x158] sm:$0xff]
  %v384 = vld [vmem:[%s1 + $0x160] sm:$0xff]
  %v385 = vld [vmem:[%s1 + $0x168] sm:$0xff]
  %v386 = vld [vmem:[%s1 + $0x170] sm:$0xff]
  %v387 = vld [vmem:[%s1 + $0x178] sm:$0xff]
  %v388 = vld [vmem:[%s1 + $0x180] sm:$0xff]
  %v389 = vld [vmem:[%s1 + $0x188] sm:$0xff]
  %v390 = vld [vmem:[%s1 + $0x190] sm:$0xff]
  %v391 = vld [vmem:[%s1 + $0x198] sm:$0xff]
  %v392 = vld [vmem:[%s1 + $0x1a0] sm:$0xff]
  %v393 = vld [vmem:[%s1 + $0x1a8] sm:$0xff]
  %v394 = vld [vmem:[%s1 + $0x1b0] sm:$0xff]
  %v395 = vld [vmem:[%s1 + $0x1b8] sm:$0xff]
  %v396 = vld [vmem:[%s1 + $0x1c0] sm:$0xff]
  %v397 = vld [vmem:[%s1 + $0x1c8] sm:$0xff]
  %v398 = vld [vmem:[%s1 + $0x1d0] sm:$0xff]
  %v399 = vld [vmem:[%s1 + $0x1d8] sm:$0xff]
  %v400 = vld [vmem:[%s1 + $0x1e0] sm:$0xff]
  %v401 = vld [vmem:[%s1 + $0x1e8] sm:$0xff]
  %v402 = vld [vmem:[%s1 + $0x1f0] sm:$0xff]
  %v403 = vld [vmem:[%s1 + $0x1f8] sm:$0xff]
  %v404 = vld [vmem:[%s1 + $0x200] sm:$0xff]
  %v405 = vld [vmem:[%s1 + $0x208] sm:$0xff]
  %v406 = vld [vmem:[%s1 + $0x210] sm:$0xff]
  %v407 = vld [vmem:[%s1 + $0x218] sm:$0xff]
  %v408 = vld [vmem:[%s1 + $0x220] sm:$0xff]
  %v409 = vld [vmem:[%s1 + $0x228] sm:$0xff]
  %v410 = vld [vmem:[%s1 + $0x230] sm:$0xff]
  %v411 = vld [vmem:[%s1 + $0x238] sm:$0xff]
  %v412 = vld [vmem:[%s2] sm:$0x1]
  %v414 = vperm.slane %v412, 0
  %vm416 = vcmask 523264
  %v418 = vsel %vm416, %v24, 0
  %v421 = vsel %vm416, %v29, 0
  %v424 = vsel %vm416, %v34, 0
  %v427 = vsel %vm416, %v39, 0
  %v430 = vsel %vm416, %v44, 0
  %v433 = vsel %vm416, %v49, 0
  %v436 = vsel %vm416, %v54, 0
  %v439 = vsel %vm416, %v59, 0
  %v442 = vsel %vm416, %v64, 0
  %v445 = vsel %vm416, %v69, 0
  %v448 = vsel %vm416, %v74, 0
  %v451 = vsel %vm416, %v79, 0
  %v454 = vsel %vm416, %v84, 0
  %v457 = vsel %vm416, %v89, 0
  %v460 = vsel %vm416, %v94, 0
  %v463 = vsel %vm416, %v99, 0
  %v466 = vsel %vm416, %v104, 0
  %v469 = vsel %vm416, %v109, 0
  %v472 = vsel %vm416, %v114, 0
  %v475 = vsel %vm416, %v119, 0
  %v478 = vsel %vm416, %v124, 0
  %v481 = vsel %vm416, %v129, 0
  %v484 = vsel %vm416, %v134, 0
  %v487 = vsel %vm416, %v139, 0
  %v490 = vsel %vm416, %v144, 0
  %v493 = vsel %vm416, %v149, 0
  %v496 = vsel %vm416, %v154, 0
  %v499 = vsel %vm416, %v159, 0
  %v502 = vsel %vm416, %v164, 0
  %v505 = vsel %vm416, %v169, 0
  %v508 = vsel %vm416, %v174, 0
  %v511 = vsel %vm416, %v179, 0
  %v514 = vsel %vm416, %v184, 0
  %v517 = vsel %vm416, %v189, 0
  %v520 = vsel %vm416, %v194, 0
  %v523 = vsel %vm416, %v199, 0
  %v526 = vsel %vm416, %v204, 0
  %v529 = vsel %vm416, %v209, 0
  %v532 = vsel %vm416, %v214, 0
  %v535 = vsel %vm416, %v219, 0
  %v538 = vsel %vm416, %v224, 0
  %v541 = vsel %vm416, %v229, 0
  %v544 = vsel %vm416, %v234, 0
  %v547 = vsel %vm416, %v239, 0
  %v550 = vsel %vm416, %v244, 0
  %v553 = vsel %vm416, %v249, 0
  %v556 = vsel %vm416, %v254, 0
  %v559 = vsel %vm416, %v259, 0
  %v562 = vsel %vm416, %v264, 0
  %v565 = vsel %vm416, %v269, 0
  %v568 = vsel %vm416, %v274, 0
  %v571 = vsel %vm416, %v279, 0
  %v574 = vsel %vm416, %v284, 0
  %v577 = vsel %vm416, %v289, 0
  %v580 = vsel %vm416, %v294, 0
  %v583 = vsel %vm416, %v299, 0
  %v586 = vsel %vm416, %v304, 0
  %v589 = vsel %vm416, %v309, 0
  %v592 = vsel %vm416, %v314, 0
  %v595 = vsel %vm416, %v319, 0
  %v598 = vsel %vm416, %v324, 0
  %v601 = vsel %vm416, %v329, 0
  %v604 = vsel %vm416, %v334, 0
  %v607 = vsel %vm416, %v339, 0
  %609 = vmatpush.msra.mxu0 %v355
  %610 = vmatpush.msra.mxu0 %v354
  %611 = vmatpush.msra.mxu0 %v353
  %612 = vmatpush.msra.mxu0 %v352
  %613 = vmatpush.msra.mxu0 %v351
  %614 = vmatpush.msra.mxu0 %v350
  %615 = vmatpush.msra.mxu0 %v349
  %616 = vmatpush.msra.mxu0 %v348
  %617 = vmatpush.msra.mxu0 %v347
  %618 = vmatpush.msra.mxu0 %v346
  %619 = vmatpush.msra.mxu0 %v345
  %620 = vmatpush.msra.mxu0 %v344
  %621 = vmatpush.msra.mxu0 %v343
  %622 = vmatpush.msra.mxu0 %v342
  %623 = vmatpush.msra.mxu0 %v341
  %624 = vmatpush.msra.mxu0 %v340
  %625 = vmatmul.f32.gmra.mxu0 %v20
  %v626 = vpop.f32.mrf.mxu0
  %v627 = vadd.f32 %v414, %v626
  %628 = vmatmul.f32.gmra.mxu0 %v25
  %v629 = vpop.f32.mrf.mxu0
  %v630 = vadd.f32 %v414, %v629
  %631 = vmatmul.f32.gmra.mxu0 %v30
  %v632 = vpop.f32.mrf.mxu0
  %v633 = vadd.f32 %v414, %v632
  %634 = vmatmul.f32.gmra.mxu0 %v35
  %v635 = vpop.f32.mrf.mxu0
  %v636 = vadd.f32 %v414, %v635
  %637 = vmatmul.f32.gmra.mxu0 %v40
  %v638 = vpop.f32.mrf.mxu0
  %v639 = vadd.f32 %v414, %v638
  %640 = vmatmul.f32.gmra.mxu0 %v45
  %v641 = vpop.f32.mrf.mxu0
  %v642 = vadd.f32 %v414, %v641
  %643 = vmatmul.f32.gmra.mxu0 %v50
  %v644 = vpop.f32.mrf.mxu0
  %v645 = vadd.f32 %v414, %v644
  %646 = vmatmul.f32.gmra.mxu0 %v55
  %v647 = vpop.f32.mrf.mxu0
  %v648 = vadd.f32 %v414, %v647
  %649 = vmatmul.f32.gmra.mxu0 %v60
  %v650 = vpop.f32.mrf.mxu0
  %v651 = vadd.f32 %v414, %v650
  %652 = vmatmul.f32.gmra.mxu0 %v65
  %v653 = vpop.f32.mrf.mxu0
  %v654 = vadd.f32 %v414, %v653
  %655 = vmatmul.f32.gmra.mxu0 %v70
  %v656 = vpop.f32.mrf.mxu0
  %v657 = vadd.f32 %v414, %v656
  %658 = vmatmul.f32.gmra.mxu0 %v75
  %v659 = vpop.f32.mrf.mxu0
  %v660 = vadd.f32 %v414, %v659
  %661 = vmatmul.f32.gmra.mxu0 %v80
  %v662 = vpop.f32.mrf.mxu0
  %v663 = vadd.f32 %v414, %v662
  %664 = vmatmul.f32.gmra.mxu0 %v85
  %v665 = vpop.f32.mrf.mxu0
  %v666 = vadd.f32 %v414, %v665
  %667 = vmatmul.f32.gmra.mxu0 %v90
  %v668 = vpop.f32.mrf.mxu0
  %v669 = vadd.f32 %v414, %v668
  %670 = vmatmul.f32.gmra.mxu0 %v95
  %v671 = vpop.f32.mrf.mxu0
  %v672 = vadd.f32 %v414, %v671
  %673 = vmatmul.f32.gmra.mxu0 %v100
  %v674 = vpop.f32.mrf.mxu0
  %v675 = vadd.f32 %v414, %v674
  %676 = vmatmul.f32.gmra.mxu0 %v105
  %v677 = vpop.f32.mrf.mxu0
  %v678 = vadd.f32 %v414, %v677
  %679 = vmatmul.f32.gmra.mxu0 %v110
  %v680 = vpop.f32.mrf.mxu0
  %v681 = vadd.f32 %v414, %v680
  %682 = vmatmul.f32.gmra.mxu0 %v115
  %v683 = vpop.f32.mrf.mxu0
  %v684 = vadd.f32 %v414, %v683
  %685 = vmatmul.f32.gmra.mxu0 %v120
  %v686 = vpop.f32.mrf.mxu0
  %v687 = vadd.f32 %v414, %v686
  %688 = vmatmul.f32.gmra.mxu0 %v125
  %v689 = vpop.f32.mrf.mxu0
  %v690 = vadd.f32 %v414, %v689
  %691 = vmatmul.f32.gmra.mxu0 %v130
  %v692 = vpop.f32.mrf.mxu0
  %v693 = vadd.f32 %v414, %v692
  %694 = vmatmul.f32.gmra.mxu0 %v135
  %v695 = vpop.f32.mrf.mxu0
  %v696 = vadd.f32 %v414, %v695
  %697 = vmatmul.f32.gmra.mxu0 %v140
  %v698 = vpop.f32.mrf.mxu0
  %v699 = vadd.f32 %v414, %v698
  %700 = vmatmul.f32.gmra.mxu0 %v145
  %v701 = vpop.f32.mrf.mxu0
  %v702 = vadd.f32 %v414, %v701
  %703 = vmatmul.f32.gmra.mxu0 %v150
  %v704 = vpop.f32.mrf.mxu0
  %v705 = vadd.f32 %v414, %v704
  %706 = vmatmul.f32.gmra.mxu0 %v155
  %v707 = vpop.f32.mrf.mxu0
  %v708 = vadd.f32 %v414, %v707
  %709 = vmatmul.f32.gmra.mxu0 %v160
  %v710 = vpop.f32.mrf.mxu0
  %v711 = vadd.f32 %v414, %v710
  %712 = vmatmul.f32.gmra.mxu0 %v165
  %v713 = vpop.f32.mrf.mxu0
  %v714 = vadd.f32 %v414, %v713
  %715 = vmatmul.f32.gmra.mxu0 %v170
  %v716 = vpop.f32.mrf.mxu0
  %v717 = vadd.f32 %v414, %v716
  %718 = vmatmul.f32.gmra.mxu0 %v175
  %v719 = vpop.f32.mrf.mxu0
  %v720 = vadd.f32 %v414, %v719
  %721 = vmatmul.f32.gmra.mxu0 %v180
  %v722 = vpop.f32.mrf.mxu0
  %v723 = vadd.f32 %v414, %v722
  %724 = vmatmul.f32.gmra.mxu0 %v185
  %v725 = vpop.f32.mrf.mxu0
  %v726 = vadd.f32 %v414, %v725
  %727 = vmatmul.f32.gmra.mxu0 %v190
  %v728 = vpop.f32.mrf.mxu0
  %v729 = vadd.f32 %v414, %v728
  %730 = vmatmul.f32.gmra.mxu0 %v195
  %v731 = vpop.f32.mrf.mxu0
  %v732 = vadd.f32 %v414, %v731
  %733 = vmatmul.f32.gmra.mxu0 %v200
  %v734 = vpop.f32.mrf.mxu0
  %v735 = vadd.f32 %v414, %v734
  %736 = vmatmul.f32.gmra.mxu0 %v205
  %v737 = vpop.f32.mrf.mxu0
  %v738 = vadd.f32 %v414, %v737
  %739 = vmatmul.f32.gmra.mxu0 %v210
  %v740 = vpop.f32.mrf.mxu0
  %v741 = vadd.f32 %v414, %v740
  %742 = vmatmul.f32.gmra.mxu0 %v215
  %v743 = vpop.f32.mrf.mxu0
  %v744 = vadd.f32 %v414, %v743
  %745 = vmatmul.f32.gmra.mxu0 %v220
  %v746 = vpop.f32.mrf.mxu0
  %v747 = vadd.f32 %v414, %v746
  %748 = vmatmul.f32.gmra.mxu0 %v225
  %v749 = vpop.f32.mrf.mxu0
  %v750 = vadd.f32 %v414, %v749
  %751 = vmatmul.f32.gmra.mxu0 %v230
  %v752 = vpop.f32.mrf.mxu0
  %v753 = vadd.f32 %v414, %v752
  %754 = vmatmul.f32.gmra.mxu0 %v235
  %v755 = vpop.f32.mrf.mxu0
  %v756 = vadd.f32 %v414, %v755
  %757 = vmatmul.f32.gmra.mxu0 %v240
  %v758 = vpop.f32.mrf.mxu0
  %v759 = vadd.f32 %v414, %v758
  %760 = vmatmul.f32.gmra.mxu0 %v245
  %v761 = vpop.f32.mrf.mxu0
  %v762 = vadd.f32 %v414, %v761
  %763 = vmatmul.f32.gmra.mxu0 %v250
  %v764 = vpop.f32.mrf.mxu0
  %v765 = vadd.f32 %v414, %v764
  %766 = vmatmul.f32.gmra.mxu0 %v255
  %v767 = vpop.f32.mrf.mxu0
  %v768 = vadd.f32 %v414, %v767
  %769 = vmatmul.f32.gmra.mxu0 %v260
  %v770 = vpop.f32.mrf.mxu0
  %v771 = vadd.f32 %v414, %v770
  %772 = vmatmul.f32.gmra.mxu0 %v265
  %v773 = vpop.f32.mrf.mxu0
  %v774 = vadd.f32 %v414, %v773
  %775 = vmatmul.f32.gmra.mxu0 %v270
  %v776 = vpop.f32.mrf.mxu0
  %v777 = vadd.f32 %v414, %v776
  %778 = vmatmul.f32.gmra.mxu0 %v275
  %v779 = vpop.f32.mrf.mxu0
  %v780 = vadd.f32 %v414, %v779
  %781 = vmatmul.f32.gmra.mxu0 %v280
  %v782 = vpop.f32.mrf.mxu0
  %v783 = vadd.f32 %v414, %v782
  %784 = vmatmul.f32.gmra.mxu0 %v285
  %v785 = vpop.f32.mrf.mxu0
  %v786 = vadd.f32 %v414, %v785
  %787 = vmatmul.f32.gmra.mxu0 %v290
  %v788 = vpop.f32.mrf.mxu0
  %v789 = vadd.f32 %v414, %v788
  %790 = vmatmul.f32.gmra.mxu0 %v295
  %v791 = vpop.f32.mrf.mxu0
  %v792 = vadd.f32 %v414, %v791
  %793 = vmatmul.f32.gmra.mxu0 %v300
  %v794 = vpop.f32.mrf.mxu0
  %v795 = vadd.f32 %v414, %v794
  %796 = vmatmul.f32.gmra.mxu0 %v305
  %v797 = vpop.f32.mrf.mxu0
  %v798 = vadd.f32 %v414, %v797
  %799 = vmatmul.f32.gmra.mxu0 %v310
  %v800 = vpop.f32.mrf.mxu0
  %v801 = vadd.f32 %v414, %v800
  %802 = vmatmul.f32.gmra.mxu0 %v315
  %v803 = vpop.f32.mrf.mxu0
  %v804 = vadd.f32 %v414, %v803
  %805 = vmatmul.f32.gmra.mxu0 %v320
  %v806 = vpop.f32.mrf.mxu0
  %v807 = vadd.f32 %v414, %v806
  %808 = vmatmul.f32.gmra.mxu0 %v325
  %v809 = vpop.f32.mrf.mxu0
  %v810 = vadd.f32 %v414, %v809
  %811 = vmatmul.f32.gmra.mxu0 %v330
  %v812 = vpop.f32.mrf.mxu0
  %v813 = vadd.f32 %v414, %v812
  %814 = vmatmul.f32.gmra.mxu0 %v335
  %v815 = vpop.f32.mrf.mxu0
  %v816 = vadd.f32 %v414, %v815
  %817 = vdwg.mxu0
  %818 = vmatpush.msra.mxu0 %v371
  %819 = vmatpush.msra.mxu0 %v370
  %820 = vmatpush.msra.mxu0 %v369
  %821 = vmatpush.msra.mxu0 %v368
  %822 = vmatpush.msra.mxu0 %v367
  %823 = vmatpush.msra.mxu0 %v366
  %824 = vmatpush.msra.mxu0 %v365
  %825 = vmatpush.msra.mxu0 %v364
  %826 = vmatpush.msra.mxu0 %v363
  %827 = vmatpush.msra.mxu0 %v362
  %828 = vmatpush.msra.mxu0 %v361
  %829 = vmatpush.msra.mxu0 %v360
  %830 = vmatpush.msra.mxu0 %v359
  %831 = vmatpush.msra.mxu0 %v358
  %832 = vmatpush.msra.mxu0 %v357
  %833 = vmatpush.msra.mxu0 %v356
  %834 = vmatmul.f32.gmra.mxu0 %v21
  %v835 = vpop.f32.mrf.mxu0
  %v836 = vadd.f32 %v627, %v835
  %837 = vmatmul.f32.gmra.mxu0 %v26
  %v838 = vpop.f32.mrf.mxu0
  %v839 = vadd.f32 %v630, %v838
  %840 = vmatmul.f32.gmra.mxu0 %v31
  %v841 = vpop.f32.mrf.mxu0
  %v842 = vadd.f32 %v633, %v841
  %843 = vmatmul.f32.gmra.mxu0 %v36
  %v844 = vpop.f32.mrf.mxu0
  %v845 = vadd.f32 %v636, %v844
  %846 = vmatmul.f32.gmra.mxu0 %v41
  %v847 = vpop.f32.mrf.mxu0
  %v848 = vadd.f32 %v639, %v847
  %849 = vmatmul.f32.gmra.mxu0 %v46
  %v850 = vpop.f32.mrf.mxu0
  %v851 = vadd.f32 %v642, %v850
  %852 = vmatmul.f32.gmra.mxu0 %v51
  %v853 = vpop.f32.mrf.mxu0
  %v854 = vadd.f32 %v645, %v853
  %855 = vmatmul.f32.gmra.mxu0 %v56
  %v856 = vpop.f32.mrf.mxu0
  %v857 = vadd.f32 %v648, %v856
  %858 = vmatmul.f32.gmra.mxu0 %v61
  %v859 = vpop.f32.mrf.mxu0
  %v860 = vadd.f32 %v651, %v859
  %861 = vmatmul.f32.gmra.mxu0 %v66
  %v862 = vpop.f32.mrf.mxu0
  %v863 = vadd.f32 %v654, %v862
  %864 = vmatmul.f32.gmra.mxu0 %v71
  %v865 = vpop.f32.mrf.mxu0
  %v866 = vadd.f32 %v657, %v865
  %867 = vmatmul.f32.gmra.mxu0 %v76
  %v868 = vpop.f32.mrf.mxu0
  %v869 = vadd.f32 %v660, %v868
  %870 = vmatmul.f32.gmra.mxu0 %v81
  %v871 = vpop.f32.mrf.mxu0
  %v872 = vadd.f32 %v663, %v871
  %873 = vmatmul.f32.gmra.mxu0 %v86
  %v874 = vpop.f32.mrf.mxu0
  %v875 = vadd.f32 %v666, %v874
  %876 = vmatmul.f32.gmra.mxu0 %v91
  %v877 = vpop.f32.mrf.mxu0
  %v878 = vadd.f32 %v669, %v877
  %879 = vmatmul.f32.gmra.mxu0 %v96
  %v880 = vpop.f32.mrf.mxu0
  %v881 = vadd.f32 %v672, %v880
  %882 = vmatmul.f32.gmra.mxu0 %v101
  %v883 = vpop.f32.mrf.mxu0
  %v884 = vadd.f32 %v675, %v883
  %885 = vmatmul.f32.gmra.mxu0 %v106
  %v886 = vpop.f32.mrf.mxu0
  %v887 = vadd.f32 %v678, %v886
  %888 = vmatmul.f32.gmra.mxu0 %v111
  %v889 = vpop.f32.mrf.mxu0
  %v890 = vadd.f32 %v681, %v889
  %891 = vmatmul.f32.gmra.mxu0 %v116
  %v892 = vpop.f32.mrf.mxu0
  %v893 = vadd.f32 %v684, %v892
  %894 = vmatmul.f32.gmra.mxu0 %v121
  %v895 = vpop.f32.mrf.mxu0
  %v896 = vadd.f32 %v687, %v895
  %897 = vmatmul.f32.gmra.mxu0 %v126
  %v898 = vpop.f32.mrf.mxu0
  %v899 = vadd.f32 %v690, %v898
  %900 = vmatmul.f32.gmra.mxu0 %v131
  %v901 = vpop.f32.mrf.mxu0
  %v902 = vadd.f32 %v693, %v901
  %903 = vmatmul.f32.gmra.mxu0 %v136
  %v904 = vpop.f32.mrf.mxu0
  %v905 = vadd.f32 %v696, %v904
  %906 = vmatmul.f32.gmra.mxu0 %v141
  %v907 = vpop.f32.mrf.mxu0
  %v908 = vadd.f32 %v699, %v907
  %909 = vmatmul.f32.gmra.mxu0 %v146
  %v910 = vpop.f32.mrf.mxu0
  %v911 = vadd.f32 %v702, %v910
  %912 = vmatmul.f32.gmra.mxu0 %v151
  %v913 = vpop.f32.mrf.mxu0
  %v914 = vadd.f32 %v705, %v913
  %915 = vmatmul.f32.gmra.mxu0 %v156
  %v916 = vpop.f32.mrf.mxu0
  %v917 = vadd.f32 %v708, %v916
  %918 = vmatmul.f32.gmra.mxu0 %v161
  %v919 = vpop.f32.mrf.mxu0
  %v920 = vadd.f32 %v711, %v919
  %921 = vmatmul.f32.gmra.mxu0 %v166
  %v922 = vpop.f32.mrf.mxu0
  %v923 = vadd.f32 %v714, %v922
  %924 = vmatmul.f32.gmra.mxu0 %v171
  %v925 = vpop.f32.mrf.mxu0
  %v926 = vadd.f32 %v717, %v925
  %927 = vmatmul.f32.gmra.mxu0 %v176
  %v928 = vpop.f32.mrf.mxu0
  %v929 = vadd.f32 %v720, %v928
  %930 = vmatmul.f32.gmra.mxu0 %v181
  %v931 = vpop.f32.mrf.mxu0
  %v932 = vadd.f32 %v723, %v931
  %933 = vmatmul.f32.gmra.mxu0 %v186
  %v934 = vpop.f32.mrf.mxu0
  %v935 = vadd.f32 %v726, %v934
  %936 = vmatmul.f32.gmra.mxu0 %v191
  %v937 = vpop.f32.mrf.mxu0
  %v938 = vadd.f32 %v729, %v937
  %939 = vmatmul.f32.gmra.mxu0 %v196
  %v940 = vpop.f32.mrf.mxu0
  %v941 = vadd.f32 %v732, %v940
  %942 = vmatmul.f32.gmra.mxu0 %v201
  %v943 = vpop.f32.mrf.mxu0
  %v944 = vadd.f32 %v735, %v943
  %945 = vmatmul.f32.gmra.mxu0 %v206
  %v946 = vpop.f32.mrf.mxu0
  %v947 = vadd.f32 %v738, %v946
  %948 = vmatmul.f32.gmra.mxu0 %v211
  %v949 = vpop.f32.mrf.mxu0
  %v950 = vadd.f32 %v741, %v949
  %951 = vmatmul.f32.gmra.mxu0 %v216
  %v952 = vpop.f32.mrf.mxu0
  %v953 = vadd.f32 %v744, %v952
  %954 = vmatmul.f32.gmra.mxu0 %v221
  %v955 = vpop.f32.mrf.mxu0
  %v956 = vadd.f32 %v747, %v955
  %957 = vmatmul.f32.gmra.mxu0 %v226
  %v958 = vpop.f32.mrf.mxu0
  %v959 = vadd.f32 %v750, %v958
  %960 = vmatmul.f32.gmra.mxu0 %v231
  %v961 = vpop.f32.mrf.mxu0
  %v962 = vadd.f32 %v753, %v961
  %963 = vmatmul.f32.gmra.mxu0 %v236
  %v964 = vpop.f32.mrf.mxu0
  %v965 = vadd.f32 %v756, %v964
  %966 = vmatmul.f32.gmra.mxu0 %v241
  %v967 = vpop.f32.mrf.mxu0
  %v968 = vadd.f32 %v759, %v967
  %969 = vmatmul.f32.gmra.mxu0 %v246
  %v970 = vpop.f32.mrf.mxu0
  %v971 = vadd.f32 %v762, %v970
  %972 = vmatmul.f32.gmra.mxu0 %v251
  %v973 = vpop.f32.mrf.mxu0
  %v974 = vadd.f32 %v765, %v973
  %975 = vmatmul.f32.gmra.mxu0 %v256
  %v976 = vpop.f32.mrf.mxu0
  %v977 = vadd.f32 %v768, %v976
  %978 = vmatmul.f32.gmra.mxu0 %v261
  %v979 = vpop.f32.mrf.mxu0
  %v980 = vadd.f32 %v771, %v979
  %981 = vmatmul.f32.gmra.mxu0 %v266
  %v982 = vpop.f32.mrf.mxu0
  %v983 = vadd.f32 %v774, %v982
  %984 = vmatmul.f32.gmra.mxu0 %v271
  %v985 = vpop.f32.mrf.mxu0
  %v986 = vadd.f32 %v777, %v985
  %987 = vmatmul.f32.gmra.mxu0 %v276
  %v988 = vpop.f32.mrf.mxu0
  %v989 = vadd.f32 %v780, %v988
  %990 = vmatmul.f32.gmra.mxu0 %v281
  %v991 = vpop.f32.mrf.mxu0
  %v992 = vadd.f32 %v783, %v991
  %993 = vmatmul.f32.gmra.mxu0 %v286
  %v994 = vpop.f32.mrf.mxu0
  %v995 = vadd.f32 %v786, %v994
  %996 = vmatmul.f32.gmra.mxu0 %v291
  %v997 = vpop.f32.mrf.mxu0
  %v998 = vadd.f32 %v789, %v997
  %999 = vmatmul.f32.gmra.mxu0 %v296
  %v1000 = vpop.f32.mrf.mxu0
  %v1001 = vadd.f32 %v792, %v1000
  %1002 = vmatmul.f32.gmra.mxu0 %v301
  %v1003 = vpop.f32.mrf.mxu0
  %v1004 = vadd.f32 %v795, %v1003
  %1005 = vmatmul.f32.gmra.mxu0 %v306
  %v1006 = vpop.f32.mrf.mxu0
  %v1007 = vadd.f32 %v798, %v1006
  %1008 = vmatmul.f32.gmra.mxu0 %v311
  %v1009 = vpop.f32.mrf.mxu0
  %v1010 = vadd.f32 %v801, %v1009
  %1011 = vmatmul.f32.gmra.mxu0 %v316
  %v1012 = vpop.f32.mrf.mxu0
  %v1013 = vadd.f32 %v804, %v1012
  %1014 = vmatmul.f32.gmra.mxu0 %v321
  %v1015 = vpop.f32.mrf.mxu0
  %v1016 = vadd.f32 %v807, %v1015
  %1017 = vmatmul.f32.gmra.mxu0 %v326
  %v1018 = vpop.f32.mrf.mxu0
  %v1019 = vadd.f32 %v810, %v1018
  %1020 = vmatmul.f32.gmra.mxu0 %v331
  %v1021 = vpop.f32.mrf.mxu0
  %v1022 = vadd.f32 %v813, %v1021
  %1023 = vmatmul.f32.gmra.mxu0 %v336
  %v1024 = vpop.f32.mrf.mxu0
  %v1025 = vadd.f32 %v816, %v1024
  %1026 = vdwg.mxu0
  %1027 = vmatpush.msra.mxu0 %v387
  %1028 = vmatpush.msra.mxu0 %v386
  %1029 = vmatpush.msra.mxu0 %v385
  %1030 = vmatpush.msra.mxu0 %v384
  %1031 = vmatpush.msra.mxu0 %v383
  %1032 = vmatpush.msra.mxu0 %v382
  %1033 = vmatpush.msra.mxu0 %v381
  %1034 = vmatpush.msra.mxu0 %v380
  %1035 = vmatpush.msra.mxu0 %v379
  %1036 = vmatpush.msra.mxu0 %v378
  %1037 = vmatpush.msra.mxu0 %v377
  %1038 = vmatpush.msra.mxu0 %v376
  %1039 = vmatpush.msra.mxu0 %v375
  %1040 = vmatpush.msra.mxu0 %v374
  %1041 = vmatpush.msra.mxu0 %v373
  %1042 = vmatpush.msra.mxu0 %v372
  %1043 = vmatmul.f32.gmra.mxu0 %v22
  %v1044 = vpop.f32.mrf.mxu0
  %v1045 = vadd.f32 %v836, %v1044
  %1046 = vmatmul.f32.gmra.mxu0 %v27
  %v1047 = vpop.f32.mrf.mxu0
  %v1048 = vadd.f32 %v839, %v1047
  %1049 = vmatmul.f32.gmra.mxu0 %v32
  %v1050 = vpop.f32.mrf.mxu0
  %v1051 = vadd.f32 %v842, %v1050
  %1052 = vmatmul.f32.gmra.mxu0 %v37
  %v1053 = vpop.f32.mrf.mxu0
  %v1054 = vadd.f32 %v845, %v1053
  %1055 = vmatmul.f32.gmra.mxu0 %v42
  %v1056 = vpop.f32.mrf.mxu0
  %v1057 = vadd.f32 %v848, %v1056
  %1058 = vmatmul.f32.gmra.mxu0 %v47
  %v1059 = vpop.f32.mrf.mxu0
  %v1060 = vadd.f32 %v851, %v1059
  %1061 = vmatmul.f32.gmra.mxu0 %v52
  %v1062 = vpop.f32.mrf.mxu0
  %v1063 = vadd.f32 %v854, %v1062
  %1064 = vmatmul.f32.gmra.mxu0 %v57
  %v1065 = vpop.f32.mrf.mxu0
  %v1066 = vadd.f32 %v857, %v1065
  %1067 = vmatmul.f32.gmra.mxu0 %v62
  %v1068 = vpop.f32.mrf.mxu0
  %v1069 = vadd.f32 %v860, %v1068
  %1070 = vmatmul.f32.gmra.mxu0 %v67
  %v1071 = vpop.f32.mrf.mxu0
  %v1072 = vadd.f32 %v863, %v1071
  %1073 = vmatmul.f32.gmra.mxu0 %v72
  %v1074 = vpop.f32.mrf.mxu0
  %v1075 = vadd.f32 %v866, %v1074
  %1076 = vmatmul.f32.gmra.mxu0 %v77
  %v1077 = vpop.f32.mrf.mxu0
  %v1078 = vadd.f32 %v869, %v1077
  %1079 = vmatmul.f32.gmra.mxu0 %v82
  %v1080 = vpop.f32.mrf.mxu0
  %v1081 = vadd.f32 %v872, %v1080
  %1082 = vmatmul.f32.gmra.mxu0 %v87
  %v1083 = vpop.f32.mrf.mxu0
  %v1084 = vadd.f32 %v875, %v1083
  %1085 = vmatmul.f32.gmra.mxu0 %v92
  %v1086 = vpop.f32.mrf.mxu0
  %v1087 = vadd.f32 %v878, %v1086
  %1088 = vmatmul.f32.gmra.mxu0 %v97
  %v1089 = vpop.f32.mrf.mxu0
  %v1090 = vadd.f32 %v881, %v1089
  %1091 = vmatmul.f32.gmra.mxu0 %v102
  %v1092 = vpop.f32.mrf.mxu0
  %v1093 = vadd.f32 %v884, %v1092
  %1094 = vmatmul.f32.gmra.mxu0 %v107
  %v1095 = vpop.f32.mrf.mxu0
  %v1096 = vadd.f32 %v887, %v1095
  %1097 = vmatmul.f32.gmra.mxu0 %v112
  %v1098 = vpop.f32.mrf.mxu0
  %v1099 = vadd.f32 %v890, %v1098
  %1100 = vmatmul.f32.gmra.mxu0 %v117
  %v1101 = vpop.f32.mrf.mxu0
  %v1102 = vadd.f32 %v893, %v1101
  %1103 = vmatmul.f32.gmra.mxu0 %v122
  %v1104 = vpop.f32.mrf.mxu0
  %v1105 = vadd.f32 %v896, %v1104
  %1106 = vmatmul.f32.gmra.mxu0 %v127
  %v1107 = vpop.f32.mrf.mxu0
  %v1108 = vadd.f32 %v899, %v1107
  %1109 = vmatmul.f32.gmra.mxu0 %v132
  %v1110 = vpop.f32.mrf.mxu0
  %v1111 = vadd.f32 %v902, %v1110
  %1112 = vmatmul.f32.gmra.mxu0 %v137
  %v1113 = vpop.f32.mrf.mxu0
  %v1114 = vadd.f32 %v905, %v1113
  %1115 = vmatmul.f32.gmra.mxu0 %v142
  %v1116 = vpop.f32.mrf.mxu0
  %v1117 = vadd.f32 %v908, %v1116
  %1118 = vmatmul.f32.gmra.mxu0 %v147
  %v1119 = vpop.f32.mrf.mxu0
  %v1120 = vadd.f32 %v911, %v1119
  %1121 = vmatmul.f32.gmra.mxu0 %v152
  %v1122 = vpop.f32.mrf.mxu0
  %v1123 = vadd.f32 %v914, %v1122
  %1124 = vmatmul.f32.gmra.mxu0 %v157
  %v1125 = vpop.f32.mrf.mxu0
  %v1126 = vadd.f32 %v917, %v1125
  %1127 = vmatmul.f32.gmra.mxu0 %v162
  %v1128 = vpop.f32.mrf.mxu0
  %v1129 = vadd.f32 %v920, %v1128
  %1130 = vmatmul.f32.gmra.mxu0 %v167
  %v1131 = vpop.f32.mrf.mxu0
  %v1132 = vadd.f32 %v923, %v1131
  %1133 = vmatmul.f32.gmra.mxu0 %v172
  %v1134 = vpop.f32.mrf.mxu0
  %v1135 = vadd.f32 %v926, %v1134
  %1136 = vmatmul.f32.gmra.mxu0 %v177
  %v1137 = vpop.f32.mrf.mxu0
  %v1138 = vadd.f32 %v929, %v1137
  %1139 = vmatmul.f32.gmra.mxu0 %v182
  %v1140 = vpop.f32.mrf.mxu0
  %v1141 = vadd.f32 %v932, %v1140
  %1142 = vmatmul.f32.gmra.mxu0 %v187
  %v1143 = vpop.f32.mrf.mxu0
  %v1144 = vadd.f32 %v935, %v1143
  %1145 = vmatmul.f32.gmra.mxu0 %v192
  %v1146 = vpop.f32.mrf.mxu0
  %v1147 = vadd.f32 %v938, %v1146
  %1148 = vmatmul.f32.gmra.mxu0 %v197
  %v1149 = vpop.f32.mrf.mxu0
  %v1150 = vadd.f32 %v941, %v1149
  %1151 = vmatmul.f32.gmra.mxu0 %v202
  %v1152 = vpop.f32.mrf.mxu0
  %v1153 = vadd.f32 %v944, %v1152
  %1154 = vmatmul.f32.gmra.mxu0 %v207
  %v1155 = vpop.f32.mrf.mxu0
  %v1156 = vadd.f32 %v947, %v1155
  %1157 = vmatmul.f32.gmra.mxu0 %v212
  %v1158 = vpop.f32.mrf.mxu0
  %v1159 = vadd.f32 %v950, %v1158
  %1160 = vmatmul.f32.gmra.mxu0 %v217
  %v1161 = vpop.f32.mrf.mxu0
  %v1162 = vadd.f32 %v953, %v1161
  %1163 = vmatmul.f32.gmra.mxu0 %v222
  %v1164 = vpop.f32.mrf.mxu0
  %v1165 = vadd.f32 %v956, %v1164
  %1166 = vmatmul.f32.gmra.mxu0 %v227
  %v1167 = vpop.f32.mrf.mxu0
  %v1168 = vadd.f32 %v959, %v1167
  %1169 = vmatmul.f32.gmra.mxu0 %v232
  %v1170 = vpop.f32.mrf.mxu0
  %v1171 = vadd.f32 %v962, %v1170
  %1172 = vmatmul.f32.gmra.mxu0 %v237
  %v1173 = vpop.f32.mrf.mxu0
  %v1174 = vadd.f32 %v965, %v1173
  %1175 = vmatmul.f32.gmra.mxu0 %v242
  %v1176 = vpop.f32.mrf.mxu0
  %v1177 = vadd.f32 %v968, %v1176
  %1178 = vmatmul.f32.gmra.mxu0 %v247
  %v1179 = vpop.f32.mrf.mxu0
  %v1180 = vadd.f32 %v971, %v1179
  %1181 = vmatmul.f32.gmra.mxu0 %v252
  %v1182 = vpop.f32.mrf.mxu0
  %v1183 = vadd.f32 %v974, %v1182
  %1184 = vmatmul.f32.gmra.mxu0 %v257
  %v1185 = vpop.f32.mrf.mxu0
  %v1186 = vadd.f32 %v977, %v1185
  %1187 = vmatmul.f32.gmra.mxu0 %v262
  %v1188 = vpop.f32.mrf.mxu0
  %v1189 = vadd.f32 %v980, %v1188
  %1190 = vmatmul.f32.gmra.mxu0 %v267
  %v1191 = vpop.f32.mrf.mxu0
  %v1192 = vadd.f32 %v983, %v1191
  %1193 = vmatmul.f32.gmra.mxu0 %v272
  %v1194 = vpop.f32.mrf.mxu0
  %v1195 = vadd.f32 %v986, %v1194
  %1196 = vmatmul.f32.gmra.mxu0 %v277
  %v1197 = vpop.f32.mrf.mxu0
  %v1198 = vadd.f32 %v989, %v1197
  %1199 = vmatmul.f32.gmra.mxu0 %v282
  %v1200 = vpop.f32.mrf.mxu0
  %v1201 = vadd.f32 %v992, %v1200
  %1202 = vmatmul.f32.gmra.mxu0 %v287
  %v1203 = vpop.f32.mrf.mxu0
  %v1204 = vadd.f32 %v995, %v1203
  %1205 = vmatmul.f32.gmra.mxu0 %v292
  %v1206 = vpop.f32.mrf.mxu0
  %v1207 = vadd.f32 %v998, %v1206
  %1208 = vmatmul.f32.gmra.mxu0 %v297
  %v1209 = vpop.f32.mrf.mxu0
  %v1210 = vadd.f32 %v1001, %v1209
  %1211 = vmatmul.f32.gmra.mxu0 %v302
  %v1212 = vpop.f32.mrf.mxu0
  %v1213 = vadd.f32 %v1004, %v1212
  %1214 = vmatmul.f32.gmra.mxu0 %v307
  %v1215 = vpop.f32.mrf.mxu0
  %v1216 = vadd.f32 %v1007, %v1215
  %1217 = vmatmul.f32.gmra.mxu0 %v312
  %v1218 = vpop.f32.mrf.mxu0
  %v1219 = vadd.f32 %v1010, %v1218
  %1220 = vmatmul.f32.gmra.mxu0 %v317
  %v1221 = vpop.f32.mrf.mxu0
  %v1222 = vadd.f32 %v1013, %v1221
  %1223 = vmatmul.f32.gmra.mxu0 %v322
  %v1224 = vpop.f32.mrf.mxu0
  %v1225 = vadd.f32 %v1016, %v1224
  %1226 = vmatmul.f32.gmra.mxu0 %v327
  %v1227 = vpop.f32.mrf.mxu0
  %v1228 = vadd.f32 %v1019, %v1227
  %1229 = vmatmul.f32.gmra.mxu0 %v332
  %v1230 = vpop.f32.mrf.mxu0
  %v1231 = vadd.f32 %v1022, %v1230
  %1232 = vmatmul.f32.gmra.mxu0 %v337
  %v1233 = vpop.f32.mrf.mxu0
  %v1234 = vadd.f32 %v1025, %v1233
  %1235 = vdwg.mxu0
  %1236 = vmatpush.msra.mxu0 %v403
  %1237 = vmatpush.msra.mxu0 %v402
  %1238 = vmatpush.msra.mxu0 %v401
  %1239 = vmatpush.msra.mxu0 %v400
  %1240 = vmatpush.msra.mxu0 %v399
  %1241 = vmatpush.msra.mxu0 %v398
  %1242 = vmatpush.msra.mxu0 %v397
  %1243 = vmatpush.msra.mxu0 %v396
  %1244 = vmatpush.msra.mxu0 %v395
  %1245 = vmatpush.msra.mxu0 %v394
  %1246 = vmatpush.msra.mxu0 %v393
  %1247 = vmatpush.msra.mxu0 %v392
  %1248 = vmatpush.msra.mxu0 %v391
  %1249 = vmatpush.msra.mxu0 %v390
  %1250 = vmatpush.msra.mxu0 %v389
  %1251 = vmatpush.msra.mxu0 %v388
  %1252 = vmatmul.f32.gmra.mxu0 %v23
  %v1253 = vpop.f32.mrf.mxu0
  %v1254 = vadd.f32 %v1045, %v1253
  %1255 = vmatmul.f32.gmra.mxu0 %v28
  %v1256 = vpop.f32.mrf.mxu0
  %v1257 = vadd.f32 %v1048, %v1256
  %1258 = vmatmul.f32.gmra.mxu0 %v33
  %v1259 = vpop.f32.mrf.mxu0
  %v1260 = vadd.f32 %v1051, %v1259
  %1261 = vmatmul.f32.gmra.mxu0 %v38
  %v1262 = vpop.f32.mrf.mxu0
  %v1263 = vadd.f32 %v1054, %v1262
  %1264 = vmatmul.f32.gmra.mxu0 %v43
  %v1265 = vpop.f32.mrf.mxu0
  %v1266 = vadd.f32 %v1057, %v1265
  %1267 = vmatmul.f32.gmra.mxu0 %v48
  %v1268 = vpop.f32.mrf.mxu0
  %v1269 = vadd.f32 %v1060, %v1268
  %1270 = vmatmul.f32.gmra.mxu0 %v53
  %v1271 = vpop.f32.mrf.mxu0
  %v1272 = vadd.f32 %v1063, %v1271
  %1273 = vmatmul.f32.gmra.mxu0 %v58
  %v1274 = vpop.f32.mrf.mxu0
  %v1275 = vadd.f32 %v1066, %v1274
  %1276 = vmatmul.f32.gmra.mxu0 %v63
  %v1277 = vpop.f32.mrf.mxu0
  %v1278 = vadd.f32 %v1069, %v1277
  %1279 = vmatmul.f32.gmra.mxu0 %v68
  %v1280 = vpop.f32.mrf.mxu0
  %v1281 = vadd.f32 %v1072, %v1280
  %1282 = vmatmul.f32.gmra.mxu0 %v73
  %v1283 = vpop.f32.mrf.mxu0
  %v1284 = vadd.f32 %v1075, %v1283
  %1285 = vmatmul.f32.gmra.mxu0 %v78
  %v1286 = vpop.f32.mrf.mxu0
  %v1287 = vadd.f32 %v1078, %v1286
  %1288 = vmatmul.f32.gmra.mxu0 %v83
  %v1289 = vpop.f32.mrf.mxu0
  %v1290 = vadd.f32 %v1081, %v1289
  %1291 = vmatmul.f32.gmra.mxu0 %v88
  %v1292 = vpop.f32.mrf.mxu0
  %v1293 = vadd.f32 %v1084, %v1292
  %1294 = vmatmul.f32.gmra.mxu0 %v93
  %v1295 = vpop.f32.mrf.mxu0
  %v1296 = vadd.f32 %v1087, %v1295
  %1297 = vmatmul.f32.gmra.mxu0 %v98
  %v1298 = vpop.f32.mrf.mxu0
  %v1299 = vadd.f32 %v1090, %v1298
  %1300 = vmatmul.f32.gmra.mxu0 %v103
  %v1301 = vpop.f32.mrf.mxu0
  %v1302 = vadd.f32 %v1093, %v1301
  %1303 = vmatmul.f32.gmra.mxu0 %v108
  %v1304 = vpop.f32.mrf.mxu0
  %v1305 = vadd.f32 %v1096, %v1304
  %1306 = vmatmul.f32.gmra.mxu0 %v113
  %v1307 = vpop.f32.mrf.mxu0
  %v1308 = vadd.f32 %v1099, %v1307
  %1309 = vmatmul.f32.gmra.mxu0 %v118
  %v1310 = vpop.f32.mrf.mxu0
  %v1311 = vadd.f32 %v1102, %v1310
  %1312 = vmatmul.f32.gmra.mxu0 %v123
  %v1313 = vpop.f32.mrf.mxu0
  %v1314 = vadd.f32 %v1105, %v1313
  %1315 = vmatmul.f32.gmra.mxu0 %v128
  %v1316 = vpop.f32.mrf.mxu0
  %v1317 = vadd.f32 %v1108, %v1316
  %1318 = vmatmul.f32.gmra.mxu0 %v133
  %v1319 = vpop.f32.mrf.mxu0
  %v1320 = vadd.f32 %v1111, %v1319
  %1321 = vmatmul.f32.gmra.mxu0 %v138
  %v1322 = vpop.f32.mrf.mxu0
  %v1323 = vadd.f32 %v1114, %v1322
  %1324 = vmatmul.f32.gmra.mxu0 %v143
  %v1325 = vpop.f32.mrf.mxu0
  %v1326 = vadd.f32 %v1117, %v1325
  %1327 = vmatmul.f32.gmra.mxu0 %v148
  %v1328 = vpop.f32.mrf.mxu0
  %v1329 = vadd.f32 %v1120, %v1328
  %1330 = vmatmul.f32.gmra.mxu0 %v153
  %v1331 = vpop.f32.mrf.mxu0
  %v1332 = vadd.f32 %v1123, %v1331
  %1333 = vmatmul.f32.gmra.mxu0 %v158
  %v1334 = vpop.f32.mrf.mxu0
  %v1335 = vadd.f32 %v1126, %v1334
  %1336 = vmatmul.f32.gmra.mxu0 %v163
  %v1337 = vpop.f32.mrf.mxu0
  %v1338 = vadd.f32 %v1129, %v1337
  %1339 = vmatmul.f32.gmra.mxu0 %v168
  %v1340 = vpop.f32.mrf.mxu0
  %v1341 = vadd.f32 %v1132, %v1340
  %1342 = vmatmul.f32.gmra.mxu0 %v173
  %v1343 = vpop.f32.mrf.mxu0
  %v1344 = vadd.f32 %v1135, %v1343
  %1345 = vmatmul.f32.gmra.mxu0 %v178
  %v1346 = vpop.f32.mrf.mxu0
  %v1347 = vadd.f32 %v1138, %v1346
  %1348 = vmatmul.f32.gmra.mxu0 %v183
  %v1349 = vpop.f32.mrf.mxu0
  %v1350 = vadd.f32 %v1141, %v1349
  %1351 = vmatmul.f32.gmra.mxu0 %v188
  %v1352 = vpop.f32.mrf.mxu0
  %v1353 = vadd.f32 %v1144, %v1352
  %1354 = vmatmul.f32.gmra.mxu0 %v193
  %v1355 = vpop.f32.mrf.mxu0
  %v1356 = vadd.f32 %v1147, %v1355
  %1357 = vmatmul.f32.gmra.mxu0 %v198
  %v1358 = vpop.f32.mrf.mxu0
  %v1359 = vadd.f32 %v1150, %v1358
  %1360 = vmatmul.f32.gmra.mxu0 %v203
  %v1361 = vpop.f32.mrf.mxu0
  %v1362 = vadd.f32 %v1153, %v1361
  %1363 = vmatmul.f32.gmra.mxu0 %v208
  %v1364 = vpop.f32.mrf.mxu0
  %v1365 = vadd.f32 %v1156, %v1364
  %1366 = vmatmul.f32.gmra.mxu0 %v213
  %v1367 = vpop.f32.mrf.mxu0
  %v1368 = vadd.f32 %v1159, %v1367
  %1369 = vmatmul.f32.gmra.mxu0 %v218
  %v1370 = vpop.f32.mrf.mxu0
  %v1371 = vadd.f32 %v1162, %v1370
  %1372 = vmatmul.f32.gmra.mxu0 %v223
  %v1373 = vpop.f32.mrf.mxu0
  %v1374 = vadd.f32 %v1165, %v1373
  %1375 = vmatmul.f32.gmra.mxu0 %v228
  %v1376 = vpop.f32.mrf.mxu0
  %v1377 = vadd.f32 %v1168, %v1376
  %1378 = vmatmul.f32.gmra.mxu0 %v233
  %v1379 = vpop.f32.mrf.mxu0
  %v1380 = vadd.f32 %v1171, %v1379
  %1381 = vmatmul.f32.gmra.mxu0 %v238
  %v1382 = vpop.f32.mrf.mxu0
  %v1383 = vadd.f32 %v1174, %v1382
  %1384 = vmatmul.f32.gmra.mxu0 %v243
  %v1385 = vpop.f32.mrf.mxu0
  %v1386 = vadd.f32 %v1177, %v1385
  %1387 = vmatmul.f32.gmra.mxu0 %v248
  %v1388 = vpop.f32.mrf.mxu0
  %v1389 = vadd.f32 %v1180, %v1388
  %1390 = vmatmul.f32.gmra.mxu0 %v253
  %v1391 = vpop.f32.mrf.mxu0
  %v1392 = vadd.f32 %v1183, %v1391
  %1393 = vmatmul.f32.gmra.mxu0 %v258
  %v1394 = vpop.f32.mrf.mxu0
  %v1395 = vadd.f32 %v1186, %v1394
  %1396 = vmatmul.f32.gmra.mxu0 %v263
  %v1397 = vpop.f32.mrf.mxu0
  %v1398 = vadd.f32 %v1189, %v1397
  %1399 = vmatmul.f32.gmra.mxu0 %v268
  %v1400 = vpop.f32.mrf.mxu0
  %v1401 = vadd.f32 %v1192, %v1400
  %1402 = vmatmul.f32.gmra.mxu0 %v273
  %v1403 = vpop.f32.mrf.mxu0
  %v1404 = vadd.f32 %v1195, %v1403
  %1405 = vmatmul.f32.gmra.mxu0 %v278
  %v1406 = vpop.f32.mrf.mxu0
  %v1407 = vadd.f32 %v1198, %v1406
  %1408 = vmatmul.f32.gmra.mxu0 %v283
  %v1409 = vpop.f32.mrf.mxu0
  %v1410 = vadd.f32 %v1201, %v1409
  %1411 = vmatmul.f32.gmra.mxu0 %v288
  %v1412 = vpop.f32.mrf.mxu0
  %v1413 = vadd.f32 %v1204, %v1412
  %1414 = vmatmul.f32.gmra.mxu0 %v293
  %v1415 = vpop.f32.mrf.mxu0
  %v1416 = vadd.f32 %v1207, %v1415
  %1417 = vmatmul.f32.gmra.mxu0 %v298
  %v1418 = vpop.f32.mrf.mxu0
  %v1419 = vadd.f32 %v1210, %v1418
  %1420 = vmatmul.f32.gmra.mxu0 %v303
  %v1421 = vpop.f32.mrf.mxu0
  %v1422 = vadd.f32 %v1213, %v1421
  %1423 = vmatmul.f32.gmra.mxu0 %v308
  %v1424 = vpop.f32.mrf.mxu0
  %v1425 = vadd.f32 %v1216, %v1424
  %1426 = vmatmul.f32.gmra.mxu0 %v313
  %v1427 = vpop.f32.mrf.mxu0
  %v1428 = vadd.f32 %v1219, %v1427
  %1429 = vmatmul.f32.gmra.mxu0 %v318
  %v1430 = vpop.f32.mrf.mxu0
  %v1431 = vadd.f32 %v1222, %v1430
  %1432 = vmatmul.f32.gmra.mxu0 %v323
  %v1433 = vpop.f32.mrf.mxu0
  %v1434 = vadd.f32 %v1225, %v1433
  %1435 = vmatmul.f32.gmra.mxu0 %v328
  %v1436 = vpop.f32.mrf.mxu0
  %v1437 = vadd.f32 %v1228, %v1436
  %1438 = vmatmul.f32.gmra.mxu0 %v333
  %v1439 = vpop.f32.mrf.mxu0
  %v1440 = vadd.f32 %v1231, %v1439
  %1441 = vmatmul.f32.gmra.mxu0 %v338
  %v1442 = vpop.f32.mrf.mxu0
  %v1443 = vadd.f32 %v1234, %v1442
  %1444 = vdwg.mxu0
  %1445 = vmatpush.msra.mxu0 0.0
  %1446 = vmatpush.msra.mxu0 0.0
  %1447 = vmatpush.msra.mxu0 0.0
  %1448 = vmatpush.msra.mxu0 0.0
  %1449 = vmatpush.msra.mxu0 0.0
  %1450 = vmatpush.msra.mxu0 0.0
  %1451 = vmatpush.msra.mxu0 0.0
  %1452 = vmatpush.msra.mxu0 0.0
  %1453 = vmatpush.msra.mxu0 %v411
  %1454 = vmatpush.msra.mxu0 %v410
  %1455 = vmatpush.msra.mxu0 %v409
  %1456 = vmatpush.msra.mxu0 %v408
  %1457 = vmatpush.msra.mxu0 %v407
  %1458 = vmatpush.msra.mxu0 %v406
  %1459 = vmatpush.msra.mxu0 %v405
  %1460 = vmatpush.msra.mxu0 %v404
  %1461 = vmatmul.f32.gmra.mxu0 %v418
  %v1462 = vpop.f32.mrf.mxu0
  %v1463 = vadd.f32 %v1254, %v1462
  %1464 = vmatmul.f32.gmra.mxu0 %v421
  %v1465 = vpop.f32.mrf.mxu0
  %v1466 = vadd.f32 %v1257, %v1465
  %1467 = vmatmul.f32.gmra.mxu0 %v424
  %v1468 = vpop.f32.mrf.mxu0
  %v1469 = vadd.f32 %v1260, %v1468
  %1470 = vmatmul.f32.gmra.mxu0 %v427
  %v1471 = vpop.f32.mrf.mxu0
  %v1472 = vadd.f32 %v1263, %v1471
  %1473 = vmatmul.f32.gmra.mxu0 %v430
  %v1474 = vpop.f32.mrf.mxu0
  %v1475 = vadd.f32 %v1266, %v1474
  %1476 = vmatmul.f32.gmra.mxu0 %v433
  %v1477 = vpop.f32.mrf.mxu0
  %v1478 = vadd.f32 %v1269, %v1477
  %1479 = vmatmul.f32.gmra.mxu0 %v436
  %v1480 = vpop.f32.mrf.mxu0
  %v1481 = vadd.f32 %v1272, %v1480
  %1482 = vmatmul.f32.gmra.mxu0 %v439
  %v1483 = vpop.f32.mrf.mxu0
  %v1484 = vadd.f32 %v1275, %v1483
  %1485 = vmatmul.f32.gmra.mxu0 %v442
  %v1486 = vpop.f32.mrf.mxu0
  %v1487 = vadd.f32 %v1278, %v1486
  %1488 = vmatmul.f32.gmra.mxu0 %v445
  %v1489 = vpop.f32.mrf.mxu0
  %v1490 = vadd.f32 %v1281, %v1489
  %1491 = vmatmul.f32.gmra.mxu0 %v448
  %v1492 = vpop.f32.mrf.mxu0
  %v1493 = vadd.f32 %v1284, %v1492
  %1494 = vmatmul.f32.gmra.mxu0 %v451
  %v1495 = vpop.f32.mrf.mxu0
  %v1496 = vadd.f32 %v1287, %v1495
  %1497 = vmatmul.f32.gmra.mxu0 %v454
  %v1498 = vpop.f32.mrf.mxu0
  %v1499 = vadd.f32 %v1290, %v1498
  %1500 = vmatmul.f32.gmra.mxu0 %v457
  %v1501 = vpop.f32.mrf.mxu0
  %v1502 = vadd.f32 %v1293, %v1501
  %1503 = vmatmul.f32.gmra.mxu0 %v460
  %v1504 = vpop.f32.mrf.mxu0
  %v1505 = vadd.f32 %v1296, %v1504
  %1506 = vmatmul.f32.gmra.mxu0 %v463
  %v1507 = vpop.f32.mrf.mxu0
  %v1508 = vadd.f32 %v1299, %v1507
  %1509 = vmatmul.f32.gmra.mxu0 %v466
  %v1510 = vpop.f32.mrf.mxu0
  %v1511 = vadd.f32 %v1302, %v1510
  %1512 = vmatmul.f32.gmra.mxu0 %v469
  %v1513 = vpop.f32.mrf.mxu0
  %v1514 = vadd.f32 %v1305, %v1513
  %1515 = vmatmul.f32.gmra.mxu0 %v472
  %v1516 = vpop.f32.mrf.mxu0
  %v1517 = vadd.f32 %v1308, %v1516
  %1518 = vmatmul.f32.gmra.mxu0 %v475
  %v1519 = vpop.f32.mrf.mxu0
  %v1520 = vadd.f32 %v1311, %v1519
  %1521 = vmatmul.f32.gmra.mxu0 %v478
  %v1522 = vpop.f32.mrf.mxu0
  %v1523 = vadd.f32 %v1314, %v1522
  %1524 = vmatmul.f32.gmra.mxu0 %v481
  %v1525 = vpop.f32.mrf.mxu0
  %v1526 = vadd.f32 %v1317, %v1525
  %1527 = vmatmul.f32.gmra.mxu0 %v484
  %v1528 = vpop.f32.mrf.mxu0
  %v1529 = vadd.f32 %v1320, %v1528
  %1530 = vmatmul.f32.gmra.mxu0 %v487
  %v1531 = vpop.f32.mrf.mxu0
  %v1532 = vadd.f32 %v1323, %v1531
  %1533 = vmatmul.f32.gmra.mxu0 %v490
  %v1534 = vpop.f32.mrf.mxu0
  %v1535 = vadd.f32 %v1326, %v1534
  %1536 = vmatmul.f32.gmra.mxu0 %v493
  %v1537 = vpop.f32.mrf.mxu0
  %v1538 = vadd.f32 %v1329, %v1537
  %1539 = vmatmul.f32.gmra.mxu0 %v496
  %v1540 = vpop.f32.mrf.mxu0
  %v1541 = vadd.f32 %v1332, %v1540
  %1542 = vmatmul.f32.gmra.mxu0 %v499
  %v1543 = vpop.f32.mrf.mxu0
  %v1544 = vadd.f32 %v1335, %v1543
  %1545 = vmatmul.f32.gmra.mxu0 %v502
  %v1546 = vpop.f32.mrf.mxu0
  %v1547 = vadd.f32 %v1338, %v1546
  %1548 = vmatmul.f32.gmra.mxu0 %v505
  %v1549 = vpop.f32.mrf.mxu0
  %v1550 = vadd.f32 %v1341, %v1549
  %1551 = vmatmul.f32.gmra.mxu0 %v508
  %v1552 = vpop.f32.mrf.mxu0
  %v1553 = vadd.f32 %v1344, %v1552
  %1554 = vmatmul.f32.gmra.mxu0 %v511
  %v1555 = vpop.f32.mrf.mxu0
  %v1556 = vadd.f32 %v1347, %v1555
  %1557 = vmatmul.f32.gmra.mxu0 %v514
  %v1558 = vpop.f32.mrf.mxu0
  %v1559 = vadd.f32 %v1350, %v1558
  %1560 = vmatmul.f32.gmra.mxu0 %v517
  %v1561 = vpop.f32.mrf.mxu0
  %v1562 = vadd.f32 %v1353, %v1561
  %1563 = vmatmul.f32.gmra.mxu0 %v520
  %v1564 = vpop.f32.mrf.mxu0
  %v1565 = vadd.f32 %v1356, %v1564
  %1566 = vmatmul.f32.gmra.mxu0 %v523
  %v1567 = vpop.f32.mrf.mxu0
  %v1568 = vadd.f32 %v1359, %v1567
  %1569 = vmatmul.f32.gmra.mxu0 %v526
  %v1570 = vpop.f32.mrf.mxu0
  %v1571 = vadd.f32 %v1362, %v1570
  %1572 = vmatmul.f32.gmra.mxu0 %v529
  %v1573 = vpop.f32.mrf.mxu0
  %v1574 = vadd.f32 %v1365, %v1573
  %1575 = vmatmul.f32.gmra.mxu0 %v532
  %v1576 = vpop.f32.mrf.mxu0
  %v1577 = vadd.f32 %v1368, %v1576
  %1578 = vmatmul.f32.gmra.mxu0 %v535
  %v1579 = vpop.f32.mrf.mxu0
  %v1580 = vadd.f32 %v1371, %v1579
  %1581 = vmatmul.f32.gmra.mxu0 %v538
  %v1582 = vpop.f32.mrf.mxu0
  %v1583 = vadd.f32 %v1374, %v1582
  %1584 = vmatmul.f32.gmra.mxu0 %v541
  %v1585 = vpop.f32.mrf.mxu0
  %v1586 = vadd.f32 %v1377, %v1585
  %1587 = vmatmul.f32.gmra.mxu0 %v544
  %v1588 = vpop.f32.mrf.mxu0
  %v1589 = vadd.f32 %v1380, %v1588
  %1590 = vmatmul.f32.gmra.mxu0 %v547
  %v1591 = vpop.f32.mrf.mxu0
  %v1592 = vadd.f32 %v1383, %v1591
  %1593 = vmatmul.f32.gmra.mxu0 %v550
  %v1594 = vpop.f32.mrf.mxu0
  %v1595 = vadd.f32 %v1386, %v1594
  %1596 = vmatmul.f32.gmra.mxu0 %v553
  %v1597 = vpop.f32.mrf.mxu0
  %v1598 = vadd.f32 %v1389, %v1597
  %1599 = vmatmul.f32.gmra.mxu0 %v556
  %v1600 = vpop.f32.mrf.mxu0
  %v1601 = vadd.f32 %v1392, %v1600
  %1602 = vmatmul.f32.gmra.mxu0 %v559
  %v1603 = vpop.f32.mrf.mxu0
  %v1604 = vadd.f32 %v1395, %v1603
  %1605 = vmatmul.f32.gmra.mxu0 %v562
  %v1606 = vpop.f32.mrf.mxu0
  %v1607 = vadd.f32 %v1398, %v1606
  %1608 = vmatmul.f32.gmra.mxu0 %v565
  %v1609 = vpop.f32.mrf.mxu0
  %v1610 = vadd.f32 %v1401, %v1609
  %1611 = vmatmul.f32.gmra.mxu0 %v568
  %v1612 = vpop.f32.mrf.mxu0
  %v1613 = vadd.f32 %v1404, %v1612
  %1614 = vmatmul.f32.gmra.mxu0 %v571
  %v1615 = vpop.f32.mrf.mxu0
  %v1616 = vadd.f32 %v1407, %v1615
  %1617 = vmatmul.f32.gmra.mxu0 %v574
  %v1618 = vpop.f32.mrf.mxu0
  %v1619 = vadd.f32 %v1410, %v1618
  %1620 = vmatmul.f32.gmra.mxu0 %v577
  %v1621 = vpop.f32.mrf.mxu0
  %v1622 = vadd.f32 %v1413, %v1621
  %1623 = vmatmul.f32.gmra.mxu0 %v580
  %v1624 = vpop.f32.mrf.mxu0
  %v1625 = vadd.f32 %v1416, %v1624
  %1626 = vmatmul.f32.gmra.mxu0 %v583
  %v1627 = vpop.f32.mrf.mxu0
  %v1628 = vadd.f32 %v1419, %v1627
  %1629 = vmatmul.f32.gmra.mxu0 %v586
  %v1630 = vpop.f32.mrf.mxu0
  %v1631 = vadd.f32 %v1422, %v1630
  %1632 = vmatmul.f32.gmra.mxu0 %v589
  %v1633 = vpop.f32.mrf.mxu0
  %v1634 = vadd.f32 %v1425, %v1633
  %1635 = vmatmul.f32.gmra.mxu0 %v592
  %v1636 = vpop.f32.mrf.mxu0
  %v1637 = vadd.f32 %v1428, %v1636
  %1638 = vmatmul.f32.gmra.mxu0 %v595
  %v1639 = vpop.f32.mrf.mxu0
  %v1640 = vadd.f32 %v1431, %v1639
  %1641 = vmatmul.f32.gmra.mxu0 %v598
  %v1642 = vpop.f32.mrf.mxu0
  %v1643 = vadd.f32 %v1434, %v1642
  %1644 = vmatmul.f32.gmra.mxu0 %v601
  %v1645 = vpop.f32.mrf.mxu0
  %v1646 = vadd.f32 %v1437, %v1645
  %1647 = vmatmul.f32.gmra.mxu0 %v604
  %v1648 = vpop.f32.mrf.mxu0
  %v1649 = vadd.f32 %v1440, %v1648
  %1650 = vmatmul.f32.gmra.mxu0 %v607
  %v1651 = vpop.f32.mrf.mxu0
  %v1652 = vadd.f32 %v1443, %v1651
  %1653 = vdwg.mxu0
  %v1654 = vsel %vm416, %v1463, 0.0
  %v1655 = vsel %vm416, %v1466, 0.0
  %v1656 = vadd.f32 %v1654, %v1655
  %v1657 = vsel %vm416, %v1469, 0.0
  %v1658 = vadd.f32 %v1656, %v1657
  %v1659 = vsel %vm416, %v1472, 0.0
  %v1660 = vadd.f32 %v1658, %v1659
  %v1661 = vsel %vm416, %v1475, 0.0
  %v1662 = vadd.f32 %v1660, %v1661
  %v1663 = vsel %vm416, %v1478, 0.0
  %v1664 = vadd.f32 %v1662, %v1663
  %v1665 = vsel %vm416, %v1481, 0.0
  %v1666 = vadd.f32 %v1664, %v1665
  %v1667 = vsel %vm416, %v1484, 0.0
  %v1668 = vadd.f32 %v1666, %v1667
  %v1669 = vsel %vm416, %v1487, 0.0
  %v1670 = vadd.f32 %v1668, %v1669
  %v1671 = vsel %vm416, %v1490, 0.0
  %v1672 = vadd.f32 %v1670, %v1671
  %v1673 = vsel %vm416, %v1493, 0.0
  %v1674 = vadd.f32 %v1672, %v1673
  %v1675 = vsel %vm416, %v1496, 0.0
  %v1676 = vadd.f32 %v1674, %v1675
  %v1677 = vsel %vm416, %v1499, 0.0
  %v1678 = vadd.f32 %v1676, %v1677
  %v1679 = vsel %vm416, %v1502, 0.0
  %v1680 = vadd.f32 %v1678, %v1679
  %v1681 = vsel %vm416, %v1505, 0.0
  %v1682 = vadd.f32 %v1680, %v1681
  %v1683 = vsel %vm416, %v1508, 0.0
  %v1684 = vadd.f32 %v1682, %v1683
  %v1685 = vsel %vm416, %v1511, 0.0
  %v1686 = vadd.f32 %v1684, %v1685
  %v1687 = vsel %vm416, %v1514, 0.0
  %v1688 = vadd.f32 %v1686, %v1687
  %v1689 = vsel %vm416, %v1517, 0.0
  %v1690 = vadd.f32 %v1688, %v1689
  %v1691 = vsel %vm416, %v1520, 0.0
  %v1692 = vadd.f32 %v1690, %v1691
  %v1693 = vsel %vm416, %v1523, 0.0
  %v1694 = vadd.f32 %v1692, %v1693
  %v1695 = vsel %vm416, %v1526, 0.0
  %v1696 = vadd.f32 %v1694, %v1695
  %v1697 = vsel %vm416, %v1529, 0.0
  %v1698 = vadd.f32 %v1696, %v1697
  %v1699 = vsel %vm416, %v1532, 0.0
  %v1700 = vadd.f32 %v1698, %v1699
  %v1701 = vsel %vm416, %v1535, 0.0
  %v1702 = vadd.f32 %v1700, %v1701
  %v1703 = vsel %vm416, %v1538, 0.0
  %v1704 = vadd.f32 %v1702, %v1703
  %v1705 = vsel %vm416, %v1541, 0.0
  %v1706 = vadd.f32 %v1704, %v1705
  %v1707 = vsel %vm416, %v1544, 0.0
  %v1708 = vadd.f32 %v1706, %v1707
  %v1709 = vsel %vm416, %v1547, 0.0
  %v1710 = vadd.f32 %v1708, %v1709
  %v1711 = vsel %vm416, %v1550, 0.0
  %v1712 = vadd.f32 %v1710, %v1711
  %v1713 = vsel %vm416, %v1553, 0.0
  %v1714 = vadd.f32 %v1712, %v1713
  %v1715 = vsel %vm416, %v1556, 0.0
  %v1716 = vadd.f32 %v1714, %v1715
  %v1717 = vsel %vm416, %v1559, 0.0
  %v1718 = vadd.f32 %v1716, %v1717
  %v1719 = vsel %vm416, %v1562, 0.0
  %v1720 = vadd.f32 %v1718, %v1719
  %v1721 = vsel %vm416, %v1565, 0.0
  %v1722 = vadd.f32 %v1720, %v1721
  %v1723 = vsel %vm416, %v1568, 0.0
  %v1724 = vadd.f32 %v1722, %v1723
  %v1725 = vsel %vm416, %v1571, 0.0
  %v1726 = vadd.f32 %v1724, %v1725
  %v1727 = vsel %vm416, %v1574, 0.0
  %v1728 = vadd.f32 %v1726, %v1727
  %v1729 = vsel %vm416, %v1577, 0.0
  %v1730 = vadd.f32 %v1728, %v1729
  %v1731 = vsel %vm416, %v1580, 0.0
  %v1732 = vadd.f32 %v1730, %v1731
  %v1733 = vsel %vm416, %v1583, 0.0
  %v1734 = vadd.f32 %v1732, %v1733
  %v1735 = vsel %vm416, %v1586, 0.0
  %v1736 = vadd.f32 %v1734, %v1735
  %v1737 = vsel %vm416, %v1589, 0.0
  %v1738 = vadd.f32 %v1736, %v1737
  %v1739 = vsel %vm416, %v1592, 0.0
  %v1740 = vadd.f32 %v1738, %v1739
  %v1741 = vsel %vm416, %v1595, 0.0
  %v1742 = vadd.f32 %v1740, %v1741
  %v1743 = vsel %vm416, %v1598, 0.0
  %v1744 = vadd.f32 %v1742, %v1743
  %v1745 = vsel %vm416, %v1601, 0.0
  %v1746 = vadd.f32 %v1744, %v1745
  %v1747 = vsel %vm416, %v1604, 0.0
  %v1748 = vadd.f32 %v1746, %v1747
  %v1749 = vsel %vm416, %v1607, 0.0
  %v1750 = vadd.f32 %v1748, %v1749
  %v1751 = vsel %vm416, %v1610, 0.0
  %v1752 = vadd.f32 %v1750, %v1751
  %v1753 = vsel %vm416, %v1613, 0.0
  %v1754 = vadd.f32 %v1752, %v1753
  %v1755 = vsel %vm416, %v1616, 0.0
  %v1756 = vadd.f32 %v1754, %v1755
  %v1757 = vsel %vm416, %v1619, 0.0
  %v1758 = vadd.f32 %v1756, %v1757
  %v1759 = vsel %vm416, %v1622, 0.0
  %v1760 = vadd.f32 %v1758, %v1759
  %v1761 = vsel %vm416, %v1625, 0.0
  %v1762 = vadd.f32 %v1760, %v1761
  %v1763 = vsel %vm416, %v1628, 0.0
  %v1764 = vadd.f32 %v1762, %v1763
  %v1765 = vsel %vm416, %v1631, 0.0
  %v1766 = vadd.f32 %v1764, %v1765
  %v1767 = vsel %vm416, %v1634, 0.0
  %v1768 = vadd.f32 %v1766, %v1767
  %v1769 = vsel %vm416, %v1637, 0.0
  %v1770 = vadd.f32 %v1768, %v1769
  %v1771 = vsel %vm416, %v1640, 0.0
  %v1772 = vadd.f32 %v1770, %v1771
  %v1773 = vsel %vm416, %v1643, 0.0
  %v1774 = vadd.f32 %v1772, %v1773
  %v1775 = vsel %vm416, %v1646, 0.0
  %v1776 = vadd.f32 %v1774, %v1775
  %v1777 = vsel %vm416, %v1649, 0.0
  %v1778 = vadd.f32 %v1776, %v1777
  %v1779 = vsel %vm416, %v1652, 0.0
  %v1780 = vadd.f32 %v1778, %v1779
  %v1781 = vrot.slane %v1780, 4
  %v1782 = vadd.f32 %v1780, %v1781
  %v1783 = vrot.slane %v1782, 2
  %v1784 = vadd.f32 %v1782, %v1783
  %v1785 = vrot.slane %v1784, 1
  %v1786 = vadd.f32 %v1784, %v1785
  %v1787 = vmul.f32 %v1786, 0.001953125
  %v1788 = vsub.f32 %v1463, %v1787
  %v1789 = vsub.f32 %v1466, %v1787
  %v1790 = vsub.f32 %v1469, %v1787
  %v1791 = vsub.f32 %v1472, %v1787
  %v1792 = vsub.f32 %v1475, %v1787
  %v1793 = vsub.f32 %v1478, %v1787
  %v1794 = vsub.f32 %v1481, %v1787
  %v1795 = vsub.f32 %v1484, %v1787
  %v1796 = vsub.f32 %v1487, %v1787
  %v1797 = vsub.f32 %v1490, %v1787
  %v1798 = vsub.f32 %v1493, %v1787
  %v1799 = vsub.f32 %v1496, %v1787
  %v1800 = vsub.f32 %v1499, %v1787
  %v1801 = vsub.f32 %v1502, %v1787
  %v1802 = vsub.f32 %v1505, %v1787
  %v1803 = vsub.f32 %v1508, %v1787
  %v1804 = vsub.f32 %v1511, %v1787
  %v1805 = vsub.f32 %v1514, %v1787
  %v1806 = vsub.f32 %v1517, %v1787
  %v1807 = vsub.f32 %v1520, %v1787
  %v1808 = vsub.f32 %v1523, %v1787
  %v1809 = vsub.f32 %v1526, %v1787
  %v1810 = vsub.f32 %v1529, %v1787
  %v1811 = vsub.f32 %v1532, %v1787
  %v1812 = vsub.f32 %v1535, %v1787
  %v1813 = vsub.f32 %v1538, %v1787
  %v1814 = vsub.f32 %v1541, %v1787
  %v1815 = vsub.f32 %v1544, %v1787
  %v1816 = vsub.f32 %v1547, %v1787
  %v1817 = vsub.f32 %v1550, %v1787
  %v1818 = vsub.f32 %v1553, %v1787
  %v1819 = vsub.f32 %v1556, %v1787
  %v1820 = vsub.f32 %v1559, %v1787
  %v1821 = vsub.f32 %v1562, %v1787
  %v1822 = vsub.f32 %v1565, %v1787
  %v1823 = vsub.f32 %v1568, %v1787
  %v1824 = vsub.f32 %v1571, %v1787
  %v1825 = vsub.f32 %v1574, %v1787
  %v1826 = vsub.f32 %v1577, %v1787
  %v1827 = vsub.f32 %v1580, %v1787
  %v1828 = vsub.f32 %v1583, %v1787
  %v1829 = vsub.f32 %v1586, %v1787
  %v1830 = vsub.f32 %v1589, %v1787
  %v1831 = vsub.f32 %v1592, %v1787
  %v1832 = vsub.f32 %v1595, %v1787
  %v1833 = vsub.f32 %v1598, %v1787
  %v1834 = vsub.f32 %v1601, %v1787
  %v1835 = vsub.f32 %v1604, %v1787
  %v1836 = vsub.f32 %v1607, %v1787
  %v1837 = vsub.f32 %v1610, %v1787
  %v1838 = vsub.f32 %v1613, %v1787
  %v1839 = vsub.f32 %v1616, %v1787
  %v1840 = vsub.f32 %v1619, %v1787
  %v1841 = vsub.f32 %v1622, %v1787
  %v1842 = vsub.f32 %v1625, %v1787
  %v1843 = vsub.f32 %v1628, %v1787
  %v1844 = vsub.f32 %v1631, %v1787
  %v1845 = vsub.f32 %v1634, %v1787
  %v1846 = vsub.f32 %v1637, %v1787
  %v1847 = vsub.f32 %v1640, %v1787
  %v1848 = vsub.f32 %v1643, %v1787
  %v1849 = vsub.f32 %v1646, %v1787
  %v1850 = vsub.f32 %v1649, %v1787
  %v1851 = vsub.f32 %v1652, %v1787
  %v1852 = vmul.f32 %v1788, %v1788
  %v1853 = vmul.f32 %v1789, %v1789
  %v1854 = vmul.f32 %v1790, %v1790
  %v1855 = vmul.f32 %v1791, %v1791
  %v1856 = vmul.f32 %v1792, %v1792
  %v1857 = vmul.f32 %v1793, %v1793
  %v1858 = vmul.f32 %v1794, %v1794
  %v1859 = vmul.f32 %v1795, %v1795
  %v1860 = vmul.f32 %v1796, %v1796
  %v1861 = vmul.f32 %v1797, %v1797
  %v1862 = vmul.f32 %v1798, %v1798
  %v1863 = vmul.f32 %v1799, %v1799
  %v1864 = vmul.f32 %v1800, %v1800
  %v1865 = vmul.f32 %v1801, %v1801
  %v1866 = vmul.f32 %v1802, %v1802
  %v1867 = vmul.f32 %v1803, %v1803
  %v1868 = vmul.f32 %v1804, %v1804
  %v1869 = vmul.f32 %v1805, %v1805
  %v1870 = vmul.f32 %v1806, %v1806
  %v1871 = vmul.f32 %v1807, %v1807
  %v1872 = vmul.f32 %v1808, %v1808
  %v1873 = vmul.f32 %v1809, %v1809
  %v1874 = vmul.f32 %v1810, %v1810
  %v1875 = vmul.f32 %v1811, %v1811
  %v1876 = vmul.f32 %v1812, %v1812
  %v1877 = vmul.f32 %v1813, %v1813
  %v1878 = vmul.f32 %v1814, %v1814
  %v1879 = vmul.f32 %v1815, %v1815
  %v1880 = vmul.f32 %v1816, %v1816
  %v1881 = vmul.f32 %v1817, %v1817
  %v1882 = vmul.f32 %v1818, %v1818
  %v1883 = vmul.f32 %v1819, %v1819
  %v1884 = vmul.f32 %v1820, %v1820
  %v1885 = vmul.f32 %v1821, %v1821
  %v1886 = vmul.f32 %v1822, %v1822
  %v1887 = vmul.f32 %v1823, %v1823
  %v1888 = vmul.f32 %v1824, %v1824
  %v1889 = vmul.f32 %v1825, %v1825
  %v1890 = vmul.f32 %v1826, %v1826
  %v1891 = vmul.f32 %v1827, %v1827
  %v1892 = vmul.f32 %v1828, %v1828
  %v1893 = vmul.f32 %v1829, %v1829
  %v1894 = vmul.f32 %v1830, %v1830
  %v1895 = vmul.f32 %v1831, %v1831
  %v1896 = vmul.f32 %v1832, %v1832
  %v1897 = vmul.f32 %v1833, %v1833
  %v1898 = vmul.f32 %v1834, %v1834
  %v1899 = vmul.f32 %v1835, %v1835
  %v1900 = vmul.f32 %v1836, %v1836
  %v1901 = vmul.f32 %v1837, %v1837
  %v1902 = vmul.f32 %v1838, %v1838
  %v1903 = vmul.f32 %v1839, %v1839
  %v1904 = vmul.f32 %v1840, %v1840
  %v1905 = vmul.f32 %v1841, %v1841
  %v1906 = vmul.f32 %v1842, %v1842
  %v1907 = vmul.f32 %v1843, %v1843
  %v1908 = vmul.f32 %v1844, %v1844
  %v1909 = vmul.f32 %v1845, %v1845
  %v1910 = vmul.f32 %v1846, %v1846
  %v1911 = vmul.f32 %v1847, %v1847
  %v1912 = vmul.f32 %v1848, %v1848
  %v1913 = vmul.f32 %v1849, %v1849
  %v1914 = vmul.f32 %v1850, %v1850
  %v1915 = vmul.f32 %v1851, %v1851
  %v1916 = vsel %vm416, %v1852, 0.0
  %v1917 = vsel %vm416, %v1853, 0.0
  %v1918 = vadd.f32 %v1916, %v1917
  %v1919 = vsel %vm416, %v1854, 0.0
  %v1920 = vadd.f32 %v1918, %v1919
  %v1921 = vsel %vm416, %v1855, 0.0
  %v1922 = vadd.f32 %v1920, %v1921
  %v1923 = vsel %vm416, %v1856, 0.0
  %v1924 = vadd.f32 %v1922, %v1923
  %v1925 = vsel %vm416, %v1857, 0.0
  %v1926 = vadd.f32 %v1924, %v1925
  %v1927 = vsel %vm416, %v1858, 0.0
  %v1928 = vadd.f32 %v1926, %v1927
  %v1929 = vsel %vm416, %v1859, 0.0
  %v1930 = vadd.f32 %v1928, %v1929
  %v1931 = vsel %vm416, %v1860, 0.0
  %v1932 = vadd.f32 %v1930, %v1931
  %v1933 = vsel %vm416, %v1861, 0.0
  %v1934 = vadd.f32 %v1932, %v1933
  %v1935 = vsel %vm416, %v1862, 0.0
  %v1936 = vadd.f32 %v1934, %v1935
  %v1937 = vsel %vm416, %v1863, 0.0
  %v1938 = vadd.f32 %v1936, %v1937
  %v1939 = vsel %vm416, %v1864, 0.0
  %v1940 = vadd.f32 %v1938, %v1939
  %v1941 = vsel %vm416, %v1865, 0.0
  %v1942 = vadd.f32 %v1940, %v1941
  %v1943 = vsel %vm416, %v1866, 0.0
  %v1944 = vadd.f32 %v1942, %v1943
  %v1945 = vsel %vm416, %v1867, 0.0
  %v1946 = vadd.f32 %v1944, %v1945
  %v1947 = vsel %vm416, %v1868, 0.0
  %v1948 = vadd.f32 %v1946, %v1947
  %v1949 = vsel %vm416, %v1869, 0.0
  %v1950 = vadd.f32 %v1948, %v1949
  %v1951 = vsel %vm416, %v1870, 0.0
  %v1952 = vadd.f32 %v1950, %v1951
  %v1953 = vsel %vm416, %v1871, 0.0
  %v1954 = vadd.f32 %v1952, %v1953
  %v1955 = vsel %vm416, %v1872, 0.0
  %v1956 = vadd.f32 %v1954, %v1955
  %v1957 = vsel %vm416, %v1873, 0.0
  %v1958 = vadd.f32 %v1956, %v1957
  %v1959 = vsel %vm416, %v1874, 0.0
  %v1960 = vadd.f32 %v1958, %v1959
  %v1961 = vsel %vm416, %v1875, 0.0
  %v1962 = vadd.f32 %v1960, %v1961
  %v1963 = vsel %vm416, %v1876, 0.0
  %v1964 = vadd.f32 %v1962, %v1963
  %v1965 = vsel %vm416, %v1877, 0.0
  %v1966 = vadd.f32 %v1964, %v1965
  %v1967 = vsel %vm416, %v1878, 0.0
  %v1968 = vadd.f32 %v1966, %v1967
  %v1969 = vsel %vm416, %v1879, 0.0
  %v1970 = vadd.f32 %v1968, %v1969
  %v1971 = vsel %vm416, %v1880, 0.0
  %v1972 = vadd.f32 %v1970, %v1971
  %v1973 = vsel %vm416, %v1881, 0.0
  %v1974 = vadd.f32 %v1972, %v1973
  %v1975 = vsel %vm416, %v1882, 0.0
  %v1976 = vadd.f32 %v1974, %v1975
  %v1977 = vsel %vm416, %v1883, 0.0
  %v1978 = vadd.f32 %v1976, %v1977
  %v1979 = vsel %vm416, %v1884, 0.0
  %v1980 = vadd.f32 %v1978, %v1979
  %v1981 = vsel %vm416, %v1885, 0.0
  %v1982 = vadd.f32 %v1980, %v1981
  %v1983 = vsel %vm416, %v1886, 0.0
  %v1984 = vadd.f32 %v1982, %v1983
  %v1985 = vsel %vm416, %v1887, 0.0
  %v1986 = vadd.f32 %v1984, %v1985
  %v1987 = vsel %vm416, %v1888, 0.0
  %v1988 = vadd.f32 %v1986, %v1987
  %v1989 = vsel %vm416, %v1889, 0.0
  %v1990 = vadd.f32 %v1988, %v1989
  %v1991 = vsel %vm416, %v1890, 0.0
  %v1992 = vadd.f32 %v1990, %v1991
  %v1993 = vsel %vm416, %v1891, 0.0
  %v1994 = vadd.f32 %v1992, %v1993
  %v1995 = vsel %vm416, %v1892, 0.0
  %v1996 = vadd.f32 %v1994, %v1995
  %v1997 = vsel %vm416, %v1893, 0.0
  %v1998 = vadd.f32 %v1996, %v1997
  %v1999 = vsel %vm416, %v1894, 0.0
  %v2000 = vadd.f32 %v1998, %v1999
  %v2001 = vsel %vm416, %v1895, 0.0
  %v2002 = vadd.f32 %v2000, %v2001
  %v2003 = vsel %vm416, %v1896, 0.0
  %v2004 = vadd.f32 %v2002, %v2003
  %v2005 = vsel %vm416, %v1897, 0.0
  %v2006 = vadd.f32 %v2004, %v2005
  %v2007 = vsel %vm416, %v1898, 0.0
  %v2008 = vadd.f32 %v2006, %v2007
  %v2009 = vsel %vm416, %v1899, 0.0
  %v2010 = vadd.f32 %v2008, %v2009
  %v2011 = vsel %vm416, %v1900, 0.0
  %v2012 = vadd.f32 %v2010, %v2011
  %v2013 = vsel %vm416, %v1901, 0.0
  %v2014 = vadd.f32 %v2012, %v2013
  %v2015 = vsel %vm416, %v1902, 0.0
  %v2016 = vadd.f32 %v2014, %v2015
  %v2017 = vsel %vm416, %v1903, 0.0
  %v2018 = vadd.f32 %v2016, %v2017
  %v2019 = vsel %vm416, %v1904, 0.0
  %v2020 = vadd.f32 %v2018, %v2019
  %v2021 = vsel %vm416, %v1905, 0.0
  %v2022 = vadd.f32 %v2020, %v2021
  %v2023 = vsel %vm416, %v1906, 0.0
  %v2024 = vadd.f32 %v2022, %v2023
  %v2025 = vsel %vm416, %v1907, 0.0
  %v2026 = vadd.f32 %v2024, %v2025
  %v2027 = vsel %vm416, %v1908, 0.0
  %v2028 = vadd.f32 %v2026, %v2027
  %v2029 = vsel %vm416, %v1909, 0.0
  %v2030 = vadd.f32 %v2028, %v2029
  %v2031 = vsel %vm416, %v1910, 0.0
  %v2032 = vadd.f32 %v2030, %v2031
  %v2033 = vsel %vm416, %v1911, 0.0
  %v2034 = vadd.f32 %v2032, %v2033
  %v2035 = vsel %vm416, %v1912, 0.0
  %v2036 = vadd.f32 %v2034, %v2035
  %v2037 = vsel %vm416, %v1913, 0.0
  %v2038 = vadd.f32 %v2036, %v2037
  %v2039 = vsel %vm416, %v1914, 0.0
  %v2040 = vadd.f32 %v2038, %v2039
  %v2041 = vsel %vm416, %v1915, 0.0
  %v2042 = vadd.f32 %v2040, %v2041
  %v2043 = vrot.slane %v2042, 4
  %v2044 = vadd.f32 %v2042, %v2043
  %v2045 = vrot.slane %v2044, 2
  %v2046 = vadd.f32 %v2044, %v2045
  %v2047 = vrot.slane %v2046, 1
  %v2048 = vadd.f32 %v2046, %v2047
  %v2049 = vmul.f32 %v2048, 0.001953125
  %v2050 = vld [vmem:[%s3] sm:$0x1]
  %v2051 = vadd.f32 %v2049, 1e-05
  %v2052 = vrsqrt.pop %v2051
  %v2053 = vmul.f32 %v2052, %v2051
  %v2054 = vmul.f32 %v2053, %v2052
  %v2055 = vmul.f32 0.5, %v2054
  %v2056 = vsub.f32 1.5, %v2055
  %v2057 = vmul.f32 %v2052, %v2056
  %vm2058 = vweird.f32 %v2051
  %vm2059 = vweird.f32 %v2052
  %vm2060 = vmor %vm2058, %vm2059
  %v2061 = vsel %vm2060, %v2052, %v2057
  %v2062 = vmul.f32 %v2050, %v2061
  %v2064 = vperm.slane %v2062, 0
  %v2066 = vmul.f32 %v1788, %v2064
  %v2067 = vmul.f32 %v1789, %v2064
  %v2068 = vmul.f32 %v1790, %v2064
  %v2069 = vmul.f32 %v1791, %v2064
  %v2070 = vmul.f32 %v1792, %v2064
  %v2071 = vmul.f32 %v1793, %v2064
  %v2072 = vmul.f32 %v1794, %v2064
  %v2073 = vmul.f32 %v1795, %v2064
  %v2074 = vmul.f32 %v1796, %v2064
  %v2075 = vmul.f32 %v1797, %v2064
  %v2076 = vmul.f32 %v1798, %v2064
  %v2077 = vmul.f32 %v1799, %v2064
  %v2078 = vmul.f32 %v1800, %v2064
  %v2079 = vmul.f32 %v1801, %v2064
  %v2080 = vmul.f32 %v1802, %v2064
  %v2081 = vmul.f32 %v1803, %v2064
  %v2082 = vmul.f32 %v1804, %v2064
  %v2083 = vmul.f32 %v1805, %v2064
  %v2084 = vmul.f32 %v1806, %v2064
  %v2085 = vmul.f32 %v1807, %v2064
  %v2086 = vmul.f32 %v1808, %v2064
  %v2087 = vmul.f32 %v1809, %v2064
  %v2088 = vmul.f32 %v1810, %v2064
  %v2089 = vmul.f32 %v1811, %v2064
  %v2090 = vmul.f32 %v1812, %v2064
  %v2091 = vmul.f32 %v1813, %v2064
  %v2092 = vmul.f32 %v1814, %v2064
  %v2093 = vmul.f32 %v1815, %v2064
  %v2094 = vmul.f32 %v1816, %v2064
  %v2095 = vmul.f32 %v1817, %v2064
  %v2096 = vmul.f32 %v1818, %v2064
  %v2097 = vmul.f32 %v1819, %v2064
  %v2098 = vmul.f32 %v1820, %v2064
  %v2099 = vmul.f32 %v1821, %v2064
  %v2100 = vmul.f32 %v1822, %v2064
  %v2101 = vmul.f32 %v1823, %v2064
  %v2102 = vmul.f32 %v1824, %v2064
  %v2103 = vmul.f32 %v1825, %v2064
  %v2104 = vmul.f32 %v1826, %v2064
  %v2105 = vmul.f32 %v1827, %v2064
  %v2106 = vmul.f32 %v1828, %v2064
  %v2107 = vmul.f32 %v1829, %v2064
  %v2108 = vmul.f32 %v1830, %v2064
  %v2109 = vmul.f32 %v1831, %v2064
  %v2110 = vmul.f32 %v1832, %v2064
  %v2111 = vmul.f32 %v1833, %v2064
  %v2112 = vmul.f32 %v1834, %v2064
  %v2113 = vmul.f32 %v1835, %v2064
  %v2114 = vmul.f32 %v1836, %v2064
  %v2115 = vmul.f32 %v1837, %v2064
  %v2116 = vmul.f32 %v1838, %v2064
  %v2117 = vmul.f32 %v1839, %v2064
  %v2118 = vmul.f32 %v1840, %v2064
  %v2119 = vmul.f32 %v1841, %v2064
  %v2120 = vmul.f32 %v1842, %v2064
  %v2121 = vmul.f32 %v1843, %v2064
  %v2122 = vmul.f32 %v1844, %v2064
  %v2123 = vmul.f32 %v1845, %v2064
  %v2124 = vmul.f32 %v1846, %v2064
  %v2125 = vmul.f32 %v1847, %v2064
  %v2126 = vmul.f32 %v1848, %v2064
  %v2127 = vmul.f32 %v1849, %v2064
  %v2128 = vmul.f32 %v1850, %v2064
  %v2129 = vmul.f32 %v1851, %v2064
  %v2130 = vld [vmem:[%s4] sm:$0x1]
  %v2132 = vperm.slane %v2130, 0
  %v2134 = vadd.f32 %v2066, %v2132
  %v2135 = vadd.f32 %v2067, %v2132
  %v2136 = vadd.f32 %v2068, %v2132
  %v2137 = vadd.f32 %v2069, %v2132
  %v2138 = vadd.f32 %v2070, %v2132
  %v2139 = vadd.f32 %v2071, %v2132
  %v2140 = vadd.f32 %v2072, %v2132
  %v2141 = vadd.f32 %v2073, %v2132
  %v2142 = vadd.f32 %v2074, %v2132
  %v2143 = vadd.f32 %v2075, %v2132
  %v2144 = vadd.f32 %v2076, %v2132
  %v2145 = vadd.f32 %v2077, %v2132
  %v2146 = vadd.f32 %v2078, %v2132
  %v2147 = vadd.f32 %v2079, %v2132
  %v2148 = vadd.f32 %v2080, %v2132
  %v2149 = vadd.f32 %v2081, %v2132
  %v2150 = vadd.f32 %v2082, %v2132
  %v2151 = vadd.f32 %v2083, %v2132
  %v2152 = vadd.f32 %v2084, %v2132
  %v2153 = vadd.f32 %v2085, %v2132
  %v2154 = vadd.f32 %v2086, %v2132
  %v2155 = vadd.f32 %v2087, %v2132
  %v2156 = vadd.f32 %v2088, %v2132
  %v2157 = vadd.f32 %v2089, %v2132
  %v2158 = vadd.f32 %v2090, %v2132
  %v2159 = vadd.f32 %v2091, %v2132
  %v2160 = vadd.f32 %v2092, %v2132
  %v2161 = vadd.f32 %v2093, %v2132
  %v2162 = vadd.f32 %v2094, %v2132
  %v2163 = vadd.f32 %v2095, %v2132
  %v2164 = vadd.f32 %v2096, %v2132
  %v2165 = vadd.f32 %v2097, %v2132
  %v2166 = vadd.f32 %v2098, %v2132
  %v2167 = vadd.f32 %v2099, %v2132
  %v2168 = vadd.f32 %v2100, %v2132
  %v2169 = vadd.f32 %v2101, %v2132
  %v2170 = vadd.f32 %v2102, %v2132
  %v2171 = vadd.f32 %v2103, %v2132
  %v2172 = vadd.f32 %v2104, %v2132
  %v2173 = vadd.f32 %v2105, %v2132
  %v2174 = vadd.f32 %v2106, %v2132
  %v2175 = vadd.f32 %v2107, %v2132
  %v2176 = vadd.f32 %v2108, %v2132
  %v2177 = vadd.f32 %v2109, %v2132
  %v2178 = vadd.f32 %v2110, %v2132
  %v2179 = vadd.f32 %v2111, %v2132
  %v2180 = vadd.f32 %v2112, %v2132
  %v2181 = vadd.f32 %v2113, %v2132
  %v2182 = vadd.f32 %v2114, %v2132
  %v2183 = vadd.f32 %v2115, %v2132
  %v2184 = vadd.f32 %v2116, %v2132
  %v2185 = vadd.f32 %v2117, %v2132
  %v2186 = vadd.f32 %v2118, %v2132
  %v2187 = vadd.f32 %v2119, %v2132
  %v2188 = vadd.f32 %v2120, %v2132
  %v2189 = vadd.f32 %v2121, %v2132
  %v2190 = vadd.f32 %v2122, %v2132
  %v2191 = vadd.f32 %v2123, %v2132
  %v2192 = vadd.f32 %v2124, %v2132
  %v2193 = vadd.f32 %v2125, %v2132
  %v2194 = vadd.f32 %v2126, %v2132
  %v2195 = vadd.f32 %v2127, %v2132
  %v2196 = vadd.f32 %v2128, %v2132
  %v2197 = vadd.f32 %v2129, %v2132
  %2198 = vst.msk [vmem:[#allocation2] sm:$0xff] %vm416, %v2134
  %2199 = vst.msk [vmem:[#allocation2 + $0x8] sm:$0xff] %vm416, %v2135
  %2200 = vst.msk [vmem:[#allocation2 + $0x10] sm:$0xff] %vm416, %v2136
  %2201 = vst.msk [vmem:[#allocation2 + $0x18] sm:$0xff] %vm416, %v2137
  %2202 = vst.msk [vmem:[#allocation2 + $0x20] sm:$0xff] %vm416, %v2138
  %2203 = vst.msk [vmem:[#allocation2 + $0x28] sm:$0xff] %vm416, %v2139
  %2204 = vst.msk [vmem:[#allocation2 + $0x30] sm:$0xff] %vm416, %v2140
  %2205 = vst.msk [vmem:[#allocation2 + $0x38] sm:$0xff] %vm416, %v2141
  %2206 = vst.msk [vmem:[#allocation2 + $0x40] sm:$0xff] %vm416, %v2142
  %2207 = vst.msk [vmem:[#allocation2 + $0x48] sm:$0xff] %vm416, %v2143
  %2208 = vst.msk [vmem:[#allocation2 + $0x50] sm:$0xff] %vm416, %v2144
  %2209 = vst.msk [vmem:[#allocation2 + $0x58] sm:$0xff] %vm416, %v2145
  %2210 = vst.msk [vmem:[#allocation2 + $0x60] sm:$0xff] %vm416, %v2146
  %2211 = vst.msk [vmem:[#allocation2 + $0x68] sm:$0xff] %vm416, %v2147
  %2212 = vst.msk [vmem:[#allocation2 + $0x70] sm:$0xff] %vm416, %v2148
  %2213 = vst.msk [vmem:[#allocation2 + $0x78] sm:$0xff] %vm416, %v2149
  %2214 = vst.msk [vmem:[#allocation2 + $0x80] sm:$0xff] %vm416, %v2150
  %2215 = vst.msk [vmem:[#allocation2 + $0x88] sm:$0xff] %vm416, %v2151
  %2216 = vst.msk [vmem:[#allocation2 + $0x90] sm:$0xff] %vm416, %v2152
  %2217 = vst.msk [vmem:[#allocation2 + $0x98] sm:$0xff] %vm416, %v2153
  %2218 = vst.msk [vmem:[#allocation2 + $0xa0] sm:$0xff] %vm416, %v2154
  %2219 = vst.msk [vmem:[#allocation2 + $0xa8] sm:$0xff] %vm416, %v2155
  %2220 = vst.msk [vmem:[#allocation2 + $0xb0] sm:$0xff] %vm416, %v2156
  %2221 = vst.msk [vmem:[#allocation2 + $0xb8] sm:$0xff] %vm416, %v2157
  %2222 = vst.msk [vmem:[#allocation2 + $0xc0] sm:$0xff] %vm416, %v2158
  %2223 = vst.msk [vmem:[#allocation2 + $0xc8] sm:$0xff] %vm416, %v2159
  %2224 = vst.msk [vmem:[#allocation2 + $0xd0] sm:$0xff] %vm416, %v2160
  %2225 = vst.msk [vmem:[#allocation2 + $0xd8] sm:$0xff] %vm416, %v2161
  %2226 = vst.msk [vmem:[#allocation2 + $0xe0] sm:$0xff] %vm416, %v2162
  %2227 = vst.msk [vmem:[#allocation2 + $0xe8] sm:$0xff] %vm416, %v2163
  %2228 = vst.msk [vmem:[#allocation2 + $0xf0] sm:$0xff] %vm416, %v2164
  %2229 = vst.msk [vmem:[#allocation2 + $0xf8] sm:$0xff] %vm416, %v2165
  %2230 = vst.msk [vmem:[#allocation2 + $0x100] sm:$0xff] %vm416, %v2166
  %2231 = vst.msk [vmem:[#allocation2 + $0x108] sm:$0xff] %vm416, %v2167
  %2232 = vst.msk [vmem:[#allocation2 + $0x110] sm:$0xff] %vm416, %v2168
  %2233 = vst.msk [vmem:[#allocation2 + $0x118] sm:$0xff] %vm416, %v2169
  %2234 = vst.msk [vmem:[#allocation2 + $0x120] sm:$0xff] %vm416, %v2170
  %2235 = vst.msk [vmem:[#allocation2 + $0x128] sm:$0xff] %vm416, %v2171
  %2236 = vst.msk [vmem:[#allocation2 + $0x130] sm:$0xff] %vm416, %v2172
  %2237 = vst.msk [vmem:[#allocation2 + $0x138] sm:$0xff] %vm416, %v2173
  %2238 = vst.msk [vmem:[#allocation2 + $0x140] sm:$0xff] %vm416, %v2174
  %2239 = vst.msk [vmem:[#allocation2 + $0x148] sm:$0xff] %vm416, %v2175
  %2240 = vst.msk [vmem:[#allocation2 + $0x150] sm:$0xff] %vm416, %v2176
  %2241 = vst.msk [vmem:[#allocation2 + $0x158] sm:$0xff] %vm416, %v2177
  %2242 = vst.msk [vmem:[#allocation2 + $0x160] sm:$0xff] %vm416, %v2178
  %2243 = vst.msk [vmem:[#allocation2 + $0x168] sm:$0xff] %vm416, %v2179
  %2244 = vst.msk [vmem:[#allocation2 + $0x170] sm:$0xff] %vm416, %v2180
  %2245 = vst.msk [vmem:[#allocation2 + $0x178] sm:$0xff] %vm416, %v2181
  %2246 = vst.msk [vmem:[#allocation2 + $0x180] sm:$0xff] %vm416, %v2182
  %2247 = vst.msk [vmem:[#allocation2 + $0x188] sm:$0xff] %vm416, %v2183
  %2248 = vst.msk [vmem:[#allocation2 + $0x190] sm:$0xff] %vm416, %v2184
  %2249 = vst.msk [vmem:[#allocation2 + $0x198] sm:$0xff] %vm416, %v2185
  %2250 = vst.msk [vmem:[#allocation2 + $0x1a0] sm:$0xff] %vm416, %v2186
  %2251 = vst.msk [vmem:[#allocation2 + $0x1a8] sm:$0xff] %vm416, %v2187
  %2252 = vst.msk [vmem:[#allocation2 + $0x1b0] sm:$0xff] %vm416, %v2188
  %2253 = vst.msk [vmem:[#allocation2 + $0x1b8] sm:$0xff] %vm416, %v2189
  %2254 = vst.msk [vmem:[#allocation2 + $0x1c0] sm:$0xff] %vm416, %v2190
  %2255 = vst.msk [vmem:[#allocation2 + $0x1c8] sm:$0xff] %vm416, %v2191
  %2256 = vst.msk [vmem:[#allocation2 + $0x1d0] sm:$0xff] %vm416, %v2192
  %2257 = vst.msk [vmem:[#allocation2 + $0x1d8] sm:$0xff] %vm416, %v2193
  %2258 = vst.msk [vmem:[#allocation2 + $0x1e0] sm:$0xff] %vm416, %v2194
  %2259 = vst.msk [vmem:[#allocation2 + $0x1e8] sm:$0xff] %vm416, %v2195
  %2260 = vst.msk [vmem:[#allocation2 + $0x1f0] sm:$0xff] %vm416, %v2196
  %2261 = vst.msk [vmem:[#allocation2 + $0x1f8] sm:$0xff] %vm416, %v2197
  %v2262 = vld [vmem:[#allocation2] ss:$4 sm:$0xff]
  %s2263 = scalar_lea.vmem [#allocation2], 32
  %v2264 = vld [vmem:[%s2263] ss:$4 sm:$0xff]
  %s2265 = scalar_lea.vmem [#allocation2], 64
  %v2266 = vld [vmem:[%s2265] ss:$4 sm:$0xff]
  %s2267 = scalar_lea.vmem [#allocation2], 96
  %v2268 = vld [vmem:[%s2267] ss:$4 sm:$0xff]
  %s2269 = scalar_lea.vmem [#allocation2], 128
  %v2270 = vld [vmem:[%s2269] ss:$4 sm:$0xff]
  %s2271 = scalar_lea.vmem [#allocation2], 160
  %v2272 = vld [vmem:[%s2271] ss:$4 sm:$0xff]
  %s2273 = scalar_lea.vmem [#allocation2], 192
  %v2274 = vld [vmem:[%s2273] ss:$4 sm:$0xff]
  %s2275 = scalar_lea.vmem [#allocation2], 224
  %v2276 = vld [vmem:[%s2275] ss:$4 sm:$0xff]
  %s2277 = scalar_lea.vmem [#allocation2], 256
  %v2278 = vld [vmem:[%s2277] ss:$4 sm:$0xff]
  %s2279 = scalar_lea.vmem [#allocation2], 288
  %v2280 = vld [vmem:[%s2279] ss:$4 sm:$0xff]
  %s2281 = scalar_lea.vmem [#allocation2], 320
  %v2282 = vld [vmem:[%s2281] ss:$4 sm:$0xff]
  %s2283 = scalar_lea.vmem [#allocation2], 352
  %v2284 = vld [vmem:[%s2283] ss:$4 sm:$0xff]
  %s2285 = scalar_lea.vmem [#allocation2], 384
  %v2286 = vld [vmem:[%s2285] ss:$4 sm:$0xff]
  %s2287 = scalar_lea.vmem [#allocation2], 416
  %v2288 = vld [vmem:[%s2287] ss:$4 sm:$0xff]
  %s2289 = scalar_lea.vmem [#allocation2], 448
  %v2290 = vld [vmem:[%s2289] ss:$4 sm:$0xff]
  %s2291 = scalar_lea.vmem [#allocation2], 480
  %v2292 = vld [vmem:[%s2291] ss:$4 sm:$0xff]
  %s2293 = scalar_lea.vmem [#allocation2], 1
  %v2294 = vld [vmem:[%s2293] ss:$4 sm:$0xff]
  %s2295 = scalar_lea.vmem [#allocation2], 33
  %v2296 = vld [vmem:[%s2295] ss:$4 sm:$0xff]
  %s2297 = scalar_lea.vmem [#allocation2], 65
  %v2298 = vld [vmem:[%s2297] ss:$4 sm:$0xff]
  %s2299 = scalar_lea.vmem [#allocation2], 97
  %v2300 = vld [vmem:[%s2299] ss:$4 sm:$0xff]
  %s2301 = scalar_lea.vmem [#allocation2], 129
  %v2302 = vld [vmem:[%s2301] ss:$4 sm:$0xff]
  %s2303 = scalar_lea.vmem [#allocation2], 161
  %v2304 = vld [vmem:[%s2303] ss:$4 sm:$0xff]
  %s2305 = scalar_lea.vmem [#allocation2], 193
  %v2306 = vld [vmem:[%s2305] ss:$4 sm:$0xff]
  %s2307 = scalar_lea.vmem [#allocation2], 225
  %v2308 = vld [vmem:[%s2307] ss:$4 sm:$0xff]
  %s2309 = scalar_lea.vmem [#allocation2], 257
  %v2310 = vld [vmem:[%s2309] ss:$4 sm:$0xff]
  %s2311 = scalar_lea.vmem [#allocation2], 289
  %v2312 = vld [vmem:[%s2311] ss:$4 sm:$0xff]
  %s2313 = scalar_lea.vmem [#allocation2], 321
  %v2314 = vld [vmem:[%s2313] ss:$4 sm:$0xff]
  %s2315 = scalar_lea.vmem [#allocation2], 353
  %v2316 = vld [vmem:[%s2315] ss:$4 sm:$0xff]
  %s2317 = scalar_lea.vmem [#allocation2], 385
  %v2318 = vld [vmem:[%s2317] ss:$4 sm:$0xff]
  %s2319 = scalar_lea.vmem [#allocation2], 417
  %v2320 = vld [vmem:[%s2319] ss:$4 sm:$0xff]
  %s2321 = scalar_lea.vmem [#allocation2], 449
  %v2322 = vld [vmem:[%s2321] ss:$4 sm:$0xff]
  %s2323 = scalar_lea.vmem [#allocation2], 481
  %v2324 = vld [vmem:[%s2323] ss:$4 sm:$0xff]
  %v2325 = vmax.f32 %v2262, %v2294
  %v2326 = vmax.f32 %v2264, %v2296
  %v2327 = vmax.f32 %v2266, %v2298
  %v2328 = vmax.f32 %v2268, %v2300
  %v2329 = vmax.f32 %v2270, %v2302
  %v2330 = vmax.f32 %v2272, %v2304
  %v2331 = vmax.f32 %v2274, %v2306
  %v2332 = vmax.f32 %v2276, %v2308
  %v2333 = vmax.f32 %v2278, %v2310
  %v2334 = vmax.f32 %v2280, %v2312
  %v2335 = vmax.f32 %v2282, %v2314
  %v2336 = vmax.f32 %v2284, %v2316
  %v2337 = vmax.f32 %v2286, %v2318
  %v2338 = vmax.f32 %v2288, %v2320
  %v2339 = vmax.f32 %v2290, %v2322
  %v2340 = vmax.f32 %v2292, %v2324
  %s2341 = scalar_lea.vmem [#allocation2], 2
  %v2342 = vld [vmem:[%s2341] ss:$4 sm:$0xff]
  %s2343 = scalar_lea.vmem [#allocation2], 34
  %v2344 = vld [vmem:[%s2343] ss:$4 sm:$0xff]
  %s2345 = scalar_lea.vmem [#allocation2], 66
  %v2346 = vld [vmem:[%s2345] ss:$4 sm:$0xff]
  %s2347 = scalar_lea.vmem [#allocation2], 98
  %v2348 = vld [vmem:[%s2347] ss:$4 sm:$0xff]
  %s2349 = scalar_lea.vmem [#allocation2], 130
  %v2350 = vld [vmem:[%s2349] ss:$4 sm:$0xff]
  %s2351 = scalar_lea.vmem [#allocation2], 162
  %v2352 = vld [vmem:[%s2351] ss:$4 sm:$0xff]
  %s2353 = scalar_lea.vmem [#allocation2], 194
  %v2354 = vld [vmem:[%s2353] ss:$4 sm:$0xff]
  %s2355 = scalar_lea.vmem [#allocation2], 226
  %v2356 = vld [vmem:[%s2355] ss:$4 sm:$0xff]
  %s2357 = scalar_lea.vmem [#allocation2], 258
  %v2358 = vld [vmem:[%s2357] ss:$4 sm:$0xff]
  %s2359 = scalar_lea.vmem [#allocation2], 290
  %v2360 = vld [vmem:[%s2359] ss:$4 sm:$0xff]
  %s2361 = scalar_lea.vmem [#allocation2], 322
  %v2362 = vld [vmem:[%s2361] ss:$4 sm:$0xff]
  %s2363 = scalar_lea.vmem [#allocation2], 354
  %v2364 = vld [vmem:[%s2363] ss:$4 sm:$0xff]
  %s2365 = scalar_lea.vmem [#allocation2], 386
  %v2366 = vld [vmem:[%s2365] ss:$4 sm:$0xff]
  %s2367 = scalar_lea.vmem [#allocation2], 418
  %v2368 = vld [vmem:[%s2367] ss:$4 sm:$0xff]
  %s2369 = scalar_lea.vmem [#allocation2], 450
  %v2370 = vld [vmem:[%s2369] ss:$4 sm:$0xff]
  %s2371 = scalar_lea.vmem [#allocation2], 482
  %v2372 = vld [vmem:[%s2371] ss:$4 sm:$0xff]
  %s2373 = scalar_lea.vmem [#allocation2], 3
  %v2374 = vld [vmem:[%s2373] ss:$4 sm:$0xff]
  %s2375 = scalar_lea.vmem [#allocation2], 35
  %v2376 = vld [vmem:[%s2375] ss:$4 sm:$0xff]
  %s2377 = scalar_lea.vmem [#allocation2], 67
  %v2378 = vld [vmem:[%s2377] ss:$4 sm:$0xff]
  %s2379 = scalar_lea.vmem [#allocation2], 99
  %v2380 = vld [vmem:[%s2379] ss:$4 sm:$0xff]
  %s2381 = scalar_lea.vmem [#allocation2], 131
  %v2382 = vld [vmem:[%s2381] ss:$4 sm:$0xff]
  %s2383 = scalar_lea.vmem [#allocation2], 163
  %v2384 = vld [vmem:[%s2383] ss:$4 sm:$0xff]
  %s2385 = scalar_lea.vmem [#allocation2], 195
  %v2386 = vld [vmem:[%s2385] ss:$4 sm:$0xff]
  %s2387 = scalar_lea.vmem [#allocation2], 227
  %v2388 = vld [vmem:[%s2387] ss:$4 sm:$0xff]
  %s2389 = scalar_lea.vmem [#allocation2], 259
  %v2390 = vld [vmem:[%s2389] ss:$4 sm:$0xff]
  %s2391 = scalar_lea.vmem [#allocation2], 291
  %v2392 = vld [vmem:[%s2391] ss:$4 sm:$0xff]
  %s2393 = scalar_lea.vmem [#allocation2], 323
  %v2394 = vld [vmem:[%s2393] ss:$4 sm:$0xff]
  %s2395 = scalar_lea.vmem [#allocation2], 355
  %v2396 = vld [vmem:[%s2395] ss:$4 sm:$0xff]
  %s2397 = scalar_lea.vmem [#allocation2], 387
  %v2398 = vld [vmem:[%s2397] ss:$4 sm:$0xff]
  %s2399 = scalar_lea.vmem [#allocation2], 419
  %v2400 = vld [vmem:[%s2399] ss:$4 sm:$0xff]
  %s2401 = scalar_lea.vmem [#allocation2], 451
  %v2402 = vld [vmem:[%s2401] ss:$4 sm:$0xff]
  %s2403 = scalar_lea.vmem [#allocation2], 483
  %v2404 = vld [vmem:[%s2403] ss:$4 sm:$0xff]
  %v2405 = vmax.f32 %v2342, %v2374
  %v2406 = vmax.f32 %v2344, %v2376
  %v2407 = vmax.f32 %v2346, %v2378
  %v2408 = vmax.f32 %v2348, %v2380
  %v2409 = vmax.f32 %v2350, %v2382
  %v2410 = vmax.f32 %v2352, %v2384
  %v2411 = vmax.f32 %v2354, %v2386
  %v2412 = vmax.f32 %v2356, %v2388
  %v2413 = vmax.f32 %v2358, %v2390
  %v2414 = vmax.f32 %v2360, %v2392
  %v2415 = vmax.f32 %v2362, %v2394
  %v2416 = vmax.f32 %v2364, %v2396
  %v2417 = vmax.f32 %v2366, %v2398
  %v2418 = vmax.f32 %v2368, %v2400
  %v2419 = vmax.f32 %v2370, %v2402
  %v2420 = vmax.f32 %v2372, %v2404
  %v2421 = vmax.f32 %v2325, %v2405
  %v2422 = vmax.f32 %v2326, %v2406
  %v2423 = vmax.f32 %v2327, %v2407
  %v2424 = vmax.f32 %v2328, %v2408
  %v2425 = vmax.f32 %v2329, %v2409
  %v2426 = vmax.f32 %v2330, %v2410
  %v2427 = vmax.f32 %v2331, %v2411
  %v2428 = vmax.f32 %v2332, %v2412
  %v2429 = vmax.f32 %v2333, %v2413
  %v2430 = vmax.f32 %v2334, %v2414
  %v2431 = vmax.f32 %v2335, %v2415
  %v2432 = vmax.f32 %v2336, %v2416
  %v2433 = vmax.f32 %v2337, %v2417
  %v2434 = vmax.f32 %v2338, %v2418
  %v2435 = vmax.f32 %v2339, %v2419
  %v2436 = vmax.f32 %v2340, %v2420
  %vm2437 = vcmp.ge.f32.partialorder %v2421, 0.0
  %vm2438 = vcmp.ge.f32.partialorder %v2422, 0.0
  %vm2439 = vcmp.ge.f32.partialorder %v2423, 0.0
  %vm2440 = vcmp.ge.f32.partialorder %v2424, 0.0
  %vm2441 = vcmp.ge.f32.partialorder %v2425, 0.0
  %vm2442 = vcmp.ge.f32.partialorder %v2426, 0.0
  %vm2443 = vcmp.ge.f32.partialorder %v2427, 0.0
  %vm2444 = vcmp.ge.f32.partialorder %v2428, 0.0
  %vm2445 = vcmp.ge.f32.partialorder %v2429, 0.0
  %vm2446 = vcmp.ge.f32.partialorder %v2430, 0.0
  %vm2447 = vcmp.ge.f32.partialorder %v2431, 0.0
  %vm2448 = vcmp.ge.f32.partialorder %v2432, 0.0
  %vm2449 = vcmp.ge.f32.partialorder %v2433, 0.0
  %vm2450 = vcmp.ge.f32.partialorder %v2434, 0.0
  %vm2451 = vcmp.ge.f32.partialorder %v2435, 0.0
  %vm2452 = vcmp.ge.f32.partialorder %v2436, 0.0
  %v2453 = vmul.f32 %v2421, 0.2
  %v2454 = vmul.f32 %v2422, 0.2
  %v2455 = vmul.f32 %v2423, 0.2
  %v2456 = vmul.f32 %v2424, 0.2
  %v2457 = vmul.f32 %v2425, 0.2
  %v2458 = vmul.f32 %v2426, 0.2
  %v2459 = vmul.f32 %v2427, 0.2
  %v2460 = vmul.f32 %v2428, 0.2
  %v2461 = vmul.f32 %v2429, 0.2
  %v2462 = vmul.f32 %v2430, 0.2
  %v2463 = vmul.f32 %v2431, 0.2
  %v2464 = vmul.f32 %v2432, 0.2
  %v2465 = vmul.f32 %v2433, 0.2
  %v2466 = vmul.f32 %v2434, 0.2
  %v2467 = vmul.f32 %v2435, 0.2
  %v2468 = vmul.f32 %v2436, 0.2
  %v2469 = vsel %vm2437, %v2421, %v2453
  %v2470 = vsel %vm2438, %v2422, %v2454
  %v2471 = vsel %vm2439, %v2423, %v2455
  %v2472 = vsel %vm2440, %v2424, %v2456
  %v2473 = vsel %vm2441, %v2425, %v2457
  %v2474 = vsel %vm2442, %v2426, %v2458
  %v2475 = vsel %vm2443, %v2427, %v2459
  %v2476 = vsel %vm2444, %v2428, %v2460
  %v2477 = vsel %vm2445, %v2429, %v2461
  %v2478 = vsel %vm2446, %v2430, %v2462
  %v2479 = vsel %vm2447, %v2431, %v2463
  %v2480 = vsel %vm2448, %v2432, %v2464
  %v2481 = vsel %vm2449, %v2433, %v2465
  %v2482 = vsel %vm2450, %v2434, %v2466
  %v2483 = vsel %vm2451, %v2435, %v2467
  %v2484 = vsel %vm2452, %v2436, %v2468
  %2485 = vst.msk [vmem:[%s5] sm:$0xff] %vm416, %v2469
  %2486 = vst.msk [vmem:[%s5 + $0x8] sm:$0xff] %vm416, %v2470
  %2487 = vst.msk [vmem:[%s5 + $0x10] sm:$0xff] %vm416, %v2471
  %2488 = vst.msk [vmem:[%s5 + $0x18] sm:$0xff] %vm416, %v2472
  %2489 = vst.msk [vmem:[%s5 + $0x20] sm:$0xff] %vm416, %v2473
  %2490 = vst.msk [vmem:[%s5 + $0x28] sm:$0xff] %vm416, %v2474
  %2491 = vst.msk [vmem:[%s5 + $0x30] sm:$0xff] %vm416, %v2475
  %2492 = vst.msk [vmem:[%s5 + $0x38] sm:$0xff] %vm416, %v2476
  %2493 = vst.msk [vmem:[%s5 + $0x40] sm:$0xff] %vm416, %v2477
  %2494 = vst.msk [vmem:[%s5 + $0x48] sm:$0xff] %vm416, %v2478
  %2495 = vst.msk [vmem:[%s5 + $0x50] sm:$0xff] %vm416, %v2479
  %2496 = vst.msk [vmem:[%s5 + $0x58] sm:$0xff] %vm416, %v2480
  %2497 = vst.msk [vmem:[%s5 + $0x60] sm:$0xff] %vm416, %v2481
  %2498 = vst.msk [vmem:[%s5 + $0x68] sm:$0xff] %vm416, %v2482
  %2499 = vst.msk [vmem:[%s5 + $0x70] sm:$0xff] %vm416, %v2483
  %2500 = vst.msk [vmem:[%s5 + $0x78] sm:$0xff] %vm416, %v2484
  // Predicated region
  $region22: #{discriminator_forward.7} parent=0 // pred_check
    _
  $region23: #{discriminator_forward.7} parent=0 // pred_check_branch
    %2502 = sbr.rel (0) target = $region25
  $region24: #{discriminator_forward.7} parent=0 // pred_region
    _
  $region25: #{discriminator_forward.7} parent=0 // pred_fallthru
    _
  // Predicated region
  $region26: #{discriminator_forward.7} parent=0 // pred_check
    _
  $region27: #{discriminator_forward.7} parent=0 // pred_check_branch
    %2504 = sbr.rel (0) target = $region29
  $region28: #{discriminator_forward.7} parent=0 // pred_region
    _
  $region29: #{discriminator_forward.7} parent=0 // pred_fallthru
    _

// kernel: discriminator_forward.8
$region0: #{discriminator_forward.8}
  #allocation0 [shape = 'u32[]', space=smem, size = 0x4, offset = 0x4, fixed_abs, tag = 'smem constant byte address 0x4 - core index']
  #allocation1 [shape = 'u32[72,128]{1,0:T(1,128)}', space=vmem, size = 0x9000, scoped, tag = 'internal scratch']
  #allocation2 [shape = 'f32[128,64]{1,0:T(8,128)}', space=vmem, size = 0x10000, scoped, tag = 'scratch operand']
  %s0 = inlined_call_operand.vmem [shape: f32[128,576], index: 0, kind: input, shape index: {}]
  %s1 = inlined_call_operand.vmem [shape: f32[576,64], index: 1, kind: input, shape index: {}]
  %s2 = inlined_call_operand.vmem [shape: f32[1,64], index: 2, kind: input, shape index: {}]
  %s3 = inlined_call_operand.vmem [shape: f32[1,64], index: 3, kind: input, shape index: {}]
  %s4 = inlined_call_operand.vmem [shape: f32[1,64], index: 4, kind: input, shape index: {}]
  %s5 = inlined_call_operand.vmem [shape: f32[32,64], index: 5, kind: output, shape index: {}]
  %s6 = sld [smem:[#allocation0]]
  $region30: #{discriminator_forward.8} parent=0
    _
  %s8 = ssub.s32 1, %s6
  %s9 = scalar_select 0, %s8, %s6
  // Predicated region
  $region2: #{discriminator_forward.8} parent=0 // pred_check
    _
  $region3: #{discriminator_forward.8} parent=0 // pred_check_branch
    %11 = sbr.rel (0) target = $region5
  $region4: #{discriminator_forward.8} parent=0 // pred_region
    _
  $region5: #{discriminator_forward.8} parent=0 // pred_fallthru
    _
  // Predicated region
  $region6: #{discriminator_forward.8} parent=0 // pred_check
    _
  $region7: #{discriminator_forward.8} parent=0 // pred_check_branch
    %13 = sbr.rel (0) target = $region9
  $region8: #{discriminator_forward.8} parent=0 // pred_region
    _
  $region9: #{discriminator_forward.8} parent=0 // pred_fallthru
    _
  // Predicated region
  $region10: #{discriminator_forward.8} parent=0 // pred_check
    _
  $region11: #{discriminator_forward.8} parent=0 // pred_check_branch
    %15 = sbr.rel (0) target = $region13
  $region12: #{discriminator_forward.8} parent=0 // pred_region
    _
  $region13: #{discriminator_forward.8} parent=0 // pred_fallthru
    _
  // Predicated region
  $region14: #{discriminator_forward.8} parent=0 // pred_check
    _
  $region15: #{discriminator_forward.8} parent=0 // pred_check_branch
    %17 = sbr.rel (0) target = $region17
  $region16: #{discriminator_forward.8} parent=0 // pred_region
    _
  $region17: #{discriminator_forward.8} parent=0 // pred_fallthru
    _
  // Predicated region
  $region18: #{discriminator_forward.8} parent=0 // pred_check
    _
  $region19: #{discriminator_forward.8} parent=0 // pred_check_branch
    %19 = sbr.rel (0) target = $region21
  $region20: #{discriminator_forward.8} parent=0 // pred_region
    _
  $region21: #{discriminator_forward.8} parent=0 // pred_fallthru
    _
  %v20 = vld [vmem:[%s0] sm:$0xff]
  %v21 = vld [vmem:[%s0 + $0x8] sm:$0xff]
  %v22 = vld [vmem:[%s0 + $0x10] sm:$0xff]
  %v23 = vld [vmem:[%s0 + $0x18] sm:$0xff]
  %v24 = vld [vmem:[%s0 + $0x20] sm:$0xff]
  %v25 = vld [vmem:[%s0 + $0x28] sm:$0xff]
  %v26 = vld [vmem:[%s0 + $0x30] sm:$0xff]
  %v27 = vld [vmem:[%s0 + $0x38] sm:$0xff]
  %v28 = vld [vmem:[%s0 + $0x40] sm:$0xff]
  %v29 = vld [vmem:[%s0 + $0x48] sm:$0xff]
  %v30 = vld [vmem:[%s0 + $0x50] sm:$0xff]
  %v31 = vld [vmem:[%s0 + $0x58] sm:$0xff]
  %v32 = vld [vmem:[%s0 + $0x60] sm:$0xff]
  %v33 = vld [vmem:[%s0 + $0x68] sm:$0xff]
  %v34 = vld [vmem:[%s0 + $0x70] sm:$0xff]
  %v35 = vld [vmem:[%s0 + $0x78] sm:$0xff]
  %v36 = vld [vmem:[%s0 + $0x80] sm:$0xff]
  %v37 = vld [vmem:[%s0 + $0x88] sm:$0xff]
  %v38 = vld [vmem:[%s0 + $0x90] sm:$0xff]
  %v39 = vld [vmem:[%s0 + $0x98] sm:$0xff]
  %v40 = vld [vmem:[%s0 + $0xa0] sm:$0xff]
  %v41 = vld [vmem:[%s0 + $0xa8] sm:$0xff]
  %v42 = vld [vmem:[%s0 + $0xb0] sm:$0xff]
  %v43 = vld [vmem:[%s0 + $0xb8] sm:$0xff]
  %v44 = vld [vmem:[%s0 + $0xc0] sm:$0xff]
  %v45 = vld [vmem:[%s0 + $0xc8] sm:$0xff]
  %v46 = vld [vmem:[%s0 + $0xd0] sm:$0xff]
  %v47 = vld [vmem:[%s0 + $0xd8] sm:$0xff]
  %v48 = vld [vmem:[%s0 + $0xe0] sm:$0xff]
  %v49 = vld [vmem:[%s0 + $0xe8] sm:$0xff]
  %v50 = vld [vmem:[%s0 + $0xf0] sm:$0xff]
  %v51 = vld [vmem:[%s0 + $0xf8] sm:$0xff]
  %v52 = vld [vmem:[%s0 + $0x100] sm:$0xff]
  %v53 = vld [vmem:[%s0 + $0x108] sm:$0xff]
  %v54 = vld [vmem:[%s0 + $0x110] sm:$0xff]
  %v55 = vld [vmem:[%s0 + $0x118] sm:$0xff]
  %v56 = vld [vmem:[%s0 + $0x120] sm:$0xff]
  %v57 = vld [vmem:[%s0 + $0x128] sm:$0xff]
  %v58 = vld [vmem:[%s0 + $0x130] sm:$0xff]
  %v59 = vld [vmem:[%s0 + $0x138] sm:$0xff]
  %v60 = vld [vmem:[%s0 + $0x140] sm:$0xff]
  %v61 = vld [vmem:[%s0 + $0x148] sm:$0xff]
  %v62 = vld [vmem:[%s0 + $0x150] sm:$0xff]
  %v63 = vld [vmem:[%s0 + $0x158] sm:$0xff]
  %v64 = vld [vmem:[%s0 + $0x160] sm:$0xff]
  %v65 = vld [vmem:[%s0 + $0x168] sm:$0xff]
  %v66 = vld [vmem:[%s0 + $0x170] sm:$0xff]
  %v67 = vld [vmem:[%s0 + $0x178] sm:$0xff]
  %v68 = vld [vmem:[%s0 + $0x180] sm:$0xff]
  %v69 = vld [vmem:[%s0 + $0x188] sm:$0xff]
  %v70 = vld [vmem:[%s0 + $0x190] sm:$0xff]
  %v71 = vld [vmem:[%s0 + $0x198] sm:$0xff]
  %v72 = vld [vmem:[%s0 + $0x1a0] sm:$0xff]
  %v73 = vld [vmem:[%s0 + $0x1a8] sm:$0xff]
  %v74 = vld [vmem:[%s0 + $0x1b0] sm:$0xff]
  %v75 = vld [vmem:[%s0 + $0x1b8] sm:$0xff]
  %v76 = vld [vmem:[%s0 + $0x1c0] sm:$0xff]
  %v77 = vld [vmem:[%s0 + $0x1c8] sm:$0xff]
  %v78 = vld [vmem:[%s0 + $0x1d0] sm:$0xff]
  %v79 = vld [vmem:[%s0 + $0x1d8] sm:$0xff]
  %v80 = vld [vmem:[%s0 + $0x1e0] sm:$0xff]
  %v81 = vld [vmem:[%s0 + $0x1e8] sm:$0xff]
  %v82 = vld [vmem:[%s0 + $0x1f0] sm:$0xff]
  %v83 = vld [vmem:[%s0 + $0x1f8] sm:$0xff]
  %v84 = vld [vmem:[%s0 + $0x200] sm:$0xff]
  %v85 = vld [vmem:[%s0 + $0x208] sm:$0xff]
  %v86 = vld [vmem:[%s0 + $0x210] sm:$0xff]
  %v87 = vld [vmem:[%s0 + $0x218] sm:$0xff]
  %v88 = vld [vmem:[%s0 + $0x220] sm:$0xff]
  %v89 = vld [vmem:[%s0 + $0x228] sm:$0xff]
  %v90 = vld [vmem:[%s0 + $0x230] sm:$0xff]
  %v91 = vld [vmem:[%s0 + $0x238] sm:$0xff]
  %v92 = vld [vmem:[%s0 + $0x240] sm:$0xff]
  %v93 = vld [vmem:[%s0 + $0x248] sm:$0xff]
  %v94 = vld [vmem:[%s0 + $0x250] sm:$0xff]
  %v95 = vld [vmem:[%s0 + $0x258] sm:$0xff]
  %v96 = vld [vmem:[%s0 + $0x260] sm:$0xff]
  %v97 = vld [vmem:[%s0 + $0x268] sm:$0xff]
  %v98 = vld [vmem:[%s0 + $0x270] sm:$0xff]
  %v99 = vld [vmem:[%s0 + $0x278] sm:$0xff]
  %v100 = vld [vmem:[%s1] sm:$0xff]
  %v101 = vld [vmem:[%s1 + $0x8] sm:$0xff]
  %v102 = vld [vmem:[%s1 + $0x10] sm:$0xff]
  %v103 = vld [vmem:[%s1 + $0x18] sm:$0xff]
  %v104 = vld [vmem:[%s1 + $0x20] sm:$0xff]
  %v105 = vld [vmem:[%s1 + $0x28] sm:$0xff]
  %v106 = vld [vmem:[%s1 + $0x30] sm:$0xff]
  %v107 = vld [vmem:[%s1 + $0x38] sm:$0xff]
  %v108 = vld [vmem:[%s1 + $0x40] sm:$0xff]
  %v109 = vld [vmem:[%s1 + $0x48] sm:$0xff]
  %v110 = vld [vmem:[%s1 + $0x50] sm:$0xff]
  %v111 = vld [vmem:[%s1 + $0x58] sm:$0xff]
  %v112 = vld [vmem:[%s1 + $0x60] sm:$0xff]
  %v113 = vld [vmem:[%s1 + $0x68] sm:$0xff]
  %v114 = vld [vmem:[%s1 + $0x70] sm:$0xff]
  %v115 = vld [vmem:[%s1 + $0x78] sm:$0xff]
  %v116 = vld [vmem:[%s1 + $0x80] sm:$0xff]
  %v117 = vld [vmem:[%s1 + $0x88] sm:$0xff]
  %v118 = vld [vmem:[%s1 + $0x90] sm:$0xff]
  %v119 = vld [vmem:[%s1 + $0x98] sm:$0xff]
  %v120 = vld [vmem:[%s1 + $0xa0] sm:$0xff]
  %v121 = vld [vmem:[%s1 + $0xa8] sm:$0xff]
  %v122 = vld [vmem:[%s1 + $0xb0] sm:$0xff]
  %v123 = vld [vmem:[%s1 + $0xb8] sm:$0xff]
  %v124 = vld [vmem:[%s1 + $0xc0] sm:$0xff]
  %v125 = vld [vmem:[%s1 + $0xc8] sm:$0xff]
  %v126 = vld [vmem:[%s1 + $0xd0] sm:$0xff]
  %v127 = vld [vmem:[%s1 + $0xd8] sm:$0xff]
  %v128 = vld [vmem:[%s1 + $0xe0] sm:$0xff]
  %v129 = vld [vmem:[%s1 + $0xe8] sm:$0xff]
  %v130 = vld [vmem:[%s1 + $0xf0] sm:$0xff]
  %v131 = vld [vmem:[%s1 + $0xf8] sm:$0xff]
  %v132 = vld [vmem:[%s1 + $0x100] sm:$0xff]
  %v133 = vld [vmem:[%s1 + $0x108] sm:$0xff]
  %v134 = vld [vmem:[%s1 + $0x110] sm:$0xff]
  %v135 = vld [vmem:[%s1 + $0x118] sm:$0xff]
  %v136 = vld [vmem:[%s1 + $0x120] sm:$0xff]
  %v137 = vld [vmem:[%s1 + $0x128] sm:$0xff]
  %v138 = vld [vmem:[%s1 + $0x130] sm:$0xff]
  %v139 = vld [vmem:[%s1 + $0x138] sm:$0xff]
  %v140 = vld [vmem:[%s1 + $0x140] sm:$0xff]
  %v141 = vld [vmem:[%s1 + $0x148] sm:$0xff]
  %v142 = vld [vmem:[%s1 + $0x150] sm:$0xff]
  %v143 = vld [vmem:[%s1 + $0x158] sm:$0xff]
  %v144 = vld [vmem:[%s1 + $0x160] sm:$0xff]
  %v145 = vld [vmem:[%s1 + $0x168] sm:$0xff]
  %v146 = vld [vmem:[%s1 + $0x170] sm:$0xff]
  %v147 = vld [vmem:[%s1 + $0x178] sm:$0xff]
  %v148 = vld [vmem:[%s1 + $0x180] sm:$0xff]
  %v149 = vld [vmem:[%s1 + $0x188] sm:$0xff]
  %v150 = vld [vmem:[%s1 + $0x190] sm:$0xff]
  %v151 = vld [vmem:[%s1 + $0x198] sm:$0xff]
  %v152 = vld [vmem:[%s1 + $0x1a0] sm:$0xff]
  %v153 = vld [vmem:[%s1 + $0x1a8] sm:$0xff]
  %v154 = vld [vmem:[%s1 + $0x1b0] sm:$0xff]
  %v155 = vld [vmem:[%s1 + $0x1b8] sm:$0xff]
  %v156 = vld [vmem:[%s1 + $0x1c0] sm:$0xff]
  %v157 = vld [vmem:[%s1 + $0x1c8] sm:$0xff]
  %v158 = vld [vmem:[%s1 + $0x1d0] sm:$0xff]
  %v159 = vld [vmem:[%s1 + $0x1d8] sm:$0xff]
  %v160 = vld [vmem:[%s1 + $0x1e0] sm:$0xff]
  %v161 = vld [vmem:[%s1 + $0x1e8] sm:$0xff]
  %v162 = vld [vmem:[%s1 + $0x1f0] sm:$0xff]
  %v163 = vld [vmem:[%s1 + $0x1f8] sm:$0xff]
  %v164 = vld [vmem:[%s1 + $0x200] sm:$0xff]
  %v165 = vld [vmem:[%s1 + $0x208] sm:$0xff]
  %v166 = vld [vmem:[%s1 + $0x210] sm:$0xff]
  %v167 = vld [vmem:[%s1 + $0x218] sm:$0xff]
  %v168 = vld [vmem:[%s1 + $0x220] sm:$0xff]
  %v169 = vld [vmem:[%s1 + $0x228] sm:$0xff]
  %v170 = vld [vmem:[%s1 + $0x230] sm:$0xff]
  %v171 = vld [vmem:[%s1 + $0x238] sm:$0xff]
  %v172 = vld [vmem:[%s2] sm:$0x1]
  %v174 = vperm.slane %v172, 0
  %vm176 = vcmask 523264
  %v178 = vsel %vm176, %v24, 0
  %v181 = vsel %vm176, %v29, 0
  %v184 = vsel %vm176, %v34, 0
  %v187 = vsel %vm176, %v39, 0
  %v190 = vsel %vm176, %v44, 0
  %v193 = vsel %vm176, %v49, 0
  %v196 = vsel %vm176, %v54, 0
  %v199 = vsel %vm176, %v59, 0
  %v202 = vsel %vm176, %v64, 0
  %v205 = vsel %vm176, %v69, 0
  %v208 = vsel %vm176, %v74, 0
  %v211 = vsel %vm176, %v79, 0
  %v214 = vsel %vm176, %v84, 0
  %v217 = vsel %vm176, %v89, 0
  %v220 = vsel %vm176, %v94, 0
  %v223 = vsel %vm176, %v99, 0
  %225 = vmatpush.msra.mxu0 %v115
  %226 = vmatpush.msra.mxu0 %v114
  %227 = vmatpush.msra.mxu0 %v113
  %228 = vmatpush.msra.mxu0 %v112
  %229 = vmatpush.msra.mxu0 %v111
  %230 = vmatpush.msra.mxu0 %v110
  %231 = vmatpush.msra.mxu0 %v109
  %232 = vmatpush.msra.mxu0 %v108
  %233 = vmatpush.msra.mxu0 %v107
  %234 = vmatpush.msra.mxu0 %v106
  %235 = vmatpush.msra.mxu0 %v105
  %236 = vmatpush.msra.mxu0 %v104
  %237 = vmatpush.msra.mxu0 %v103
  %238 = vmatpush.msra.mxu0 %v102
  %239 = vmatpush.msra.mxu0 %v101
  %240 = vmatpush.msra.mxu0 %v100
  %241 = vmatmul.f32.gmra.mxu0 %v20
  %v242 = vpop.f32.mrf.mxu0
  %v243 = vadd.f32 %v174, %v242
  %244 = vmatmul.f32.gmra.mxu0 %v25
  %v245 = vpop.f32.mrf.mxu0
  %v246 = vadd.f32 %v174, %v245
  %247 = vmatmul.f32.gmra.mxu0 %v30
  %v248 = vpop.f32.mrf.mxu0
  %v249 = vadd.f32 %v174, %v248
  %250 = vmatmul.f32.gmra.mxu0 %v35
  %v251 = vpop.f32.mrf.mxu0
  %v252 = vadd.f32 %v174, %v251
  %253 = vmatmul.f32.gmra.mxu0 %v40
  %v254 = vpop.f32.mrf.mxu0
  %v255 = vadd.f32 %v174, %v254
  %256 = vmatmul.f32.gmra.mxu0 %v45
  %v257 = vpop.f32.mrf.mxu0
  %v258 = vadd.f32 %v174, %v257
  %259 = vmatmul.f32.gmra.mxu0 %v50
  %v260 = vpop.f32.mrf.mxu0
  %v261 = vadd.f32 %v174, %v260
  %262 = vmatmul.f32.gmra.mxu0 %v55
  %v263 = vpop.f32.mrf.mxu0
  %v264 = vadd.f32 %v174, %v263
  %265 = vmatmul.f32.gmra.mxu0 %v60
  %v266 = vpop.f32.mrf.mxu0
  %v267 = vadd.f32 %v174, %v266
  %268 = vmatmul.f32.gmra.mxu0 %v65
  %v269 = vpop.f32.mrf.mxu0
  %v270 = vadd.f32 %v174, %v269
  %271 = vmatmul.f32.gmra.mxu0 %v70
  %v272 = vpop.f32.mrf.mxu0
  %v273 = vadd.f32 %v174, %v272
  %274 = vmatmul.f32.gmra.mxu0 %v75
  %v275 = vpop.f32.mrf.mxu0
  %v276 = vadd.f32 %v174, %v275
  %277 = vmatmul.f32.gmra.mxu0 %v80
  %v278 = vpop.f32.mrf.mxu0
  %v279 = vadd.f32 %v174, %v278
  %280 = vmatmul.f32.gmra.mxu0 %v85
  %v281 = vpop.f32.mrf.mxu0
  %v282 = vadd.f32 %v174, %v281
  %283 = vmatmul.f32.gmra.mxu0 %v90
  %v284 = vpop.f32.mrf.mxu0
  %v285 = vadd.f32 %v174, %v284
  %286 = vmatmul.f32.gmra.mxu0 %v95
  %v287 = vpop.f32.mrf.mxu0
  %v288 = vadd.f32 %v174, %v287
  %289 = vdwg.mxu0
  %290 = vmatpush.msra.mxu0 %v131
  %291 = vmatpush.msra.mxu0 %v130
  %292 = vmatpush.msra.mxu0 %v129
  %293 = vmatpush.msra.mxu0 %v128
  %294 = vmatpush.msra.mxu0 %v127
  %295 = vmatpush.msra.mxu0 %v126
  %296 = vmatpush.msra.mxu0 %v125
  %297 = vmatpush.msra.mxu0 %v124
  %298 = vmatpush.msra.mxu0 %v123
  %299 = vmatpush.msra.mxu0 %v122
  %300 = vmatpush.msra.mxu0 %v121
  %301 = vmatpush.msra.mxu0 %v120
  %302 = vmatpush.msra.mxu0 %v119
  %303 = vmatpush.msra.mxu0 %v118
  %304 = vmatpush.msra.mxu0 %v117
  %305 = vmatpush.msra.mxu0 %v116
  %306 = vmatmul.f32.gmra.mxu0 %v21
  %v307 = vpop.f32.mrf.mxu0
  %v308 = vadd.f32 %v243, %v307
  %309 = vmatmul.f32.gmra.mxu0 %v26
  %v310 = vpop.f32.mrf.mxu0
  %v311 = vadd.f32 %v246, %v310
  %312 = vmatmul.f32.gmra.mxu0 %v31
  %v313 = vpop.f32.mrf.mxu0
  %v314 = vadd.f32 %v249, %v313
  %315 = vmatmul.f32.gmra.mxu0 %v36
  %v316 = vpop.f32.mrf.mxu0
  %v317 = vadd.f32 %v252, %v316
  %318 = vmatmul.f32.gmra.mxu0 %v41
  %v319 = vpop.f32.mrf.mxu0
  %v320 = vadd.f32 %v255, %v319
  %321 = vmatmul.f32.gmra.mxu0 %v46
  %v322 = vpop.f32.mrf.mxu0
  %v323 = vadd.f32 %v258, %v322
  %324 = vmatmul.f32.gmra.mxu0 %v51
  %v325 = vpop.f32.mrf.mxu0
  %v326 = vadd.f32 %v261, %v325
  %327 = vmatmul.f32.gmra.mxu0 %v56
  %v328 = vpop.f32.mrf.mxu0
  %v329 = vadd.f32 %v264, %v328
  %330 = vmatmul.f32.gmra.mxu0 %v61
  %v331 = vpop.f32.mrf.mxu0
  %v332 = vadd.f32 %v267, %v331
  %333 = vmatmul.f32.gmra.mxu0 %v66
  %v334 = vpop.f32.mrf.mxu0
  %v335 = vadd.f32 %v270, %v334
  %336 = vmatmul.f32.gmra.mxu0 %v71
  %v337 = vpop.f32.mrf.mxu0
  %v338 = vadd.f32 %v273, %v337
  %339 = vmatmul.f32.gmra.mxu0 %v76
  %v340 = vpop.f32.mrf.mxu0
  %v341 = vadd.f32 %v276, %v340
  %342 = vmatmul.f32.gmra.mxu0 %v81
  %v343 = vpop.f32.mrf.mxu0
  %v344 = vadd.f32 %v279, %v343
  %345 = vmatmul.f32.gmra.mxu0 %v86
  %v346 = vpop.f32.mrf.mxu0
  %v347 = vadd.f32 %v282, %v346
  %348 = vmatmul.f32.gmra.mxu0 %v91
  %v349 = vpop.f32.mrf.mxu0
  %v350 = vadd.f32 %v285, %v349
  %351 = vmatmul.f32.gmra.mxu0 %v96
  %v352 = vpop.f32.mrf.mxu0
  %v353 = vadd.f32 %v288, %v352
  %354 = vdwg.mxu0
  %355 = vmatpush.msra.mxu0 %v147
  %356 = vmatpush.msra.mxu0 %v146
  %357 = vmatpush.msra.mxu0 %v145
  %358 = vmatpush.msra.mxu0 %v144
  %359 = vmatpush.msra.mxu0 %v143
  %360 = vmatpush.msra.mxu0 %v142
  %361 = vmatpush.msra.mxu0 %v141
  %362 = vmatpush.msra.mxu0 %v140
  %363 = vmatpush.msra.mxu0 %v139
  %364 = vmatpush.msra.mxu0 %v138
  %365 = vmatpush.msra.mxu0 %v137
  %366 = vmatpush.msra.mxu0 %v136
  %367 = vmatpush.msra.mxu0 %v135
  %368 = vmatpush.msra.mxu0 %v134
  %369 = vmatpush.msra.mxu0 %v133
  %370 = vmatpush.msra.mxu0 %v132
  %371 = vmatmul.f32.gmra.mxu0 %v22
  %v372 = vpop.f32.mrf.mxu0
  %v373 = vadd.f32 %v308, %v372
  %374 = vmatmul.f32.gmra.mxu0 %v27
  %v375 = vpop.f32.mrf.mxu0
  %v376 = vadd.f32 %v311, %v375
  %377 = vmatmul.f32.gmra.mxu0 %v32
  %v378 = vpop.f32.mrf.mxu0
  %v379 = vadd.f32 %v314, %v378
  %380 = vmatmul.f32.gmra.mxu0 %v37
  %v381 = vpop.f32.mrf.mxu0
  %v382 = vadd.f32 %v317, %v381
  %383 = vmatmul.f32.gmra.mxu0 %v42
  %v384 = vpop.f32.mrf.mxu0
  %v385 = vadd.f32 %v320, %v384
  %386 = vmatmul.f32.gmra.mxu0 %v47
  %v387 = vpop.f32.mrf.mxu0
  %v388 = vadd.f32 %v323, %v387
  %389 = vmatmul.f32.gmra.mxu0 %v52
  %v390 = vpop.f32.mrf.mxu0
  %v391 = vadd.f32 %v326, %v390
  %392 = vmatmul.f32.gmra.mxu0 %v57
  %v393 = vpop.f32.mrf.mxu0
  %v394 = vadd.f32 %v329, %v393
  %395 = vmatmul.f32.gmra.mxu0 %v62
  %v396 = vpop.f32.mrf.mxu0
  %v397 = vadd.f32 %v332, %v396
  %398 = vmatmul.f32.gmra.mxu0 %v67
  %v399 = vpop.f32.mrf.mxu0
  %v400 = vadd.f32 %v335, %v399
  %401 = vmatmul.f32.gmra.mxu0 %v72
  %v402 = vpop.f32.mrf.mxu0
  %v403 = vadd.f32 %v338, %v402
  %404 = vmatmul.f32.gmra.mxu0 %v77
  %v405 = vpop.f32.mrf.mxu0
  %v406 = vadd.f32 %v341, %v405
  %407 = vmatmul.f32.gmra.mxu0 %v82
  %v408 = vpop.f32.mrf.mxu0
  %v409 = vadd.f32 %v344, %v408
  %410 = vmatmul.f32.gmra.mxu0 %v87
  %v411 = vpop.f32.mrf.mxu0
  %v412 = vadd.f32 %v347, %v411
  %413 = vmatmul.f32.gmra.mxu0 %v92
  %v414 = vpop.f32.mrf.mxu0
  %v415 = vadd.f32 %v350, %v414
  %416 = vmatmul.f32.gmra.mxu0 %v97
  %v417 = vpop.f32.mrf.mxu0
  %v418 = vadd.f32 %v353, %v417
  %419 = vdwg.mxu0
  %420 = vmatpush.msra.mxu0 %v163
  %421 = vmatpush.msra.mxu0 %v162
  %422 = vmatpush.msra.mxu0 %v161
  %423 = vmatpush.msra.mxu0 %v160
  %424 = vmatpush.msra.mxu0 %v159
  %425 = vmatpush.msra.mxu0 %v158
  %426 = vmatpush.msra.mxu0 %v157
  %427 = vmatpush.msra.mxu0 %v156
  %428 = vmatpush.msra.mxu0 %v155
  %429 = vmatpush.msra.mxu0 %v154
  %430 = vmatpush.msra.mxu0 %v153
  %431 = vmatpush.msra.mxu0 %v152
  %432 = vmatpush.msra.mxu0 %v151
  %433 = vmatpush.msra.mxu0 %v150
  %434 = vmatpush.msra.mxu0 %v149
  %435 = vmatpush.msra.mxu0 %v148
  %436 = vmatmul.f32.gmra.mxu0 %v23
  %v437 = vpop.f32.mrf.mxu0
  %v438 = vadd.f32 %v373, %v437
  %439 = vmatmul.f32.gmra.mxu0 %v28
  %v440 = vpop.f32.mrf.mxu0
  %v441 = vadd.f32 %v376, %v440
  %442 = vmatmul.f32.gmra.mxu0 %v33
  %v443 = vpop.f32.mrf.mxu0
  %v444 = vadd.f32 %v379, %v443
  %445 = vmatmul.f32.gmra.mxu0 %v38
  %v446 = vpop.f32.mrf.mxu0
  %v447 = vadd.f32 %v382, %v446
  %448 = vmatmul.f32.gmra.mxu0 %v43
  %v449 = vpop.f32.mrf.mxu0
  %v450 = vadd.f32 %v385, %v449
  %451 = vmatmul.f32.gmra.mxu0 %v48
  %v452 = vpop.f32.mrf.mxu0
  %v453 = vadd.f32 %v388, %v452
  %454 = vmatmul.f32.gmra.mxu0 %v53
  %v455 = vpop.f32.mrf.mxu0
  %v456 = vadd.f32 %v391, %v455
  %457 = vmatmul.f32.gmra.mxu0 %v58
  %v458 = vpop.f32.mrf.mxu0
  %v459 = vadd.f32 %v394, %v458
  %460 = vmatmul.f32.gmra.mxu0 %v63
  %v461 = vpop.f32.mrf.mxu0
  %v462 = vadd.f32 %v397, %v461
  %463 = vmatmul.f32.gmra.mxu0 %v68
  %v464 = vpop.f32.mrf.mxu0
  %v465 = vadd.f32 %v400, %v464
  %466 = vmatmul.f32.gmra.mxu0 %v73
  %v467 = vpop.f32.mrf.mxu0
  %v468 = vadd.f32 %v403, %v467
  %469 = vmatmul.f32.gmra.mxu0 %v78
  %v470 = vpop.f32.mrf.mxu0
  %v471 = vadd.f32 %v406, %v470
  %472 = vmatmul.f32.gmra.mxu0 %v83
  %v473 = vpop.f32.mrf.mxu0
  %v474 = vadd.f32 %v409, %v473
  %475 = vmatmul.f32.gmra.mxu0 %v88
  %v476 = vpop.f32.mrf.mxu0
  %v477 = vadd.f32 %v412, %v476
  %478 = vmatmul.f32.gmra.mxu0 %v93
  %v479 = vpop.f32.mrf.mxu0
  %v480 = vadd.f32 %v415, %v479
  %481 = vmatmul.f32.gmra.mxu0 %v98
  %v482 = vpop.f32.mrf.mxu0
  %v483 = vadd.f32 %v418, %v482
  %484 = vdwg.mxu0
  %485 = vmatpush.msra.mxu0 0.0
  %486 = vmatpush.msra.mxu0 0.0
  %487 = vmatpush.msra.mxu0 0.0
  %488 = vmatpush.msra.mxu0 0.0
  %489 = vmatpush.msra.mxu0 0.0
  %490 = vmatpush.msra.mxu0 0.0
  %491 = vmatpush.msra.mxu0 0.0
  %492 = vmatpush.msra.mxu0 0.0
  %493 = vmatpush.msra.mxu0 %v171
  %494 = vmatpush.msra.mxu0 %v170
  %495 = vmatpush.msra.mxu0 %v169
  %496 = vmatpush.msra.mxu0 %v168
  %497 = vmatpush.msra.mxu0 %v167
  %498 = vmatpush.msra.mxu0 %v166
  %499 = vmatpush.msra.mxu0 %v165
  %500 = vmatpush.msra.mxu0 %v164
  %501 = vmatmul.f32.gmra.mxu0 %v178
  %v502 = vpop.f32.mrf.mxu0
  %v503 = vadd.f32 %v438, %v502
  %504 = vmatmul.f32.gmra.mxu0 %v181
  %v505 = vpop.f32.mrf.mxu0
  %v506 = vadd.f32 %v441, %v505
  %507 = vmatmul.f32.gmra.mxu0 %v184
  %v508 = vpop.f32.mrf.mxu0
  %v509 = vadd.f32 %v444, %v508
  %510 = vmatmul.f32.gmra.mxu0 %v187
  %v511 = vpop.f32.mrf.mxu0
  %v512 = vadd.f32 %v447, %v511
  %513 = vmatmul.f32.gmra.mxu0 %v190
  %v514 = vpop.f32.mrf.mxu0
  %v515 = vadd.f32 %v450, %v514
  %516 = vmatmul.f32.gmra.mxu0 %v193
  %v517 = vpop.f32.mrf.mxu0
  %v518 = vadd.f32 %v453, %v517
  %519 = vmatmul.f32.gmra.mxu0 %v196
  %v520 = vpop.f32.mrf.mxu0
  %v521 = vadd.f32 %v456, %v520
  %522 = vmatmul.f32.gmra.mxu0 %v199
  %v523 = vpop.f32.mrf.mxu0
  %v524 = vadd.f32 %v459, %v523
  %525 = vmatmul.f32.gmra.mxu0 %v202
  %v526 = vpop.f32.mrf.mxu0
  %v527 = vadd.f32 %v462, %v526
  %528 = vmatmul.f32.gmra.mxu0 %v205
  %v529 = vpop.f32.mrf.mxu0
  %v530 = vadd.f32 %v465, %v529
  %531 = vmatmul.f32.gmra.mxu0 %v208
  %v532 = vpop.f32.mrf.mxu0
  %v533 = vadd.f32 %v468, %v532
  %534 = vmatmul.f32.gmra.mxu0 %v211
  %v535 = vpop.f32.mrf.mxu0
  %v536 = vadd.f32 %v471, %v535
  %537 = vmatmul.f32.gmra.mxu0 %v214
  %v538 = vpop.f32.mrf.mxu0
  %v539 = vadd.f32 %v474, %v538
  %540 = vmatmul.f32.gmra.mxu0 %v217
  %v541 = vpop.f32.mrf.mxu0
  %v542 = vadd.f32 %v477, %v541
  %543 = vmatmul.f32.gmra.mxu0 %v220
  %v544 = vpop.f32.mrf.mxu0
  %v545 = vadd.f32 %v480, %v544
  %546 = vmatmul.f32.gmra.mxu0 %v223
  %v547 = vpop.f32.mrf.mxu0
  %v548 = vadd.f32 %v483, %v547
  %549 = vdwg.mxu0
  %v550 = vsel %vm176, %v503, 0.0
  %v551 = vsel %vm176, %v506, 0.0
  %v552 = vadd.f32 %v550, %v551
  %v553 = vsel %vm176, %v509, 0.0
  %v554 = vadd.f32 %v552, %v553
  %v555 = vsel %vm176, %v512, 0.0
  %v556 = vadd.f32 %v554, %v555
  %v557 = vsel %vm176, %v515, 0.0
  %v558 = vadd.f32 %v556, %v557
  %v559 = vsel %vm176, %v518, 0.0
  %v560 = vadd.f32 %v558, %v559
  %v561 = vsel %vm176, %v521, 0.0
  %v562 = vadd.f32 %v560, %v561
  %v563 = vsel %vm176, %v524, 0.0
  %v564 = vadd.f32 %v562, %v563
  %v565 = vsel %vm176, %v527, 0.0
  %v566 = vadd.f32 %v564, %v565
  %v567 = vsel %vm176, %v530, 0.0
  %v568 = vadd.f32 %v566, %v567
  %v569 = vsel %vm176, %v533, 0.0
  %v570 = vadd.f32 %v568, %v569
  %v571 = vsel %vm176, %v536, 0.0
  %v572 = vadd.f32 %v570, %v571
  %v573 = vsel %vm176, %v539, 0.0
  %v574 = vadd.f32 %v572, %v573
  %v575 = vsel %vm176, %v542, 0.0
  %v576 = vadd.f32 %v574, %v575
  %v577 = vsel %vm176, %v545, 0.0
  %v578 = vadd.f32 %v576, %v577
  %v579 = vsel %vm176, %v548, 0.0
  %v580 = vadd.f32 %v578, %v579
  %v581 = vrot.slane %v580, 4
  %v582 = vadd.f32 %v580, %v581
  %v583 = vrot.slane %v582, 2
  %v584 = vadd.f32 %v582, %v583
  %v585 = vrot.slane %v584, 1
  %v586 = vadd.f32 %v584, %v585
  %v587 = vmul.f32 %v586, 0.0078125
  %v588 = vsub.f32 %v503, %v587
  %v589 = vsub.f32 %v506, %v587
  %v590 = vsub.f32 %v509, %v587
  %v591 = vsub.f32 %v512, %v587
  %v592 = vsub.f32 %v515, %v587
  %v593 = vsub.f32 %v518, %v587
  %v594 = vsub.f32 %v521, %v587
  %v595 = vsub.f32 %v524, %v587
  %v596 = vsub.f32 %v527, %v587
  %v597 = vsub.f32 %v530, %v587
  %v598 = vsub.f32 %v533, %v587
  %v599 = vsub.f32 %v536, %v587
  %v600 = vsub.f32 %v539, %v587
  %v601 = vsub.f32 %v542, %v587
  %v602 = vsub.f32 %v545, %v587
  %v603 = vsub.f32 %v548, %v587
  %v604 = vmul.f32 %v588, %v588
  %v605 = vmul.f32 %v589, %v589
  %v606 = vmul.f32 %v590, %v590
  %v607 = vmul.f32 %v591, %v591
  %v608 = vmul.f32 %v592, %v592
  %v609 = vmul.f32 %v593, %v593
  %v610 = vmul.f32 %v594, %v594
  %v611 = vmul.f32 %v595, %v595
  %v612 = vmul.f32 %v596, %v596
  %v613 = vmul.f32 %v597, %v597
  %v614 = vmul.f32 %v598, %v598
  %v615 = vmul.f32 %v599, %v599
  %v616 = vmul.f32 %v600, %v600
  %v617 = vmul.f32 %v601, %v601
  %v618 = vmul.f32 %v602, %v602
  %v619 = vmul.f32 %v603, %v603
  %v620 = vsel %vm176, %v604, 0.0
  %v621 = vsel %vm176, %v605, 0.0
  %v622 = vadd.f32 %v620, %v621
  %v623 = vsel %vm176, %v606, 0.0
  %v624 = vadd.f32 %v622, %v623
  %v625 = vsel %vm176, %v607, 0.0
  %v626 = vadd.f32 %v624, %v625
  %v627 = vsel %vm176, %v608, 0.0
  %v628 = vadd.f32 %v626, %v627
  %v629 = vsel %vm176, %v609, 0.0
  %v630 = vadd.f32 %v628, %v629
  %v631 = vsel %vm176, %v610, 0.0
  %v632 = vadd.f32 %v630, %v631
  %v633 = vsel %vm176, %v611, 0.0
  %v634 = vadd.f32 %v632, %v633
  %v635 = vsel %vm176, %v612, 0.0
  %v636 = vadd.f32 %v634, %v635
  %v637 = vsel %vm176, %v613, 0.0
  %v638 = vadd.f32 %v636, %v637
  %v639 = vsel %vm176, %v614, 0.0
  %v640 = vadd.f32 %v638, %v639
  %v641 = vsel %vm176, %v615, 0.0
  %v642 = vadd.f32 %v640, %v641
  %v643 = vsel %vm176, %v616, 0.0
  %v644 = vadd.f32 %v642, %v643
  %v645 = vsel %vm176, %v617, 0.0
  %v646 = vadd.f32 %v644, %v645
  %v647 = vsel %vm176, %v618, 0.0
  %v648 = vadd.f32 %v646, %v647
  %v649 = vsel %vm176, %v619, 0.0
  %v650 = vadd.f32 %v648, %v649
  %v651 = vrot.slane %v650, 4
  %v652 = vadd.f32 %v650, %v651
  %v653 = vrot.slane %v652, 2
  %v654 = vadd.f32 %v652, %v653
  %v655 = vrot.slane %v654, 1
  %v656 = vadd.f32 %v654, %v655
  %v657 = vmul.f32 %v656, 0.0078125
  %v658 = vld [vmem:[%s3] sm:$0x1]
  %v659 = vadd.f32 %v657, 1e-05
  %v660 = vrsqrt.pop %v659
  %v661 = vmul.f32 %v660, %v659
  %v662 = vmul.f32 %v661, %v660
  %v663 = vmul.f32 0.5, %v662
  %v664 = vsub.f32 1.5, %v663
  %v665 = vmul.f32 %v660, %v664
  %vm666 = vweird.f32 %v659
  %vm667 = vweird.f32 %v660
  %vm668 = vmor %vm666, %vm667
  %v669 = vsel %vm668, %v660, %v665
  %v670 = vmul.f32 %v658, %v669
  %v672 = vperm.slane %v670, 0
  %v674 = vmul.f32 %v588, %v672
  %v675 = vmul.f32 %v589, %v672
  %v676 = vmul.f32 %v590, %v672
  %v677 = vmul.f32 %v591, %v672
  %v678 = vmul.f32 %v592, %v672
  %v679 = vmul.f32 %v593, %v672
  %v680 = vmul.f32 %v594, %v672
  %v681 = vmul.f32 %v595, %v672
  %v682 = vmul.f32 %v596, %v672
  %v683 = vmul.f32 %v597, %v672
  %v684 = vmul.f32 %v598, %v672
  %v685 = vmul.f32 %v599, %v672
  %v686 = vmul.f32 %v600, %v672
  %v687 = vmul.f32 %v601, %v672
  %v688 = vmul.f32 %v602, %v672
  %v689 = vmul.f32 %v603, %v672
  %v690 = vld [vmem:[%s4] sm:$0x1]
  %v692 = vperm.slane %v690, 0
  %v694 = vadd.f32 %v674, %v692
  %v695 = vadd.f32 %v675, %v692
  %v696 = vadd.f32 %v676, %v692
  %v697 = vadd.f32 %v677, %v692
  %v698 = vadd.f32 %v678, %v692
  %v699 = vadd.f32 %v679, %v692
  %v700 = vadd.f32 %v680, %v692
  %v701 = vadd.f32 %v681, %v692
  %v702 = vadd.f32 %v682, %v692
  %v703 = vadd.f32 %v683, %v692
  %v704 = vadd.f32 %v684, %v692
  %v705 = vadd.f32 %v685, %v692
  %v706 = vadd.f32 %v686, %v692
  %v707 = vadd.f32 %v687, %v692
  %v708 = vadd.f32 %v688, %v692
  %v709 = vadd.f32 %v689, %v692
  %710 = vst.msk [vmem:[#allocation2] sm:$0xff] %vm176, %v694
  %711 = vst.msk [vmem:[#allocation2 + $0x8] sm:$0xff] %vm176, %v695
  %712 = vst.msk [vmem:[#allocation2 + $0x10] sm:$0xff] %vm176, %v696
  %713 = vst.msk [vmem:[#allocation2 + $0x18] sm:$0xff] %vm176, %v697
  %714 = vst.msk [vmem:[#allocation2 + $0x20] sm:$0xff] %vm176, %v698
  %715 = vst.msk [vmem:[#allocation2 + $0x28] sm:$0xff] %vm176, %v699
  %716 = vst.msk [vmem:[#allocation2 + $0x30] sm:$0xff] %vm176, %v700
  %717 = vst.msk [vmem:[#allocation2 + $0x38] sm:$0xff] %vm176, %v701
  %718 = vst.msk [vmem:[#allocation2 + $0x40] sm:$0xff] %vm176, %v702
  %719 = vst.msk [vmem:[#allocation2 + $0x48] sm:$0xff] %vm176, %v703
  %720 = vst.msk [vmem:[#allocation2 + $0x50] sm:$0xff] %vm176, %v704
  %721 = vst.msk [vmem:[#allocation2 + $0x58] sm:$0xff] %vm176, %v705
  %722 = vst.msk [vmem:[#allocation2 + $0x60] sm:$0xff] %vm176, %v706
  %723 = vst.msk [vmem:[#allocation2 + $0x68] sm:$0xff] %vm176, %v707
  %724 = vst.msk [vmem:[#allocation2 + $0x70] sm:$0xff] %vm176, %v708
  %725 = vst.msk [vmem:[#allocation2 + $0x78] sm:$0xff] %vm176, %v709
  %v726 = vld [vmem:[#allocation2] ss:$4 sm:$0xff]
  %s727 = scalar_lea.vmem [#allocation2], 32
  %v728 = vld [vmem:[%s727] ss:$4 sm:$0xff]
  %s729 = scalar_lea.vmem [#allocation2], 64
  %v730 = vld [vmem:[%s729] ss:$4 sm:$0xff]
  %s731 = scalar_lea.vmem [#allocation2], 96
  %v732 = vld [vmem:[%s731] ss:$4 sm:$0xff]
  %s733 = scalar_lea.vmem [#allocation2], 1
  %v734 = vld [vmem:[%s733] ss:$4 sm:$0xff]
  %s735 = scalar_lea.vmem [#allocation2], 33
  %v736 = vld [vmem:[%s735] ss:$4 sm:$0xff]
  %s737 = scalar_lea.vmem [#allocation2], 65
  %v738 = vld [vmem:[%s737] ss:$4 sm:$0xff]
  %s739 = scalar_lea.vmem [#allocation2], 97
  %v740 = vld [vmem:[%s739] ss:$4 sm:$0xff]
  %v741 = vmax.f32 %v726, %v734
  %v742 = vmax.f32 %v728, %v736
  %v743 = vmax.f32 %v730, %v738
  %v744 = vmax.f32 %v732, %v740
  %s745 = scalar_lea.vmem [#allocation2], 2
  %v746 = vld [vmem:[%s745] ss:$4 sm:$0xff]
  %s747 = scalar_lea.vmem [#allocation2], 34
  %v748 = vld [vmem:[%s747] ss:$4 sm:$0xff]
  %s749 = scalar_lea.vmem [#allocation2], 66
  %v750 = vld [vmem:[%s749] ss:$4 sm:$0xff]
  %s751 = scalar_lea.vmem [#allocation2], 98
  %v752 = vld [vmem:[%s751] ss:$4 sm:$0xff]
  %s753 = scalar_lea.vmem [#allocation2], 3
  %v754 = vld [vmem:[%s753] ss:$4 sm:$0xff]
  %s755 = scalar_lea.vmem [#allocation2], 35
  %v756 = vld [vmem:[%s755] ss:$4 sm:$0xff]
  %s757 = scalar_lea.vmem [#allocation2], 67
  %v758 = vld [vmem:[%s757] ss:$4 sm:$0xff]
  %s759 = scalar_lea.vmem [#allocation2], 99
  %v760 = vld [vmem:[%s759] ss:$4 sm:$0xff]
  %v761 = vmax.f32 %v746, %v754
  %v762 = vmax.f32 %v748, %v756
  %v763 = vmax.f32 %v750, %v758
  %v764 = vmax.f32 %v752, %v760
  %v765 = vmax.f32 %v741, %v761
  %v766 = vmax.f32 %v742, %v762
  %v767 = vmax.f32 %v743, %v763
  %v768 = vmax.f32 %v744, %v764
  %vm769 = vcmp.ge.f32.partialorder %v765, 0.0
  %vm770 = vcmp.ge.f32.partialorder %v766, 0.0
  %vm771 = vcmp.ge.f32.partialorder %v767, 0.0
  %vm772 = vcmp.ge.f32.partialorder %v768, 0.0
  %v773 = vmul.f32 %v765, 0.2
  %v774 = vmul.f32 %v766, 0.2
  %v775 = vmul.f32 %v767, 0.2
  %v776 = vmul.f32 %v768, 0.2
  %v777 = vsel %vm769, %v765, %v773
  %v778 = vsel %vm770, %v766, %v774
  %v779 = vsel %vm771, %v767, %v775
  %v780 = vsel %vm772, %v768, %v776
  %781 = vst.msk [vmem:[%s5] sm:$0xff] %vm176, %v777
  %782 = vst.msk [vmem:[%s5 + $0x8] sm:$0xff] %vm176, %v778
  %783 = vst.msk [vmem:[%s5 + $0x10] sm:$0xff] %vm176, %v779
  %784 = vst.msk [vmem:[%s5 + $0x18] sm:$0xff] %vm176, %v780
  // Predicated region
  $region22: #{discriminator_forward.8} parent=0 // pred_check
    _
  $region23: #{discriminator_forward.8} parent=0 // pred_check_branch
    %786 = sbr.rel (0) target = $region25
  $region24: #{discriminator_forward.8} parent=0 // pred_region
    _
  $region25: #{discriminator_forward.8} parent=0 // pred_fallthru
    _
  // Predicated region
  $region26: #{discriminator_forward.8} parent=0 // pred_check
    _
  $region27: #{discriminator_forward.8} parent=0 // pred_check_branch
    %788 = sbr.rel (0) target = $region29
  $region28: #{discriminator_forward.8} parent=0 // pred_region
    _
  $region29: #{discriminator_forward.8} parent=0 // pred_fallthru
    _

// kernel: discriminator_forward.9
$region0: #{discriminator_forward.9}
  #allocation0 [shape = 'u32[]', space=smem, size = 0x4, offset = 0x4, fixed_abs, tag = 'smem constant byte address 0x4 - core index']
  #allocation1 [shape = 'u32[72,128]{1,0:T(1,128)}', space=vmem, size = 0x9000, scoped, tag = 'internal scratch']
  #allocation2 [shape = 'f32[32,64]{1,0:T(8,128)}', space=vmem, size = 0x4000, scoped, tag = 'scratch operand']
  %s0 = inlined_call_operand.vmem [shape: f32[32,576], index: 0, kind: input, shape index: {}]
  %s1 = inlined_call_operand.vmem [shape: f32[576,64], index: 1, kind: input, shape index: {}]
  %s2 = inlined_call_operand.vmem [shape: f32[1,64], index: 2, kind: input, shape index: {}]
  %s3 = inlined_call_operand.vmem [shape: f32[1,64], index: 3, kind: input, shape index: {}]
  %s4 = inlined_call_operand.vmem [shape: f32[1,64], index: 4, kind: input, shape index: {}]
  %s5 = inlined_call_operand.vmem [shape: f32[8,64], index: 5, kind: output, shape index: {}]
  %s6 = sld [smem:[#allocation0]]
  $region30: #{discriminator_forward.9} parent=0
    _
  %s8 = ssub.s32 1, %s6
  %s9 = scalar_select 0, %s8, %s6
  // Predicated region
  $region2: #{discriminator_forward.9} parent=0 // pred_check
    _
  $region3: #{discriminator_forward.9} parent=0 // pred_check_branch
    %11 = sbr.rel (0) target = $region5
  $region4: #{discriminator_forward.9} parent=0 // pred_region
    _
  $region5: #{discriminator_forward.9} parent=0 // pred_fallthru
    _
  // Predicated region
  $region6: #{discriminator_forward.9} parent=0 // pred_check
    _
  $region7: #{discriminator_forward.9} parent=0 // pred_check_branch
    %13 = sbr.rel (0) target = $region9
  $region8: #{discriminator_forward.9} parent=0 // pred_region
    _
  $region9: #{discriminator_forward.9} parent=0 // pred_fallthru
    _
  // Predicated region
  $region10: #{discriminator_forward.9} parent=0 // pred_check
    _
  $region11: #{discriminator_forward.9} parent=0 // pred_check_branch
    %15 = sbr.rel (0) target = $region13
  $region12: #{discriminator_forward.9} parent=0 // pred_region
    _
  $region13: #{discriminator_forward.9} parent=0 // pred_fallthru
    _
  // Predicated region
  $region14: #{discriminator_forward.9} parent=0 // pred_check
    _
  $region15: #{discriminator_forward.9} parent=0 // pred_check_branch
    %17 = sbr.rel (0) target = $region17
  $region16: #{discriminator_forward.9} parent=0 // pred_region
    _
  $region17: #{discriminator_forward.9} parent=0 // pred_fallthru
    _
  // Predicated region
  $region18: #{discriminator_forward.9} parent=0 // pred_check
    _
  $region19: #{discriminator_forward.9} parent=0 // pred_check_branch
    %19 = sbr.rel (0) target = $region21
  $region20: #{discriminator_forward.9} parent=0 // pred_region
    _
  $region21: #{discriminator_forward.9} parent=0 // pred_fallthru
    _
  %v20 = vld [vmem:[%s0] sm:$0xff]
  %v21 = vld [vmem:[%s0 + $0x8] sm:$0xff]
  %v22 = vld [vmem:[%s0 + $0x10] sm:$0xff]
  %v23 = vld [vmem:[%s0 + $0x18] sm:$0xff]
  %v24 = vld [vmem:[%s0 + $0x20] sm:$0xff]
  %v25 = vld [vmem:[%s0 + $0x28] sm:$0xff]
  %v26 = vld [vmem:[%s0 + $0x30] sm:$0xff]
  %v27 = vld [vmem:[%s0 + $0x38] sm:$0xff]
  %v28 = vld [vmem:[%s0 + $0x40] sm:$0xff]
  %v29 = vld [vmem:[%s0 + $0x48] sm:$0xff]
  %v30 = vld [vmem:[%s0 + $0x50] sm:$0xff]
  %v31 = vld [vmem:[%s0 + $0x58] sm:$0xff]
  %v32 = vld [vmem:[%s0 + $0x60] sm:$0xff]
  %v33 = vld [vmem:[%s0 + $0x68] sm:$0xff]
  %v34 = vld [vmem:[%s0 + $0x70] sm:$0xff]
  %v35 = vld [vmem:[%s0 + $0x78] sm:$0xff]
  %v36 = vld [vmem:[%s0 + $0x80] sm:$0xff]
  %v37 = vld [vmem:[%s0 + $0x88] sm:$0xff]
  %v38 = vld [vmem:[%s0 + $0x90] sm:$0xff]
  %v39 = vld [vmem:[%s0 + $0x98] sm:$0xff]
  %v40 = vld [vmem:[%s1] sm:$0xff]
  %v41 = vld [vmem:[%s1 + $0x8] sm:$0xff]
  %v42 = vld [vmem:[%s1 + $0x10] sm:$0xff]
  %v43 = vld [vmem:[%s1 + $0x18] sm:$0xff]
  %v44 = vld [vmem:[%s1 + $0x20] sm:$0xff]
  %v45 = vld [vmem:[%s1 + $0x28] sm:$0xff]
  %v46 = vld [vmem:[%s1 + $0x30] sm:$0xff]
  %v47 = vld [vmem:[%s1 + $0x38] sm:$0xff]
  %v48 = vld [vmem:[%s1 + $0x40] sm:$0xff]
  %v49 = vld [vmem:[%s1 + $0x48] sm:$0xff]
  %v50 = vld [vmem:[%s1 + $0x50] sm:$0xff]
  %v51 = vld [vmem:[%s1 + $0x58] sm:$0xff]
  %v52 = vld [vmem:[%s1 + $0x60] sm:$0xff]
  %v53 = vld [vmem:[%s1 + $0x68] sm:$0xff]
  %v54 = vld [vmem:[%s1 + $0x70] sm:$0xff]
  %v55 = vld [vmem:[%s1 + $0x78] sm:$0xff]
  %v56 = vld [vmem:[%s1 + $0x80] sm:$0xff]
  %v57 = vld [vmem:[%s1 + $0x88] sm:$0xff]
  %v58 = vld [vmem:[%s1 + $0x90] sm:$0xff]
  %v59 = vld [vmem:[%s1 + $0x98] sm:$0xff]
  %v60 = vld [vmem:[%s1 + $0xa0] sm:$0xff]
  %v61 = vld [vmem:[%s1 + $0xa8] sm:$0xff]
  %v62 = vld [vmem:[%s1 + $0xb0] sm:$0xff]
  %v63 = vld [vmem:[%s1 + $0xb8] sm:$0xff]
  %v64 = vld [vmem:[%s1 + $0xc0] sm:$0xff]
  %v65 = vld [vmem:[%s1 + $0xc8] sm:$0xff]
  %v66 = vld [vmem:[%s1 + $0xd0] sm:$0xff]
  %v67 = vld [vmem:[%s1 + $0xd8] sm:$0xff]
  %v68 = vld [vmem:[%s1 + $0xe0] sm:$0xff]
  %v69 = vld [vmem:[%s1 + $0xe8] sm:$0xff]
  %v70 = vld [vmem:[%s1 + $0xf0] sm:$0xff]
  %v71 = vld [vmem:[%s1 + $0xf8] sm:$0xff]
  %v72 = vld [vmem:[%s1 + $0x100] sm:$0xff]
  %v73 = vld [vmem:[%s1 + $0x108] sm:$0xff]
  %v74 = vld [vmem:[%s1 + $0x110] sm:$0xff]
  %v75 = vld [vmem:[%s1 + $0x118] sm:$0xff]
  %v76 = vld [vmem:[%s1 + $0x120] sm:$0xff]
  %v77 = vld [vmem:[%s1 + $0x128] sm:$0xff]
  %v78 = vld [vmem:[%s1 + $0x130] sm:$0xff]
  %v79 = vld [vmem:[%s1 + $0x138] sm:$0xff]
  %v80 = vld [vmem:[%s1 + $0x140] sm:$0xff]
  %v81 = vld [vmem:[%s1 + $0x148] sm:$0xff]
  %v82 = vld [vmem:[%s1 + $0x150] sm:$0xff]
  %v83 = vld [vmem:[%s1 + $0x158] sm:$0xff]
  %v84 = vld [vmem:[%s1 + $0x160] sm:$0xff]
  %v85 = vld [vmem:[%s1 + $0x168] sm:$0xff]
  %v86 = vld [vmem:[%s1 + $0x170] sm:$0xff]
  %v87 = vld [vmem:[%s1 + $0x178] sm:$0xff]
  %v88 = vld [vmem:[%s1 + $0x180] sm:$0xff]
  %v89 = vld [vmem:[%s1 + $0x188] sm:$0xff]
  %v90 = vld [vmem:[%s1 + $0x190] sm:$0xff]
  %v91 = vld [vmem:[%s1 + $0x198] sm:$0xff]
  %v92 = vld [vmem:[%s1 + $0x1a0] sm:$0xff]
  %v93 = vld [vmem:[%s1 + $0x1a8] sm:$0xff]
  %v94 = vld [vmem:[%s1 + $0x1b0] sm:$0xff]
  %v95 = vld [vmem:[%s1 + $0x1b8] sm:$0xff]
  %v96 = vld [vmem:[%s1 + $0x1c0] sm:$0xff]
  %v97 = vld [vmem:[%s1 + $0x1c8] sm:$0xff]
  %v98 = vld [vmem:[%s1 + $0x1d0] sm:$0xff]
  %v99 = vld [vmem:[%s1 + $0x1d8] sm:$0xff]
  %v100 = vld [vmem:[%s1 + $0x1e0] sm:$0xff]
  %v101 = vld [vmem:[%s1 + $0x1e8] sm:$0xff]
  %v102 = vld [vmem:[%s1 + $0x1f0] sm:$0xff]
  %v103 = vld [vmem:[%s1 + $0x1f8] sm:$0xff]
  %v104 = vld [vmem:[%s1 + $0x200] sm:$0xff]
  %v105 = vld [vmem:[%s1 + $0x208] sm:$0xff]
  %v106 = vld [vmem:[%s1 + $0x210] sm:$0xff]
  %v107 = vld [vmem:[%s1 + $0x218] sm:$0xff]
  %v108 = vld [vmem:[%s1 + $0x220] sm:$0xff]
  %v109 = vld [vmem:[%s1 + $0x228] sm:$0xff]
  %v110 = vld [vmem:[%s1 + $0x230] sm:$0xff]
  %v111 = vld [vmem:[%s1 + $0x238] sm:$0xff]
  %v112 = vld [vmem:[%s2] sm:$0x1]
  %v114 = vperm.slane %v112, 0
  %vm116 = vcmask 523264
  %v118 = vsel %vm116, %v24, 0
  %v121 = vsel %vm116, %v29, 0
  %v124 = vsel %vm116, %v34, 0
  %v127 = vsel %vm116, %v39, 0
  %129 = vmatpush.msra.mxu0 %v55
  %130 = vmatpush.msra.mxu0 %v54
  %131 = vmatpush.msra.mxu0 %v53
  %132 = vmatpush.msra.mxu0 %v52
  %133 = vmatpush.msra.mxu0 %v51
  %134 = vmatpush.msra.mxu0 %v50
  %135 = vmatpush.msra.mxu0 %v49
  %136 = vmatpush.msra.mxu0 %v48
  %137 = vmatpush.msra.mxu0 %v47
  %138 = vmatpush.msra.mxu0 %v46
  %139 = vmatpush.msra.mxu0 %v45
  %140 = vmatpush.msra.mxu0 %v44
  %141 = vmatpush.msra.mxu0 %v43
  %142 = vmatpush.msra.mxu0 %v42
  %143 = vmatpush.msra.mxu0 %v41
  %144 = vmatpush.msra.mxu0 %v40
  %145 = vmatmul.f32.gmra.mxu0 %v20
  %v146 = vpop.f32.mrf.mxu0
  %v147 = vadd.f32 %v114, %v146
  %148 = vmatmul.f32.gmra.mxu0 %v25
  %v149 = vpop.f32.mrf.mxu0
  %v150 = vadd.f32 %v114, %v149
  %151 = vmatmul.f32.gmra.mxu0 %v30
  %v152 = vpop.f32.mrf.mxu0
  %v153 = vadd.f32 %v114, %v152
  %154 = vmatmul.f32.gmra.mxu0 %v35
  %v155 = vpop.f32.mrf.mxu0
  %v156 = vadd.f32 %v114, %v155
  %157 = vdwg.mxu0
  %158 = vmatpush.msra.mxu0 %v71
  %159 = vmatpush.msra.mxu0 %v70
  %160 = vmatpush.msra.mxu0 %v69
  %161 = vmatpush.msra.mxu0 %v68
  %162 = vmatpush.msra.mxu0 %v67
  %163 = vmatpush.msra.mxu0 %v66
  %164 = vmatpush.msra.mxu0 %v65
  %165 = vmatpush.msra.mxu0 %v64
  %166 = vmatpush.msra.mxu0 %v63
  %167 = vmatpush.msra.mxu0 %v62
  %168 = vmatpush.msra.mxu0 %v61
  %169 = vmatpush.msra.mxu0 %v60
  %170 = vmatpush.msra.mxu0 %v59
  %171 = vmatpush.msra.mxu0 %v58
  %172 = vmatpush.msra.mxu0 %v57
  %173 = vmatpush.msra.mxu0 %v56
  %174 = vmatmul.f32.gmra.mxu0 %v21
  %v175 = vpop.f32.mrf.mxu0
  %v176 = vadd.f32 %v147, %v175
  %177 = vmatmul.f32.gmra.mxu0 %v26
  %v178 = vpop.f32.mrf.mxu0
  %v179 = vadd.f32 %v150, %v178
  %180 = vmatmul.f32.gmra.mxu0 %v31
  %v181 = vpop.f32.mrf.mxu0
  %v182 = vadd.f32 %v153, %v181
  %183 = vmatmul.f32.gmra.mxu0 %v36
  %v184 = vpop.f32.mrf.mxu0
  %v185 = vadd.f32 %v156, %v184
  %186 = vdwg.mxu0
  %187 = vmatpush.msra.mxu0 %v87
  %188 = vmatpush.msra.mxu0 %v86
  %189 = vmatpush.msra.mxu0 %v85
  %190 = vmatpush.msra.mxu0 %v84
  %191 = vmatpush.msra.mxu0 %v83
  %192 = vmatpush.msra.mxu0 %v82
  %193 = vmatpush.msra.mxu0 %v81
  %194 = vmatpush.msra.mxu0 %v80
  %195 = vmatpush.msra.mxu0 %v79
  %196 = vmatpush.msra.mxu0 %v78
  %197 = vmatpush.msra.mxu0 %v77
  %198 = vmatpush.msra.mxu0 %v76
  %199 = vmatpush.msra.mxu0 %v75
  %200 = vmatpush.msra.mxu0 %v74
  %201 = vmatpush.msra.mxu0 %v73
  %202 = vmatpush.msra.mxu0 %v72
  %203 = vmatmul.f32.gmra.mxu0 %v22
  %v204 = vpop.f32.mrf.mxu0
  %v205 = vadd.f32 %v176, %v204
  %206 = vmatmul.f32.gmra.mxu0 %v27
  %v207 = vpop.f32.mrf.mxu0
  %v208 = vadd.f32 %v179, %v207
  %209 = vmatmul.f32.gmra.mxu0 %v32
  %v210 = vpop.f32.mrf.mxu0
  %v211 = vadd.f32 %v182, %v210
  %212 = vmatmul.f32.gmra.mxu0 %v37
  %v213 = vpop.f32.mrf.mxu0
  %v214 = vadd.f32 %v185, %v213
  %215 = vdwg.mxu0
  %216 = vmatpush.msra.mxu0 %v103
  %217 = vmatpush.msra.mxu0 %v102
  %218 = vmatpush.msra.mxu0 %v101
  %219 = vmatpush.msra.mxu0 %v100
  %220 = vmatpush.msra.mxu0 %v99
  %221 = vmatpush.msra.mxu0 %v98
  %222 = vmatpush.msra.mxu0 %v97
  %223 = vmatpush.msra.mxu0 %v96
  %224 = vmatpush.msra.mxu0 %v95
  %225 = vmatpush.msra.mxu0 %v94
  %226 = vmatpush.msra.mxu0 %v93
  %227 = vmatpush.msra.mxu0 %v92
  %228 = vmatpush.msra.mxu0 %v91
  %229 = vmatpush.msra.mxu0 %v90
  %230 = vmatpush.msra.mxu0 %v89
  %231 = vmatpush.msra.mxu0 %v88
  %232 = vmatmul.f32.gmra.mxu0 %v23
  %v233 = vpop.f32.mrf.mxu0
  %v234 = vadd.f32 %v205, %v233
  %235 = vmatmul.f32.gmra.mxu0 %v28
  %v236 = vpop.f32.mrf.mxu0
  %v237 = vadd.f32 %v208, %v236
  %238 = vmatmul.f32.gmra.mxu0 %v33
  %v239 = vpop.f32.mrf.mxu0
  %v240 = vadd.f32 %v211, %v239
  %241 = vmatmul.f32.gmra.mxu0 %v38
  %v242 = vpop.f32.mrf.mxu0
  %v243 = vadd.f32 %v214, %v242
  %244 = vdwg.mxu0
  %245 = vmatpush.msra.mxu0 0.0
  %246 = vmatpush.msra.mxu0 0.0
  %247 = vmatpush.msra.mxu0 0.0
  %248 = vmatpush.msra.mxu0 0.0
  %249 = vmatpush.msra.mxu0 0.0
  %250 = vmatpush.msra.mxu0 0.0
  %251 = vmatpush.msra.mxu0 0.0
  %252 = vmatpush.msra.mxu0 0.0
  %253 = vmatpush.msra.mxu0 %v111
  %254 = vmatpush.msra.mxu0 %v110
  %255 = vmatpush.msra.mxu0 %v109
  %256 = vmatpush.msra.mxu0 %v108
  %257 = vmatpush.msra.mxu0 %v107
  %258 = vmatpush.msra.mxu0 %v106
  %259 = vmatpush.msra.mxu0 %v105
  %260 = vmatpush.msra.mxu0 %v104
  %261 = vmatmul.f32.gmra.mxu0 %v118
  %v262 = vpop.f32.mrf.mxu0
  %v263 = vadd.f32 %v234, %v262
  %264 = vmatmul.f32.gmra.mxu0 %v121
  %v265 = vpop.f32.mrf.mxu0
  %v266 = vadd.f32 %v237, %v265
  %267 = vmatmul.f32.gmra.mxu0 %v124
  %v268 = vpop.f32.mrf.mxu0
  %v269 = vadd.f32 %v240, %v268
  %270 = vmatmul.f32.gmra.mxu0 %v127
  %v271 = vpop.f32.mrf.mxu0
  %v272 = vadd.f32 %v243, %v271
  %273 = vdwg.mxu0
  %v274 = vsel %vm116, %v263, 0.0
  %v275 = vsel %vm116, %v266, 0.0
  %v276 = vadd.f32 %v274, %v275
  %v277 = vsel %vm116, %v269, 0.0
  %v278 = vadd.f32 %v276, %v277
  %v279 = vsel %vm116, %v272, 0.0
  %v280 = vadd.f32 %v278, %v279
  %v281 = vrot.slane %v280, 4
  %v282 = vadd.f32 %v280, %v281
  %v283 = vrot.slane %v282, 2
  %v284 = vadd.f32 %v282, %v283
  %v285 = vrot.slane %v284, 1
  %v286 = vadd.f32 %v284, %v285
  %v287 = vmul.f32 %v286, 0.03125
  %v288 = vsub.f32 %v263, %v287
  %v289 = vsub.f32 %v266, %v287
  %v290 = vsub.f32 %v269, %v287
  %v291 = vsub.f32 %v272, %v287
  %v292 = vmul.f32 %v288, %v288
  %v293 = vmul.f32 %v289, %v289
  %v294 = vmul.f32 %v290, %v290
  %v295 = vmul.f32 %v291, %v291
  %v296 = vsel %vm116, %v292, 0.0
  %v297 = vsel %vm116, %v293, 0.0
  %v298 = vadd.f32 %v296, %v297
  %v299 = vsel %vm116, %v294, 0.0
  %v300 = vadd.f32 %v298, %v299
  %v301 = vsel %vm116, %v295, 0.0
  %v302 = vadd.f32 %v300, %v301
  %v303 = vrot.slane %v302, 4
  %v304 = vadd.f32 %v302, %v303
  %v305 = vrot.slane %v304, 2
  %v306 = vadd.f32 %v304, %v305
  %v307 = vrot.slane %v306, 1
  %v308 = vadd.f32 %v306, %v307
  %v309 = vmul.f32 %v308, 0.03125
  %v310 = vld [vmem:[%s3] sm:$0x1]
  %v311 = vadd.f32 %v309, 1e-05
  %v312 = vrsqrt.pop %v311
  %v313 = vmul.f32 %v312, %v311
  %v314 = vmul.f32 %v313, %v312
  %v315 = vmul.f32 0.5, %v314
  %v316 = vsub.f32 1.5, %v315
  %v317 = vmul.f32 %v312, %v316
  %vm318 = vweird.f32 %v311
  %vm319 = vweird.f32 %v312
  %vm320 = vmor %vm318, %vm319
  %v321 = vsel %vm320, %v312, %v317
  %v322 = vmul.f32 %v310, %v321
  %v324 = vperm.slane %v322, 0
  %v326 = vmul.f32 %v288, %v324
  %v327 = vmul.f32 %v289, %v324
  %v328 = vmul.f32 %v290, %v324
  %v329 = vmul.f32 %v291, %v324
  %v330 = vld [vmem:[%s4] sm:$0x1]
  %v332 = vperm.slane %v330, 0
  %v334 = vadd.f32 %v326, %v332
  %v335 = vadd.f32 %v327, %v332
  %v336 = vadd.f32 %v328, %v332
  %v337 = vadd.f32 %v329, %v332
  %338 = vst.msk [vmem:[#allocation2] sm:$0xff] %vm116, %v334
  %339 = vst.msk [vmem:[#allocation2 + $0x8] sm:$0xff] %vm116, %v335
  %340 = vst.msk [vmem:[#allocation2 + $0x10] sm:$0xff] %vm116, %v336
  %341 = vst.msk [vmem:[#allocation2 + $0x18] sm:$0xff] %vm116, %v337
  %v342 = vld [vmem:[#allocation2] ss:$4 sm:$0xff]
  %s343 = scalar_lea.vmem [#allocation2], 1
  %v344 = vld [vmem:[%s343] ss:$4 sm:$0xff]
  %v345 = vmax.f32 %v342, %v344
  %s346 = scalar_lea.vmem [#allocation2], 2
  %v347 = vld [vmem:[%s346] ss:$4 sm:$0xff]
  %s348 = scalar_lea.vmem [#allocation2], 3
  %v349 = vld [vmem:[%s348] ss:$4 sm:$0xff]
  %v350 = vmax.f32 %v347, %v349
  %v351 = vmax.f32 %v345, %v350
  %vm352 = vcmp.ge.f32.partialorder %v351, 0.0
  %v353 = vmul.f32 %v351, 0.2
  %v354 = vsel %vm352, %v351, %v353
  %355 = vst.msk [vmem:[%s5] sm:$0xff] %vm116, %v354
  // Predicated region
  $region22: #{discriminator_forward.9} parent=0 // pred_check
    _
  $region23: #{discriminator_forward.9} parent=0 // pred_check_branch
    %357 = sbr.rel (0) target = $region25
  $region24: #{discriminator_forward.9} parent=0 // pred_region
    _
  $region25: #{discriminator_forward.9} parent=0 // pred_fallthru
    _
  // Predicated region
  $region26: #{discriminator_forward.9} parent=0 // pred_check
    _
  $region27: #{discriminator_forward.9} parent=0 // pred_check_branch
    %359 = sbr.rel (0) target = $region29
  $region28: #{discriminator_forward.9} parent=0 // pred_region
    _
  $region29: #{discriminator_forward.9} parent=0 // pred_fallthru
    _

// kernel: discriminator_forward.10
$region0: #{discriminator_forward.10}
  #allocation0 [shape = 'u32[]', space=smem, size = 0x4, offset = 0x4, fixed_abs, tag = 'smem constant byte address 0x4 - core index']
  #allocation1 [shape = 'u32[72,128]{1,0:T(1,128)}', space=vmem, size = 0x9000, scoped, tag = 'internal scratch']
  #allocation2 [shape = 'f32[8,64]{1,0:T(8,128)}', space=vmem, size = 0x1000, scoped, tag = 'scratch operand']
  %s0 = inlined_call_operand.vmem [shape: f32[8,576], index: 0, kind: input, shape index: {}]
  %s1 = inlined_call_operand.vmem [shape: f32[576,64], index: 1, kind: input, shape index: {}]
  %s2 = inlined_call_operand.vmem [shape: f32[1,64], index: 2, kind: input, shape index: {}]
  %s3 = inlined_call_operand.vmem [shape: f32[1,64], index: 3, kind: input, shape index: {}]
  %s4 = inlined_call_operand.vmem [shape: f32[1,64], index: 4, kind: input, shape index: {}]
  %s5 = inlined_call_operand.vmem [shape: f32[2,64], index: 5, kind: output, shape index: {}]
  %s6 = sld [smem:[#allocation0]]
  $region30: #{discriminator_forward.10} parent=0
    _
  %s8 = ssub.s32 1, %s6
  %s9 = scalar_select 0, %s8, %s6
  // Predicated region
  $region2: #{discriminator_forward.10} parent=0 // pred_check
    _
  $region3: #{discriminator_forward.10} parent=0 // pred_check_branch
    %11 = sbr.rel (0) target = $region5
  $region4: #{discriminator_forward.10} parent=0 // pred_region
    _
  $region5: #{discriminator_forward.10} parent=0 // pred_fallthru
    _
  // Predicated region
  $region6: #{discriminator_forward.10} parent=0 // pred_check
    _
  $region7: #{discriminator_forward.10} parent=0 // pred_check_branch
    %13 = sbr.rel (0) target = $region9
  $region8: #{discriminator_forward.10} parent=0 // pred_region
    _
  $region9: #{discriminator_forward.10} parent=0 // pred_fallthru
    _
  // Predicated region
  $region10: #{discriminator_forward.10} parent=0 // pred_check
    _
  $region11: #{discriminator_forward.10} parent=0 // pred_check_branch
    %15 = sbr.rel (0) target = $region13
  $region12: #{discriminator_forward.10} parent=0 // pred_region
    _
  $region13: #{discriminator_forward.10} parent=0 // pred_fallthru
    _
  // Predicated region
  $region14: #{discriminator_forward.10} parent=0 // pred_check
    _
  $region15: #{discriminator_forward.10} parent=0 // pred_check_branch
    %17 = sbr.rel (0) target = $region17
  $region16: #{discriminator_forward.10} parent=0 // pred_region
    _
  $region17: #{discriminator_forward.10} parent=0 // pred_fallthru
    _
  // Predicated region
  $region18: #{discriminator_forward.10} parent=0 // pred_check
    _
  $region19: #{discriminator_forward.10} parent=0 // pred_check_branch
    %19 = sbr.rel (0) target = $region21
  $region20: #{discriminator_forward.10} parent=0 // pred_region
    _
  $region21: #{discriminator_forward.10} parent=0 // pred_fallthru
    _
  %v20 = vld [vmem:[%s0] sm:$0xff]
  %v21 = vld [vmem:[%s0 + $0x8] sm:$0xff]
  %v22 = vld [vmem:[%s0 + $0x10] sm:$0xff]
  %v23 = vld [vmem:[%s0 + $0x18] sm:$0xff]
  %v24 = vld [vmem:[%s0 + $0x20] sm:$0xff]
  %v25 = vld [vmem:[%s1] sm:$0xff]
  %v26 = vld [vmem:[%s1 + $0x8] sm:$0xff]
  %v27 = vld [vmem:[%s1 + $0x10] sm:$0xff]
  %v28 = vld [vmem:[%s1 + $0x18] sm:$0xff]
  %v29 = vld [vmem:[%s1 + $0x20] sm:$0xff]
  %v30 = vld [vmem:[%s1 + $0x28] sm:$0xff]
  %v31 = vld [vmem:[%s1 + $0x30] sm:$0xff]
  %v32 = vld [vmem:[%s1 + $0x38] sm:$0xff]
  %v33 = vld [vmem:[%s1 + $0x40] sm:$0xff]
  %v34 = vld [vmem:[%s1 + $0x48] sm:$0xff]
  %v35 = vld [vmem:[%s1 + $0x50] sm:$0xff]
  %v36 = vld [vmem:[%s1 + $0x58] sm:$0xff]
  %v37 = vld [vmem:[%s1 + $0x60] sm:$0xff]
  %v38 = vld [vmem:[%s1 + $0x68] sm:$0xff]
  %v39 = vld [vmem:[%s1 + $0x70] sm:$0xff]
  %v40 = vld [vmem:[%s1 + $0x78] sm:$0xff]
  %v41 = vld [vmem:[%s1 + $0x80] sm:$0xff]
  %v42 = vld [vmem:[%s1 + $0x88] sm:$0xff]
  %v43 = vld [vmem:[%s1 + $0x90] sm:$0xff]
  %v44 = vld [vmem:[%s1 + $0x98] sm:$0xff]
  %v45 = vld [vmem:[%s1 + $0xa0] sm:$0xff]
  %v46 = vld [vmem:[%s1 + $0xa8] sm:$0xff]
  %v47 = vld [vmem:[%s1 + $0xb0] sm:$0xff]
  %v48 = vld [vmem:[%s1 + $0xb8] sm:$0xff]
  %v49 = vld [vmem:[%s1 + $0xc0] sm:$0xff]
  %v50 = vld [vmem:[%s1 + $0xc8] sm:$0xff]
  %v51 = vld [vmem:[%s1 + $0xd0] sm:$0xff]
  %v52 = vld [vmem:[%s1 + $0xd8] sm:$0xff]
  %v53 = vld [vmem:[%s1 + $0xe0] sm:$0xff]
  %v54 = vld [vmem:[%s1 + $0xe8] sm:$0xff]
  %v55 = vld [vmem:[%s1 + $0xf0] sm:$0xff]
  %v56 = vld [vmem:[%s1 + $0xf8] sm:$0xff]
  %v57 = vld [vmem:[%s1 + $0x100] sm:$0xff]
  %v58 = vld [vmem:[%s1 + $0x108] sm:$0xff]
  %v59 = vld [vmem:[%s1 + $0x110] sm:$0xff]
  %v60 = vld [vmem:[%s1 + $0x118] sm:$0xff]
  %v61 = vld [vmem:[%s1 + $0x120] sm:$0xff]
  %v62 = vld [vmem:[%s1 + $0x128] sm:$0xff]
  %v63 = vld [vmem:[%s1 + $0x130] sm:$0xff]
  %v64 = vld [vmem:[%s1 + $0x138] sm:$0xff]
  %v65 = vld [vmem:[%s1 + $0x140] sm:$0xff]
  %v66 = vld [vmem:[%s1 + $0x148] sm:$0xff]
  %v67 = vld [vmem:[%s1 + $0x150] sm:$0xff]
  %v68 = vld [vmem:[%s1 + $0x158] sm:$0xff]
  %v69 = vld [vmem:[%s1 + $0x160] sm:$0xff]
  %v70 = vld [vmem:[%s1 + $0x168] sm:$0xff]
  %v71 = vld [vmem:[%s1 + $0x170] sm:$0xff]
  %v72 = vld [vmem:[%s1 + $0x178] sm:$0xff]
  %v73 = vld [vmem:[%s1 + $0x180] sm:$0xff]
  %v74 = vld [vmem:[%s1 + $0x188] sm:$0xff]
  %v75 = vld [vmem:[%s1 + $0x190] sm:$0xff]
  %v76 = vld [vmem:[%s1 + $0x198] sm:$0xff]
  %v77 = vld [vmem:[%s1 + $0x1a0] sm:$0xff]
  %v78 = vld [vmem:[%s1 + $0x1a8] sm:$0xff]
  %v79 = vld [vmem:[%s1 + $0x1b0] sm:$0xff]
  %v80 = vld [vmem:[%s1 + $0x1b8] sm:$0xff]
  %v81 = vld [vmem:[%s1 + $0x1c0] sm:$0xff]
  %v82 = vld [vmem:[%s1 + $0x1c8] sm:$0xff]
  %v83 = vld [vmem:[%s1 + $0x1d0] sm:$0xff]
  %v84 = vld [vmem:[%s1 + $0x1d8] sm:$0xff]
  %v85 = vld [vmem:[%s1 + $0x1e0] sm:$0xff]
  %v86 = vld [vmem:[%s1 + $0x1e8] sm:$0xff]
  %v87 = vld [vmem:[%s1 + $0x1f0] sm:$0xff]
  %v88 = vld [vmem:[%s1 + $0x1f8] sm:$0xff]
  %v89 = vld [vmem:[%s1 + $0x200] sm:$0xff]
  %v90 = vld [vmem:[%s1 + $0x208] sm:$0xff]
  %v91 = vld [vmem:[%s1 + $0x210] sm:$0xff]
  %v92 = vld [vmem:[%s1 + $0x218] sm:$0xff]
  %v93 = vld [vmem:[%s1 + $0x220] sm:$0xff]
  %v94 = vld [vmem:[%s1 + $0x228] sm:$0xff]
  %v95 = vld [vmem:[%s1 + $0x230] sm:$0xff]
  %v96 = vld [vmem:[%s1 + $0x238] sm:$0xff]
  %v97 = vld [vmem:[%s2] sm:$0x1]
  %v99 = vperm.slane %v97, 0
  %vm101 = vcmask 523264
  %v103 = vsel %vm101, %v24, 0
  %105 = vmatpush.msra.mxu0 %v40
  %106 = vmatpush.msra.mxu0 %v39
  %107 = vmatpush.msra.mxu0 %v38
  %108 = vmatpush.msra.mxu0 %v37
  %109 = vmatpush.msra.mxu0 %v36
  %110 = vmatpush.msra.mxu0 %v35
  %111 = vmatpush.msra.mxu0 %v34
  %112 = vmatpush.msra.mxu0 %v33
  %113 = vmatpush.msra.mxu0 %v32
  %114 = vmatpush.msra.mxu0 %v31
  %115 = vmatpush.msra.mxu0 %v30
  %116 = vmatpush.msra.mxu0 %v29
  %117 = vmatpush.msra.mxu0 %v28
  %118 = vmatpush.msra.mxu0 %v27
  %119 = vmatpush.msra.mxu0 %v26
  %120 = vmatpush.msra.mxu0 %v25
  %121 = vmatmul.f32.gmra.mxu0 %v20
  %v122 = vpop.f32.mrf.mxu0
  %v123 = vadd.f32 %v99, %v122
  %124 = vdwg.mxu0
  %125 = vmatpush.msra.mxu0 %v56
  %126 = vmatpush.msra.mxu0 %v55
  %127 = vmatpush.msra.mxu0 %v54
  %128 = vmatpush.msra.mxu0 %v53
  %129 = vmatpush.msra.mxu0 %v52
  %130 = vmatpush.msra.mxu0 %v51
  %131 = vmatpush.msra.mxu0 %v50
  %132 = vmatpush.msra.mxu0 %v49
  %133 = vmatpush.msra.mxu0 %v48
  %134 = vmatpush.msra.mxu0 %v47
  %135 = vmatpush.msra.mxu0 %v46
  %136 = vmatpush.msra.mxu0 %v45
  %137 = vmatpush.msra.mxu0 %v44
  %138 = vmatpush.msra.mxu0 %v43
  %139 = vmatpush.msra.mxu0 %v42
  %140 = vmatpush.msra.mxu0 %v41
  %141 = vmatmul.f32.gmra.mxu0 %v21
  %v142 = vpop.f32.mrf.mxu0
  %v143 = vadd.f32 %v123, %v142
  %144 = vdwg.mxu0
  %145 = vmatpush.msra.mxu0 %v72
  %146 = vmatpush.msra.mxu0 %v71
  %147 = vmatpush.msra.mxu0 %v70
  %148 = vmatpush.msra.mxu0 %v69
  %149 = vmatpush.msra.mxu0 %v68
  %150 = vmatpush.msra.mxu0 %v67
  %151 = vmatpush.msra.mxu0 %v66
  %152 = vmatpush.msra.mxu0 %v65
  %153 = vmatpush.msra.mxu0 %v64
  %154 = vmatpush.msra.mxu0 %v63
  %155 = vmatpush.msra.mxu0 %v62
  %156 = vmatpush.msra.mxu0 %v61
  %157 = vmatpush.msra.mxu0 %v60
  %158 = vmatpush.msra.mxu0 %v59
  %159 = vmatpush.msra.mxu0 %v58
  %160 = vmatpush.msra.mxu0 %v57
  %161 = vmatmul.f32.gmra.mxu0 %v22
  %v162 = vpop.f32.mrf.mxu0
  %v163 = vadd.f32 %v143, %v162
  %164 = vdwg.mxu0
  %165 = vmatpush.msra.mxu0 %v88
  %166 = vmatpush.msra.mxu0 %v87
  %167 = vmatpush.msra.mxu0 %v86
  %168 = vmatpush.msra.mxu0 %v85
  %169 = vmatpush.msra.mxu0 %v84
  %170 = vmatpush.msra.mxu0 %v83
  %171 = vmatpush.msra.mxu0 %v82
  %172 = vmatpush.msra.mxu0 %v81
  %173 = vmatpush.msra.mxu0 %v80
  %174 = vmatpush.msra.mxu0 %v79
  %175 = vmatpush.msra.mxu0 %v78
  %176 = vmatpush.msra.mxu0 %v77
  %177 = vmatpush.msra.mxu0 %v76
  %178 = vmatpush.msra.mxu0 %v75
  %179 = vmatpush.msra.mxu0 %v74
  %180 = vmatpush.msra.mxu0 %v73
  %181 = vmatmul.f32.gmra.mxu0 %v23
  %v182 = vpop.f32.mrf.mxu0
  %v183 = vadd.f32 %v163, %v182
  %184 = vdwg.mxu0
  %185 = vmatpush.msra.mxu0 0.0
  %186 = vmatpush.msra.mxu0 0.0
  %187 = vmatpush.msra.mxu0 0.0
  %188 = vmatpush.msra.mxu0 0.0
  %189 = vmatpush.msra.mxu0 0.0
  %190 = vmatpush.msra.mxu0 0.0
  %191 = vmatpush.msra.mxu0 0.0
  %192 = vmatpush.msra.mxu0 0.0
  %193 = vmatpush.msra.mxu0 %v96
  %194 = vmatpush.msra.mxu0 %v95
  %195 = vmatpush.msra.mxu0 %v94
  %196 = vmatpush.msra.mxu0 %v93
  %197 = vmatpush.msra.mxu0 %v92
  %198 = vmatpush.msra.mxu0 %v91
  %199 = vmatpush.msra.mxu0 %v90
  %200 = vmatpush.msra.mxu0 %v89
  %201 = vmatmul.f32.gmra.mxu0 %v103
  %v202 = vpop.f32.mrf.mxu0
  %v203 = vadd.f32 %v183, %v202
  %204 = vdwg.mxu0
  %v205 = vsel %vm101, %v203, 0.0
  %v206 = vrot.slane %v205, 4
  %v207 = vadd.f32 %v205, %v206
  %v208 = vrot.slane %v207, 2
  %v209 = vadd.f32 %v207, %v208
  %v210 = vrot.slane %v209, 1
  %v211 = vadd.f32 %v209, %v210
  %v212 = vmul.f32 %v211, 0.125
  %v213 = vsub.f32 %v203, %v212
  %v214 = vmul.f32 %v213, %v213
  %v215 = vsel %vm101, %v214, 0.0
  %v216 = vrot.slane %v215, 4
  %v217 = vadd.f32 %v215, %v216
  %v218 = vrot.slane %v217, 2
  %v219 = vadd.f32 %v217, %v218
  %v220 = vrot.slane %v219, 1
  %v221 = vadd.f32 %v219, %v220
  %v222 = vmul.f32 %v221, 0.125
  %v223 = vld [vmem:[%s3] sm:$0x1]
  %v224 = vadd.f32 %v222, 1e-05
  %v225 = vrsqrt.pop %v224
  %v226 = vmul.f32 %v225, %v224
  %v227 = vmul.f32 %v226, %v225
  %v228 = vmul.f32 0.5, %v227
  %v229 = vsub.f32 1.5, %v228
  %v230 = vmul.f32 %v225, %v229
  %vm231 = vweird.f32 %v224
  %vm232 = vweird.f32 %v225
  %vm233 = vmor %vm231, %vm232
  %v234 = vsel %vm233, %v225, %v230
  %v235 = vmul.f32 %v223, %v234
  %v237 = vperm.slane %v235, 0
  %v239 = vmul.f32 %v213, %v237
  %v240 = vld [vmem:[%s4] sm:$0x1]
  %v242 = vperm.slane %v240, 0
  %v244 = vadd.f32 %v239, %v242
  %245 = vst.msk [vmem:[#allocation2] sm:$0xff] %vm101, %v244
  %v246 = vld [vmem:[#allocation2] ss:$4 sm:$0x3]
  %s247 = scalar_lea.vmem [#allocation2], 1
  %v248 = vld [vmem:[%s247] ss:$4 sm:$0x3]
  %v249 = vmax.f32 %v246, %v248
  %s250 = scalar_lea.vmem [#allocation2], 2
  %v251 = vld [vmem:[%s250] ss:$4 sm:$0x3]
  %s252 = scalar_lea.vmem [#allocation2], 3
  %v253 = vld [vmem:[%s252] ss:$4 sm:$0x3]
  %v254 = vmax.f32 %v251, %v253
  %v255 = vmax.f32 %v249, %v254
  %vm256 = vcmp.ge.f32.partialorder %v255, 0.0
  %v257 = vmul.f32 %v255, 0.2
  %v258 = vsel %vm256, %v255, %v257
  %vm259 = vcmask 517120
  %260 = vst.msk [vmem:[%s5] sm:$0x3] %vm259, %v258
  // Predicated region
  $region22: #{discriminator_forward.10} parent=0 // pred_check
    _
  $region23: #{discriminator_forward.10} parent=0 // pred_check_branch
    %262 = sbr.rel (0) target = $region25
  $region24: #{discriminator_forward.10} parent=0 // pred_region
    _
  $region25: #{discriminator_forward.10} parent=0 // pred_fallthru
    _
  // Predicated region
  $region26: #{discriminator_forward.10} parent=0 // pred_check
    _
  $region27: #{discriminator_forward.10} parent=0 // pred_check_branch
    %264 = sbr.rel (0) target = $region29
  $region28: #{discriminator_forward.10} parent=0 // pred_region
    _
  $region29: #{discriminator_forward.10} parent=0 // pred_fallthru
    _

// kernel: discriminator_forward.11
$region0: #{discriminator_forward.11}
  #allocation0 [shape = 'u32[]', space=smem, size = 0x4, offset = 0x4, fixed_abs, tag = 'smem constant byte address 0x4 - core index']
  #allocation1 [shape = 'u32[72,128]{1,0:T(1,128)}', space=vmem, size = 0x9000, scoped, tag = 'internal scratch']
  #allocation2 [shape = 'f32[1,1]{1,0:T(1,128)S(1)}', space=vmem, size = 0x200, scoped, tag = 'scoped memory for discriminator_forward.11']
  %s0 = inlined_call_operand.vmem [shape: f32[2,64], index: 0, kind: input, shape index: {}]
  %s1 = inlined_call_operand.vmem [shape: f32[64,1024], index: 1, kind: input, shape index: {}]
  %s2 = inlined_call_operand.vmem [shape: f32[1,1024], index: 2, kind: input, shape index: {}]
  %s3 = inlined_call_operand.vmem [shape: f32[1,1024], index: 3, kind: input, shape index: {}]
  %s4 = inlined_call_operand.<no memory space> [shape: f32[1,1], index: 4, kind: input, shape index: {}]
  %s5 = inlined_call_operand.vmem [shape: f32[2,1], index: 5, kind: output, shape index: {}]
  %s6 = sld [smem:[#allocation0]]
  $region30: #{discriminator_forward.11} parent=0
    _
  %s8 = ssub.s32 1, %s6
  %s9 = scalar_select 0, %s8, %s6
  %v10 = vstv %s4
  %11 = vst [vmem:[#allocation2] sm:$0x1] %v10
  // Predicated region
  $region2: #{discriminator_forward.11} parent=0 // pred_check
    _
  $region3: #{discriminator_forward.11} parent=0 // pred_check_branch
    %13 = sbr.rel (0) target = $region5
  $region4: #{discriminator_forward.11} parent=0 // pred_region
    _
  $region5: #{discriminator_forward.11} parent=0 // pred_fallthru
    _
  // Predicated region
  $region6: #{discriminator_forward.11} parent=0 // pred_check
    _
  $region7: #{discriminator_forward.11} parent=0 // pred_check_branch
    %15 = sbr.rel (0) target = $region9
  $region8: #{discriminator_forward.11} parent=0 // pred_region
    _
  $region9: #{discriminator_forward.11} parent=0 // pred_fallthru
    _
  // Predicated region
  $region10: #{discriminator_forward.11} parent=0 // pred_check
    _
  $region11: #{discriminator_forward.11} parent=0 // pred_check_branch
    %17 = sbr.rel (0) target = $region13
  $region12: #{discriminator_forward.11} parent=0 // pred_region
    _
  $region13: #{discriminator_forward.11} parent=0 // pred_fallthru
    _
  // Predicated region
  $region14: #{discriminator_forward.11} parent=0 // pred_check
    _
  $region15: #{discriminator_forward.11} parent=0 // pred_check_branch
    %19 = sbr.rel (0) target = $region17
  $region16: #{discriminator_forward.11} parent=0 // pred_region
    _
  $region17: #{discriminator_forward.11} parent=0 // pred_fallthru
    _
  // Predicated region
  $region18: #{discriminator_forward.11} parent=0 // pred_check
    _
  $region19: #{discriminator_forward.11} parent=0 // pred_check_branch
    %21 = sbr.rel (0) target = $region21
  $region20: #{discriminator_forward.11} parent=0 // pred_region
    _
  $region21: #{discriminator_forward.11} parent=0 // pred_fallthru
    _
  %v22 = vld [vmem:[%s0] sm:$0x3]
  %v23 = vld [vmem:[%s1] sm:$0xff]
  %v24 = vld [vmem:[%s1 + $0x8] sm:$0xff]
  %v25 = vld [vmem:[%s1 + $0x10] sm:$0xff]
  %v26 = vld [vmem:[%s1 + $0x18] sm:$0xff]
  %v27 = vld [vmem:[%s1 + $0x20] sm:$0xff]
  %v28 = vld [vmem:[%s1 + $0x28] sm:$0xff]
  %v29 = vld [vmem:[%s1 + $0x30] sm:$0xff]
  %v30 = vld [vmem:[%s1 + $0x38] sm:$0xff]
  %v31 = vld [vmem:[%s1 + $0x40] sm:$0xff]
  %v32 = vld [vmem:[%s1 + $0x48] sm:$0xff]
  %v33 = vld [vmem:[%s1 + $0x50] sm:$0xff]
  %v34 = vld [vmem:[%s1 + $0x58] sm:$0xff]
  %v35 = vld [vmem:[%s1 + $0x60] sm:$0xff]
  %v36 = vld [vmem:[%s1 + $0x68] sm:$0xff]
  %v37 = vld [vmem:[%s1 + $0x70] sm:$0xff]
  %v38 = vld [vmem:[%s1 + $0x78] sm:$0xff]
  %v39 = vld [vmem:[%s1 + $0x80] sm:$0xff]
  %v40 = vld [vmem:[%s1 + $0x88] sm:$0xff]
  %v41 = vld [vmem:[%s1 + $0x90] sm:$0xff]
  %v42 = vld [vmem:[%s1 + $0x98] sm:$0xff]
  %v43 = vld [vmem:[%s1 + $0xa0] sm:$0xff]
  %v44 = vld [vmem:[%s1 + $0xa8] sm:$0xff]
  %v45 = vld [vmem:[%s1 + $0xb0] sm:$0xff]
  %v46 = vld [vmem:[%s1 + $0xb8] sm:$0xff]
  %v47 = vld [vmem:[%s1 + $0xc0] sm:$0xff]
  %v48 = vld [vmem:[%s1 + $0xc8] sm:$0xff]
  %v49 = vld [vmem:[%s1 + $0xd0] sm:$0xff]
  %v50 = vld [vmem:[%s1 + $0xd8] sm:$0xff]
  %v51 = vld [vmem:[%s1 + $0xe0] sm:$0xff]
  %v52 = vld [vmem:[%s1 + $0xe8] sm:$0xff]
  %v53 = vld [vmem:[%s1 + $0xf0] sm:$0xff]
  %v54 = vld [vmem:[%s1 + $0xf8] sm:$0xff]
  %v55 = vld [vmem:[%s1 + $0x100] sm:$0xff]
  %v56 = vld [vmem:[%s1 + $0x108] sm:$0xff]
  %v57 = vld [vmem:[%s1 + $0x110] sm:$0xff]
  %v58 = vld [vmem:[%s1 + $0x118] sm:$0xff]
  %v59 = vld [vmem:[%s1 + $0x120] sm:$0xff]
  %v60 = vld [vmem:[%s1 + $0x128] sm:$0xff]
  %v61 = vld [vmem:[%s1 + $0x130] sm:$0xff]
  %v62 = vld [vmem:[%s1 + $0x138] sm:$0xff]
  %v63 = vld [vmem:[%s1 + $0x140] sm:$0xff]
  %v64 = vld [vmem:[%s1 + $0x148] sm:$0xff]
  %v65 = vld [vmem:[%s1 + $0x150] sm:$0xff]
  %v66 = vld [vmem:[%s1 + $0x158] sm:$0xff]
  %v67 = vld [vmem:[%s1 + $0x160] sm:$0xff]
  %v68 = vld [vmem:[%s1 + $0x168] sm:$0xff]
  %v69 = vld [vmem:[%s1 + $0x170] sm:$0xff]
  %v70 = vld [vmem:[%s1 + $0x178] sm:$0xff]
  %v71 = vld [vmem:[%s1 + $0x180] sm:$0xff]
  %v72 = vld [vmem:[%s1 + $0x188] sm:$0xff]
  %v73 = vld [vmem:[%s1 + $0x190] sm:$0xff]
  %v74 = vld [vmem:[%s1 + $0x198] sm:$0xff]
  %v75 = vld [vmem:[%s1 + $0x1a0] sm:$0xff]
  %v76 = vld [vmem:[%s1 + $0x1a8] sm:$0xff]
  %v77 = vld [vmem:[%s1 + $0x1b0] sm:$0xff]
  %v78 = vld [vmem:[%s1 + $0x1b8] sm:$0xff]
  %v79 = vld [vmem:[%s1 + $0x1c0] sm:$0xff]
  %v80 = vld [vmem:[%s1 + $0x1c8] sm:$0xff]
  %v81 = vld [vmem:[%s1 + $0x1d0] sm:$0xff]
  %v82 = vld [vmem:[%s1 + $0x1d8] sm:$0xff]
  %v83 = vld [vmem:[%s1 + $0x1e0] sm:$0xff]
  %v84 = vld [vmem:[%s1 + $0x1e8] sm:$0xff]
  %v85 = vld [vmem:[%s1 + $0x1f0] sm:$0xff]
  %v86 = vld [vmem:[%s1 + $0x1f8] sm:$0xff]
  %v87 = vld [vmem:[%s2] sm:$0xff]
  %v89 = vperm.slane %v87, 0
  %v90 = vperm.slane %v87, 1
  %v91 = vperm.slane %v87, 2
  %v92 = vperm.slane %v87, 3
  %v93 = vperm.slane %v87, 4
  %v94 = vperm.slane %v87, 5
  %v95 = vperm.slane %v87, 6
  %v96 = vperm.slane %v87, 7
  %vm105 = vcmask 523264
  %v107 = vsel %vm105, %v22, 0
  %109 = vmatpush.msra.mxu0 0.0
  %110 = vmatpush.msra.mxu0 0.0
  %111 = vmatpush.msra.mxu0 0.0
  %112 = vmatpush.msra.mxu0 0.0
  %113 = vmatpush.msra.mxu0 0.0
  %114 = vmatpush.msra.mxu0 0.0
  %115 = vmatpush.msra.mxu0 0.0
  %116 = vmatpush.msra.mxu0 0.0
  %117 = vmatpush.msra.mxu0 %v79
  %118 = vmatpush.msra.mxu0 %v71
  %119 = vmatpush.msra.mxu0 %v63
  %120 = vmatpush.msra.mxu0 %v55
  %121 = vmatpush.msra.mxu0 %v47
  %122 = vmatpush.msra.mxu0 %v39
  %123 = vmatpush.msra.mxu0 %v31
  %124 = vmatpush.msra.mxu0 %v23
  %125 = vmatmul.f32.gmra.mxu0 %v107
  %v126 = vpop.f32.mrf.mxu0
  %v127 = vadd.f32 %v89, %v126
  %128 = vdwg.mxu0
  %129 = vmatpush.msra.mxu0 0.0
  %130 = vmatpush.msra.mxu0 0.0
  %131 = vmatpush.msra.mxu0 0.0
  %132 = vmatpush.msra.mxu0 0.0
  %133 = vmatpush.msra.mxu0 0.0
  %134 = vmatpush.msra.mxu0 0.0
  %135 = vmatpush.msra.mxu0 0.0
  %136 = vmatpush.msra.mxu0 0.0
  %137 = vmatpush.msra.mxu0 %v80
  %138 = vmatpush.msra.mxu0 %v72
  %139 = vmatpush.msra.mxu0 %v64
  %140 = vmatpush.msra.mxu0 %v56
  %141 = vmatpush.msra.mxu0 %v48
  %142 = vmatpush.msra.mxu0 %v40
  %143 = vmatpush.msra.mxu0 %v32
  %144 = vmatpush.msra.mxu0 %v24
  %145 = vmatmul.f32.gmra.mxu0 %v107
  %v146 = vpop.f32.mrf.mxu0
  %v147 = vadd.f32 %v90, %v146
  %148 = vdwg.mxu0
  %149 = vmatpush.msra.mxu0 0.0
  %150 = vmatpush.msra.mxu0 0.0
  %151 = vmatpush.msra.mxu0 0.0
  %152 = vmatpush.msra.mxu0 0.0
  %153 = vmatpush.msra.mxu0 0.0
  %154 = vmatpush.msra.mxu0 0.0
  %155 = vmatpush.msra.mxu0 0.0
  %156 = vmatpush.msra.mxu0 0.0
  %157 = vmatpush.msra.mxu0 %v81
  %158 = vmatpush.msra.mxu0 %v73
  %159 = vmatpush.msra.mxu0 %v65
  %160 = vmatpush.msra.mxu0 %v57
  %161 = vmatpush.msra.mxu0 %v49
  %162 = vmatpush.msra.mxu0 %v41
  %163 = vmatpush.msra.mxu0 %v33
  %164 = vmatpush.msra.mxu0 %v25
  %165 = vmatmul.f32.gmra.mxu0 %v107
  %v166 = vpop.f32.mrf.mxu0
  %v167 = vadd.f32 %v91, %v166
  %168 = vdwg.mxu0
  %169 = vmatpush.msra.mxu0 0.0
  %170 = vmatpush.msra.mxu0 0.0
  %171 = vmatpush.msra.mxu0 0.0
  %172 = vmatpush.msra.mxu0 0.0
  %173 = vmatpush.msra.mxu0 0.0
  %174 = vmatpush.msra.mxu0 0.0
  %175 = vmatpush.msra.mxu0 0.0
  %176 = vmatpush.msra.mxu0 0.0
  %177 = vmatpush.msra.mxu0 %v82
  %178 = vmatpush.msra.mxu0 %v74
  %179 = vmatpush.msra.mxu0 %v66
  %180 = vmatpush.msra.mxu0 %v58
  %181 = vmatpush.msra.mxu0 %v50
  %182 = vmatpush.msra.mxu0 %v42
  %183 = vmatpush.msra.mxu0 %v34
  %184 = vmatpush.msra.mxu0 %v26
  %185 = vmatmul.f32.gmra.mxu0 %v107
  %v186 = vpop.f32.mrf.mxu0
  %v187 = vadd.f32 %v92, %v186
  %188 = vdwg.mxu0
  %189 = vmatpush.msra.mxu0 0.0
  %190 = vmatpush.msra.mxu0 0.0
  %191 = vmatpush.msra.mxu0 0.0
  %192 = vmatpush.msra.mxu0 0.0
  %193 = vmatpush.msra.mxu0 0.0
  %194 = vmatpush.msra.mxu0 0.0
  %195 = vmatpush.msra.mxu0 0.0
  %196 = vmatpush.msra.mxu0 0.0
  %197 = vmatpush.msra.mxu0 %v83
  %198 = vmatpush.msra.mxu0 %v75
  %199 = vmatpush.msra.mxu0 %v67
  %200 = vmatpush.msra.mxu0 %v59
  %201 = vmatpush.msra.mxu0 %v51
  %202 = vmatpush.msra.mxu0 %v43
  %203 = vmatpush.msra.mxu0 %v35
  %204 = vmatpush.msra.mxu0 %v27
  %205 = vmatmul.f32.gmra.mxu0 %v107
  %v206 = vpop.f32.mrf.mxu0
  %v207 = vadd.f32 %v93, %v206
  %208 = vdwg.mxu0
  %209 = vmatpush.msra.mxu0 0.0
  %210 = vmatpush.msra.mxu0 0.0
  %211 = vmatpush.msra.mxu0 0.0
  %212 = vmatpush.msra.mxu0 0.0
  %213 = vmatpush.msra.mxu0 0.0
  %214 = vmatpush.msra.mxu0 0.0
  %215 = vmatpush.msra.mxu0 0.0
  %216 = vmatpush.msra.mxu0 0.0
  %217 = vmatpush.msra.mxu0 %v84
  %218 = vmatpush.msra.mxu0 %v76
  %219 = vmatpush.msra.mxu0 %v68
  %220 = vmatpush.msra.mxu0 %v60
  %221 = vmatpush.msra.mxu0 %v52
  %222 = vmatpush.msra.mxu0 %v44
  %223 = vmatpush.msra.mxu0 %v36
  %224 = vmatpush.msra.mxu0 %v28
  %225 = vmatmul.f32.gmra.mxu0 %v107
  %v226 = vpop.f32.mrf.mxu0
  %v227 = vadd.f32 %v94, %v226
  %228 = vdwg.mxu0
  %229 = vmatpush.msra.mxu0 0.0
  %230 = vmatpush.msra.mxu0 0.0
  %231 = vmatpush.msra.mxu0 0.0
  %232 = vmatpush.msra.mxu0 0.0
  %233 = vmatpush.msra.mxu0 0.0
  %234 = vmatpush.msra.mxu0 0.0
  %235 = vmatpush.msra.mxu0 0.0
  %236 = vmatpush.msra.mxu0 0.0
  %237 = vmatpush.msra.mxu0 %v85
  %238 = vmatpush.msra.mxu0 %v77
  %239 = vmatpush.msra.mxu0 %v69
  %240 = vmatpush.msra.mxu0 %v61
  %241 = vmatpush.msra.mxu0 %v53
  %242 = vmatpush.msra.mxu0 %v45
  %243 = vmatpush.msra.mxu0 %v37
  %244 = vmatpush.msra.mxu0 %v29
  %245 = vmatmul.f32.gmra.mxu0 %v107
  %v246 = vpop.f32.mrf.mxu0
  %v247 = vadd.f32 %v95, %v246
  %248 = vdwg.mxu0
  %249 = vmatpush.msra.mxu0 0.0
  %250 = vmatpush.msra.mxu0 0.0
  %251 = vmatpush.msra.mxu0 0.0
  %252 = vmatpush.msra.mxu0 0.0
  %253 = vmatpush.msra.mxu0 0.0
  %254 = vmatpush.msra.mxu0 0.0
  %255 = vmatpush.msra.mxu0 0.0
  %256 = vmatpush.msra.mxu0 0.0
  %257 = vmatpush.msra.mxu0 %v86
  %258 = vmatpush.msra.mxu0 %v78
  %259 = vmatpush.msra.mxu0 %v70
  %260 = vmatpush.msra.mxu0 %v62
  %261 = vmatpush.msra.mxu0 %v54
  %262 = vmatpush.msra.mxu0 %v46
  %263 = vmatpush.msra.mxu0 %v38
  %264 = vmatpush.msra.mxu0 %v30
  %265 = vmatmul.f32.gmra.mxu0 %v107
  %v266 = vpop.f32.mrf.mxu0
  %v267 = vadd.f32 %v96, %v266
  %268 = vdwg.mxu0
  %vm269 = vcmp.ge.f32.partialorder %v127, 0.0
  %vm270 = vcmp.ge.f32.partialorder %v147, 0.0
  %vm271 = vcmp.ge.f32.partialorder %v167, 0.0
  %vm272 = vcmp.ge.f32.partialorder %v187, 0.0
  %vm273 = vcmp.ge.f32.partialorder %v207, 0.0
  %vm274 = vcmp.ge.f32.partialorder %v227, 0.0
  %vm275 = vcmp.ge.f32.partialorder %v247, 0.0
  %vm276 = vcmp.ge.f32.partialorder %v267, 0.0
  %v277 = vmul.f32 %v127, 0.2
  %v278 = vmul.f32 %v147, 0.2
  %v279 = vmul.f32 %v167, 0.2
  %v280 = vmul.f32 %v187, 0.2
  %v281 = vmul.f32 %v207, 0.2
  %v282 = vmul.f32 %v227, 0.2
  %v283 = vmul.f32 %v247, 0.2
  %v284 = vmul.f32 %v267, 0.2
  %v285 = vsel %vm269, %v127, %v277
  %v286 = vsel %vm270, %v147, %v278
  %v287 = vsel %vm271, %v167, %v279
  %v288 = vsel %vm272, %v187, %v280
  %v289 = vsel %vm273, %v207, %v281
  %v290 = vsel %vm274, %v227, %v282
  %v291 = vsel %vm275, %v247, %v283
  %v292 = vsel %vm276, %v267, %v284
  %v293 = vld [vmem:[%s3] sm:$0xff]
  %v295 = vperm.slane %v293, 0
  %v296 = vperm.slane %v293, 1
  %v297 = vperm.slane %v293, 2
  %v298 = vperm.slane %v293, 3
  %v299 = vperm.slane %v293, 4
  %v300 = vperm.slane %v293, 5
  %v301 = vperm.slane %v293, 6
  %v302 = vperm.slane %v293, 7
  %v311 = vmul.f32 %v285, %v295
  %v312 = vmul.f32 %v286, %v296
  %v313 = vmul.f32 %v287, %v297
  %v314 = vmul.f32 %v288, %v298
  %v315 = vmul.f32 %v289, %v299
  %v316 = vmul.f32 %v290, %v300
  %v317 = vmul.f32 %v291, %v301
  %v318 = vmul.f32 %v292, %v302
  %vm319 = vcmask 1041408
  %v320 = vsel %vm319, %v311, 0.0
  %v321 = vsel %vm319, %v312, 0.0
  %v322 = vadd.f32 %v320, %v321
  %v323 = vsel %vm319, %v313, 0.0
  %v324 = vadd.f32 %v322, %v323
  %v325 = vsel %vm319, %v314, 0.0
  %v326 = vadd.f32 %v324, %v325
  %v327 = vsel %vm319, %v315, 0.0
  %v328 = vadd.f32 %v326, %v327
  %v329 = vsel %vm319, %v316, 0.0
  %v330 = vadd.f32 %v328, %v329
  %v331 = vsel %vm319, %v317, 0.0
  %v332 = vadd.f32 %v330, %v331
  %v333 = vsel %vm319, %v318, 0.0
  %v334 = vadd.f32 %v332, %v333
  %335 = vadd.xlane.f32.xlu0 %v334
  %v336 = vpop.xlane.xlu0 %335
  %v337 = vld [vmem:[#allocation2] sm:$0x1]
  %v339 = vperm.slane %v337, 0
  %v341 = vadd.f32 %v336, %v339
  %vm342 = vcmask 1024
  %343 = vst.msk [vmem:[%s5] sm:$0x3] %vm342, %v341
  // Predicated region
  $region22: #{discriminator_forward.11} parent=0 // pred_check
    _
  $region23: #{discriminator_forward.11} parent=0 // pred_check_branch
    %345 = sbr.rel (0) target = $region25
  $region24: #{discriminator_forward.11} parent=0 // pred_region
    _
  $region25: #{discriminator_forward.11} parent=0 // pred_fallthru
    _
  // Predicated region
  $region26: #{discriminator_forward.11} parent=0 // pred_check
    _
  $region27: #{discriminator_forward.11} parent=0 // pred_check_branch
    %347 = sbr.rel (0) target = $region29
  $region28: #{discriminator_forward.11} parent=0 // pred_region
    _
  $region29: #{discriminator_forward.11} parent=0 // pred_fallthru
    _

</llo_original>
